<compile_context>
chip_gen: v7x
topology: tpu7x:2x2x1
jax: 0.10.0
libtpu: 0.0.40
codegen_flags: <defaults>
</compile_context>

<pallas_src>
import jax
import jax.numpy as jnp
from jax.experimental import pallas as pl
from jax.experimental.pallas import tpu as pltpu


_STRIDES = (2, 1, 2, 1)          # conv1..conv4 strides from the PyTorch module
_DEFAULT_BATCH_TILE = 16         # M = B_TILE*OH lands in 64..240 for the demo net


# ---------------------------------------------------------------------------
# The single fused Pallas kernel: whole forward pass for one batch tile.
# ---------------------------------------------------------------------------
def _fused_cnn_kernel(x_ref, *refs):
    """Ref layout (B = batch tile):
      x_ref : (B*H0, W0*C0)            batch-stacked input rows, channels fastest
      refs  : [S_1, H_1, b_1, ..., S_4, H_4, b_4, P, Wfc, bfc, out]
        S_l : (k_l, B*OH_l, B*Hin_l)   block-diagonal 0/1 row selector
                                        (vertical kernel shift + stride, per image)
        H_l : (k_l, Win_l*Cin_l, OW_l*Cout_l)  block-banded conv weights
        b_l : (1, OW_l*Cout_l)          bias tiled over output columns      (f32)
        P   : (B, B*OH_4)               per-image GAP row-sum selector
        Wfc : (OW_4*C_4, num_classes)   FC weight tiled over W, pre-scaled by
                                        1/(OH_4*OW_4) (folds the global mean, f32)
        bfc : (1, num_classes)                                              (f32)
        out : (B, num_classes)                                              (f32)
    """
    o_ref = refs[-1]
    p = refs[:-1]
    n_layers = (len(p) - 3) // 3
    cdt = x_ref.dtype                            # MXU operand dtype (bf16 or f32)

    a = x_ref[...]                               # [B*H0, W0*C0]
    for l in range(n_layers):
        s_ref, h_ref, b_ref = p[3 * l], p[3 * l + 1], p[3 * l + 2]
        k = s_ref.shape[0]
        acc = None
        for kh in range(k):                      # static unroll, k is tiny (3)
            # Row selection (exact: a single 1 per row), M = B*OH_l.
            rows = jnp.dot(s_ref[kh], a,
                           preferred_element_type=jnp.float32).astype(cdt)
            # Main conv matmul: [B*OH, Win*Cin] @ [Win*Cin, OW*Cout].
            term = jnp.dot(rows, h_ref[kh], preferred_element_type=jnp.float32)
            acc = term if acc is None else acc + term
        # TODO(synk): fold the kh terms into the contraction dim (one dot per
        # layer via lane-aligned scratch concat) if MXU issue count ever binds.
        a = jnp.maximum(acc + b_ref[...], 0.0).astype(cdt)   # bias + ReLU (VPU)

    p_ref, wfc_ref, bfc_ref = p[-3], p[-2], p[-1]
    # Per-image GAP (row-sum selector) + FC; mean factor is folded into Wfc.
    pooled = jnp.dot(p_ref[...], a, preferred_element_type=jnp.float32)
    logits = jnp.dot(pooled, wfc_ref[...], preferred_element_type=jnp.float32)
    o_ref[...] = logits + bfc_ref[...]           # one lane-dense store per tile


# ---------------------------------------------------------------------------
# Weight repacking (pure JAX, runs once per weight update, outside the forward)
# ---------------------------------------------------------------------------
def _row_select_matrix(out_rows, in_rows, stride, kh):
    i = jnp.arange(out_rows)
    s = jnp.zeros((out_rows, in_rows), jnp.float32)
    return s.at[i, stride * i + kh].set(1.0)


def _banded_weight_matrix(w, stride, w_in, w_out):
    # w: [k, k, Cin, Cout]  ->  [k, w_in*Cin, w_out*Cout]  (one matrix per kh)
    k, cin, cout = w.shape[0], w.shape[2], w.shape[3]
    j = jnp.arange(w_out)
    mats = []
    for kh in range(k):
        m = jnp.zeros((w_in, w_out, cin, cout), jnp.float32)
        for kw in range(k):
            m = m.at[stride * j + kw, j].set(
                jnp.broadcast_to(w[kh, kw], (w_out, cin, cout)))
        mats.append(m.transpose(0, 2, 1, 3).reshape(w_in * cin, w_out * cout))
    return jnp.stack(mats, axis=0)


def pack_params(params, in_hw=(32, 32), batch_tile=_DEFAULT_BATCH_TILE,
                dtype=jnp.bfloat16):
    """Repacks conv/fc weights for the fused kernel (once per weight update).
    `batch_tile` is baked into the block-diagonal selection matrices; `dtype`
    is the MXU operand dtype (bf16 recommended, f32 for verification)."""
    h, w = in_hw
    b = int(batch_tile)
    eye_b = jnp.eye(b, dtype=jnp.float32)
    layers = []
    for idx, stride in enumerate(_STRIDES, start=1):
        cw = params[f"conv{idx}_w"]              # [k, k, Cin, Cout]  (HWIO)
        cb = params[f"conv{idx}_b"]              # [Cout]
        k, cout = cw.shape[0], cw.shape[3]
        oh = (h - k) // stride + 1
        ow = (w - k) // stride + 1
        s_img = [_row_select_matrix(oh, h, stride, kh) for kh in range(k)]
        # Block-diagonal over the batch tile -> selection matmul has M = B*OH.
        s_bd = jnp.stack([jnp.kron(eye_b, s) for s in s_img], axis=0)
        h_mat = _banded_weight_matrix(cw, stride, w, ow)
        b_vec = jnp.tile(cb, ow).reshape(1, ow * cout)
        layers.append((s_bd.astype(dtype), h_mat.astype(dtype),
                       b_vec.astype(jnp.float32)))
        h, w = oh, ow
    # GAP (per image) + FC: P sums each image's OH_4 rows; the 1/(OH*OW) mean
    # and the spatial tiling over W are folded into the packed FC matrix.
    pool = jnp.kron(eye_b, jnp.ones((1, h), jnp.float32)).astype(dtype)
    fc_w = (jnp.tile(params["fc3_w"], (w, 1)) / float(h * w)).astype(jnp.float32)
    fc_b = params["fc3_b"].reshape(1, -1).astype(jnp.float32)
    return {"layers": layers, "pool": pool, "fc_w": fc_w, "fc_b": fc_b}


# ---------------------------------------------------------------------------
# Forward pass: a cheap layout op + ONE pallas_call over batch tiles
# ---------------------------------------------------------------------------
def _const_spec(shape):
    zeros = (0,) * len(shape)
    return pl.BlockSpec(tuple(shape), lambda i, _z=zeros: _z)


def model_forward(packed, x, data_format="NCHW"):
    """x is NCHW (PyTorch layout) by default; pass data_format="NHWC" to skip
    the transpose when the producer can supply channels-last data."""
    layers = packed["layers"]
    pool, fc_w, fc_b = packed["pool"], packed["fc_w"], packed["fc_b"]
    b_tile = pool.shape[0]
    cdt = layers[0][0].dtype
    in_h = layers[0][0].shape[2] // b_tile       # S_1 is (k, B*OH1, B*H0)
    in_wc = layers[0][1].shape[1]                # H_1 is (k, W0*C0, OW1*C1)

    if data_format == "NCHW":
        x = jnp.transpose(x, (0, 2, 3, 1))
    elif data_format != "NHWC":
        raise ValueError(f"unknown data_format {data_format!r}")
    n, h, w, c = x.shape
    # Correctness guard: input dims must match what pack_params baked in.
    assert h == in_h and w * c == in_wc, (
        f"input {x.shape} does not match packed params (H={in_h}, W*C={in_wc})")

    n_tiles = -(-n // b_tile)                    # cdiv
    n_pad = n_tiles * b_tile
    x2d = x.reshape(n, h, w * c).astype(cdt)     # channels fastest within a row
    if n_pad != n:
        x2d = jnp.concatenate(
            [x2d, jnp.zeros((n_pad - n, h, w * c), cdt)], axis=0)
    x2d = x2d.reshape(n_pad * h, w * c)          # batch-stacked rows

    flat = []
    for s_bd, h_mat, b_vec in layers:
        flat += [s_bd, h_mat, b_vec]
    flat += [pool, fc_w, fc_b]
    num_classes = fc_b.shape[1]

    in_specs = [pl.BlockSpec((b_tile * h, w * c), lambda i: (i, 0))]
    # Constant operands: constant index maps -> fetched once, never re-DMA'd.
    in_specs += [_const_spec(a.shape) for a in flat]
    out_specs = pl.BlockSpec((b_tile, num_classes), lambda i: (i, 0))

    out = pl.pallas_call(
        _fused_cnn_kernel,
        out_shape=jax.ShapeDtypeStruct((n_pad, num_classes), jnp.float32),
        grid_spec=pltpu.PrefetchScalarGridSpec(
            num_scalar_prefetch=0,
            grid=(n_tiles,),                     # one program per batch tile
            in_specs=in_specs,
            out_specs=out_specs,
        ),
        compiler_params=pltpu.CompilerParams(
            dimension_semantics=("parallel",),   # v7x: tiles split across 2 TCs
            vmem_limit_bytes=32 * 1024 * 1024,   # explicit headroom (v5e safe)
        ),
    )(x2d, *flat)
    return out[:n]


# ---------------------------------------------------------------------------
# Parameter init (conv weights kept as [k, k, Cin, Cout] = HWIO)
# NOTE: PyTorch stores Conv2d weights as [Cout, Cin, kh, kw]; transpose
#       (2, 3, 1, 0) when loading real checkpoints.  fc3_w here is [in, out].
# ---------------------------------------------------------------------------
def init_params(key, actions, num_classes):
    k1, f1, k2, f2, k3, f3, k4, f4 = actions
    specs = [("conv1", k1, 3, f1), ("conv2", k2, f1, f2),
             ("conv3", k3, f2, f3), ("conv4", k4, f3, f4)]
    params = {}
    keys = jax.random.split(key, len(specs) + 1)
    for (name, k, cin, cout), kk in zip(specs, keys[:-1]):
        scale = 1.0 / jnp.sqrt(float(k * k * cin))
        params[name + "_w"] = (
            jax.random.normal(kk, (k, k, cin, cout), jnp.float32) * scale)
        params[name + "_b"] = jnp.zeros((cout,), jnp.float32)
    params["fc3_w"] = (jax.random.normal(keys[-1], (f4, num_classes), jnp.float32)
                       / jnp.sqrt(float(f4)))
    params["fc3_b"] = jnp.zeros((num_classes,), jnp.float32)
    return params


# ---------------------------------------------------------------------------
# Pure-JAX reference of the PyTorch forward (for correctness checks)
# ---------------------------------------------------------------------------
def reference_forward(params, x_nchw):
    x = jnp.transpose(x_nchw, (0, 2, 3, 1))
    for idx, stride in enumerate(_STRIDES, start=1):
        w = params[f"conv{idx}_w"]
        b = params[f"conv{idx}_b"]
        x = jax.lax.conv_general_dilated(
            x, w, window_strides=(stride, stride), padding="VALID",
            dimension_numbers=("NHWC", "HWIO", "NHWC"),
            precision=jax.lax.Precision.HIGHEST)
        x = jnp.maximum(x + b, 0.0)
    pooled = jnp.mean(x, axis=(1, 2))
    return (jnp.dot(pooled, params["fc3_w"],
                    precision=jax.lax.Precision.HIGHEST) + params["fc3_b"])


if __name__ == "__main__":
    # actions = (kernel_1, filters_1, kernel_2, filters_2,
    #            kernel_3, filters_3, kernel_4, filters_4)
    actions = (3, 8, 3, 8, 3, 16, 3, 16)
    num_classes = 10

    key = jax.random.PRNGKey(0)
    pkey, xkey = jax.random.split(key)
    params = init_params(pkey, actions, num_classes)

    # Batch 32 = 2 grid steps of B_TILE=16 -> exercises batch tiling and keeps
    # both v7x TensorCores busy.  NCHW like PyTorch; 32x32 per get_final_dim.
    batch = 32
    x = jax.random.normal(xkey, (batch, 3, 32, 32), jnp.float32)
    ref = reference_forward(params, x)

    fwd = jax.jit(model_forward, static_argnames=("data_format",))

    # (1) all-f32 operands: tight check of the packing / kernel math.
    packed_f32 = pack_params(params, in_hw=(32, 32), batch_tile=16,
                             dtype=jnp.float32)
    out_f32 = jax.block_until_ready(fwd(packed_f32, x))
    assert out_f32.shape == (batch, num_classes), out_f32.shape
    assert bool(jnp.all(jnp.isfinite(out_f32)))
    err_f32 = float(jnp.max(jnp.abs(out_f32 - ref)))
    assert err_f32 < 5e-3, f"f32 mismatch vs reference: {err_f32}"

    # (2) bf16 operands (fast path): tolerance appropriate for bf16 inputs.
    packed_bf16 = pack_params(params, in_hw=(32, 32), batch_tile=16,
                              dtype=jnp.bfloat16)
    out_bf16 = jax.block_until_ready(fwd(packed_bf16, x))
    assert out_bf16.shape == (batch, num_classes), out_bf16.shape
    assert bool(jnp.all(jnp.isfinite(out_bf16)))
    err_bf16 = float(jnp.max(jnp.abs(out_bf16 - ref)))
    assert err_bf16 < 5e-2, f"bf16 mismatch vs reference: {err_bf16}"

    print("KERNEL_OK")
</pallas_src>

<mosaic_0001>
module attributes {stable_mosaic.version = 11 : i64} {
  func.func @_fused_cnn_kernel(%arg0: i32, %arg1: memref<512x96xf32, #tpu.memory_space<vmem>>, %arg2: memref<3x240x512xf32, #tpu.memory_space<vmem>>, %arg3: memref<3x96x120xf32, #tpu.memory_space<vmem>>, %arg4: memref<1x120xf32, #tpu.memory_space<vmem>>, %arg5: memref<3x208x240xf32, #tpu.memory_space<vmem>>, %arg6: memref<3x120x104xf32, #tpu.memory_space<vmem>>, %arg7: memref<1x104xf32, #tpu.memory_space<vmem>>, %arg8: memref<3x96x208xf32, #tpu.memory_space<vmem>>, %arg9: memref<3x104x96xf32, #tpu.memory_space<vmem>>, %arg10: memref<1x96xf32, #tpu.memory_space<vmem>>, %arg11: memref<3x64x96xf32, #tpu.memory_space<vmem>>, %arg12: memref<3x96x64xf32, #tpu.memory_space<vmem>>, %arg13: memref<1x64xf32, #tpu.memory_space<vmem>>, %arg14: memref<16x64xf32, #tpu.memory_space<vmem>>, %arg15: memref<64x10xf32, #tpu.memory_space<vmem>>, %arg16: memref<1x10xf32, #tpu.memory_space<vmem>>, %arg17: memref<16x10xf32, #tpu.memory_space<vmem>>) attributes {dimension_semantics = [#tpu.dimension_semantics<parallel>], iteration_bounds = array<i64: 2>, scalar_prefetch = 0 : i64, scratch_operands = 0 : i64, tpu.core_type = #tpu.core_type<tc>, window_params = [{transform_indices = @transform_0, window_bounds = array<i64: 512, 96>}, {pipeline_mode = #tpu.pipeline_mode<synchronous>, transform_indices = @transform_1, window_bounds = array<i64: 3, 240, 512>}, {pipeline_mode = #tpu.pipeline_mode<synchronous>, transform_indices = @transform_2, window_bounds = array<i64: 3, 96, 120>}, {pipeline_mode = #tpu.pipeline_mode<synchronous>, transform_indices = @transform_3, window_bounds = array<i64: 1, 120>}, {pipeline_mode = #tpu.pipeline_mode<synchronous>, transform_indices = @transform_4, window_bounds = array<i64: 3, 208, 240>}, {pipeline_mode = #tpu.pipeline_mode<synchronous>, transform_indices = @transform_5, window_bounds = array<i64: 3, 120, 104>}, {pipeline_mode = #tpu.pipeline_mode<synchronous>, transform_indices = @transform_6, window_bounds = array<i64: 1, 104>}, {pipeline_mode = #tpu.pipeline_mode<synchronous>, transform_indices = @transform_7, window_bounds = array<i64: 3, 96, 208>}, {pipeline_mode = #tpu.pipeline_mode<synchronous>, transform_indices = @transform_8, window_bounds = array<i64: 3, 104, 96>}, {pipeline_mode = #tpu.pipeline_mode<synchronous>, transform_indices = @transform_9, window_bounds = array<i64: 1, 96>}, {pipeline_mode = #tpu.pipeline_mode<synchronous>, transform_indices = @transform_10, window_bounds = array<i64: 3, 64, 96>}, {pipeline_mode = #tpu.pipeline_mode<synchronous>, transform_indices = @transform_11, window_bounds = array<i64: 3, 96, 64>}, {pipeline_mode = #tpu.pipeline_mode<synchronous>, transform_indices = @transform_12, window_bounds = array<i64: 1, 64>}, {pipeline_mode = #tpu.pipeline_mode<synchronous>, transform_indices = @transform_13, window_bounds = array<i64: 16, 64>}, {pipeline_mode = #tpu.pipeline_mode<synchronous>, transform_indices = @transform_14, window_bounds = array<i64: 64, 10>}, {pipeline_mode = #tpu.pipeline_mode<synchronous>, transform_indices = @transform_15, window_bounds = array<i64: 1, 10>}, {transform_indices = @transform_16, window_bounds = array<i64: 16, 10>}]} {
    %c0 = arith.constant 0 : index
    %c0_0 = arith.constant 0 : index
    %0 = vector.load %arg1[%c0, %c0_0] : memref<512x96xf32, #tpu.memory_space<vmem>>, vector<512x96xf32>
    %c0_1 = arith.constant 0 : index
    %c0_2 = arith.constant 0 : index
    %c0_3 = arith.constant 0 : index
    %1 = vector.load %arg2[%c0_1, %c0_2, %c0_3] : memref<3x240x512xf32, #tpu.memory_space<vmem>>, vector<1x240x512xf32>
    %2 = vector.shape_cast %1 : vector<1x240x512xf32> to vector<240x512xf32>
    %cst = arith.constant dense<0.000000e+00> : vector<240x96xf32>
    %3 = tpu.matmul %2, %0, %cst {dimension_numbers = #tpu.dot_dimension_numbers<[1], [0], [0], [1], [0, 0, 1, 1], [], []>} : vector<240x512xf32>, vector<512x96xf32>, vector<240x96xf32> -> vector<240x96xf32>
    %c0_4 = arith.constant 0 : index
    %c0_5 = arith.constant 0 : index
    %c0_6 = arith.constant 0 : index
    %4 = vector.load %arg3[%c0_4, %c0_5, %c0_6] : memref<3x96x120xf32, #tpu.memory_space<vmem>>, vector<1x96x120xf32>
    %5 = vector.shape_cast %4 : vector<1x96x120xf32> to vector<96x120xf32>
    %cst_7 = arith.constant dense<0.000000e+00> : vector<240x120xf32>
    %6 = tpu.matmul %3, %5, %cst_7 {dimension_numbers = #tpu.dot_dimension_numbers<[1], [0], [0], [1], [0, 0, 1, 1], [], []>} : vector<240x96xf32>, vector<96x120xf32>, vector<240x120xf32> -> vector<240x120xf32>
    %c1 = arith.constant 1 : index
    %c0_8 = arith.constant 0 : index
    %c0_9 = arith.constant 0 : index
    %7 = vector.load %arg2[%c1, %c0_8, %c0_9] : memref<3x240x512xf32, #tpu.memory_space<vmem>>, vector<1x240x512xf32>
    %8 = vector.shape_cast %7 : vector<1x240x512xf32> to vector<240x512xf32>
    %cst_10 = arith.constant dense<0.000000e+00> : vector<240x96xf32>
    %9 = tpu.matmul %8, %0, %cst_10 {dimension_numbers = #tpu.dot_dimension_numbers<[1], [0], [0], [1], [0, 0, 1, 1], [], []>} : vector<240x512xf32>, vector<512x96xf32>, vector<240x96xf32> -> vector<240x96xf32>
    %c1_11 = arith.constant 1 : index
    %c0_12 = arith.constant 0 : index
    %c0_13 = arith.constant 0 : index
    %10 = vector.load %arg3[%c1_11, %c0_12, %c0_13] : memref<3x96x120xf32, #tpu.memory_space<vmem>>, vector<1x96x120xf32>
    %11 = vector.shape_cast %10 : vector<1x96x120xf32> to vector<96x120xf32>
    %cst_14 = arith.constant dense<0.000000e+00> : vector<240x120xf32>
    %12 = tpu.matmul %9, %11, %cst_14 {dimension_numbers = #tpu.dot_dimension_numbers<[1], [0], [0], [1], [0, 0, 1, 1], [], []>} : vector<240x96xf32>, vector<96x120xf32>, vector<240x120xf32> -> vector<240x120xf32>
    %13 = arith.addf %6, %12 : vector<240x120xf32>
    %c2 = arith.constant 2 : index
    %c0_15 = arith.constant 0 : index
    %c0_16 = arith.constant 0 : index
    %14 = vector.load %arg2[%c2, %c0_15, %c0_16] : memref<3x240x512xf32, #tpu.memory_space<vmem>>, vector<1x240x512xf32>
    %15 = vector.shape_cast %14 : vector<1x240x512xf32> to vector<240x512xf32>
    %cst_17 = arith.constant dense<0.000000e+00> : vector<240x96xf32>
    %16 = tpu.matmul %15, %0, %cst_17 {dimension_numbers = #tpu.dot_dimension_numbers<[1], [0], [0], [1], [0, 0, 1, 1], [], []>} : vector<240x512xf32>, vector<512x96xf32>, vector<240x96xf32> -> vector<240x96xf32>
    %c2_18 = arith.constant 2 : index
    %c0_19 = arith.constant 0 : index
    %c0_20 = arith.constant 0 : index
    %17 = vector.load %arg3[%c2_18, %c0_19, %c0_20] : memref<3x96x120xf32, #tpu.memory_space<vmem>>, vector<1x96x120xf32>
    %18 = vector.shape_cast %17 : vector<1x96x120xf32> to vector<96x120xf32>
    %cst_21 = arith.constant dense<0.000000e+00> : vector<240x120xf32>
    %19 = tpu.matmul %16, %18, %cst_21 {dimension_numbers = #tpu.dot_dimension_numbers<[1], [0], [0], [1], [0, 0, 1, 1], [], []>} : vector<240x96xf32>, vector<96x120xf32>, vector<240x120xf32> -> vector<240x120xf32>
    %20 = arith.addf %13, %19 : vector<240x120xf32>
    %c0_22 = arith.constant 0 : index
    %c0_23 = arith.constant 0 : index
    %21 = vector.load %arg4[%c0_22, %c0_23] : memref<1x120xf32, #tpu.memory_space<vmem>>, vector<1x120xf32>
    %22 = vector.broadcast %21 : vector<1x120xf32> to vector<240x120xf32>
    %23 = arith.addf %20, %22 : vector<240x120xf32>
    %cst_24 = arith.constant 0.000000e+00 : f32
    %24 = vector.broadcast %cst_24 : f32 to vector<240x120xf32>
    %25 = arith.maximumf %23, %24 : vector<240x120xf32>
    %c0_25 = arith.constant 0 : index
    %c0_26 = arith.constant 0 : index
    %c0_27 = arith.constant 0 : index
    %26 = vector.load %arg5[%c0_25, %c0_26, %c0_27] : memref<3x208x240xf32, #tpu.memory_space<vmem>>, vector<1x208x240xf32>
    %27 = vector.shape_cast %26 : vector<1x208x240xf32> to vector<208x240xf32>
    %cst_28 = arith.constant dense<0.000000e+00> : vector<208x120xf32>
    %28 = tpu.matmul %27, %25, %cst_28 {dimension_numbers = #tpu.dot_dimension_numbers<[1], [0], [0], [1], [0, 0, 1, 1], [], []>} : vector<208x240xf32>, vector<240x120xf32>, vector<208x120xf32> -> vector<208x120xf32>
    %c0_29 = arith.constant 0 : index
    %c0_30 = arith.constant 0 : index
    %c0_31 = arith.constant 0 : index
    %29 = vector.load %arg6[%c0_29, %c0_30, %c0_31] : memref<3x120x104xf32, #tpu.memory_space<vmem>>, vector<1x120x104xf32>
    %30 = vector.shape_cast %29 : vector<1x120x104xf32> to vector<120x104xf32>
    %cst_32 = arith.constant dense<0.000000e+00> : vector<208x104xf32>
    %31 = tpu.matmul %28, %30, %cst_32 {dimension_numbers = #tpu.dot_dimension_numbers<[1], [0], [0], [1], [0, 0, 1, 1], [], []>} : vector<208x120xf32>, vector<120x104xf32>, vector<208x104xf32> -> vector<208x104xf32>
    %c1_33 = arith.constant 1 : index
    %c0_34 = arith.constant 0 : index
    %c0_35 = arith.constant 0 : index
    %32 = vector.load %arg5[%c1_33, %c0_34, %c0_35] : memref<3x208x240xf32, #tpu.memory_space<vmem>>, vector<1x208x240xf32>
    %33 = vector.shape_cast %32 : vector<1x208x240xf32> to vector<208x240xf32>
    %cst_36 = arith.constant dense<0.000000e+00> : vector<208x120xf32>
    %34 = tpu.matmul %33, %25, %cst_36 {dimension_numbers = #tpu.dot_dimension_numbers<[1], [0], [0], [1], [0, 0, 1, 1], [], []>} : vector<208x240xf32>, vector<240x120xf32>, vector<208x120xf32> -> vector<208x120xf32>
    %c1_37 = arith.constant 1 : index
    %c0_38 = arith.constant 0 : index
    %c0_39 = arith.constant 0 : index
    %35 = vector.load %arg6[%c1_37, %c0_38, %c0_39] : memref<3x120x104xf32, #tpu.memory_space<vmem>>, vector<1x120x104xf32>
    %36 = vector.shape_cast %35 : vector<1x120x104xf32> to vector<120x104xf32>
    %cst_40 = arith.constant dense<0.000000e+00> : vector<208x104xf32>
    %37 = tpu.matmul %34, %36, %cst_40 {dimension_numbers = #tpu.dot_dimension_numbers<[1], [0], [0], [1], [0, 0, 1, 1], [], []>} : vector<208x120xf32>, vector<120x104xf32>, vector<208x104xf32> -> vector<208x104xf32>
    %38 = arith.addf %31, %37 : vector<208x104xf32>
    %c2_41 = arith.constant 2 : index
    %c0_42 = arith.constant 0 : index
    %c0_43 = arith.constant 0 : index
    %39 = vector.load %arg5[%c2_41, %c0_42, %c0_43] : memref<3x208x240xf32, #tpu.memory_space<vmem>>, vector<1x208x240xf32>
    %40 = vector.shape_cast %39 : vector<1x208x240xf32> to vector<208x240xf32>
    %cst_44 = arith.constant dense<0.000000e+00> : vector<208x120xf32>
    %41 = tpu.matmul %40, %25, %cst_44 {dimension_numbers = #tpu.dot_dimension_numbers<[1], [0], [0], [1], [0, 0, 1, 1], [], []>} : vector<208x240xf32>, vector<240x120xf32>, vector<208x120xf32> -> vector<208x120xf32>
    %c2_45 = arith.constant 2 : index
    %c0_46 = arith.constant 0 : index
    %c0_47 = arith.constant 0 : index
    %42 = vector.load %arg6[%c2_45, %c0_46, %c0_47] : memref<3x120x104xf32, #tpu.memory_space<vmem>>, vector<1x120x104xf32>
    %43 = vector.shape_cast %42 : vector<1x120x104xf32> to vector<120x104xf32>
    %cst_48 = arith.constant dense<0.000000e+00> : vector<208x104xf32>
    %44 = tpu.matmul %41, %43, %cst_48 {dimension_numbers = #tpu.dot_dimension_numbers<[1], [0], [0], [1], [0, 0, 1, 1], [], []>} : vector<208x120xf32>, vector<120x104xf32>, vector<208x104xf32> -> vector<208x104xf32>
    %45 = arith.addf %38, %44 : vector<208x104xf32>
    %c0_49 = arith.constant 0 : index
    %c0_50 = arith.constant 0 : index
    %46 = vector.load %arg7[%c0_49, %c0_50] : memref<1x104xf32, #tpu.memory_space<vmem>>, vector<1x104xf32>
    %47 = vector.broadcast %46 : vector<1x104xf32> to vector<208x104xf32>
    %48 = arith.addf %45, %47 : vector<208x104xf32>
    %cst_51 = arith.constant 0.000000e+00 : f32
    %49 = vector.broadcast %cst_51 : f32 to vector<208x104xf32>
    %50 = arith.maximumf %48, %49 : vector<208x104xf32>
    %c0_52 = arith.constant 0 : index
    %c0_53 = arith.constant 0 : index
    %c0_54 = arith.constant 0 : index
    %51 = vector.load %arg8[%c0_52, %c0_53, %c0_54] : memref<3x96x208xf32, #tpu.memory_space<vmem>>, vector<1x96x208xf32>
    %52 = vector.shape_cast %51 : vector<1x96x208xf32> to vector<96x208xf32>
    %cst_55 = arith.constant dense<0.000000e+00> : vector<96x104xf32>
    %53 = tpu.matmul %52, %50, %cst_55 {dimension_numbers = #tpu.dot_dimension_numbers<[1], [0], [0], [1], [0, 0, 1, 1], [], []>} : vector<96x208xf32>, vector<208x104xf32>, vector<96x104xf32> -> vector<96x104xf32>
    %c0_56 = arith.constant 0 : index
    %c0_57 = arith.constant 0 : index
    %c0_58 = arith.constant 0 : index
    %54 = vector.load %arg9[%c0_56, %c0_57, %c0_58] : memref<3x104x96xf32, #tpu.memory_space<vmem>>, vector<1x104x96xf32>
    %55 = vector.shape_cast %54 : vector<1x104x96xf32> to vector<104x96xf32>
    %cst_59 = arith.constant dense<0.000000e+00> : vector<96x96xf32>
    %56 = tpu.matmul %53, %55, %cst_59 {dimension_numbers = #tpu.dot_dimension_numbers<[1], [0], [0], [1], [0, 0, 1, 1], [], []>} : vector<96x104xf32>, vector<104x96xf32>, vector<96x96xf32> -> vector<96x96xf32>
    %c1_60 = arith.constant 1 : index
    %c0_61 = arith.constant 0 : index
    %c0_62 = arith.constant 0 : index
    %57 = vector.load %arg8[%c1_60, %c0_61, %c0_62] : memref<3x96x208xf32, #tpu.memory_space<vmem>>, vector<1x96x208xf32>
    %58 = vector.shape_cast %57 : vector<1x96x208xf32> to vector<96x208xf32>
    %cst_63 = arith.constant dense<0.000000e+00> : vector<96x104xf32>
    %59 = tpu.matmul %58, %50, %cst_63 {dimension_numbers = #tpu.dot_dimension_numbers<[1], [0], [0], [1], [0, 0, 1, 1], [], []>} : vector<96x208xf32>, vector<208x104xf32>, vector<96x104xf32> -> vector<96x104xf32>
    %c1_64 = arith.constant 1 : index
    %c0_65 = arith.constant 0 : index
    %c0_66 = arith.constant 0 : index
    %60 = vector.load %arg9[%c1_64, %c0_65, %c0_66] : memref<3x104x96xf32, #tpu.memory_space<vmem>>, vector<1x104x96xf32>
    %61 = vector.shape_cast %60 : vector<1x104x96xf32> to vector<104x96xf32>
    %cst_67 = arith.constant dense<0.000000e+00> : vector<96x96xf32>
    %62 = tpu.matmul %59, %61, %cst_67 {dimension_numbers = #tpu.dot_dimension_numbers<[1], [0], [0], [1], [0, 0, 1, 1], [], []>} : vector<96x104xf32>, vector<104x96xf32>, vector<96x96xf32> -> vector<96x96xf32>
    %63 = arith.addf %56, %62 : vector<96x96xf32>
    %c2_68 = arith.constant 2 : index
    %c0_69 = arith.constant 0 : index
    %c0_70 = arith.constant 0 : index
    %64 = vector.load %arg8[%c2_68, %c0_69, %c0_70] : memref<3x96x208xf32, #tpu.memory_space<vmem>>, vector<1x96x208xf32>
    %65 = vector.shape_cast %64 : vector<1x96x208xf32> to vector<96x208xf32>
    %cst_71 = arith.constant dense<0.000000e+00> : vector<96x104xf32>
    %66 = tpu.matmul %65, %50, %cst_71 {dimension_numbers = #tpu.dot_dimension_numbers<[1], [0], [0], [1], [0, 0, 1, 1], [], []>} : vector<96x208xf32>, vector<208x104xf32>, vector<96x104xf32> -> vector<96x104xf32>
    %c2_72 = arith.constant 2 : index
    %c0_73 = arith.constant 0 : index
    %c0_74 = arith.constant 0 : index
    %67 = vector.load %arg9[%c2_72, %c0_73, %c0_74] : memref<3x104x96xf32, #tpu.memory_space<vmem>>, vector<1x104x96xf32>
    %68 = vector.shape_cast %67 : vector<1x104x96xf32> to vector<104x96xf32>
    %cst_75 = arith.constant dense<0.000000e+00> : vector<96x96xf32>
    %69 = tpu.matmul %66, %68, %cst_75 {dimension_numbers = #tpu.dot_dimension_numbers<[1], [0], [0], [1], [0, 0, 1, 1], [], []>} : vector<96x104xf32>, vector<104x96xf32>, vector<96x96xf32> -> vector<96x96xf32>
    %70 = arith.addf %63, %69 : vector<96x96xf32>
    %c0_76 = arith.constant 0 : index
    %c0_77 = arith.constant 0 : index
    %71 = vector.load %arg10[%c0_76, %c0_77] : memref<1x96xf32, #tpu.memory_space<vmem>>, vector<1x96xf32>
    %72 = vector.broadcast %71 : vector<1x96xf32> to vector<96x96xf32>
    %73 = arith.addf %70, %72 : vector<96x96xf32>
    %cst_78 = arith.constant 0.000000e+00 : f32
    %74 = vector.broadcast %cst_78 : f32 to vector<96x96xf32>
    %75 = arith.maximumf %73, %74 : vector<96x96xf32>
    %c0_79 = arith.constant 0 : index
    %c0_80 = arith.constant 0 : index
    %c0_81 = arith.constant 0 : index
    %76 = vector.load %arg11[%c0_79, %c0_80, %c0_81] : memref<3x64x96xf32, #tpu.memory_space<vmem>>, vector<1x64x96xf32>
    %77 = vector.shape_cast %76 : vector<1x64x96xf32> to vector<64x96xf32>
    %cst_82 = arith.constant dense<0.000000e+00> : vector<64x96xf32>
    %78 = tpu.matmul %77, %75, %cst_82 {dimension_numbers = #tpu.dot_dimension_numbers<[1], [0], [0], [1], [0, 0, 1, 1], [], []>} : vector<64x96xf32>, vector<96x96xf32>, vector<64x96xf32> -> vector<64x96xf32>
    %c0_83 = arith.constant 0 : index
    %c0_84 = arith.constant 0 : index
    %c0_85 = arith.constant 0 : index
    %79 = vector.load %arg12[%c0_83, %c0_84, %c0_85] : memref<3x96x64xf32, #tpu.memory_space<vmem>>, vector<1x96x64xf32>
    %80 = vector.shape_cast %79 : vector<1x96x64xf32> to vector<96x64xf32>
    %cst_86 = arith.constant dense<0.000000e+00> : vector<64x64xf32>
    %81 = tpu.matmul %78, %80, %cst_86 {dimension_numbers = #tpu.dot_dimension_numbers<[1], [0], [0], [1], [0, 0, 1, 1], [], []>} : vector<64x96xf32>, vector<96x64xf32>, vector<64x64xf32> -> vector<64x64xf32>
    %c1_87 = arith.constant 1 : index
    %c0_88 = arith.constant 0 : index
    %c0_89 = arith.constant 0 : index
    %82 = vector.load %arg11[%c1_87, %c0_88, %c0_89] : memref<3x64x96xf32, #tpu.memory_space<vmem>>, vector<1x64x96xf32>
    %83 = vector.shape_cast %82 : vector<1x64x96xf32> to vector<64x96xf32>
    %cst_90 = arith.constant dense<0.000000e+00> : vector<64x96xf32>
    %84 = tpu.matmul %83, %75, %cst_90 {dimension_numbers = #tpu.dot_dimension_numbers<[1], [0], [0], [1], [0, 0, 1, 1], [], []>} : vector<64x96xf32>, vector<96x96xf32>, vector<64x96xf32> -> vector<64x96xf32>
    %c1_91 = arith.constant 1 : index
    %c0_92 = arith.constant 0 : index
    %c0_93 = arith.constant 0 : index
    %85 = vector.load %arg12[%c1_91, %c0_92, %c0_93] : memref<3x96x64xf32, #tpu.memory_space<vmem>>, vector<1x96x64xf32>
    %86 = vector.shape_cast %85 : vector<1x96x64xf32> to vector<96x64xf32>
    %cst_94 = arith.constant dense<0.000000e+00> : vector<64x64xf32>
    %87 = tpu.matmul %84, %86, %cst_94 {dimension_numbers = #tpu.dot_dimension_numbers<[1], [0], [0], [1], [0, 0, 1, 1], [], []>} : vector<64x96xf32>, vector<96x64xf32>, vector<64x64xf32> -> vector<64x64xf32>
    %88 = arith.addf %81, %87 : vector<64x64xf32>
    %c2_95 = arith.constant 2 : index
    %c0_96 = arith.constant 0 : index
    %c0_97 = arith.constant 0 : index
    %89 = vector.load %arg11[%c2_95, %c0_96, %c0_97] : memref<3x64x96xf32, #tpu.memory_space<vmem>>, vector<1x64x96xf32>
    %90 = vector.shape_cast %89 : vector<1x64x96xf32> to vector<64x96xf32>
    %cst_98 = arith.constant dense<0.000000e+00> : vector<64x96xf32>
    %91 = tpu.matmul %90, %75, %cst_98 {dimension_numbers = #tpu.dot_dimension_numbers<[1], [0], [0], [1], [0, 0, 1, 1], [], []>} : vector<64x96xf32>, vector<96x96xf32>, vector<64x96xf32> -> vector<64x96xf32>
    %c2_99 = arith.constant 2 : index
    %c0_100 = arith.constant 0 : index
    %c0_101 = arith.constant 0 : index
    %92 = vector.load %arg12[%c2_99, %c0_100, %c0_101] : memref<3x96x64xf32, #tpu.memory_space<vmem>>, vector<1x96x64xf32>
    %93 = vector.shape_cast %92 : vector<1x96x64xf32> to vector<96x64xf32>
    %cst_102 = arith.constant dense<0.000000e+00> : vector<64x64xf32>
    %94 = tpu.matmul %91, %93, %cst_102 {dimension_numbers = #tpu.dot_dimension_numbers<[1], [0], [0], [1], [0, 0, 1, 1], [], []>} : vector<64x96xf32>, vector<96x64xf32>, vector<64x64xf32> -> vector<64x64xf32>
    %95 = arith.addf %88, %94 : vector<64x64xf32>
    %c0_103 = arith.constant 0 : index
    %c0_104 = arith.constant 0 : index
    %96 = vector.load %arg13[%c0_103, %c0_104] : memref<1x64xf32, #tpu.memory_space<vmem>>, vector<1x64xf32>
    %97 = vector.broadcast %96 : vector<1x64xf32> to vector<64x64xf32>
    %98 = arith.addf %95, %97 : vector<64x64xf32>
    %cst_105 = arith.constant 0.000000e+00 : f32
    %99 = vector.broadcast %cst_105 : f32 to vector<64x64xf32>
    %100 = arith.maximumf %98, %99 : vector<64x64xf32>
    %c0_106 = arith.constant 0 : index
    %c0_107 = arith.constant 0 : index
    %101 = vector.load %arg14[%c0_106, %c0_107] : memref<16x64xf32, #tpu.memory_space<vmem>>, vector<16x64xf32>
    %cst_108 = arith.constant dense<0.000000e+00> : vector<16x64xf32>
    %102 = tpu.matmul %101, %100, %cst_108 {dimension_numbers = #tpu.dot_dimension_numbers<[1], [0], [0], [1], [0, 0, 1, 1], [], []>} : vector<16x64xf32>, vector<64x64xf32>, vector<16x64xf32> -> vector<16x64xf32>
    %c0_109 = arith.constant 0 : index
    %c0_110 = arith.constant 0 : index
    %103 = vector.load %arg15[%c0_109, %c0_110] : memref<64x10xf32, #tpu.memory_space<vmem>>, vector<64x10xf32>
    %cst_111 = arith.constant dense<0.000000e+00> : vector<16x10xf32>
    %104 = tpu.matmul %102, %103, %cst_111 {dimension_numbers = #tpu.dot_dimension_numbers<[1], [0], [0], [1], [0, 0, 1, 1], [], []>} : vector<16x64xf32>, vector<64x10xf32>, vector<16x10xf32> -> vector<16x10xf32>
    %c0_112 = arith.constant 0 : index
    %c0_113 = arith.constant 0 : index
    %105 = vector.load %arg16[%c0_112, %c0_113] : memref<1x10xf32, #tpu.memory_space<vmem>>, vector<1x10xf32>
    %106 = vector.broadcast %105 : vector<1x10xf32> to vector<16x10xf32>
    %107 = arith.addf %104, %106 : vector<16x10xf32>
    %c0_114 = arith.constant 0 : index
    %c0_115 = arith.constant 0 : index
    %108 = vector.load %arg17[%c0_114, %c0_115] : memref<16x10xf32, #tpu.memory_space<vmem>>, vector<16x10xf32>
    tpu.vector_store %arg17[%c0_114, %c0_115], %107 {strides = array<i32>} : memref<16x10xf32, #tpu.memory_space<vmem>>, vector<16x10xf32>,
    return
  }
  func.func @transform_0(%arg0: i32) -> (i32, i32) {
    %c0_i32 = arith.constant 0 : i32
    %c0_i32_0 = arith.constant 0 : i32
    return %arg0, %c0_i32 : i32, i32
  }
  func.func @transform_1(%arg0: i32) -> (i32, i32, i32) {
    %c0_i32 = arith.constant 0 : i32
    %c0_i32_0 = arith.constant 0 : i32
    %c0_i32_1 = arith.constant 0 : i32
    %c0_i32_2 = arith.constant 0 : i32
    return %c0_i32, %c0_i32_0, %c0_i32_1 : i32, i32, i32
  }
  func.func @transform_2(%arg0: i32) -> (i32, i32, i32) {
    %c0_i32 = arith.constant 0 : i32
    %c0_i32_0 = arith.constant 0 : i32
    %c0_i32_1 = arith.constant 0 : i32
    %c0_i32_2 = arith.constant 0 : i32
    return %c0_i32, %c0_i32_0, %c0_i32_1 : i32, i32, i32
  }
  func.func @transform_3(%arg0: i32) -> (i32, i32) {
    %c0_i32 = arith.constant 0 : i32
    %c0_i32_0 = arith.constant 0 : i32
    %c0_i32_1 = arith.constant 0 : i32
    return %c0_i32, %c0_i32_0 : i32, i32
  }
  func.func @transform_4(%arg0: i32) -> (i32, i32, i32) {
    %c0_i32 = arith.constant 0 : i32
    %c0_i32_0 = arith.constant 0 : i32
    %c0_i32_1 = arith.constant 0 : i32
    %c0_i32_2 = arith.constant 0 : i32
    return %c0_i32, %c0_i32_0, %c0_i32_1 : i32, i32, i32
  }
  func.func @transform_5(%arg0: i32) -> (i32, i32, i32) {
    %c0_i32 = arith.constant 0 : i32
    %c0_i32_0 = arith.constant 0 : i32
    %c0_i32_1 = arith.constant 0 : i32
    %c0_i32_2 = arith.constant 0 : i32
    return %c0_i32, %c0_i32_0, %c0_i32_1 : i32, i32, i32
  }
  func.func @transform_6(%arg0: i32) -> (i32, i32) {
    %c0_i32 = arith.constant 0 : i32
    %c0_i32_0 = arith.constant 0 : i32
    %c0_i32_1 = arith.constant 0 : i32
    return %c0_i32, %c0_i32_0 : i32, i32
  }
  func.func @transform_7(%arg0: i32) -> (i32, i32, i32) {
    %c0_i32 = arith.constant 0 : i32
    %c0_i32_0 = arith.constant 0 : i32
    %c0_i32_1 = arith.constant 0 : i32
    %c0_i32_2 = arith.constant 0 : i32
    return %c0_i32, %c0_i32_0, %c0_i32_1 : i32, i32, i32
  }
  func.func @transform_8(%arg0: i32) -> (i32, i32, i32) {
    %c0_i32 = arith.constant 0 : i32
    %c0_i32_0 = arith.constant 0 : i32
    %c0_i32_1 = arith.constant 0 : i32
    %c0_i32_2 = arith.constant 0 : i32
    return %c0_i32, %c0_i32_0, %c0_i32_1 : i32, i32, i32
  }
  func.func @transform_9(%arg0: i32) -> (i32, i32) {
    %c0_i32 = arith.constant 0 : i32
    %c0_i32_0 = arith.constant 0 : i32
    %c0_i32_1 = arith.constant 0 : i32
    return %c0_i32, %c0_i32_0 : i32, i32
  }
  func.func @transform_10(%arg0: i32) -> (i32, i32, i32) {
    %c0_i32 = arith.constant 0 : i32
    %c0_i32_0 = arith.constant 0 : i32
    %c0_i32_1 = arith.constant 0 : i32
    %c0_i32_2 = arith.constant 0 : i32
    return %c0_i32, %c0_i32_0, %c0_i32_1 : i32, i32, i32
  }
  func.func @transform_11(%arg0: i32) -> (i32, i32, i32) {
    %c0_i32 = arith.constant 0 : i32
    %c0_i32_0 = arith.constant 0 : i32
    %c0_i32_1 = arith.constant 0 : i32
    %c0_i32_2 = arith.constant 0 : i32
    return %c0_i32, %c0_i32_0, %c0_i32_1 : i32, i32, i32
  }
  func.func @transform_12(%arg0: i32) -> (i32, i32) {
    %c0_i32 = arith.constant 0 : i32
    %c0_i32_0 = arith.constant 0 : i32
    %c0_i32_1 = arith.constant 0 : i32
    return %c0_i32, %c0_i32_0 : i32, i32
  }
  func.func @transform_13(%arg0: i32) -> (i32, i32) {
    %c0_i32 = arith.constant 0 : i32
    %c0_i32_0 = arith.constant 0 : i32
    %c0_i32_1 = arith.constant 0 : i32
    return %c0_i32, %c0_i32_0 : i32, i32
  }
  func.func @transform_14(%arg0: i32) -> (i32, i32) {
    %c0_i32 = arith.constant 0 : i32
    %c0_i32_0 = arith.constant 0 : i32
    %c0_i32_1 = arith.constant 0 : i32
    return %c0_i32, %c0_i32_0 : i32, i32
  }
  func.func @transform_15(%arg0: i32) -> (i32, i32) {
    %c0_i32 = arith.constant 0 : i32
    %c0_i32_0 = arith.constant 0 : i32
    %c0_i32_1 = arith.constant 0 : i32
    return %c0_i32, %c0_i32_0 : i32, i32
  }
  func.func @transform_16(%arg0: i32) -> (i32, i32) {
    %c0_i32 = arith.constant 0 : i32
    %c0_i32_0 = arith.constant 0 : i32
    return %arg0, %c0_i32 : i32, i32
  }
}

</mosaic_0001>

<llo_original>
// kernel: model_forward.1
$region0: #{model_forward.1}
  #allocation0 [shape = 'u32[]', space=smem, size = 0x4, offset = 0x4, fixed_abs, tag = 'smem constant byte address 0x4 - core index']
  #allocation1 [shape = 'u32[144,128]{1,0:T(1,128)}', space=vmem, size = 0x12000, scoped, tag = 'internal scratch']
  %s0 = inlined_call_operand.vmem [shape: f32[1024,96], index: 0, kind: input, shape index: {}]
  %s1 = inlined_call_operand.vmem [shape: f32[3,240,512], index: 1, kind: input, shape index: {}]
  %s2 = inlined_call_operand.vmem [shape: f32[3,96,120], index: 2, kind: input, shape index: {}]
  %s3 = inlined_call_operand.vmem [shape: f32[1,120], index: 3, kind: input, shape index: {}]
  %s4 = inlined_call_operand.vmem [shape: f32[3,208,240], index: 4, kind: input, shape index: {}]
  %s5 = inlined_call_operand.vmem [shape: f32[3,120,104], index: 5, kind: input, shape index: {}]
  %s6 = inlined_call_operand.vmem [shape: f32[1,104], index: 6, kind: input, shape index: {}]
  %s7 = inlined_call_operand.vmem [shape: f32[3,96,208], index: 7, kind: input, shape index: {}]
  %s8 = inlined_call_operand.vmem [shape: f32[3,104,96], index: 8, kind: input, shape index: {}]
  %s9 = inlined_call_operand.vmem [shape: f32[1,96], index: 9, kind: input, shape index: {}]
  %s10 = inlined_call_operand.vmem [shape: f32[3,64,96], index: 10, kind: input, shape index: {}]
  %s11 = inlined_call_operand.vmem [shape: f32[3,96,64], index: 11, kind: input, shape index: {}]
  %s12 = inlined_call_operand.vmem [shape: f32[1,64], index: 12, kind: input, shape index: {}]
  %s13 = inlined_call_operand.vmem [shape: f32[16,64], index: 13, kind: input, shape index: {}]
  %s14 = inlined_call_operand.vmem [shape: f32[64,10], index: 14, kind: input, shape index: {}]
  %s15 = inlined_call_operand.vmem [shape: f32[1,10], index: 15, kind: input, shape index: {}]
  %s16 = inlined_call_operand.vmem [shape: f32[32,10], index: 16, kind: output, shape index: {}]
  %s17 = sld [smem:[#allocation0]]
  $region97: #{model_forward.1} parent=0
    _
  %s19 = ssub.s32 1, %s17
  %s20 = scalar_select 0, %s19, %s17
  loop: start=0, step=1, limit=4
  $region2: #{model_forward.1} parent=0 // loop_pre_header
    _
  $region3: #{model_forward.1} parent=0 // loop_header
    %s22 = sphi 0, %s26
    %p23 = scmp.ge.s32.totalorder %s22, 4
    %s32 = sphi 0, %s34
    %s35 = sphi 0, %s32
    %s36 = sphi 0, %s35
    %s52 = sphi 0, %s36
    %s56 = sphi 0, %s56
    %s58 = sphi 0, %s56
    %s59 = sphi 0, %s58
    %s73 = sphi 0, %s59
    %s77 = sphi 0, %s77
    %s79 = sphi 0, %s77
    %s80 = sphi 0, %s79
    %s94 = sphi 0, %s80
    %s98 = sphi 0, %s98
    %s100 = sphi 0, %s98
    %s101 = sphi 0, %s100
    %s115 = sphi 0, %s101
    %s119 = sphi 0, %s119
    %s121 = sphi 0, %s119
    %s122 = sphi 0, %s121
    %s136 = sphi 0, %s122
    %s140 = sphi 0, %s140
    %s142 = sphi 0, %s140
    %s143 = sphi 0, %s142
    %s157 = sphi 0, %s143
    %s161 = sphi 0, %s161
    %s163 = sphi 0, %s161
    %s164 = sphi 0, %s163
    %s178 = sphi 0, %s164
    %s182 = sphi 0, %s182
    %s184 = sphi 0, %s182
    %s185 = sphi 0, %s184
    %s199 = sphi 0, %s185
    %s203 = sphi 0, %s203
    %s205 = sphi 0, %s203
    %s206 = sphi 0, %s205
    %s220 = sphi 0, %s206
    %s224 = sphi 0, %s224
    %s226 = sphi 0, %s224
    %s227 = sphi 0, %s226
    %s241 = sphi 0, %s227
    %s245 = sphi 0, %s245
    %s247 = sphi 0, %s245
    %s248 = sphi 0, %s247
    %s262 = sphi 0, %s248
    %s266 = sphi 0, %s266
    %s268 = sphi 0, %s266
    %s269 = sphi 0, %s268
    %s283 = sphi 0, %s269
    %s287 = sphi 0, %s287
    %s289 = sphi 0, %s287
    %s290 = sphi 0, %s289
    %s304 = sphi 0, %s290
    %s308 = sphi 0, %s308
    %s310 = sphi 0, %s308
    %s311 = sphi 0, %s310
    %s325 = sphi 0, %s311
    %s329 = sphi 0, %s329
    %s331 = sphi 0, %s329
    %s332 = sphi 0, %s331
    %s346 = sphi 0, %s332
    %s350 = sphi 0, %s350
    %s352 = sphi 0, %s350
    %s353 = sphi 0, %s352
    %s367 = sphi 0, %s353
    %s373 = sphi 0, %s375
    %s376 = sphi 0, %s373
    %s377 = sphi 0, %s376
    %s393 = sphi 0, %s377
  $region4: #{model_forward.1} parent=0 // loop_header_branch
    %25 = sbr.rel (%p23) target = $region8
  $region5: #{model_forward.1} parent=0 // loop_body
    %s27 = ssub.s32 %s22, 1
    %s28 = ssub.s32 %s22, 2
    %s29 = sadd.s32 %s22, 1
    %s30 = ssub.s32 %s22, %s29
    %p31 = scmp.eq.s32.totalorder %s30, 0
    %s33 = sadd.s32 %s32, 1
    %s34 = scalar_select %p31, %s32, %s33
    %p37 = pneg %p31
    %p38 = scmp.eq.s32.totalorder %s22, 1
    %p39 = por %p37, %p38
    %p40 = scmp.ne.s32.totalorder %s32, %s35
    %p41 = scmp.eq.s32.totalorder %s22, 0
    %p42 = por %p40, %p41
    %p43 = scmp.ne.s32.totalorder %s32, %s35
    %p44 = scmp.eq.s32.totalorder %s27, 1
    %p45 = por %p43, %p44
    %p46 = scmp.ne.s32.totalorder %s35, %s36
    %p47 = scmp.eq.s32.totalorder %s27, 0
    %p48 = por %p46, %p47
    %p49 = scmp.ne.s32.totalorder %s35, %s36
    %p50 = scmp.eq.s32.totalorder %s28, 1
    %p51 = por %p49, %p50
    %p53 = scmp.ne.s32.totalorder %s36, %s52
    %p54 = scmp.eq.s32.totalorder %s28, 0
    %p55 = por %p53, %p54
    %s57 = sadd.s32 %s56, 1
    %p60 = scmp.eq.s32.totalorder %s22, 1
    %p61 = scmp.ne.s32.totalorder %s56, %s58
    %p62 = scmp.eq.s32.totalorder %s22, 0
    %p63 = por %p61, %p62
    %p64 = scmp.ne.s32.totalorder %s56, %s58
    %p65 = scmp.eq.s32.totalorder %s27, 1
    %p66 = por %p64, %p65
    %p67 = scmp.ne.s32.totalorder %s58, %s59
    %p68 = scmp.eq.s32.totalorder %s27, 0
    %p69 = por %p67, %p68
    %p70 = scmp.ne.s32.totalorder %s58, %s59
    %p71 = scmp.eq.s32.totalorder %s28, 1
    %p72 = por %p70, %p71
    %p74 = scmp.ne.s32.totalorder %s59, %s73
    %p75 = scmp.eq.s32.totalorder %s28, 0
    %p76 = por %p74, %p75
    %s78 = sadd.s32 %s77, 1
    %p81 = scmp.eq.s32.totalorder %s22, 1
    %p82 = scmp.ne.s32.totalorder %s77, %s79
    %p83 = scmp.eq.s32.totalorder %s22, 0
    %p84 = por %p82, %p83
    %p85 = scmp.ne.s32.totalorder %s77, %s79
    %p86 = scmp.eq.s32.totalorder %s27, 1
    %p87 = por %p85, %p86
    %p88 = scmp.ne.s32.totalorder %s79, %s80
    %p89 = scmp.eq.s32.totalorder %s27, 0
    %p90 = por %p88, %p89
    %p91 = scmp.ne.s32.totalorder %s79, %s80
    %p92 = scmp.eq.s32.totalorder %s28, 1
    %p93 = por %p91, %p92
    %p95 = scmp.ne.s32.totalorder %s80, %s94
    %p96 = scmp.eq.s32.totalorder %s28, 0
    %p97 = por %p95, %p96
    %s99 = sadd.s32 %s98, 1
    %p102 = scmp.eq.s32.totalorder %s22, 1
    %p103 = scmp.ne.s32.totalorder %s98, %s100
    %p104 = scmp.eq.s32.totalorder %s22, 0
    %p105 = por %p103, %p104
    %p106 = scmp.ne.s32.totalorder %s98, %s100
    %p107 = scmp.eq.s32.totalorder %s27, 1
    %p108 = por %p106, %p107
    %p109 = scmp.ne.s32.totalorder %s100, %s101
    %p110 = scmp.eq.s32.totalorder %s27, 0
    %p111 = por %p109, %p110
    %p112 = scmp.ne.s32.totalorder %s100, %s101
    %p113 = scmp.eq.s32.totalorder %s28, 1
    %p114 = por %p112, %p113
    %p116 = scmp.ne.s32.totalorder %s101, %s115
    %p117 = scmp.eq.s32.totalorder %s28, 0
    %p118 = por %p116, %p117
    %s120 = sadd.s32 %s119, 1
    %p123 = scmp.eq.s32.totalorder %s22, 1
    %p124 = scmp.ne.s32.totalorder %s119, %s121
    %p125 = scmp.eq.s32.totalorder %s22, 0
    %p126 = por %p124, %p125
    %p127 = scmp.ne.s32.totalorder %s119, %s121
    %p128 = scmp.eq.s32.totalorder %s27, 1
    %p129 = por %p127, %p128
    %p130 = scmp.ne.s32.totalorder %s121, %s122
    %p131 = scmp.eq.s32.totalorder %s27, 0
    %p132 = por %p130, %p131
    %p133 = scmp.ne.s32.totalorder %s121, %s122
    %p134 = scmp.eq.s32.totalorder %s28, 1
    %p135 = por %p133, %p134
    %p137 = scmp.ne.s32.totalorder %s122, %s136
    %p138 = scmp.eq.s32.totalorder %s28, 0
    %p139 = por %p137, %p138
    %s141 = sadd.s32 %s140, 1
    %p144 = scmp.eq.s32.totalorder %s22, 1
    %p145 = scmp.ne.s32.totalorder %s140, %s142
    %p146 = scmp.eq.s32.totalorder %s22, 0
    %p147 = por %p145, %p146
    %p148 = scmp.ne.s32.totalorder %s140, %s142
    %p149 = scmp.eq.s32.totalorder %s27, 1
    %p150 = por %p148, %p149
    %p151 = scmp.ne.s32.totalorder %s142, %s143
    %p152 = scmp.eq.s32.totalorder %s27, 0
    %p153 = por %p151, %p152
    %p154 = scmp.ne.s32.totalorder %s142, %s143
    %p155 = scmp.eq.s32.totalorder %s28, 1
    %p156 = por %p154, %p155
    %p158 = scmp.ne.s32.totalorder %s143, %s157
    %p159 = scmp.eq.s32.totalorder %s28, 0
    %p160 = por %p158, %p159
    %s162 = sadd.s32 %s161, 1
    %p165 = scmp.eq.s32.totalorder %s22, 1
    %p166 = scmp.ne.s32.totalorder %s161, %s163
    %p167 = scmp.eq.s32.totalorder %s22, 0
    %p168 = por %p166, %p167
    %p169 = scmp.ne.s32.totalorder %s161, %s163
    %p170 = scmp.eq.s32.totalorder %s27, 1
    %p171 = por %p169, %p170
    %p172 = scmp.ne.s32.totalorder %s163, %s164
    %p173 = scmp.eq.s32.totalorder %s27, 0
    %p174 = por %p172, %p173
    %p175 = scmp.ne.s32.totalorder %s163, %s164
    %p176 = scmp.eq.s32.totalorder %s28, 1
    %p177 = por %p175, %p176
    %p179 = scmp.ne.s32.totalorder %s164, %s178
    %p180 = scmp.eq.s32.totalorder %s28, 0
    %p181 = por %p179, %p180
    %s183 = sadd.s32 %s182, 1
    %p186 = scmp.eq.s32.totalorder %s22, 1
    %p187 = scmp.ne.s32.totalorder %s182, %s184
    %p188 = scmp.eq.s32.totalorder %s22, 0
    %p189 = por %p187, %p188
    %p190 = scmp.ne.s32.totalorder %s182, %s184
    %p191 = scmp.eq.s32.totalorder %s27, 1
    %p192 = por %p190, %p191
    %p193 = scmp.ne.s32.totalorder %s184, %s185
    %p194 = scmp.eq.s32.totalorder %s27, 0
    %p195 = por %p193, %p194
    %p196 = scmp.ne.s32.totalorder %s184, %s185
    %p197 = scmp.eq.s32.totalorder %s28, 1
    %p198 = por %p196, %p197
    %p200 = scmp.ne.s32.totalorder %s185, %s199
    %p201 = scmp.eq.s32.totalorder %s28, 0
    %p202 = por %p200, %p201
    %s204 = sadd.s32 %s203, 1
    %p207 = scmp.eq.s32.totalorder %s22, 1
    %p208 = scmp.ne.s32.totalorder %s203, %s205
    %p209 = scmp.eq.s32.totalorder %s22, 0
    %p210 = por %p208, %p209
    %p211 = scmp.ne.s32.totalorder %s203, %s205
    %p212 = scmp.eq.s32.totalorder %s27, 1
    %p213 = por %p211, %p212
    %p214 = scmp.ne.s32.totalorder %s205, %s206
    %p215 = scmp.eq.s32.totalorder %s27, 0
    %p216 = por %p214, %p215
    %p217 = scmp.ne.s32.totalorder %s205, %s206
    %p218 = scmp.eq.s32.totalorder %s28, 1
    %p219 = por %p217, %p218
    %p221 = scmp.ne.s32.totalorder %s206, %s220
    %p222 = scmp.eq.s32.totalorder %s28, 0
    %p223 = por %p221, %p222
    %s225 = sadd.s32 %s224, 1
    %p228 = scmp.eq.s32.totalorder %s22, 1
    %p229 = scmp.ne.s32.totalorder %s224, %s226
    %p230 = scmp.eq.s32.totalorder %s22, 0
    %p231 = por %p229, %p230
    %p232 = scmp.ne.s32.totalorder %s224, %s226
    %p233 = scmp.eq.s32.totalorder %s27, 1
    %p234 = por %p232, %p233
    %p235 = scmp.ne.s32.totalorder %s226, %s227
    %p236 = scmp.eq.s32.totalorder %s27, 0
    %p237 = por %p235, %p236
    %p238 = scmp.ne.s32.totalorder %s226, %s227
    %p239 = scmp.eq.s32.totalorder %s28, 1
    %p240 = por %p238, %p239
    %p242 = scmp.ne.s32.totalorder %s227, %s241
    %p243 = scmp.eq.s32.totalorder %s28, 0
    %p244 = por %p242, %p243
    %s246 = sadd.s32 %s245, 1
    %p249 = scmp.eq.s32.totalorder %s22, 1
    %p250 = scmp.ne.s32.totalorder %s245, %s247
    %p251 = scmp.eq.s32.totalorder %s22, 0
    %p252 = por %p250, %p251
    %p253 = scmp.ne.s32.totalorder %s245, %s247
    %p254 = scmp.eq.s32.totalorder %s27, 1
    %p255 = por %p253, %p254
    %p256 = scmp.ne.s32.totalorder %s247, %s248
    %p257 = scmp.eq.s32.totalorder %s27, 0
    %p258 = por %p256, %p257
    %p259 = scmp.ne.s32.totalorder %s247, %s248
    %p260 = scmp.eq.s32.totalorder %s28, 1
    %p261 = por %p259, %p260
    %p263 = scmp.ne.s32.totalorder %s248, %s262
    %p264 = scmp.eq.s32.totalorder %s28, 0
    %p265 = por %p263, %p264
    %s267 = sadd.s32 %s266, 1
    %p270 = scmp.eq.s32.totalorder %s22, 1
    %p271 = scmp.ne.s32.totalorder %s266, %s268
    %p272 = scmp.eq.s32.totalorder %s22, 0
    %p273 = por %p271, %p272
    %p274 = scmp.ne.s32.totalorder %s266, %s268
    %p275 = scmp.eq.s32.totalorder %s27, 1
    %p276 = por %p274, %p275
    %p277 = scmp.ne.s32.totalorder %s268, %s269
    %p278 = scmp.eq.s32.totalorder %s27, 0
    %p279 = por %p277, %p278
    %p280 = scmp.ne.s32.totalorder %s268, %s269
    %p281 = scmp.eq.s32.totalorder %s28, 1
    %p282 = por %p280, %p281
    %p284 = scmp.ne.s32.totalorder %s269, %s283
    %p285 = scmp.eq.s32.totalorder %s28, 0
    %p286 = por %p284, %p285
    %s288 = sadd.s32 %s287, 1
    %p291 = scmp.eq.s32.totalorder %s22, 1
    %p292 = scmp.ne.s32.totalorder %s287, %s289
    %p293 = scmp.eq.s32.totalorder %s22, 0
    %p294 = por %p292, %p293
    %p295 = scmp.ne.s32.totalorder %s287, %s289
    %p296 = scmp.eq.s32.totalorder %s27, 1
    %p297 = por %p295, %p296
    %p298 = scmp.ne.s32.totalorder %s289, %s290
    %p299 = scmp.eq.s32.totalorder %s27, 0
    %p300 = por %p298, %p299
    %p301 = scmp.ne.s32.totalorder %s289, %s290
    %p302 = scmp.eq.s32.totalorder %s28, 1
    %p303 = por %p301, %p302
    %p305 = scmp.ne.s32.totalorder %s290, %s304
    %p306 = scmp.eq.s32.totalorder %s28, 0
    %p307 = por %p305, %p306
    %s309 = sadd.s32 %s308, 1
    %p312 = scmp.eq.s32.totalorder %s22, 1
    %p313 = scmp.ne.s32.totalorder %s308, %s310
    %p314 = scmp.eq.s32.totalorder %s22, 0
    %p315 = por %p313, %p314
    %p316 = scmp.ne.s32.totalorder %s308, %s310
    %p317 = scmp.eq.s32.totalorder %s27, 1
    %p318 = por %p316, %p317
    %p319 = scmp.ne.s32.totalorder %s310, %s311
    %p320 = scmp.eq.s32.totalorder %s27, 0
    %p321 = por %p319, %p320
    %p322 = scmp.ne.s32.totalorder %s310, %s311
    %p323 = scmp.eq.s32.totalorder %s28, 1
    %p324 = por %p322, %p323
    %p326 = scmp.ne.s32.totalorder %s311, %s325
    %p327 = scmp.eq.s32.totalorder %s28, 0
    %p328 = por %p326, %p327
    %s330 = sadd.s32 %s329, 1
    %p333 = scmp.eq.s32.totalorder %s22, 1
    %p334 = scmp.ne.s32.totalorder %s329, %s331
    %p335 = scmp.eq.s32.totalorder %s22, 0
    %p336 = por %p334, %p335
    %p337 = scmp.ne.s32.totalorder %s329, %s331
    %p338 = scmp.eq.s32.totalorder %s27, 1
    %p339 = por %p337, %p338
    %p340 = scmp.ne.s32.totalorder %s331, %s332
    %p341 = scmp.eq.s32.totalorder %s27, 0
    %p342 = por %p340, %p341
    %p343 = scmp.ne.s32.totalorder %s331, %s332
    %p344 = scmp.eq.s32.totalorder %s28, 1
    %p345 = por %p343, %p344
    %p347 = scmp.ne.s32.totalorder %s332, %s346
    %p348 = scmp.eq.s32.totalorder %s28, 0
    %p349 = por %p347, %p348
    %s351 = sadd.s32 %s350, 1
    %p354 = scmp.eq.s32.totalorder %s22, 1
    %p355 = scmp.ne.s32.totalorder %s350, %s352
    %p356 = scmp.eq.s32.totalorder %s22, 0
    %p357 = por %p355, %p356
    %p358 = scmp.ne.s32.totalorder %s350, %s352
    %p359 = scmp.eq.s32.totalorder %s27, 1
    %p360 = por %p358, %p359
    %p361 = scmp.ne.s32.totalorder %s352, %s353
    %p362 = scmp.eq.s32.totalorder %s27, 0
    %p363 = por %p361, %p362
    %p364 = scmp.ne.s32.totalorder %s352, %s353
    %p365 = scmp.eq.s32.totalorder %s28, 1
    %p366 = por %p364, %p365
    %p368 = scmp.ne.s32.totalorder %s353, %s367
    %p369 = scmp.eq.s32.totalorder %s28, 0
    %p370 = por %p368, %p369
    %s371 = ssub.s32 %s22, %s29
    %p372 = scmp.eq.s32.totalorder %s371, 0
    %s374 = sadd.s32 %s373, 1
    %s375 = scalar_select %p372, %s373, %s374
    %p378 = pneg %p372
    %p379 = scmp.eq.s32.totalorder %s22, 1
    %p380 = por %p378, %p379
    %p381 = scmp.ne.s32.totalorder %s373, %s376
    %p382 = scmp.eq.s32.totalorder %s22, 0
    %p383 = por %p381, %p382
    %p384 = scmp.ne.s32.totalorder %s373, %s376
    %p385 = scmp.eq.s32.totalorder %s27, 1
    %p386 = por %p384, %p385
    %p387 = scmp.ne.s32.totalorder %s376, %s377
    %p388 = scmp.eq.s32.totalorder %s27, 0
    %p389 = por %p387, %p388
    %p390 = scmp.ne.s32.totalorder %s376, %s377
    %p391 = scmp.eq.s32.totalorder %s28, 1
    %p392 = por %p390, %p391
    %p394 = scmp.ne.s32.totalorder %s377, %s393
    %p395 = scmp.eq.s32.totalorder %s28, 0
    %p396 = por %p394, %p395
    %p397 = scmp.le.s32.totalorder 1, %s22
    %p398 = scmp.lt.s32.totalorder %s22, 3
    %p399 = pnand %p397, %p398
    %p400 = pneg %p399
    // Predicated region
    $region9: #{model_forward.1} parent=5 // pred_check
      _
    $region10: #{model_forward.1} parent=5 // pred_check_branch
      %402 = sbr.rel (%p399) target = $region12
    $region11: #{model_forward.1} parent=5 // pred_region
      %s403 = ssub.s32 %s22, 1
      // Predicated region
      $region13: #{model_forward.1} parent=11 // pred_check
        %p404 = pneg %p69
      $region14: #{model_forward.1} parent=11 // pred_check_branch
        %406 = sbr.rel (%p404) target = $region16
      $region15: #{model_forward.1} parent=11 // pred_region
        _
      $region16: #{model_forward.1} parent=11 // pred_fallthru
        _
      // Predicated region
      $region17: #{model_forward.1} parent=11 // pred_check
        %p407 = pneg %p90
      $region18: #{model_forward.1} parent=11 // pred_check_branch
        %409 = sbr.rel (%p407) target = $region20
      $region19: #{model_forward.1} parent=11 // pred_region
        _
      $region20: #{model_forward.1} parent=11 // pred_fallthru
        _
      // Predicated region
      $region21: #{model_forward.1} parent=11 // pred_check
        %p410 = pneg %p111
      $region22: #{model_forward.1} parent=11 // pred_check_branch
        %412 = sbr.rel (%p410) target = $region24
      $region23: #{model_forward.1} parent=11 // pred_region
        _
      $region24: #{model_forward.1} parent=11 // pred_fallthru
        _
      // Predicated region
      $region25: #{model_forward.1} parent=11 // pred_check
        %p413 = pneg %p132
      $region26: #{model_forward.1} parent=11 // pred_check_branch
        %415 = sbr.rel (%p413) target = $region28
      $region27: #{model_forward.1} parent=11 // pred_region
        _
      $region28: #{model_forward.1} parent=11 // pred_fallthru
        _
      // Predicated region
      $region29: #{model_forward.1} parent=11 // pred_check
        %p416 = pneg %p153
      $region30: #{model_forward.1} parent=11 // pred_check_branch
        %418 = sbr.rel (%p416) target = $region32
      $region31: #{model_forward.1} parent=11 // pred_region
        _
      $region32: #{model_forward.1} parent=11 // pred_fallthru
        _
      // Predicated region
      $region33: #{model_forward.1} parent=11 // pred_check
        %p419 = pneg %p174
      $region34: #{model_forward.1} parent=11 // pred_check_branch
        %421 = sbr.rel (%p419) target = $region36
      $region35: #{model_forward.1} parent=11 // pred_region
        _
      $region36: #{model_forward.1} parent=11 // pred_fallthru
        _
      // Predicated region
      $region37: #{model_forward.1} parent=11 // pred_check
        %p422 = pneg %p195
      $region38: #{model_forward.1} parent=11 // pred_check_branch
        %424 = sbr.rel (%p422) target = $region40
      $region39: #{model_forward.1} parent=11 // pred_region
        _
      $region40: #{model_forward.1} parent=11 // pred_fallthru
        _
      // Predicated region
      $region41: #{model_forward.1} parent=11 // pred_check
        %p425 = pneg %p216
      $region42: #{model_forward.1} parent=11 // pred_check_branch
        %427 = sbr.rel (%p425) target = $region44
      $region43: #{model_forward.1} parent=11 // pred_region
        _
      $region44: #{model_forward.1} parent=11 // pred_fallthru
        _
      // Predicated region
      $region45: #{model_forward.1} parent=11 // pred_check
        %p428 = pneg %p237
      $region46: #{model_forward.1} parent=11 // pred_check_branch
        %430 = sbr.rel (%p428) target = $region48
      $region47: #{model_forward.1} parent=11 // pred_region
        _
      $region48: #{model_forward.1} parent=11 // pred_fallthru
        _
      // Predicated region
      $region49: #{model_forward.1} parent=11 // pred_check
        %p431 = pneg %p258
      $region50: #{model_forward.1} parent=11 // pred_check_branch
        %433 = sbr.rel (%p431) target = $region52
      $region51: #{model_forward.1} parent=11 // pred_region
        _
      $region52: #{model_forward.1} parent=11 // pred_fallthru
        _
      // Predicated region
      $region53: #{model_forward.1} parent=11 // pred_check
        %p434 = pneg %p279
      $region54: #{model_forward.1} parent=11 // pred_check_branch
        %436 = sbr.rel (%p434) target = $region56
      $region55: #{model_forward.1} parent=11 // pred_region
        _
      $region56: #{model_forward.1} parent=11 // pred_fallthru
        _
      // Predicated region
      $region57: #{model_forward.1} parent=11 // pred_check
        %p437 = pneg %p300
      $region58: #{model_forward.1} parent=11 // pred_check_branch
        %439 = sbr.rel (%p437) target = $region60
      $region59: #{model_forward.1} parent=11 // pred_region
        _
      $region60: #{model_forward.1} parent=11 // pred_fallthru
        _
      // Predicated region
      $region61: #{model_forward.1} parent=11 // pred_check
        %p440 = pneg %p321
      $region62: #{model_forward.1} parent=11 // pred_check_branch
        %442 = sbr.rel (%p440) target = $region64
      $region63: #{model_forward.1} parent=11 // pred_region
        _
      $region64: #{model_forward.1} parent=11 // pred_fallthru
        _
      // Predicated region
      $region65: #{model_forward.1} parent=11 // pred_check
        %p443 = pneg %p342
      $region66: #{model_forward.1} parent=11 // pred_check_branch
        %445 = sbr.rel (%p443) target = $region68
      $region67: #{model_forward.1} parent=11 // pred_region
        _
      $region68: #{model_forward.1} parent=11 // pred_fallthru
        _
      // Predicated region
      $region69: #{model_forward.1} parent=11 // pred_check
        %p446 = pneg %p363
      $region70: #{model_forward.1} parent=11 // pred_check_branch
        %448 = sbr.rel (%p446) target = $region72
      $region71: #{model_forward.1} parent=11 // pred_region
        _
      $region72: #{model_forward.1} parent=11 // pred_fallthru
        _
    $region12: #{model_forward.1} parent=5 // pred_fallthru
      _
    %p449 = scmp.lt.s32.totalorder %s22, 2
    // Predicated region
    $region73: #{model_forward.1} parent=5 // pred_check
      %p450 = pneg %p449
    $region74: #{model_forward.1} parent=5 // pred_check_branch
      %452 = sbr.rel (%p450) target = $region76
    $region75: #{model_forward.1} parent=5 // pred_region
      // Predicated region
      $region77: #{model_forward.1} parent=75 // pred_check
        %p453 = pneg %p42
      $region78: #{model_forward.1} parent=75 // pred_check_branch
        %455 = sbr.rel (%p453) target = $region80
      $region79: #{model_forward.1} parent=75 // pred_region
        %s456 = smul.u32 64, %s22
        %p457 = scmp.lt.s32.totalorder %s456, 127
        %s458 = scalar_select %p457, %s456, 127
        %s459 = smul.addr %s458, 8
        %s460 = scalar_lea.vmem %s0, %s459
        %s461 = smul.u32 64, %s22
      $region80: #{model_forward.1} parent=75 // pred_fallthru
        _
    $region76: #{model_forward.1} parent=5 // pred_fallthru
      _
    %p462 = scmp.le.s32.totalorder 1, %s22
    %p463 = scmp.lt.s32.totalorder %s22, 3
    %p464 = pnand %p462, %p463
    %p465 = pneg %p464
    // Predicated region
    $region81: #{model_forward.1} parent=5 // pred_check
      _
    $region82: #{model_forward.1} parent=5 // pred_check_branch
      %467 = sbr.rel (%p464) target = $region84
    $region83: #{model_forward.1} parent=5 // pred_region
      %s468 = ssub.s32 %s22, 1
      %s469 = smul.u32 64, %s27
      %p470 = scmp.lt.s32.totalorder %s469, 127
      %s471 = scalar_select %p470, %s469, 127
      %s472 = smul.addr %s471, 8
      %s473 = scalar_lea.vmem %s0, %s472
      %p474 = pneg %p48
      %p475 = pneg %p45
      %p476 = pneg %p69
      %p477 = pneg %p66
      %p478 = pneg %p90
      %p479 = pneg %p87
      %p480 = pneg %p111
      %p481 = pneg %p108
      %p482 = pneg %p132
      %p483 = pneg %p129
      %p484 = pneg %p153
      %p485 = pneg %p150
      %p486 = pneg %p174
      %p487 = pneg %p171
      %p488 = pneg %p195
      %p489 = pneg %p192
      %p490 = pneg %p216
      %p491 = pneg %p213
      %p492 = pneg %p237
      %p493 = pneg %p234
      %p494 = pneg %p258
      %p495 = pneg %p255
      %p496 = pneg %p279
      %p497 = pneg %p276
      %p498 = pneg %p300
      %p499 = pneg %p297
      %p500 = pneg %p321
      %p501 = pneg %p318
      %p502 = pneg %p342
      %p503 = pneg %p339
      %p504 = pneg %p363
      %p505 = pneg %p360
      %p506 = pneg %p389
      %p507 = pneg %p386
      %s508 = smul.u32 2, %s27
      %p509 = scmp.lt.s32.totalorder %s508, 3
      %s510 = scalar_select %p509, %s508, 3
      %s511 = smul.addr %s510, 8
      %s512 = scalar_lea.vmem %s16, %s511
      %s513 = smul.u32 64, %s27
      %p514 = scmp.lt.s32.totalorder %s513, 127
      %s515 = scalar_select %p514, %s513, 127
      %s516 = smul.addr %s515, 8
      %s517 = scalar_lea.vmem %s0, %s516
      %s518 = smul.u32 64, %s27
      %s519 = smul.u32 2, %s27
      %p520 = scmp.lt.s32.totalorder %s519, 3
      %s521 = scalar_select %p520, %s519, 3
      %s522 = smul.addr %s521, 8
      %s523 = scalar_lea.vmem %s16, %s522
      %s524 = smul.u32 2, %s27
      %v525 = vld [vmem:[%s517] sm:$0xff]
      %v526 = vld [vmem:[%s517 + $0x8] sm:$0xff]
      %v527 = vld [vmem:[%s517 + $0x10] sm:$0xff]
      %v528 = vld [vmem:[%s517 + $0x18] sm:$0xff]
      %v529 = vld [vmem:[%s517 + $0x20] sm:$0xff]
      %v530 = vld [vmem:[%s517 + $0x28] sm:$0xff]
      %v531 = vld [vmem:[%s517 + $0x30] sm:$0xff]
      %v532 = vld [vmem:[%s517 + $0x38] sm:$0xff]
      %v533 = vld [vmem:[%s517 + $0x40] sm:$0xff]
      %v534 = vld [vmem:[%s517 + $0x48] sm:$0xff]
      %v535 = vld [vmem:[%s517 + $0x50] sm:$0xff]
      %v536 = vld [vmem:[%s517 + $0x58] sm:$0xff]
      %v537 = vld [vmem:[%s517 + $0x60] sm:$0xff]
      %v538 = vld [vmem:[%s517 + $0x68] sm:$0xff]
      %v539 = vld [vmem:[%s517 + $0x70] sm:$0xff]
      %v540 = vld [vmem:[%s517 + $0x78] sm:$0xff]
      %v541 = vld [vmem:[%s517 + $0x80] sm:$0xff]
      %v542 = vld [vmem:[%s517 + $0x88] sm:$0xff]
      %v543 = vld [vmem:[%s517 + $0x90] sm:$0xff]
      %v544 = vld [vmem:[%s517 + $0x98] sm:$0xff]
      %v545 = vld [vmem:[%s517 + $0xa0] sm:$0xff]
      %v546 = vld [vmem:[%s517 + $0xa8] sm:$0xff]
      %v547 = vld [vmem:[%s517 + $0xb0] sm:$0xff]
      %v548 = vld [vmem:[%s517 + $0xb8] sm:$0xff]
      %v549 = vld [vmem:[%s517 + $0xc0] sm:$0xff]
      %v550 = vld [vmem:[%s517 + $0xc8] sm:$0xff]
      %v551 = vld [vmem:[%s517 + $0xd0] sm:$0xff]
      %v552 = vld [vmem:[%s517 + $0xd8] sm:$0xff]
      %v553 = vld [vmem:[%s517 + $0xe0] sm:$0xff]
      %v554 = vld [vmem:[%s517 + $0xe8] sm:$0xff]
      %v555 = vld [vmem:[%s517 + $0xf0] sm:$0xff]
      %v556 = vld [vmem:[%s517 + $0xf8] sm:$0xff]
      %v557 = vld [vmem:[%s517 + $0x100] sm:$0xff]
      %v558 = vld [vmem:[%s517 + $0x108] sm:$0xff]
      %v559 = vld [vmem:[%s517 + $0x110] sm:$0xff]
      %v560 = vld [vmem:[%s517 + $0x118] sm:$0xff]
      %v561 = vld [vmem:[%s517 + $0x120] sm:$0xff]
      %v562 = vld [vmem:[%s517 + $0x128] sm:$0xff]
      %v563 = vld [vmem:[%s517 + $0x130] sm:$0xff]
      %v564 = vld [vmem:[%s517 + $0x138] sm:$0xff]
      %v565 = vld [vmem:[%s517 + $0x140] sm:$0xff]
      %v566 = vld [vmem:[%s517 + $0x148] sm:$0xff]
      %v567 = vld [vmem:[%s517 + $0x150] sm:$0xff]
      %v568 = vld [vmem:[%s517 + $0x158] sm:$0xff]
      %v569 = vld [vmem:[%s517 + $0x160] sm:$0xff]
      %v570 = vld [vmem:[%s517 + $0x168] sm:$0xff]
      %v571 = vld [vmem:[%s517 + $0x170] sm:$0xff]
      %v572 = vld [vmem:[%s517 + $0x178] sm:$0xff]
      %v573 = vld [vmem:[%s517 + $0x180] sm:$0xff]
      %v574 = vld [vmem:[%s517 + $0x188] sm:$0xff]
      %v575 = vld [vmem:[%s517 + $0x190] sm:$0xff]
      %v576 = vld [vmem:[%s517 + $0x198] sm:$0xff]
      %v577 = vld [vmem:[%s517 + $0x1a0] sm:$0xff]
      %v578 = vld [vmem:[%s517 + $0x1a8] sm:$0xff]
      %v579 = vld [vmem:[%s517 + $0x1b0] sm:$0xff]
      %v580 = vld [vmem:[%s517 + $0x1b8] sm:$0xff]
      %v581 = vld [vmem:[%s517 + $0x1c0] sm:$0xff]
      %v582 = vld [vmem:[%s517 + $0x1c8] sm:$0xff]
      %v583 = vld [vmem:[%s517 + $0x1d0] sm:$0xff]
      %v584 = vld [vmem:[%s517 + $0x1d8] sm:$0xff]
      %v585 = vld [vmem:[%s517 + $0x1e0] sm:$0xff]
      %v586 = vld [vmem:[%s517 + $0x1e8] sm:$0xff]
      %v587 = vld [vmem:[%s517 + $0x1f0] sm:$0xff]
      %v588 = vld [vmem:[%s517 + $0x1f8] sm:$0xff]
      %v589 = vld [vmem:[%s1] sm:$0xff]
      %v590 = vld [vmem:[%s1 + $0x8] sm:$0xff]
      %v591 = vld [vmem:[%s1 + $0x10] sm:$0xff]
      %v592 = vld [vmem:[%s1 + $0x18] sm:$0xff]
      %v593 = vld [vmem:[%s1 + $0x20] sm:$0xff]
      %v594 = vld [vmem:[%s1 + $0x28] sm:$0xff]
      %v595 = vld [vmem:[%s1 + $0x30] sm:$0xff]
      %v596 = vld [vmem:[%s1 + $0x38] sm:$0xff]
      %v597 = vld [vmem:[%s1 + $0x40] sm:$0xff]
      %v598 = vld [vmem:[%s1 + $0x48] sm:$0xff]
      %v599 = vld [vmem:[%s1 + $0x50] sm:$0xff]
      %v600 = vld [vmem:[%s1 + $0x58] sm:$0xff]
      %v601 = vld [vmem:[%s1 + $0x60] sm:$0xff]
      %v602 = vld [vmem:[%s1 + $0x68] sm:$0xff]
      %v603 = vld [vmem:[%s1 + $0x70] sm:$0xff]
      %v604 = vld [vmem:[%s1 + $0x78] sm:$0xff]
      %v605 = vld [vmem:[%s1 + $0x80] sm:$0xff]
      %v606 = vld [vmem:[%s1 + $0x88] sm:$0xff]
      %v607 = vld [vmem:[%s1 + $0x90] sm:$0xff]
      %v608 = vld [vmem:[%s1 + $0x98] sm:$0xff]
      %v609 = vld [vmem:[%s1 + $0xa0] sm:$0xff]
      %v610 = vld [vmem:[%s1 + $0xa8] sm:$0xff]
      %v611 = vld [vmem:[%s1 + $0xb0] sm:$0xff]
      %v612 = vld [vmem:[%s1 + $0xb8] sm:$0xff]
      %v613 = vld [vmem:[%s1 + $0xc0] sm:$0xff]
      %v614 = vld [vmem:[%s1 + $0xc8] sm:$0xff]
      %v615 = vld [vmem:[%s1 + $0xd0] sm:$0xff]
      %v616 = vld [vmem:[%s1 + $0xd8] sm:$0xff]
      %v617 = vld [vmem:[%s1 + $0xe0] sm:$0xff]
      %v618 = vld [vmem:[%s1 + $0xe8] sm:$0xff]
      %v619 = vld [vmem:[%s1 + $0xf0] sm:$0xff]
      %v620 = vld [vmem:[%s1 + $0xf8] sm:$0xff]
      %v621 = vld [vmem:[%s1 + $0x100] sm:$0xff]
      %v622 = vld [vmem:[%s1 + $0x108] sm:$0xff]
      %v623 = vld [vmem:[%s1 + $0x110] sm:$0xff]
      %v624 = vld [vmem:[%s1 + $0x118] sm:$0xff]
      %v625 = vld [vmem:[%s1 + $0x120] sm:$0xff]
      %v626 = vld [vmem:[%s1 + $0x128] sm:$0xff]
      %v627 = vld [vmem:[%s1 + $0x130] sm:$0xff]
      %v628 = vld [vmem:[%s1 + $0x138] sm:$0xff]
      %v629 = vld [vmem:[%s1 + $0x140] sm:$0xff]
      %v630 = vld [vmem:[%s1 + $0x148] sm:$0xff]
      %v631 = vld [vmem:[%s1 + $0x150] sm:$0xff]
      %v632 = vld [vmem:[%s1 + $0x158] sm:$0xff]
      %v633 = vld [vmem:[%s1 + $0x160] sm:$0xff]
      %v634 = vld [vmem:[%s1 + $0x168] sm:$0xff]
      %v635 = vld [vmem:[%s1 + $0x170] sm:$0xff]
      %v636 = vld [vmem:[%s1 + $0x178] sm:$0xff]
      %v637 = vld [vmem:[%s1 + $0x180] sm:$0xff]
      %v638 = vld [vmem:[%s1 + $0x188] sm:$0xff]
      %v639 = vld [vmem:[%s1 + $0x190] sm:$0xff]
      %v640 = vld [vmem:[%s1 + $0x198] sm:$0xff]
      %v641 = vld [vmem:[%s1 + $0x1a0] sm:$0xff]
      %v642 = vld [vmem:[%s1 + $0x1a8] sm:$0xff]
      %v643 = vld [vmem:[%s1 + $0x1b0] sm:$0xff]
      %v644 = vld [vmem:[%s1 + $0x1b8] sm:$0xff]
      %v645 = vld [vmem:[%s1 + $0x1c0] sm:$0xff]
      %v646 = vld [vmem:[%s1 + $0x1c8] sm:$0xff]
      %v647 = vld [vmem:[%s1 + $0x1d0] sm:$0xff]
      %v648 = vld [vmem:[%s1 + $0x1d8] sm:$0xff]
      %v649 = vld [vmem:[%s1 + $0x1e0] sm:$0xff]
      %v650 = vld [vmem:[%s1 + $0x1e8] sm:$0xff]
      %v651 = vld [vmem:[%s1 + $0x1f0] sm:$0xff]
      %v652 = vld [vmem:[%s1 + $0x1f8] sm:$0xff]
      %v653 = vld [vmem:[%s1 + $0x200] sm:$0xff]
      %v654 = vld [vmem:[%s1 + $0x208] sm:$0xff]
      %v655 = vld [vmem:[%s1 + $0x210] sm:$0xff]
      %v656 = vld [vmem:[%s1 + $0x218] sm:$0xff]
      %v657 = vld [vmem:[%s1 + $0x220] sm:$0xff]
      %v658 = vld [vmem:[%s1 + $0x228] sm:$0xff]
      %v659 = vld [vmem:[%s1 + $0x230] sm:$0xff]
      %v660 = vld [vmem:[%s1 + $0x238] sm:$0xff]
      %v661 = vld [vmem:[%s1 + $0x240] sm:$0xff]
      %v662 = vld [vmem:[%s1 + $0x248] sm:$0xff]
      %v663 = vld [vmem:[%s1 + $0x250] sm:$0xff]
      %v664 = vld [vmem:[%s1 + $0x258] sm:$0xff]
      %v665 = vld [vmem:[%s1 + $0x260] sm:$0xff]
      %v666 = vld [vmem:[%s1 + $0x268] sm:$0xff]
      %v667 = vld [vmem:[%s1 + $0x270] sm:$0xff]
      %v668 = vld [vmem:[%s1 + $0x278] sm:$0xff]
      %v669 = vld [vmem:[%s1 + $0x280] sm:$0xff]
      %v670 = vld [vmem:[%s1 + $0x288] sm:$0xff]
      %v671 = vld [vmem:[%s1 + $0x290] sm:$0xff]
      %v672 = vld [vmem:[%s1 + $0x298] sm:$0xff]
      %v673 = vld [vmem:[%s1 + $0x2a0] sm:$0xff]
      %v674 = vld [vmem:[%s1 + $0x2a8] sm:$0xff]
      %v675 = vld [vmem:[%s1 + $0x2b0] sm:$0xff]
      %v676 = vld [vmem:[%s1 + $0x2b8] sm:$0xff]
      %v677 = vld [vmem:[%s1 + $0x2c0] sm:$0xff]
      %v678 = vld [vmem:[%s1 + $0x2c8] sm:$0xff]
      %v679 = vld [vmem:[%s1 + $0x2d0] sm:$0xff]
      %v680 = vld [vmem:[%s1 + $0x2d8] sm:$0xff]
      %v681 = vld [vmem:[%s1 + $0x2e0] sm:$0xff]
      %v682 = vld [vmem:[%s1 + $0x2e8] sm:$0xff]
      %v683 = vld [vmem:[%s1 + $0x2f0] sm:$0xff]
      %v684 = vld [vmem:[%s1 + $0x2f8] sm:$0xff]
      %v685 = vld [vmem:[%s1 + $0x300] sm:$0xff]
      %v686 = vld [vmem:[%s1 + $0x308] sm:$0xff]
      %v687 = vld [vmem:[%s1 + $0x310] sm:$0xff]
      %v688 = vld [vmem:[%s1 + $0x318] sm:$0xff]
      %v689 = vld [vmem:[%s1 + $0x320] sm:$0xff]
      %v690 = vld [vmem:[%s1 + $0x328] sm:$0xff]
      %v691 = vld [vmem:[%s1 + $0x330] sm:$0xff]
      %v692 = vld [vmem:[%s1 + $0x338] sm:$0xff]
      %v693 = vld [vmem:[%s1 + $0x340] sm:$0xff]
      %v694 = vld [vmem:[%s1 + $0x348] sm:$0xff]
      %v695 = vld [vmem:[%s1 + $0x350] sm:$0xff]
      %v696 = vld [vmem:[%s1 + $0x358] sm:$0xff]
      %v697 = vld [vmem:[%s1 + $0x360] sm:$0xff]
      %v698 = vld [vmem:[%s1 + $0x368] sm:$0xff]
      %v699 = vld [vmem:[%s1 + $0x370] sm:$0xff]
      %v700 = vld [vmem:[%s1 + $0x378] sm:$0xff]
      %v701 = vld [vmem:[%s1 + $0x380] sm:$0xff]
      %v702 = vld [vmem:[%s1 + $0x388] sm:$0xff]
      %v703 = vld [vmem:[%s1 + $0x390] sm:$0xff]
      %v704 = vld [vmem:[%s1 + $0x398] sm:$0xff]
      %v705 = vld [vmem:[%s1 + $0x3a0] sm:$0xff]
      %v706 = vld [vmem:[%s1 + $0x3a8] sm:$0xff]
      %v707 = vld [vmem:[%s1 + $0x3b0] sm:$0xff]
      %v708 = vld [vmem:[%s1 + $0x3b8] sm:$0xff]
      %709 = vmatprep.subr.mxu0 0.0
      %710 = vmatpush1.msra.mxu0 %v525
      %711 = vmatprep.subr.mxu0 0.0
      %712 = vmatpush1.msra.mxu0 %v526
      %713 = vmatprep.subr.mxu0 0.0
      %714 = vmatpush1.msra.mxu0 %v527
      %715 = vmatprep.subr.mxu0 0.0
      %716 = vmatpush1.msra.mxu0 %v528
      %717 = vmatprep.subr.mxu0 0.0
      %718 = vmatpush1.msra.mxu0 %v529
      %719 = vmatprep.subr.mxu0 0.0
      %720 = vmatpush1.msra.mxu0 %v530
      %721 = vmatprep.subr.mxu0 0.0
      %722 = vmatpush1.msra.mxu0 %v531
      %723 = vmatprep.subr.mxu0 0.0
      %724 = vmatpush1.msra.mxu0 %v532
      %725 = vmatprep.subr.mxu0 0.0
      %726 = vmatpush1.msra.mxu0 %v533
      %727 = vmatprep.subr.mxu0 0.0
      %728 = vmatpush1.msra.mxu0 %v534
      %729 = vmatprep.subr.mxu0 0.0
      %730 = vmatpush1.msra.mxu0 %v535
      %731 = vmatprep.subr.mxu0 0.0
      %732 = vmatpush1.msra.mxu0 %v536
      %733 = vmatprep.subr.mxu0 0.0
      %734 = vmatpush1.msra.mxu0 %v537
      %735 = vmatprep.subr.mxu0 0.0
      %736 = vmatpush1.msra.mxu0 %v538
      %737 = vmatprep.subr.mxu0 0.0
      %738 = vmatpush1.msra.mxu0 %v539
      %739 = vmatprep.subr.mxu0 0.0
      %740 = vmatpush1.msra.mxu0 %v540
      %741 = vmatprep.subr.mxu0 0.0
      %742 = vmatpush1.msra.mxu0 %v541
      %743 = vmatprep.subr.mxu0 0.0
      %744 = vmatpush1.msra.mxu0 %v542
      %745 = vmatprep.subr.mxu0 0.0
      %746 = vmatpush1.msra.mxu0 %v543
      %747 = vmatprep.subr.mxu0 0.0
      %748 = vmatpush1.msra.mxu0 %v544
      %749 = vmatprep.subr.mxu0 0.0
      %750 = vmatpush1.msra.mxu0 %v545
      %751 = vmatprep.subr.mxu0 0.0
      %752 = vmatpush1.msra.mxu0 %v546
      %753 = vmatprep.subr.mxu0 0.0
      %754 = vmatpush1.msra.mxu0 %v547
      %755 = vmatprep.subr.mxu0 0.0
      %756 = vmatpush1.msra.mxu0 %v548
      %757 = vmatprep.subr.mxu0 0.0
      %758 = vmatpush1.msra.mxu0 %v549
      %759 = vmatprep.subr.mxu0 0.0
      %760 = vmatpush1.msra.mxu0 %v550
      %761 = vmatprep.subr.mxu0 0.0
      %762 = vmatpush1.msra.mxu0 %v551
      %763 = vmatprep.subr.mxu0 0.0
      %764 = vmatpush1.msra.mxu0 %v552
      %765 = vmatprep.subr.mxu0 0.0
      %766 = vmatpush1.msra.mxu0 %v553
      %767 = vmatprep.subr.mxu0 0.0
      %768 = vmatpush1.msra.mxu0 %v554
      %769 = vmatprep.subr.mxu0 0.0
      %770 = vmatpush1.msra.mxu0 %v555
      %771 = vmatprep.subr.mxu0 0.0
      %772 = vmatpush1.msra.mxu0 %v556
      %773 = vmatprep.mubr.f32.mxu0 %v590
      %774 = vmatmul.mubr.f32.gmra.mrb[0].mxu0 %v589
      %v775 = vpop.f32.mrb[0].mxu0
      %v776 = vadd.f32 0.0, %v775
      %v777 = vpop.f32.mrb[0].mxu0
      %778 = vmatprep.mubr.f32.mxu0 %v594
      %779 = vmatmul.mubr.f32.gmra.mrb[0].mxu0 %v593
      %v780 = vpop.f32.mrb[0].mxu0
      %v781 = vadd.f32 0.0, %v780
      %v782 = vpop.f32.mrb[0].mxu0
      %783 = vmatprep.mubr.f32.mxu0 %v598
      %784 = vmatmul.mubr.f32.gmra.mrb[0].mxu0 %v597
      %v785 = vpop.f32.mrb[0].mxu0
      %v786 = vadd.f32 0.0, %v785
      %v787 = vpop.f32.mrb[0].mxu0
      %788 = vmatprep.mubr.f32.mxu0 %v602
      %789 = vmatmul.mubr.f32.gmra.mrb[0].mxu0 %v601
      %v790 = vpop.f32.mrb[0].mxu0
      %v791 = vadd.f32 0.0, %v790
      %v792 = vpop.f32.mrb[0].mxu0
      %793 = vmatprep.mubr.f32.mxu0 %v606
      %794 = vmatmul.mubr.f32.gmra.mrb[0].mxu0 %v605
      %v795 = vpop.f32.mrb[0].mxu0
      %v796 = vadd.f32 0.0, %v795
      %v797 = vpop.f32.mrb[0].mxu0
      %798 = vmatprep.mubr.f32.mxu0 %v610
      %799 = vmatmul.mubr.f32.gmra.mrb[0].mxu0 %v609
      %v800 = vpop.f32.mrb[0].mxu0
      %v801 = vadd.f32 0.0, %v800
      %v802 = vpop.f32.mrb[0].mxu0
      %803 = vmatprep.mubr.f32.mxu0 %v614
      %804 = vmatmul.mubr.f32.gmra.mrb[0].mxu0 %v613
      %v805 = vpop.f32.mrb[0].mxu0
      %v806 = vadd.f32 0.0, %v805
      %v807 = vpop.f32.mrb[0].mxu0
      %808 = vmatprep.mubr.f32.mxu0 %v618
      %809 = vmatmul.mubr.f32.gmra.mrb[0].mxu0 %v617
      %v810 = vpop.f32.mrb[0].mxu0
      %v811 = vadd.f32 0.0, %v810
      %v812 = vpop.f32.mrb[0].mxu0
      %813 = vmatprep.mubr.f32.mxu0 %v622
      %814 = vmatmul.mubr.f32.gmra.mrb[0].mxu0 %v621
      %v815 = vpop.f32.mrb[0].mxu0
      %v816 = vadd.f32 0.0, %v815
      %v817 = vpop.f32.mrb[0].mxu0
      %818 = vmatprep.mubr.f32.mxu0 %v626
      %819 = vmatmul.mubr.f32.gmra.mrb[0].mxu0 %v625
      %v820 = vpop.f32.mrb[0].mxu0
      %v821 = vadd.f32 0.0, %v820
      %v822 = vpop.f32.mrb[0].mxu0
      %823 = vmatprep.mubr.f32.mxu0 %v630
      %824 = vmatmul.mubr.f32.gmra.mrb[0].mxu0 %v629
      %v825 = vpop.f32.mrb[0].mxu0
      %v826 = vadd.f32 0.0, %v825
      %v827 = vpop.f32.mrb[0].mxu0
      %828 = vmatprep.mubr.f32.mxu0 %v634
      %829 = vmatmul.mubr.f32.gmra.mrb[0].mxu0 %v633
      %v830 = vpop.f32.mrb[0].mxu0
      %v831 = vadd.f32 0.0, %v830
      %v832 = vpop.f32.mrb[0].mxu0
      %833 = vmatprep.mubr.f32.mxu0 %v638
      %834 = vmatmul.mubr.f32.gmra.mrb[0].mxu0 %v637
      %v835 = vpop.f32.mrb[0].mxu0
      %v836 = vadd.f32 0.0, %v835
      %v837 = vpop.f32.mrb[0].mxu0
      %838 = vmatprep.mubr.f32.mxu0 %v642
      %839 = vmatmul.mubr.f32.gmra.mrb[0].mxu0 %v641
      %v840 = vpop.f32.mrb[0].mxu0
      %v841 = vadd.f32 0.0, %v840
      %v842 = vpop.f32.mrb[0].mxu0
      %843 = vmatprep.mubr.f32.mxu0 %v646
      %844 = vmatmul.mubr.f32.gmra.mrb[0].mxu0 %v645
      %v845 = vpop.f32.mrb[0].mxu0
      %v846 = vadd.f32 0.0, %v845
      %v847 = vpop.f32.mrb[0].mxu0
      %848 = vmatprep.mubr.f32.mxu0 %v650
      %849 = vmatmul.mubr.f32.gmra.mrb[0].mxu0 %v649
      %v850 = vpop.f32.mrb[0].mxu0
      %v851 = vadd.f32 0.0, %v850
      %v852 = vpop.f32.mrb[0].mxu0
      %853 = vmatprep.mubr.f32.mxu0 %v654
      %854 = vmatmul.mubr.f32.gmra.mrb[0].mxu0 %v653
      %v855 = vpop.f32.mrb[0].mxu0
      %v856 = vadd.f32 0.0, %v855
      %v857 = vpop.f32.mrb[0].mxu0
      %858 = vmatprep.mubr.f32.mxu0 %v658
      %859 = vmatmul.mubr.f32.gmra.mrb[0].mxu0 %v657
      %v860 = vpop.f32.mrb[0].mxu0
      %v861 = vadd.f32 0.0, %v860
      %v862 = vpop.f32.mrb[0].mxu0
      %863 = vmatprep.mubr.f32.mxu0 %v662
      %864 = vmatmul.mubr.f32.gmra.mrb[0].mxu0 %v661
      %v865 = vpop.f32.mrb[0].mxu0
      %v866 = vadd.f32 0.0, %v865
      %v867 = vpop.f32.mrb[0].mxu0
      %868 = vmatprep.mubr.f32.mxu0 %v666
      %869 = vmatmul.mubr.f32.gmra.mrb[0].mxu0 %v665
      %v870 = vpop.f32.mrb[0].mxu0
      %v871 = vadd.f32 0.0, %v870
      %v872 = vpop.f32.mrb[0].mxu0
      %873 = vmatprep.mubr.f32.mxu0 %v670
      %874 = vmatmul.mubr.f32.gmra.mrb[0].mxu0 %v669
      %v875 = vpop.f32.mrb[0].mxu0
      %v876 = vadd.f32 0.0, %v875
      %v877 = vpop.f32.mrb[0].mxu0
      %878 = vmatprep.mubr.f32.mxu0 %v674
      %879 = vmatmul.mubr.f32.gmra.mrb[0].mxu0 %v673
      %v880 = vpop.f32.mrb[0].mxu0
      %v881 = vadd.f32 0.0, %v880
      %v882 = vpop.f32.mrb[0].mxu0
      %883 = vmatprep.mubr.f32.mxu0 %v678
      %884 = vmatmul.mubr.f32.gmra.mrb[0].mxu0 %v677
      %v885 = vpop.f32.mrb[0].mxu0
      %v886 = vadd.f32 0.0, %v885
      %v887 = vpop.f32.mrb[0].mxu0
      %888 = vmatprep.mubr.f32.mxu0 %v682
      %889 = vmatmul.mubr.f32.gmra.mrb[0].mxu0 %v681
      %v890 = vpop.f32.mrb[0].mxu0
      %v891 = vadd.f32 0.0, %v890
      %v892 = vpop.f32.mrb[0].mxu0
      %893 = vmatprep.mubr.f32.mxu0 %v686
      %894 = vmatmul.mubr.f32.gmra.mrb[0].mxu0 %v685
      %v895 = vpop.f32.mrb[0].mxu0
      %v896 = vadd.f32 0.0, %v895
      %v897 = vpop.f32.mrb[0].mxu0
      %898 = vmatprep.mubr.f32.mxu0 %v690
      %899 = vmatmul.mubr.f32.gmra.mrb[0].mxu0 %v689
      %v900 = vpop.f32.mrb[0].mxu0
      %v901 = vadd.f32 0.0, %v900
      %v902 = vpop.f32.mrb[0].mxu0
      %903 = vmatprep.mubr.f32.mxu0 %v694
      %904 = vmatmul.mubr.f32.gmra.mrb[0].mxu0 %v693
      %v905 = vpop.f32.mrb[0].mxu0
      %v906 = vadd.f32 0.0, %v905
      %v907 = vpop.f32.mrb[0].mxu0
      %908 = vmatprep.mubr.f32.mxu0 %v698
      %909 = vmatmul.mubr.f32.gmra.mrb[0].mxu0 %v697
      %v910 = vpop.f32.mrb[0].mxu0
      %v911 = vadd.f32 0.0, %v910
      %v912 = vpop.f32.mrb[0].mxu0
      %913 = vmatprep.mubr.f32.mxu0 %v702
      %914 = vmatmul.mubr.f32.gmra.mrb[0].mxu0 %v701
      %v915 = vpop.f32.mrb[0].mxu0
      %v916 = vadd.f32 0.0, %v915
      %v917 = vpop.f32.mrb[0].mxu0
      %918 = vmatprep.mubr.f32.mxu0 %v706
      %919 = vmatmul.mubr.f32.gmra.mrb[0].mxu0 %v705
      %v920 = vpop.f32.mrb[0].mxu0
      %v921 = vadd.f32 0.0, %v920
      %v922 = vpop.f32.mrb[0].mxu0
      %923 = vdwg.mxu0
      %924 = vmatprep.subr.mxu0 0.0
      %925 = vmatpush1.msra.mxu0 %v557
      %926 = vmatprep.subr.mxu0 0.0
      %927 = vmatpush1.msra.mxu0 %v558
      %928 = vmatprep.subr.mxu0 0.0
      %929 = vmatpush1.msra.mxu0 %v559
      %930 = vmatprep.subr.mxu0 0.0
      %931 = vmatpush1.msra.mxu0 %v560
      %932 = vmatprep.subr.mxu0 0.0
      %933 = vmatpush1.msra.mxu0 %v561
      %934 = vmatprep.subr.mxu0 0.0
      %935 = vmatpush1.msra.mxu0 %v562
      %936 = vmatprep.subr.mxu0 0.0
      %937 = vmatpush1.msra.mxu0 %v563
      %938 = vmatprep.subr.mxu0 0.0
      %939 = vmatpush1.msra.mxu0 %v564
      %940 = vmatprep.subr.mxu0 0.0
      %941 = vmatpush1.msra.mxu0 %v565
      %942 = vmatprep.subr.mxu0 0.0
      %943 = vmatpush1.msra.mxu0 %v566
      %944 = vmatprep.subr.mxu0 0.0
      %945 = vmatpush1.msra.mxu0 %v567
      %946 = vmatprep.subr.mxu0 0.0
      %947 = vmatpush1.msra.mxu0 %v568
      %948 = vmatprep.subr.mxu0 0.0
      %949 = vmatpush1.msra.mxu0 %v569
      %950 = vmatprep.subr.mxu0 0.0
      %951 = vmatpush1.msra.mxu0 %v570
      %952 = vmatprep.subr.mxu0 0.0
      %953 = vmatpush1.msra.mxu0 %v571
      %954 = vmatprep.subr.mxu0 0.0
      %955 = vmatpush1.msra.mxu0 %v572
      %956 = vmatprep.subr.mxu0 0.0
      %957 = vmatpush1.msra.mxu0 %v573
      %958 = vmatprep.subr.mxu0 0.0
      %959 = vmatpush1.msra.mxu0 %v574
      %960 = vmatprep.subr.mxu0 0.0
      %961 = vmatpush1.msra.mxu0 %v575
      %962 = vmatprep.subr.mxu0 0.0
      %963 = vmatpush1.msra.mxu0 %v576
      %964 = vmatprep.subr.mxu0 0.0
      %965 = vmatpush1.msra.mxu0 %v577
      %966 = vmatprep.subr.mxu0 0.0
      %967 = vmatpush1.msra.mxu0 %v578
      %968 = vmatprep.subr.mxu0 0.0
      %969 = vmatpush1.msra.mxu0 %v579
      %970 = vmatprep.subr.mxu0 0.0
      %971 = vmatpush1.msra.mxu0 %v580
      %972 = vmatprep.subr.mxu0 0.0
      %973 = vmatpush1.msra.mxu0 %v581
      %974 = vmatprep.subr.mxu0 0.0
      %975 = vmatpush1.msra.mxu0 %v582
      %976 = vmatprep.subr.mxu0 0.0
      %977 = vmatpush1.msra.mxu0 %v583
      %978 = vmatprep.subr.mxu0 0.0
      %979 = vmatpush1.msra.mxu0 %v584
      %980 = vmatprep.subr.mxu0 0.0
      %981 = vmatpush1.msra.mxu0 %v585
      %982 = vmatprep.subr.mxu0 0.0
      %983 = vmatpush1.msra.mxu0 %v586
      %984 = vmatprep.subr.mxu0 0.0
      %985 = vmatpush1.msra.mxu0 %v587
      %986 = vmatprep.subr.mxu0 0.0
      %987 = vmatpush1.msra.mxu0 %v588
      %988 = vmatprep.mubr.f32.mxu0 %v592
      %989 = vmatmul.mubr.f32.gmra.mrb[0].mxu0 %v591
      %v990 = vpop.f32.mrb[0].mxu0
      %v991 = vadd.f32 %v776, %v990
      %v992 = vpop.f32.mrb[0].mxu0
      %993 = vmatprep.mubr.f32.mxu0 %v596
      %994 = vmatmul.mubr.f32.gmra.mrb[0].mxu0 %v595
      %v995 = vpop.f32.mrb[0].mxu0
      %v996 = vadd.f32 %v781, %v995
      %v997 = vpop.f32.mrb[0].mxu0
      %998 = vmatprep.mubr.f32.mxu0 %v600
      %999 = vmatmul.mubr.f32.gmra.mrb[0].mxu0 %v599
      %v1000 = vpop.f32.mrb[0].mxu0
      %v1001 = vadd.f32 %v786, %v1000
      %v1002 = vpop.f32.mrb[0].mxu0
      %1003 = vmatprep.mubr.f32.mxu0 %v604
      %1004 = vmatmul.mubr.f32.gmra.mrb[0].mxu0 %v603
      %v1005 = vpop.f32.mrb[0].mxu0
      %v1006 = vadd.f32 %v791, %v1005
      %v1007 = vpop.f32.mrb[0].mxu0
      %1008 = vmatprep.mubr.f32.mxu0 %v608
      %1009 = vmatmul.mubr.f32.gmra.mrb[0].mxu0 %v607
      %v1010 = vpop.f32.mrb[0].mxu0
      %v1011 = vadd.f32 %v796, %v1010
      %v1012 = vpop.f32.mrb[0].mxu0
      %1013 = vmatprep.mubr.f32.mxu0 %v612
      %1014 = vmatmul.mubr.f32.gmra.mrb[0].mxu0 %v611
      %v1015 = vpop.f32.mrb[0].mxu0
      %v1016 = vadd.f32 %v801, %v1015
      %v1017 = vpop.f32.mrb[0].mxu0
      %1018 = vmatprep.mubr.f32.mxu0 %v616
      %1019 = vmatmul.mubr.f32.gmra.mrb[0].mxu0 %v615
      %v1020 = vpop.f32.mrb[0].mxu0
      %v1021 = vadd.f32 %v806, %v1020
      %v1022 = vpop.f32.mrb[0].mxu0
      %1023 = vmatprep.mubr.f32.mxu0 %v620
      %1024 = vmatmul.mubr.f32.gmra.mrb[0].mxu0 %v619
      %v1025 = vpop.f32.mrb[0].mxu0
      %v1026 = vadd.f32 %v811, %v1025
      %v1027 = vpop.f32.mrb[0].mxu0
      %1028 = vmatprep.mubr.f32.mxu0 %v624
      %1029 = vmatmul.mubr.f32.gmra.mrb[0].mxu0 %v623
      %v1030 = vpop.f32.mrb[0].mxu0
      %v1031 = vadd.f32 %v816, %v1030
      %v1032 = vpop.f32.mrb[0].mxu0
      %1033 = vmatprep.mubr.f32.mxu0 %v628
      %1034 = vmatmul.mubr.f32.gmra.mrb[0].mxu0 %v627
      %v1035 = vpop.f32.mrb[0].mxu0
      %v1036 = vadd.f32 %v821, %v1035
      %v1037 = vpop.f32.mrb[0].mxu0
      %1038 = vmatprep.mubr.f32.mxu0 %v632
      %1039 = vmatmul.mubr.f32.gmra.mrb[0].mxu0 %v631
      %v1040 = vpop.f32.mrb[0].mxu0
      %v1041 = vadd.f32 %v826, %v1040
      %v1042 = vpop.f32.mrb[0].mxu0
      %1043 = vmatprep.mubr.f32.mxu0 %v636
      %1044 = vmatmul.mubr.f32.gmra.mrb[0].mxu0 %v635
      %v1045 = vpop.f32.mrb[0].mxu0
      %v1046 = vadd.f32 %v831, %v1045
      %v1047 = vpop.f32.mrb[0].mxu0
      %1048 = vmatprep.mubr.f32.mxu0 %v640
      %1049 = vmatmul.mubr.f32.gmra.mrb[0].mxu0 %v639
      %v1050 = vpop.f32.mrb[0].mxu0
      %v1051 = vadd.f32 %v836, %v1050
      %v1052 = vpop.f32.mrb[0].mxu0
      %1053 = vmatprep.mubr.f32.mxu0 %v644
      %1054 = vmatmul.mubr.f32.gmra.mrb[0].mxu0 %v643
      %v1055 = vpop.f32.mrb[0].mxu0
      %v1056 = vadd.f32 %v841, %v1055
      %v1057 = vpop.f32.mrb[0].mxu0
      %1058 = vmatprep.mubr.f32.mxu0 %v648
      %1059 = vmatmul.mubr.f32.gmra.mrb[0].mxu0 %v647
      %v1060 = vpop.f32.mrb[0].mxu0
      %v1061 = vadd.f32 %v846, %v1060
      %v1062 = vpop.f32.mrb[0].mxu0
      %1063 = vmatprep.mubr.f32.mxu0 %v652
      %1064 = vmatmul.mubr.f32.gmra.mrb[0].mxu0 %v651
      %v1065 = vpop.f32.mrb[0].mxu0
      %v1066 = vadd.f32 %v851, %v1065
      %v1067 = vpop.f32.mrb[0].mxu0
      %1068 = vmatprep.mubr.f32.mxu0 %v656
      %1069 = vmatmul.mubr.f32.gmra.mrb[0].mxu0 %v655
      %v1070 = vpop.f32.mrb[0].mxu0
      %v1071 = vadd.f32 %v856, %v1070
      %v1072 = vpop.f32.mrb[0].mxu0
      %1073 = vmatprep.mubr.f32.mxu0 %v660
      %1074 = vmatmul.mubr.f32.gmra.mrb[0].mxu0 %v659
      %v1075 = vpop.f32.mrb[0].mxu0
      %v1076 = vadd.f32 %v861, %v1075
      %v1077 = vpop.f32.mrb[0].mxu0
      %1078 = vmatprep.mubr.f32.mxu0 %v664
      %1079 = vmatmul.mubr.f32.gmra.mrb[0].mxu0 %v663
      %v1080 = vpop.f32.mrb[0].mxu0
      %v1081 = vadd.f32 %v866, %v1080
      %v1082 = vpop.f32.mrb[0].mxu0
      %1083 = vmatprep.mubr.f32.mxu0 %v668
      %1084 = vmatmul.mubr.f32.gmra.mrb[0].mxu0 %v667
      %v1085 = vpop.f32.mrb[0].mxu0
      %v1086 = vadd.f32 %v871, %v1085
      %v1087 = vpop.f32.mrb[0].mxu0
      %1088 = vmatprep.mubr.f32.mxu0 %v672
      %1089 = vmatmul.mubr.f32.gmra.mrb[0].mxu0 %v671
      %v1090 = vpop.f32.mrb[0].mxu0
      %v1091 = vadd.f32 %v876, %v1090
      %v1092 = vpop.f32.mrb[0].mxu0
      %1093 = vmatprep.mubr.f32.mxu0 %v676
      %1094 = vmatmul.mubr.f32.gmra.mrb[0].mxu0 %v675
      %v1095 = vpop.f32.mrb[0].mxu0
      %v1096 = vadd.f32 %v881, %v1095
      %v1097 = vpop.f32.mrb[0].mxu0
      %1098 = vmatprep.mubr.f32.mxu0 %v680
      %1099 = vmatmul.mubr.f32.gmra.mrb[0].mxu0 %v679
      %v1100 = vpop.f32.mrb[0].mxu0
      %v1101 = vadd.f32 %v886, %v1100
      %v1102 = vpop.f32.mrb[0].mxu0
      %1103 = vmatprep.mubr.f32.mxu0 %v684
      %1104 = vmatmul.mubr.f32.gmra.mrb[0].mxu0 %v683
      %v1105 = vpop.f32.mrb[0].mxu0
      %v1106 = vadd.f32 %v891, %v1105
      %v1107 = vpop.f32.mrb[0].mxu0
      %1108 = vmatprep.mubr.f32.mxu0 %v688
      %1109 = vmatmul.mubr.f32.gmra.mrb[0].mxu0 %v687
      %v1110 = vpop.f32.mrb[0].mxu0
      %v1111 = vadd.f32 %v896, %v1110
      %v1112 = vpop.f32.mrb[0].mxu0
      %1113 = vmatprep.mubr.f32.mxu0 %v692
      %1114 = vmatmul.mubr.f32.gmra.mrb[0].mxu0 %v691
      %v1115 = vpop.f32.mrb[0].mxu0
      %v1116 = vadd.f32 %v901, %v1115
      %v1117 = vpop.f32.mrb[0].mxu0
      %1118 = vmatprep.mubr.f32.mxu0 %v696
      %1119 = vmatmul.mubr.f32.gmra.mrb[0].mxu0 %v695
      %v1120 = vpop.f32.mrb[0].mxu0
      %v1121 = vadd.f32 %v906, %v1120
      %v1122 = vpop.f32.mrb[0].mxu0
      %1123 = vmatprep.mubr.f32.mxu0 %v700
      %1124 = vmatmul.mubr.f32.gmra.mrb[0].mxu0 %v699
      %v1125 = vpop.f32.mrb[0].mxu0
      %v1126 = vadd.f32 %v911, %v1125
      %v1127 = vpop.f32.mrb[0].mxu0
      %1128 = vmatprep.mubr.f32.mxu0 %v704
      %1129 = vmatmul.mubr.f32.gmra.mrb[0].mxu0 %v703
      %v1130 = vpop.f32.mrb[0].mxu0
      %v1131 = vadd.f32 %v916, %v1130
      %v1132 = vpop.f32.mrb[0].mxu0
      %1133 = vmatprep.mubr.f32.mxu0 %v708
      %1134 = vmatmul.mubr.f32.gmra.mrb[0].mxu0 %v707
      %v1135 = vpop.f32.mrb[0].mxu0
      %v1136 = vadd.f32 %v921, %v1135
      %v1137 = vpop.f32.mrb[0].mxu0
      %1138 = vdwg.mxu0
      %v1139 = vld [vmem:[%s2] sm:$0xff]
      %v1140 = vld [vmem:[%s2 + $0x8] sm:$0xff]
      %v1141 = vld [vmem:[%s2 + $0x10] sm:$0xff]
      %v1142 = vld [vmem:[%s2 + $0x18] sm:$0xff]
      %v1143 = vld [vmem:[%s2 + $0x20] sm:$0xff]
      %v1144 = vld [vmem:[%s2 + $0x28] sm:$0xff]
      %v1145 = vld [vmem:[%s2 + $0x30] sm:$0xff]
      %v1146 = vld [vmem:[%s2 + $0x38] sm:$0xff]
      %v1147 = vld [vmem:[%s2 + $0x40] sm:$0xff]
      %v1148 = vld [vmem:[%s2 + $0x48] sm:$0xff]
      %v1149 = vld [vmem:[%s2 + $0x50] sm:$0xff]
      %v1150 = vld [vmem:[%s2 + $0x58] sm:$0xff]
      %s1151 = scalar_lea.vmem %s1, 960
      %v1152 = vld [vmem:[%s1151] sm:$0xff]
      %v1153 = vld [vmem:[%s1151 + $0x8] sm:$0xff]
      %v1154 = vld [vmem:[%s1151 + $0x10] sm:$0xff]
      %v1155 = vld [vmem:[%s1151 + $0x18] sm:$0xff]
      %v1156 = vld [vmem:[%s1151 + $0x20] sm:$0xff]
      %v1157 = vld [vmem:[%s1151 + $0x28] sm:$0xff]
      %v1158 = vld [vmem:[%s1151 + $0x30] sm:$0xff]
      %v1159 = vld [vmem:[%s1151 + $0x38] sm:$0xff]
      %v1160 = vld [vmem:[%s1151 + $0x40] sm:$0xff]
      %v1161 = vld [vmem:[%s1151 + $0x48] sm:$0xff]
      %v1162 = vld [vmem:[%s1151 + $0x50] sm:$0xff]
      %v1163 = vld [vmem:[%s1151 + $0x58] sm:$0xff]
      %v1164 = vld [vmem:[%s1151 + $0x60] sm:$0xff]
      %v1165 = vld [vmem:[%s1151 + $0x68] sm:$0xff]
      %v1166 = vld [vmem:[%s1151 + $0x70] sm:$0xff]
      %v1167 = vld [vmem:[%s1151 + $0x78] sm:$0xff]
      %v1168 = vld [vmem:[%s1151 + $0x80] sm:$0xff]
      %v1169 = vld [vmem:[%s1151 + $0x88] sm:$0xff]
      %v1170 = vld [vmem:[%s1151 + $0x90] sm:$0xff]
      %v1171 = vld [vmem:[%s1151 + $0x98] sm:$0xff]
      %v1172 = vld [vmem:[%s1151 + $0xa0] sm:$0xff]
      %v1173 = vld [vmem:[%s1151 + $0xa8] sm:$0xff]
      %v1174 = vld [vmem:[%s1151 + $0xb0] sm:$0xff]
      %v1175 = vld [vmem:[%s1151 + $0xb8] sm:$0xff]
      %v1176 = vld [vmem:[%s1151 + $0xc0] sm:$0xff]
      %v1177 = vld [vmem:[%s1151 + $0xc8] sm:$0xff]
      %v1178 = vld [vmem:[%s1151 + $0xd0] sm:$0xff]
      %v1179 = vld [vmem:[%s1151 + $0xd8] sm:$0xff]
      %v1180 = vld [vmem:[%s1151 + $0xe0] sm:$0xff]
      %v1181 = vld [vmem:[%s1151 + $0xe8] sm:$0xff]
      %v1182 = vld [vmem:[%s1151 + $0xf0] sm:$0xff]
      %v1183 = vld [vmem:[%s1151 + $0xf8] sm:$0xff]
      %v1184 = vld [vmem:[%s1151 + $0x100] sm:$0xff]
      %v1185 = vld [vmem:[%s1151 + $0x108] sm:$0xff]
      %v1186 = vld [vmem:[%s1151 + $0x110] sm:$0xff]
      %v1187 = vld [vmem:[%s1151 + $0x118] sm:$0xff]
      %v1188 = vld [vmem:[%s1151 + $0x120] sm:$0xff]
      %v1189 = vld [vmem:[%s1151 + $0x128] sm:$0xff]
      %v1190 = vld [vmem:[%s1151 + $0x130] sm:$0xff]
      %v1191 = vld [vmem:[%s1151 + $0x138] sm:$0xff]
      %v1192 = vld [vmem:[%s1151 + $0x140] sm:$0xff]
      %v1193 = vld [vmem:[%s1151 + $0x148] sm:$0xff]
      %v1194 = vld [vmem:[%s1151 + $0x150] sm:$0xff]
      %v1195 = vld [vmem:[%s1151 + $0x158] sm:$0xff]
      %v1196 = vld [vmem:[%s1151 + $0x160] sm:$0xff]
      %v1197 = vld [vmem:[%s1151 + $0x168] sm:$0xff]
      %v1198 = vld [vmem:[%s1151 + $0x170] sm:$0xff]
      %v1199 = vld [vmem:[%s1151 + $0x178] sm:$0xff]
      %v1200 = vld [vmem:[%s1151 + $0x180] sm:$0xff]
      %v1201 = vld [vmem:[%s1151 + $0x188] sm:$0xff]
      %v1202 = vld [vmem:[%s1151 + $0x190] sm:$0xff]
      %v1203 = vld [vmem:[%s1151 + $0x198] sm:$0xff]
      %v1204 = vld [vmem:[%s1151 + $0x1a0] sm:$0xff]
      %v1205 = vld [vmem:[%s1151 + $0x1a8] sm:$0xff]
      %v1206 = vld [vmem:[%s1151 + $0x1b0] sm:$0xff]
      %v1207 = vld [vmem:[%s1151 + $0x1b8] sm:$0xff]
      %v1208 = vld [vmem:[%s1151 + $0x1c0] sm:$0xff]
      %v1209 = vld [vmem:[%s1151 + $0x1c8] sm:$0xff]
      %v1210 = vld [vmem:[%s1151 + $0x1d0] sm:$0xff]
      %v1211 = vld [vmem:[%s1151 + $0x1d8] sm:$0xff]
      %v1212 = vld [vmem:[%s1151 + $0x1e0] sm:$0xff]
      %v1213 = vld [vmem:[%s1151 + $0x1e8] sm:$0xff]
      %v1214 = vld [vmem:[%s1151 + $0x1f0] sm:$0xff]
      %v1215 = vld [vmem:[%s1151 + $0x1f8] sm:$0xff]
      %v1216 = vld [vmem:[%s1151 + $0x200] sm:$0xff]
      %v1217 = vld [vmem:[%s1151 + $0x208] sm:$0xff]
      %v1218 = vld [vmem:[%s1151 + $0x210] sm:$0xff]
      %v1219 = vld [vmem:[%s1151 + $0x218] sm:$0xff]
      %v1220 = vld [vmem:[%s1151 + $0x220] sm:$0xff]
      %v1221 = vld [vmem:[%s1151 + $0x228] sm:$0xff]
      %v1222 = vld [vmem:[%s1151 + $0x230] sm:$0xff]
      %v1223 = vld [vmem:[%s1151 + $0x238] sm:$0xff]
      %v1224 = vld [vmem:[%s1151 + $0x240] sm:$0xff]
      %v1225 = vld [vmem:[%s1151 + $0x248] sm:$0xff]
      %v1226 = vld [vmem:[%s1151 + $0x250] sm:$0xff]
      %v1227 = vld [vmem:[%s1151 + $0x258] sm:$0xff]
      %v1228 = vld [vmem:[%s1151 + $0x260] sm:$0xff]
      %v1229 = vld [vmem:[%s1151 + $0x268] sm:$0xff]
      %v1230 = vld [vmem:[%s1151 + $0x270] sm:$0xff]
      %v1231 = vld [vmem:[%s1151 + $0x278] sm:$0xff]
      %v1232 = vld [vmem:[%s1151 + $0x280] sm:$0xff]
      %v1233 = vld [vmem:[%s1151 + $0x288] sm:$0xff]
      %v1234 = vld [vmem:[%s1151 + $0x290] sm:$0xff]
      %v1235 = vld [vmem:[%s1151 + $0x298] sm:$0xff]
      %v1236 = vld [vmem:[%s1151 + $0x2a0] sm:$0xff]
      %v1237 = vld [vmem:[%s1151 + $0x2a8] sm:$0xff]
      %v1238 = vld [vmem:[%s1151 + $0x2b0] sm:$0xff]
      %v1239 = vld [vmem:[%s1151 + $0x2b8] sm:$0xff]
      %v1240 = vld [vmem:[%s1151 + $0x2c0] sm:$0xff]
      %v1241 = vld [vmem:[%s1151 + $0x2c8] sm:$0xff]
      %v1242 = vld [vmem:[%s1151 + $0x2d0] sm:$0xff]
      %v1243 = vld [vmem:[%s1151 + $0x2d8] sm:$0xff]
      %v1244 = vld [vmem:[%s1151 + $0x2e0] sm:$0xff]
      %v1245 = vld [vmem:[%s1151 + $0x2e8] sm:$0xff]
      %v1246 = vld [vmem:[%s1151 + $0x2f0] sm:$0xff]
      %v1247 = vld [vmem:[%s1151 + $0x2f8] sm:$0xff]
      %v1248 = vld [vmem:[%s1151 + $0x300] sm:$0xff]
      %v1249 = vld [vmem:[%s1151 + $0x308] sm:$0xff]
      %v1250 = vld [vmem:[%s1151 + $0x310] sm:$0xff]
      %v1251 = vld [vmem:[%s1151 + $0x318] sm:$0xff]
      %v1252 = vld [vmem:[%s1151 + $0x320] sm:$0xff]
      %v1253 = vld [vmem:[%s1151 + $0x328] sm:$0xff]
      %v1254 = vld [vmem:[%s1151 + $0x330] sm:$0xff]
      %v1255 = vld [vmem:[%s1151 + $0x338] sm:$0xff]
      %v1256 = vld [vmem:[%s1151 + $0x340] sm:$0xff]
      %v1257 = vld [vmem:[%s1151 + $0x348] sm:$0xff]
      %v1258 = vld [vmem:[%s1151 + $0x350] sm:$0xff]
      %v1259 = vld [vmem:[%s1151 + $0x358] sm:$0xff]
      %v1260 = vld [vmem:[%s1151 + $0x360] sm:$0xff]
      %v1261 = vld [vmem:[%s1151 + $0x368] sm:$0xff]
      %v1262 = vld [vmem:[%s1151 + $0x370] sm:$0xff]
      %v1263 = vld [vmem:[%s1151 + $0x378] sm:$0xff]
      %v1264 = vld [vmem:[%s1151 + $0x380] sm:$0xff]
      %v1265 = vld [vmem:[%s1151 + $0x388] sm:$0xff]
      %v1266 = vld [vmem:[%s1151 + $0x390] sm:$0xff]
      %v1267 = vld [vmem:[%s1151 + $0x398] sm:$0xff]
      %v1268 = vld [vmem:[%s1151 + $0x3a0] sm:$0xff]
      %v1269 = vld [vmem:[%s1151 + $0x3a8] sm:$0xff]
      %v1270 = vld [vmem:[%s1151 + $0x3b0] sm:$0xff]
      %v1271 = vld [vmem:[%s1151 + $0x3b8] sm:$0xff]
      %1272 = vmatprep.subr.mxu0 0.0
      %1273 = vmatpush1.msra.mxu0 %v525
      %1274 = vmatprep.subr.mxu0 0.0
      %1275 = vmatpush1.msra.mxu0 %v526
      %1276 = vmatprep.subr.mxu0 0.0
      %1277 = vmatpush1.msra.mxu0 %v527
      %1278 = vmatprep.subr.mxu0 0.0
      %1279 = vmatpush1.msra.mxu0 %v528
      %1280 = vmatprep.subr.mxu0 0.0
      %1281 = vmatpush1.msra.mxu0 %v529
      %1282 = vmatprep.subr.mxu0 0.0
      %1283 = vmatpush1.msra.mxu0 %v530
      %1284 = vmatprep.subr.mxu0 0.0
      %1285 = vmatpush1.msra.mxu0 %v531
      %1286 = vmatprep.subr.mxu0 0.0
      %1287 = vmatpush1.msra.mxu0 %v532
      %1288 = vmatprep.subr.mxu0 0.0
      %1289 = vmatpush1.msra.mxu0 %v533
      %1290 = vmatprep.subr.mxu0 0.0
      %1291 = vmatpush1.msra.mxu0 %v534
      %1292 = vmatprep.subr.mxu0 0.0
      %1293 = vmatpush1.msra.mxu0 %v535
      %1294 = vmatprep.subr.mxu0 0.0
      %1295 = vmatpush1.msra.mxu0 %v536
      %1296 = vmatprep.subr.mxu0 0.0
      %1297 = vmatpush1.msra.mxu0 %v537
      %1298 = vmatprep.subr.mxu0 0.0
      %1299 = vmatpush1.msra.mxu0 %v538
      %1300 = vmatprep.subr.mxu0 0.0
      %1301 = vmatpush1.msra.mxu0 %v539
      %1302 = vmatprep.subr.mxu0 0.0
      %1303 = vmatpush1.msra.mxu0 %v540
      %1304 = vmatprep.subr.mxu0 0.0
      %1305 = vmatpush1.msra.mxu0 %v541
      %1306 = vmatprep.subr.mxu0 0.0
      %1307 = vmatpush1.msra.mxu0 %v542
      %1308 = vmatprep.subr.mxu0 0.0
      %1309 = vmatpush1.msra.mxu0 %v543
      %1310 = vmatprep.subr.mxu0 0.0
      %1311 = vmatpush1.msra.mxu0 %v544
      %1312 = vmatprep.subr.mxu0 0.0
      %1313 = vmatpush1.msra.mxu0 %v545
      %1314 = vmatprep.subr.mxu0 0.0
      %1315 = vmatpush1.msra.mxu0 %v546
      %1316 = vmatprep.subr.mxu0 0.0
      %1317 = vmatpush1.msra.mxu0 %v547
      %1318 = vmatprep.subr.mxu0 0.0
      %1319 = vmatpush1.msra.mxu0 %v548
      %1320 = vmatprep.subr.mxu0 0.0
      %1321 = vmatpush1.msra.mxu0 %v549
      %1322 = vmatprep.subr.mxu0 0.0
      %1323 = vmatpush1.msra.mxu0 %v550
      %1324 = vmatprep.subr.mxu0 0.0
      %1325 = vmatpush1.msra.mxu0 %v551
      %1326 = vmatprep.subr.mxu0 0.0
      %1327 = vmatpush1.msra.mxu0 %v552
      %1328 = vmatprep.subr.mxu0 0.0
      %1329 = vmatpush1.msra.mxu0 %v553
      %1330 = vmatprep.subr.mxu0 0.0
      %1331 = vmatpush1.msra.mxu0 %v554
      %1332 = vmatprep.subr.mxu0 0.0
      %1333 = vmatpush1.msra.mxu0 %v555
      %1334 = vmatprep.subr.mxu0 0.0
      %1335 = vmatpush1.msra.mxu0 %v556
      %1336 = vmatprep.mubr.f32.mxu0 %v1153
      %1337 = vmatmul.mubr.f32.gmra.mrb[0].mxu0 %v1152
      %v1338 = vpop.f32.mrb[0].mxu0
      %v1339 = vadd.f32 0.0, %v1338
      %v1340 = vpop.f32.mrb[0].mxu0
      %1341 = vmatprep.mubr.f32.mxu0 %v1157
      %1342 = vmatmul.mubr.f32.gmra.mrb[0].mxu0 %v1156
      %v1343 = vpop.f32.mrb[0].mxu0
      %v1344 = vadd.f32 0.0, %v1343
      %v1345 = vpop.f32.mrb[0].mxu0
      %1346 = vmatprep.mubr.f32.mxu0 %v1161
      %1347 = vmatmul.mubr.f32.gmra.mrb[0].mxu0 %v1160
      %v1348 = vpop.f32.mrb[0].mxu0
      %v1349 = vadd.f32 0.0, %v1348
      %v1350 = vpop.f32.mrb[0].mxu0
      %1351 = vmatprep.mubr.f32.mxu0 %v1165
      %1352 = vmatmul.mubr.f32.gmra.mrb[0].mxu0 %v1164
      %v1353 = vpop.f32.mrb[0].mxu0
      %v1354 = vadd.f32 0.0, %v1353
      %v1355 = vpop.f32.mrb[0].mxu0
      %1356 = vmatprep.mubr.f32.mxu0 %v1169
      %1357 = vmatmul.mubr.f32.gmra.mrb[0].mxu0 %v1168
      %v1358 = vpop.f32.mrb[0].mxu0
      %v1359 = vadd.f32 0.0, %v1358
      %v1360 = vpop.f32.mrb[0].mxu0
      %1361 = vmatprep.mubr.f32.mxu0 %v1173
      %1362 = vmatmul.mubr.f32.gmra.mrb[0].mxu0 %v1172
      %v1363 = vpop.f32.mrb[0].mxu0
      %v1364 = vadd.f32 0.0, %v1363
      %v1365 = vpop.f32.mrb[0].mxu0
      %1366 = vmatprep.mubr.f32.mxu0 %v1177
      %1367 = vmatmul.mubr.f32.gmra.mrb[0].mxu0 %v1176
      %v1368 = vpop.f32.mrb[0].mxu0
      %v1369 = vadd.f32 0.0, %v1368
      %v1370 = vpop.f32.mrb[0].mxu0
      %1371 = vmatprep.mubr.f32.mxu0 %v1181
      %1372 = vmatmul.mubr.f32.gmra.mrb[0].mxu0 %v1180
      %v1373 = vpop.f32.mrb[0].mxu0
      %v1374 = vadd.f32 0.0, %v1373
      %v1375 = vpop.f32.mrb[0].mxu0
      %1376 = vmatprep.mubr.f32.mxu0 %v1185
      %1377 = vmatmul.mubr.f32.gmra.mrb[0].mxu0 %v1184
      %v1378 = vpop.f32.mrb[0].mxu0
      %v1379 = vadd.f32 0.0, %v1378
      %v1380 = vpop.f32.mrb[0].mxu0
      %1381 = vmatprep.mubr.f32.mxu0 %v1189
      %1382 = vmatmul.mubr.f32.gmra.mrb[0].mxu0 %v1188
      %v1383 = vpop.f32.mrb[0].mxu0
      %v1384 = vadd.f32 0.0, %v1383
      %v1385 = vpop.f32.mrb[0].mxu0
      %1386 = vmatprep.mubr.f32.mxu0 %v1193
      %1387 = vmatmul.mubr.f32.gmra.mrb[0].mxu0 %v1192
      %v1388 = vpop.f32.mrb[0].mxu0
      %v1389 = vadd.f32 0.0, %v1388
      %v1390 = vpop.f32.mrb[0].mxu0
      %1391 = vmatprep.mubr.f32.mxu0 %v1197
      %1392 = vmatmul.mubr.f32.gmra.mrb[0].mxu0 %v1196
      %v1393 = vpop.f32.mrb[0].mxu0
      %v1394 = vadd.f32 0.0, %v1393
      %v1395 = vpop.f32.mrb[0].mxu0
      %1396 = vmatprep.mubr.f32.mxu0 %v1201
      %1397 = vmatmul.mubr.f32.gmra.mrb[0].mxu0 %v1200
      %v1398 = vpop.f32.mrb[0].mxu0
      %v1399 = vadd.f32 0.0, %v1398
      %v1400 = vpop.f32.mrb[0].mxu0
      %1401 = vmatprep.mubr.f32.mxu0 %v1205
      %1402 = vmatmul.mubr.f32.gmra.mrb[0].mxu0 %v1204
      %v1403 = vpop.f32.mrb[0].mxu0
      %v1404 = vadd.f32 0.0, %v1403
      %v1405 = vpop.f32.mrb[0].mxu0
      %1406 = vmatprep.mubr.f32.mxu0 %v1209
      %1407 = vmatmul.mubr.f32.gmra.mrb[0].mxu0 %v1208
      %v1408 = vpop.f32.mrb[0].mxu0
      %v1409 = vadd.f32 0.0, %v1408
      %v1410 = vpop.f32.mrb[0].mxu0
      %1411 = vmatprep.mubr.f32.mxu0 %v1213
      %1412 = vmatmul.mubr.f32.gmra.mrb[0].mxu0 %v1212
      %v1413 = vpop.f32.mrb[0].mxu0
      %v1414 = vadd.f32 0.0, %v1413
      %v1415 = vpop.f32.mrb[0].mxu0
      %1416 = vmatprep.mubr.f32.mxu0 %v1217
      %1417 = vmatmul.mubr.f32.gmra.mrb[0].mxu0 %v1216
      %v1418 = vpop.f32.mrb[0].mxu0
      %v1419 = vadd.f32 0.0, %v1418
      %v1420 = vpop.f32.mrb[0].mxu0
      %1421 = vmatprep.mubr.f32.mxu0 %v1221
      %1422 = vmatmul.mubr.f32.gmra.mrb[0].mxu0 %v1220
      %v1423 = vpop.f32.mrb[0].mxu0
      %v1424 = vadd.f32 0.0, %v1423
      %v1425 = vpop.f32.mrb[0].mxu0
      %1426 = vmatprep.mubr.f32.mxu0 %v1225
      %1427 = vmatmul.mubr.f32.gmra.mrb[0].mxu0 %v1224
      %v1428 = vpop.f32.mrb[0].mxu0
      %v1429 = vadd.f32 0.0, %v1428
      %v1430 = vpop.f32.mrb[0].mxu0
      %1431 = vmatprep.mubr.f32.mxu0 %v1229
      %1432 = vmatmul.mubr.f32.gmra.mrb[0].mxu0 %v1228
      %v1433 = vpop.f32.mrb[0].mxu0
      %v1434 = vadd.f32 0.0, %v1433
      %v1435 = vpop.f32.mrb[0].mxu0
      %1436 = vmatprep.mubr.f32.mxu0 %v1233
      %1437 = vmatmul.mubr.f32.gmra.mrb[0].mxu0 %v1232
      %v1438 = vpop.f32.mrb[0].mxu0
      %v1439 = vadd.f32 0.0, %v1438
      %v1440 = vpop.f32.mrb[0].mxu0
      %1441 = vmatprep.mubr.f32.mxu0 %v1237
      %1442 = vmatmul.mubr.f32.gmra.mrb[0].mxu0 %v1236
      %v1443 = vpop.f32.mrb[0].mxu0
      %v1444 = vadd.f32 0.0, %v1443
      %v1445 = vpop.f32.mrb[0].mxu0
      %1446 = vmatprep.mubr.f32.mxu0 %v1241
      %1447 = vmatmul.mubr.f32.gmra.mrb[0].mxu0 %v1240
      %v1448 = vpop.f32.mrb[0].mxu0
      %v1449 = vadd.f32 0.0, %v1448
      %v1450 = vpop.f32.mrb[0].mxu0
      %1451 = vmatprep.mubr.f32.mxu0 %v1245
      %1452 = vmatmul.mubr.f32.gmra.mrb[0].mxu0 %v1244
      %v1453 = vpop.f32.mrb[0].mxu0
      %v1454 = vadd.f32 0.0, %v1453
      %v1455 = vpop.f32.mrb[0].mxu0
      %1456 = vmatprep.mubr.f32.mxu0 %v1249
      %1457 = vmatmul.mubr.f32.gmra.mrb[0].mxu0 %v1248
      %v1458 = vpop.f32.mrb[0].mxu0
      %v1459 = vadd.f32 0.0, %v1458
      %v1460 = vpop.f32.mrb[0].mxu0
      %1461 = vmatprep.mubr.f32.mxu0 %v1253
      %1462 = vmatmul.mubr.f32.gmra.mrb[0].mxu0 %v1252
      %v1463 = vpop.f32.mrb[0].mxu0
      %v1464 = vadd.f32 0.0, %v1463
      %v1465 = vpop.f32.mrb[0].mxu0
      %1466 = vmatprep.mubr.f32.mxu0 %v1257
      %1467 = vmatmul.mubr.f32.gmra.mrb[0].mxu0 %v1256
      %v1468 = vpop.f32.mrb[0].mxu0
      %v1469 = vadd.f32 0.0, %v1468
      %v1470 = vpop.f32.mrb[0].mxu0
      %1471 = vmatprep.mubr.f32.mxu0 %v1261
      %1472 = vmatmul.mubr.f32.gmra.mrb[0].mxu0 %v1260
      %v1473 = vpop.f32.mrb[0].mxu0
      %v1474 = vadd.f32 0.0, %v1473
      %v1475 = vpop.f32.mrb[0].mxu0
      %1476 = vmatprep.mubr.f32.mxu0 %v1265
      %1477 = vmatmul.mubr.f32.gmra.mrb[0].mxu0 %v1264
      %v1478 = vpop.f32.mrb[0].mxu0
      %v1479 = vadd.f32 0.0, %v1478
      %v1480 = vpop.f32.mrb[0].mxu0
      %1481 = vmatprep.mubr.f32.mxu0 %v1269
      %1482 = vmatmul.mubr.f32.gmra.mrb[0].mxu0 %v1268
      %v1483 = vpop.f32.mrb[0].mxu0
      %v1484 = vadd.f32 0.0, %v1483
      %v1485 = vpop.f32.mrb[0].mxu0
      %1486 = vdwg.mxu0
      %1487 = vmatprep.subr.mxu0 0.0
      %1488 = vmatpush1.msra.mxu0 %v557
      %1489 = vmatprep.subr.mxu0 0.0
      %1490 = vmatpush1.msra.mxu0 %v558
      %1491 = vmatprep.subr.mxu0 0.0
      %1492 = vmatpush1.msra.mxu0 %v559
      %1493 = vmatprep.subr.mxu0 0.0
      %1494 = vmatpush1.msra.mxu0 %v560
      %1495 = vmatprep.subr.mxu0 0.0
      %1496 = vmatpush1.msra.mxu0 %v561
      %1497 = vmatprep.subr.mxu0 0.0
      %1498 = vmatpush1.msra.mxu0 %v562
      %1499 = vmatprep.subr.mxu0 0.0
      %1500 = vmatpush1.msra.mxu0 %v563
      %1501 = vmatprep.subr.mxu0 0.0
      %1502 = vmatpush1.msra.mxu0 %v564
      %1503 = vmatprep.subr.mxu0 0.0
      %1504 = vmatpush1.msra.mxu0 %v565
      %1505 = vmatprep.subr.mxu0 0.0
      %1506 = vmatpush1.msra.mxu0 %v566
      %1507 = vmatprep.subr.mxu0 0.0
      %1508 = vmatpush1.msra.mxu0 %v567
      %1509 = vmatprep.subr.mxu0 0.0
      %1510 = vmatpush1.msra.mxu0 %v568
      %1511 = vmatprep.subr.mxu0 0.0
      %1512 = vmatpush1.msra.mxu0 %v569
      %1513 = vmatprep.subr.mxu0 0.0
      %1514 = vmatpush1.msra.mxu0 %v570
      %1515 = vmatprep.subr.mxu0 0.0
      %1516 = vmatpush1.msra.mxu0 %v571
      %1517 = vmatprep.subr.mxu0 0.0
      %1518 = vmatpush1.msra.mxu0 %v572
      %1519 = vmatprep.subr.mxu0 0.0
      %1520 = vmatpush1.msra.mxu0 %v573
      %1521 = vmatprep.subr.mxu0 0.0
      %1522 = vmatpush1.msra.mxu0 %v574
      %1523 = vmatprep.subr.mxu0 0.0
      %1524 = vmatpush1.msra.mxu0 %v575
      %1525 = vmatprep.subr.mxu0 0.0
      %1526 = vmatpush1.msra.mxu0 %v576
      %1527 = vmatprep.subr.mxu0 0.0
      %1528 = vmatpush1.msra.mxu0 %v577
      %1529 = vmatprep.subr.mxu0 0.0
      %1530 = vmatpush1.msra.mxu0 %v578
      %1531 = vmatprep.subr.mxu0 0.0
      %1532 = vmatpush1.msra.mxu0 %v579
      %1533 = vmatprep.subr.mxu0 0.0
      %1534 = vmatpush1.msra.mxu0 %v580
      %1535 = vmatprep.subr.mxu0 0.0
      %1536 = vmatpush1.msra.mxu0 %v581
      %1537 = vmatprep.subr.mxu0 0.0
      %1538 = vmatpush1.msra.mxu0 %v582
      %1539 = vmatprep.subr.mxu0 0.0
      %1540 = vmatpush1.msra.mxu0 %v583
      %1541 = vmatprep.subr.mxu0 0.0
      %1542 = vmatpush1.msra.mxu0 %v584
      %1543 = vmatprep.subr.mxu0 0.0
      %1544 = vmatpush1.msra.mxu0 %v585
      %1545 = vmatprep.subr.mxu0 0.0
      %1546 = vmatpush1.msra.mxu0 %v586
      %1547 = vmatprep.subr.mxu0 0.0
      %1548 = vmatpush1.msra.mxu0 %v587
      %1549 = vmatprep.subr.mxu0 0.0
      %1550 = vmatpush1.msra.mxu0 %v588
      %1551 = vmatprep.mubr.f32.mxu0 %v1155
      %1552 = vmatmul.mubr.f32.gmra.mrb[0].mxu0 %v1154
      %v1553 = vpop.f32.mrb[0].mxu0
      %v1554 = vadd.f32 %v1339, %v1553
      %v1555 = vpop.f32.mrb[0].mxu0
      %1556 = vmatprep.mubr.f32.mxu0 %v1159
      %1557 = vmatmul.mubr.f32.gmra.mrb[0].mxu0 %v1158
      %v1558 = vpop.f32.mrb[0].mxu0
      %v1559 = vadd.f32 %v1344, %v1558
      %v1560 = vpop.f32.mrb[0].mxu0
      %1561 = vmatprep.mubr.f32.mxu0 %v1163
      %1562 = vmatmul.mubr.f32.gmra.mrb[0].mxu0 %v1162
      %v1563 = vpop.f32.mrb[0].mxu0
      %v1564 = vadd.f32 %v1349, %v1563
      %v1565 = vpop.f32.mrb[0].mxu0
      %1566 = vmatprep.mubr.f32.mxu0 %v1167
      %1567 = vmatmul.mubr.f32.gmra.mrb[0].mxu0 %v1166
      %v1568 = vpop.f32.mrb[0].mxu0
      %v1569 = vadd.f32 %v1354, %v1568
      %v1570 = vpop.f32.mrb[0].mxu0
      %1571 = vmatprep.mubr.f32.mxu0 %v1171
      %1572 = vmatmul.mubr.f32.gmra.mrb[0].mxu0 %v1170
      %v1573 = vpop.f32.mrb[0].mxu0
      %v1574 = vadd.f32 %v1359, %v1573
      %v1575 = vpop.f32.mrb[0].mxu0
      %1576 = vmatprep.mubr.f32.mxu0 %v1175
      %1577 = vmatmul.mubr.f32.gmra.mrb[0].mxu0 %v1174
      %v1578 = vpop.f32.mrb[0].mxu0
      %v1579 = vadd.f32 %v1364, %v1578
      %v1580 = vpop.f32.mrb[0].mxu0
      %1581 = vmatprep.mubr.f32.mxu0 %v1179
      %1582 = vmatmul.mubr.f32.gmra.mrb[0].mxu0 %v1178
      %v1583 = vpop.f32.mrb[0].mxu0
      %v1584 = vadd.f32 %v1369, %v1583
      %v1585 = vpop.f32.mrb[0].mxu0
      %1586 = vmatprep.mubr.f32.mxu0 %v1183
      %1587 = vmatmul.mubr.f32.gmra.mrb[0].mxu0 %v1182
      %v1588 = vpop.f32.mrb[0].mxu0
      %v1589 = vadd.f32 %v1374, %v1588
      %v1590 = vpop.f32.mrb[0].mxu0
      %1591 = vmatprep.mubr.f32.mxu0 %v1187
      %1592 = vmatmul.mubr.f32.gmra.mrb[0].mxu0 %v1186
      %v1593 = vpop.f32.mrb[0].mxu0
      %v1594 = vadd.f32 %v1379, %v1593
      %v1595 = vpop.f32.mrb[0].mxu0
      %1596 = vmatprep.mubr.f32.mxu0 %v1191
      %1597 = vmatmul.mubr.f32.gmra.mrb[0].mxu0 %v1190
      %v1598 = vpop.f32.mrb[0].mxu0
      %v1599 = vadd.f32 %v1384, %v1598
      %v1600 = vpop.f32.mrb[0].mxu0
      %1601 = vmatprep.mubr.f32.mxu0 %v1195
      %1602 = vmatmul.mubr.f32.gmra.mrb[0].mxu0 %v1194
      %v1603 = vpop.f32.mrb[0].mxu0
      %v1604 = vadd.f32 %v1389, %v1603
      %v1605 = vpop.f32.mrb[0].mxu0
      %1606 = vmatprep.mubr.f32.mxu0 %v1199
      %1607 = vmatmul.mubr.f32.gmra.mrb[0].mxu0 %v1198
      %v1608 = vpop.f32.mrb[0].mxu0
      %v1609 = vadd.f32 %v1394, %v1608
      %v1610 = vpop.f32.mrb[0].mxu0
      %1611 = vmatprep.mubr.f32.mxu0 %v1203
      %1612 = vmatmul.mubr.f32.gmra.mrb[0].mxu0 %v1202
      %v1613 = vpop.f32.mrb[0].mxu0
      %v1614 = vadd.f32 %v1399, %v1613
      %v1615 = vpop.f32.mrb[0].mxu0
      %1616 = vmatprep.mubr.f32.mxu0 %v1207
      %1617 = vmatmul.mubr.f32.gmra.mrb[0].mxu0 %v1206
      %v1618 = vpop.f32.mrb[0].mxu0
      %v1619 = vadd.f32 %v1404, %v1618
      %v1620 = vpop.f32.mrb[0].mxu0
      %1621 = vmatprep.mubr.f32.mxu0 %v1211
      %1622 = vmatmul.mubr.f32.gmra.mrb[0].mxu0 %v1210
      %v1623 = vpop.f32.mrb[0].mxu0
      %v1624 = vadd.f32 %v1409, %v1623
      %v1625 = vpop.f32.mrb[0].mxu0
      %1626 = vmatprep.mubr.f32.mxu0 %v1215
      %1627 = vmatmul.mubr.f32.gmra.mrb[0].mxu0 %v1214
      %v1628 = vpop.f32.mrb[0].mxu0
      %v1629 = vadd.f32 %v1414, %v1628
      %v1630 = vpop.f32.mrb[0].mxu0
      %1631 = vmatprep.mubr.f32.mxu0 %v1219
      %1632 = vmatmul.mubr.f32.gmra.mrb[0].mxu0 %v1218
      %v1633 = vpop.f32.mrb[0].mxu0
      %v1634 = vadd.f32 %v1419, %v1633
      %v1635 = vpop.f32.mrb[0].mxu0
      %1636 = vmatprep.mubr.f32.mxu0 %v1223
      %1637 = vmatmul.mubr.f32.gmra.mrb[0].mxu0 %v1222
      %v1638 = vpop.f32.mrb[0].mxu0
      %v1639 = vadd.f32 %v1424, %v1638
      %v1640 = vpop.f32.mrb[0].mxu0
      %1641 = vmatprep.mubr.f32.mxu0 %v1227
      %1642 = vmatmul.mubr.f32.gmra.mrb[0].mxu0 %v1226
      %v1643 = vpop.f32.mrb[0].mxu0
      %v1644 = vadd.f32 %v1429, %v1643
      %v1645 = vpop.f32.mrb[0].mxu0
      %1646 = vmatprep.mubr.f32.mxu0 %v1231
      %1647 = vmatmul.mubr.f32.gmra.mrb[0].mxu0 %v1230
      %v1648 = vpop.f32.mrb[0].mxu0
      %v1649 = vadd.f32 %v1434, %v1648
      %v1650 = vpop.f32.mrb[0].mxu0
      %1651 = vmatprep.mubr.f32.mxu0 %v1235
      %1652 = vmatmul.mubr.f32.gmra.mrb[0].mxu0 %v1234
      %v1653 = vpop.f32.mrb[0].mxu0
      %v1654 = vadd.f32 %v1439, %v1653
      %v1655 = vpop.f32.mrb[0].mxu0
      %1656 = vmatprep.mubr.f32.mxu0 %v1239
      %1657 = vmatmul.mubr.f32.gmra.mrb[0].mxu0 %v1238
      %v1658 = vpop.f32.mrb[0].mxu0
      %v1659 = vadd.f32 %v1444, %v1658
      %v1660 = vpop.f32.mrb[0].mxu0
      %1661 = vmatprep.mubr.f32.mxu0 %v1243
      %1662 = vmatmul.mubr.f32.gmra.mrb[0].mxu0 %v1242
      %v1663 = vpop.f32.mrb[0].mxu0
      %v1664 = vadd.f32 %v1449, %v1663
      %v1665 = vpop.f32.mrb[0].mxu0
      %1666 = vmatprep.mubr.f32.mxu0 %v1247
      %1667 = vmatmul.mubr.f32.gmra.mrb[0].mxu0 %v1246
      %v1668 = vpop.f32.mrb[0].mxu0
      %v1669 = vadd.f32 %v1454, %v1668
      %v1670 = vpop.f32.mrb[0].mxu0
      %1671 = vmatprep.mubr.f32.mxu0 %v1251
      %1672 = vmatmul.mubr.f32.gmra.mrb[0].mxu0 %v1250
      %v1673 = vpop.f32.mrb[0].mxu0
      %v1674 = vadd.f32 %v1459, %v1673
      %v1675 = vpop.f32.mrb[0].mxu0
      %1676 = vmatprep.mubr.f32.mxu0 %v1255
      %1677 = vmatmul.mubr.f32.gmra.mrb[0].mxu0 %v1254
      %v1678 = vpop.f32.mrb[0].mxu0
      %v1679 = vadd.f32 %v1464, %v1678
      %v1680 = vpop.f32.mrb[0].mxu0
      %1681 = vmatprep.mubr.f32.mxu0 %v1259
      %1682 = vmatmul.mubr.f32.gmra.mrb[0].mxu0 %v1258
      %v1683 = vpop.f32.mrb[0].mxu0
      %v1684 = vadd.f32 %v1469, %v1683
      %v1685 = vpop.f32.mrb[0].mxu0
      %1686 = vmatprep.mubr.f32.mxu0 %v1263
      %1687 = vmatmul.mubr.f32.gmra.mrb[0].mxu0 %v1262
      %v1688 = vpop.f32.mrb[0].mxu0
      %v1689 = vadd.f32 %v1474, %v1688
      %v1690 = vpop.f32.mrb[0].mxu0
      %1691 = vmatprep.mubr.f32.mxu0 %v1267
      %1692 = vmatmul.mubr.f32.gmra.mrb[0].mxu0 %v1266
      %v1693 = vpop.f32.mrb[0].mxu0
      %v1694 = vadd.f32 %v1479, %v1693
      %v1695 = vpop.f32.mrb[0].mxu0
      %1696 = vmatprep.mubr.f32.mxu0 %v1271
      %1697 = vmatmul.mubr.f32.gmra.mrb[0].mxu0 %v1270
      %v1698 = vpop.f32.mrb[0].mxu0
      %v1699 = vadd.f32 %v1484, %v1698
      %v1700 = vpop.f32.mrb[0].mxu0
      %1701 = vdwg.mxu0
      %s1702 = scalar_lea.vmem %s2, 96
      %v1703 = vld [vmem:[%s1702] sm:$0xff]
      %v1704 = vld [vmem:[%s1702 + $0x8] sm:$0xff]
      %v1705 = vld [vmem:[%s1702 + $0x10] sm:$0xff]
      %v1706 = vld [vmem:[%s1702 + $0x18] sm:$0xff]
      %v1707 = vld [vmem:[%s1702 + $0x20] sm:$0xff]
      %v1708 = vld [vmem:[%s1702 + $0x28] sm:$0xff]
      %v1709 = vld [vmem:[%s1702 + $0x30] sm:$0xff]
      %v1710 = vld [vmem:[%s1702 + $0x38] sm:$0xff]
      %v1711 = vld [vmem:[%s1702 + $0x40] sm:$0xff]
      %v1712 = vld [vmem:[%s1702 + $0x48] sm:$0xff]
      %v1713 = vld [vmem:[%s1702 + $0x50] sm:$0xff]
      %v1714 = vld [vmem:[%s1702 + $0x58] sm:$0xff]
      %vm1715 = vcmask 785408
      %v1717 = vsel %vm1715, %v1554, 0
      %v1720 = vsel %vm1715, %v1559, 0
      %v1723 = vsel %vm1715, %v1564, 0
      %v1726 = vsel %vm1715, %v1569, 0
      %v1729 = vsel %vm1715, %v1574, 0
      %v1732 = vsel %vm1715, %v1579, 0
      %v1735 = vsel %vm1715, %v1584, 0
      %v1738 = vsel %vm1715, %v1589, 0
      %v1741 = vsel %vm1715, %v1594, 0
      %v1744 = vsel %vm1715, %v1599, 0
      %v1747 = vsel %vm1715, %v1604, 0
      %v1750 = vsel %vm1715, %v1609, 0
      %v1753 = vsel %vm1715, %v1614, 0
      %v1756 = vsel %vm1715, %v1619, 0
      %v1759 = vsel %vm1715, %v1624, 0
      %v1762 = vsel %vm1715, %v1629, 0
      %v1765 = vsel %vm1715, %v1634, 0
      %v1768 = vsel %vm1715, %v1639, 0
      %v1771 = vsel %vm1715, %v1644, 0
      %v1774 = vsel %vm1715, %v1649, 0
      %v1777 = vsel %vm1715, %v1654, 0
      %v1780 = vsel %vm1715, %v1659, 0
      %v1783 = vsel %vm1715, %v1664, 0
      %v1786 = vsel %vm1715, %v1669, 0
      %v1789 = vsel %vm1715, %v1674, 0
      %v1792 = vsel %vm1715, %v1679, 0
      %v1795 = vsel %vm1715, %v1684, 0
      %v1798 = vsel %vm1715, %v1689, 0
      %v1801 = vsel %vm1715, %v1694, 0
      %v1804 = vsel %vm1715, %v1699, 0
      %1806 = vmatprep.subr.mxu0 0.0
      %1807 = vmatpush1.msra.mxu0 %v1703
      %1808 = vmatprep.subr.mxu0 0.0
      %1809 = vmatpush1.msra.mxu0 %v1704
      %1810 = vmatprep.subr.mxu0 0.0
      %1811 = vmatpush1.msra.mxu0 %v1705
      %1812 = vmatprep.subr.mxu0 0.0
      %1813 = vmatpush1.msra.mxu0 %v1706
      %1814 = vmatprep.subr.mxu0 0.0
      %1815 = vmatpush1.msra.mxu0 %v1707
      %1816 = vmatprep.subr.mxu0 0.0
      %1817 = vmatpush1.msra.mxu0 %v1708
      %1818 = vmatprep.subr.mxu0 0.0
      %1819 = vmatpush1.msra.mxu0 %v1709
      %1820 = vmatprep.subr.mxu0 0.0
      %1821 = vmatpush1.msra.mxu0 %v1710
      %1822 = vmatprep.subr.mxu0 0.0
      %1823 = vmatpush1.msra.mxu0 %v1711
      %1824 = vmatprep.subr.mxu0 0.0
      %1825 = vmatpush1.msra.mxu0 %v1712
      %1826 = vmatprep.subr.mxu0 0.0
      %1827 = vmatpush1.msra.mxu0 %v1713
      %1828 = vmatprep.subr.mxu0 0.0
      %1829 = vmatpush1.msra.mxu0 %v1714
      %1830 = vmatprep.subr.mxu0 0.0
      %1831 = vmatpush1.msra.mxu0 0.0
      %1832 = vmatprep.subr.mxu0 0.0
      %1833 = vmatpush1.msra.mxu0 0.0
      %1834 = vmatprep.subr.mxu0 0.0
      %1835 = vmatpush1.msra.mxu0 0.0
      %1836 = vmatprep.subr.mxu0 0.0
      %1837 = vmatpush1.msra.mxu0 0.0
      %1838 = vmatprep.subr.mxu0 0.0
      %1839 = vmatpush1.msra.mxu0 0.0
      %1840 = vmatprep.subr.mxu0 0.0
      %1841 = vmatpush1.msra.mxu0 0.0
      %1842 = vmatprep.subr.mxu0 0.0
      %1843 = vmatpush1.msra.mxu0 0.0
      %1844 = vmatprep.subr.mxu0 0.0
      %1845 = vmatpush1.msra.mxu0 0.0
      %1846 = vmatprep.subr.mxu0 0.0
      %1847 = vmatpush1.msra.mxu0 0.0
      %1848 = vmatprep.subr.mxu0 0.0
      %1849 = vmatpush1.msra.mxu0 0.0
      %1850 = vmatprep.subr.mxu0 0.0
      %1851 = vmatpush1.msra.mxu0 0.0
      %1852 = vmatprep.subr.mxu0 0.0
      %1853 = vmatpush1.msra.mxu0 0.0
      %1854 = vmatprep.subr.mxu0 0.0
      %1855 = vmatpush1.msra.mxu0 0.0
      %1856 = vmatprep.subr.mxu0 0.0
      %1857 = vmatpush1.msra.mxu0 0.0
      %1858 = vmatprep.subr.mxu0 0.0
      %1859 = vmatpush1.msra.mxu0 0.0
      %1860 = vmatprep.subr.mxu0 0.0
      %1861 = vmatpush1.msra.mxu0 0.0
      %1862 = vmatprep.subr.mxu0 0.0
      %1863 = vmatpush1.msra.mxu0 0.0
      %1864 = vmatprep.subr.mxu0 0.0
      %1865 = vmatpush1.msra.mxu0 0.0
      %1866 = vmatprep.subr.mxu0 0.0
      %1867 = vmatpush1.msra.mxu0 0.0
      %1868 = vmatprep.subr.mxu0 0.0
      %1869 = vmatpush1.msra.mxu0 0.0
      %1870 = vmatprep.mubr.f32.mxu0 0.0
      %1871 = vmatmul.mubr.f32.gmra.mrb[0].mxu0 %v1717
      %v1872 = vpop.f32.mrb[0].mxu0
      %v1873 = vadd.f32 0.0, %v1872
      %v1874 = vpop.f32.mrb[0].mxu0
      %1875 = vmatprep.mubr.f32.mxu0 0.0
      %1876 = vmatmul.mubr.f32.gmra.mrb[0].mxu0 %v1720
      %v1877 = vpop.f32.mrb[0].mxu0
      %v1878 = vadd.f32 0.0, %v1877
      %v1879 = vpop.f32.mrb[0].mxu0
      %1880 = vmatprep.mubr.f32.mxu0 0.0
      %1881 = vmatmul.mubr.f32.gmra.mrb[0].mxu0 %v1723
      %v1882 = vpop.f32.mrb[0].mxu0
      %v1883 = vadd.f32 0.0, %v1882
      %v1884 = vpop.f32.mrb[0].mxu0
      %1885 = vmatprep.mubr.f32.mxu0 0.0
      %1886 = vmatmul.mubr.f32.gmra.mrb[0].mxu0 %v1726
      %v1887 = vpop.f32.mrb[0].mxu0
      %v1888 = vadd.f32 0.0, %v1887
      %v1889 = vpop.f32.mrb[0].mxu0
      %1890 = vmatprep.mubr.f32.mxu0 0.0
      %1891 = vmatmul.mubr.f32.gmra.mrb[0].mxu0 %v1729
      %v1892 = vpop.f32.mrb[0].mxu0
      %v1893 = vadd.f32 0.0, %v1892
      %v1894 = vpop.f32.mrb[0].mxu0
      %1895 = vmatprep.mubr.f32.mxu0 0.0
      %1896 = vmatmul.mubr.f32.gmra.mrb[0].mxu0 %v1732
      %v1897 = vpop.f32.mrb[0].mxu0
      %v1898 = vadd.f32 0.0, %v1897
      %v1899 = vpop.f32.mrb[0].mxu0
      %1900 = vmatprep.mubr.f32.mxu0 0.0
      %1901 = vmatmul.mubr.f32.gmra.mrb[0].mxu0 %v1735
      %v1902 = vpop.f32.mrb[0].mxu0
      %v1903 = vadd.f32 0.0, %v1902
      %v1904 = vpop.f32.mrb[0].mxu0
      %1905 = vmatprep.mubr.f32.mxu0 0.0
      %1906 = vmatmul.mubr.f32.gmra.mrb[0].mxu0 %v1738
      %v1907 = vpop.f32.mrb[0].mxu0
      %v1908 = vadd.f32 0.0, %v1907
      %v1909 = vpop.f32.mrb[0].mxu0
      %1910 = vmatprep.mubr.f32.mxu0 0.0
      %1911 = vmatmul.mubr.f32.gmra.mrb[0].mxu0 %v1741
      %v1912 = vpop.f32.mrb[0].mxu0
      %v1913 = vadd.f32 0.0, %v1912
      %v1914 = vpop.f32.mrb[0].mxu0
      %1915 = vmatprep.mubr.f32.mxu0 0.0
      %1916 = vmatmul.mubr.f32.gmra.mrb[0].mxu0 %v1744
      %v1917 = vpop.f32.mrb[0].mxu0
      %v1918 = vadd.f32 0.0, %v1917
      %v1919 = vpop.f32.mrb[0].mxu0
      %1920 = vmatprep.mubr.f32.mxu0 0.0
      %1921 = vmatmul.mubr.f32.gmra.mrb[0].mxu0 %v1747
      %v1922 = vpop.f32.mrb[0].mxu0
      %v1923 = vadd.f32 0.0, %v1922
      %v1924 = vpop.f32.mrb[0].mxu0
      %1925 = vmatprep.mubr.f32.mxu0 0.0
      %1926 = vmatmul.mubr.f32.gmra.mrb[0].mxu0 %v1750
      %v1927 = vpop.f32.mrb[0].mxu0
      %v1928 = vadd.f32 0.0, %v1927
      %v1929 = vpop.f32.mrb[0].mxu0
      %1930 = vmatprep.mubr.f32.mxu0 0.0
      %1931 = vmatmul.mubr.f32.gmra.mrb[0].mxu0 %v1753
      %v1932 = vpop.f32.mrb[0].mxu0
      %v1933 = vadd.f32 0.0, %v1932
      %v1934 = vpop.f32.mrb[0].mxu0
      %1935 = vmatprep.mubr.f32.mxu0 0.0
      %1936 = vmatmul.mubr.f32.gmra.mrb[0].mxu0 %v1756
      %v1937 = vpop.f32.mrb[0].mxu0
      %v1938 = vadd.f32 0.0, %v1937
      %v1939 = vpop.f32.mrb[0].mxu0
      %1940 = vmatprep.mubr.f32.mxu0 0.0
      %1941 = vmatmul.mubr.f32.gmra.mrb[0].mxu0 %v1759
      %v1942 = vpop.f32.mrb[0].mxu0
      %v1943 = vadd.f32 0.0, %v1942
      %v1944 = vpop.f32.mrb[0].mxu0
      %1945 = vmatprep.mubr.f32.mxu0 0.0
      %1946 = vmatmul.mubr.f32.gmra.mrb[0].mxu0 %v1762
      %v1947 = vpop.f32.mrb[0].mxu0
      %v1948 = vadd.f32 0.0, %v1947
      %v1949 = vpop.f32.mrb[0].mxu0
      %1950 = vmatprep.mubr.f32.mxu0 0.0
      %1951 = vmatmul.mubr.f32.gmra.mrb[0].mxu0 %v1765
      %v1952 = vpop.f32.mrb[0].mxu0
      %v1953 = vadd.f32 0.0, %v1952
      %v1954 = vpop.f32.mrb[0].mxu0
      %1955 = vmatprep.mubr.f32.mxu0 0.0
      %1956 = vmatmul.mubr.f32.gmra.mrb[0].mxu0 %v1768
      %v1957 = vpop.f32.mrb[0].mxu0
      %v1958 = vadd.f32 0.0, %v1957
      %v1959 = vpop.f32.mrb[0].mxu0
      %1960 = vmatprep.mubr.f32.mxu0 0.0
      %1961 = vmatmul.mubr.f32.gmra.mrb[0].mxu0 %v1771
      %v1962 = vpop.f32.mrb[0].mxu0
      %v1963 = vadd.f32 0.0, %v1962
      %v1964 = vpop.f32.mrb[0].mxu0
      %1965 = vmatprep.mubr.f32.mxu0 0.0
      %1966 = vmatmul.mubr.f32.gmra.mrb[0].mxu0 %v1774
      %v1967 = vpop.f32.mrb[0].mxu0
      %v1968 = vadd.f32 0.0, %v1967
      %v1969 = vpop.f32.mrb[0].mxu0
      %1970 = vmatprep.mubr.f32.mxu0 0.0
      %1971 = vmatmul.mubr.f32.gmra.mrb[0].mxu0 %v1777
      %v1972 = vpop.f32.mrb[0].mxu0
      %v1973 = vadd.f32 0.0, %v1972
      %v1974 = vpop.f32.mrb[0].mxu0
      %1975 = vmatprep.mubr.f32.mxu0 0.0
      %1976 = vmatmul.mubr.f32.gmra.mrb[0].mxu0 %v1780
      %v1977 = vpop.f32.mrb[0].mxu0
      %v1978 = vadd.f32 0.0, %v1977
      %v1979 = vpop.f32.mrb[0].mxu0
      %1980 = vmatprep.mubr.f32.mxu0 0.0
      %1981 = vmatmul.mubr.f32.gmra.mrb[0].mxu0 %v1783
      %v1982 = vpop.f32.mrb[0].mxu0
      %v1983 = vadd.f32 0.0, %v1982
      %v1984 = vpop.f32.mrb[0].mxu0
      %1985 = vmatprep.mubr.f32.mxu0 0.0
      %1986 = vmatmul.mubr.f32.gmra.mrb[0].mxu0 %v1786
      %v1987 = vpop.f32.mrb[0].mxu0
      %v1988 = vadd.f32 0.0, %v1987
      %v1989 = vpop.f32.mrb[0].mxu0
      %1990 = vmatprep.mubr.f32.mxu0 0.0
      %1991 = vmatmul.mubr.f32.gmra.mrb[0].mxu0 %v1789
      %v1992 = vpop.f32.mrb[0].mxu0
      %v1993 = vadd.f32 0.0, %v1992
      %v1994 = vpop.f32.mrb[0].mxu0
      %1995 = vmatprep.mubr.f32.mxu0 0.0
      %1996 = vmatmul.mubr.f32.gmra.mrb[0].mxu0 %v1792
      %v1997 = vpop.f32.mrb[0].mxu0
      %v1998 = vadd.f32 0.0, %v1997
      %v1999 = vpop.f32.mrb[0].mxu0
      %2000 = vmatprep.mubr.f32.mxu0 0.0
      %2001 = vmatmul.mubr.f32.gmra.mrb[0].mxu0 %v1795
      %v2002 = vpop.f32.mrb[0].mxu0
      %v2003 = vadd.f32 0.0, %v2002
      %v2004 = vpop.f32.mrb[0].mxu0
      %2005 = vmatprep.mubr.f32.mxu0 0.0
      %2006 = vmatmul.mubr.f32.gmra.mrb[0].mxu0 %v1798
      %v2007 = vpop.f32.mrb[0].mxu0
      %v2008 = vadd.f32 0.0, %v2007
      %v2009 = vpop.f32.mrb[0].mxu0
      %2010 = vmatprep.mubr.f32.mxu0 0.0
      %2011 = vmatmul.mubr.f32.gmra.mrb[0].mxu0 %v1801
      %v2012 = vpop.f32.mrb[0].mxu0
      %v2013 = vadd.f32 0.0, %v2012
      %v2014 = vpop.f32.mrb[0].mxu0
      %2015 = vmatprep.mubr.f32.mxu0 0.0
      %2016 = vmatmul.mubr.f32.gmra.mrb[0].mxu0 %v1804
      %v2017 = vpop.f32.mrb[0].mxu0
      %v2018 = vadd.f32 0.0, %v2017
      %v2019 = vpop.f32.mrb[0].mxu0
      %2020 = vdwg.mxu0
      %v2022 = vsel %vm1715, %v991, 0
      %v2025 = vsel %vm1715, %v996, 0
      %v2028 = vsel %vm1715, %v1001, 0
      %v2031 = vsel %vm1715, %v1006, 0
      %v2034 = vsel %vm1715, %v1011, 0
      %v2037 = vsel %vm1715, %v1016, 0
      %v2040 = vsel %vm1715, %v1021, 0
      %v2043 = vsel %vm1715, %v1026, 0
      %v2046 = vsel %vm1715, %v1031, 0
      %v2049 = vsel %vm1715, %v1036, 0
      %v2052 = vsel %vm1715, %v1041, 0
      %v2055 = vsel %vm1715, %v1046, 0
      %v2058 = vsel %vm1715, %v1051, 0
      %v2061 = vsel %vm1715, %v1056, 0
      %v2064 = vsel %vm1715, %v1061, 0
      %v2067 = vsel %vm1715, %v1066, 0
      %v2070 = vsel %vm1715, %v1071, 0
      %v2073 = vsel %vm1715, %v1076, 0
      %v2076 = vsel %vm1715, %v1081, 0
      %v2079 = vsel %vm1715, %v1086, 0
      %v2082 = vsel %vm1715, %v1091, 0
      %v2085 = vsel %vm1715, %v1096, 0
      %v2088 = vsel %vm1715, %v1101, 0
      %v2091 = vsel %vm1715, %v1106, 0
      %v2094 = vsel %vm1715, %v1111, 0
      %v2097 = vsel %vm1715, %v1116, 0
      %v2100 = vsel %vm1715, %v1121, 0
      %v2103 = vsel %vm1715, %v1126, 0
      %v2106 = vsel %vm1715, %v1131, 0
      %v2109 = vsel %vm1715, %v1136, 0
      %2111 = vmatprep.subr.mxu0 0.0
      %2112 = vmatpush1.msra.mxu0 %v1139
      %2113 = vmatprep.subr.mxu0 0.0
      %2114 = vmatpush1.msra.mxu0 %v1140
      %2115 = vmatprep.subr.mxu0 0.0
      %2116 = vmatpush1.msra.mxu0 %v1141
      %2117 = vmatprep.subr.mxu0 0.0
      %2118 = vmatpush1.msra.mxu0 %v1142
      %2119 = vmatprep.subr.mxu0 0.0
      %2120 = vmatpush1.msra.mxu0 %v1143
      %2121 = vmatprep.subr.mxu0 0.0
      %2122 = vmatpush1.msra.mxu0 %v1144
      %2123 = vmatprep.subr.mxu0 0.0
      %2124 = vmatpush1.msra.mxu0 %v1145
      %2125 = vmatprep.subr.mxu0 0.0
      %2126 = vmatpush1.msra.mxu0 %v1146
      %2127 = vmatprep.subr.mxu0 0.0
      %2128 = vmatpush1.msra.mxu0 %v1147
      %2129 = vmatprep.subr.mxu0 0.0
      %2130 = vmatpush1.msra.mxu0 %v1148
      %2131 = vmatprep.subr.mxu0 0.0
      %2132 = vmatpush1.msra.mxu0 %v1149
      %2133 = vmatprep.subr.mxu0 0.0
      %2134 = vmatpush1.msra.mxu0 %v1150
      %2135 = vmatprep.subr.mxu0 0.0
      %2136 = vmatpush1.msra.mxu0 0.0
      %2137 = vmatprep.subr.mxu0 0.0
      %2138 = vmatpush1.msra.mxu0 0.0
      %2139 = vmatprep.subr.mxu0 0.0
      %2140 = vmatpush1.msra.mxu0 0.0
      %2141 = vmatprep.subr.mxu0 0.0
      %2142 = vmatpush1.msra.mxu0 0.0
      %2143 = vmatprep.subr.mxu0 0.0
      %2144 = vmatpush1.msra.mxu0 0.0
      %2145 = vmatprep.subr.mxu0 0.0
      %2146 = vmatpush1.msra.mxu0 0.0
      %2147 = vmatprep.subr.mxu0 0.0
      %2148 = vmatpush1.msra.mxu0 0.0
      %2149 = vmatprep.subr.mxu0 0.0
      %2150 = vmatpush1.msra.mxu0 0.0
      %2151 = vmatprep.subr.mxu0 0.0
      %2152 = vmatpush1.msra.mxu0 0.0
      %2153 = vmatprep.subr.mxu0 0.0
      %2154 = vmatpush1.msra.mxu0 0.0
      %2155 = vmatprep.subr.mxu0 0.0
      %2156 = vmatpush1.msra.mxu0 0.0
      %2157 = vmatprep.subr.mxu0 0.0
      %2158 = vmatpush1.msra.mxu0 0.0
      %2159 = vmatprep.subr.mxu0 0.0
      %2160 = vmatpush1.msra.mxu0 0.0
      %2161 = vmatprep.subr.mxu0 0.0
      %2162 = vmatpush1.msra.mxu0 0.0
      %2163 = vmatprep.subr.mxu0 0.0
      %2164 = vmatpush1.msra.mxu0 0.0
      %2165 = vmatprep.subr.mxu0 0.0
      %2166 = vmatpush1.msra.mxu0 0.0
      %2167 = vmatprep.subr.mxu0 0.0
      %2168 = vmatpush1.msra.mxu0 0.0
      %2169 = vmatprep.subr.mxu0 0.0
      %2170 = vmatpush1.msra.mxu0 0.0
      %2171 = vmatprep.subr.mxu0 0.0
      %2172 = vmatpush1.msra.mxu0 0.0
      %2173 = vmatprep.subr.mxu0 0.0
      %2174 = vmatpush1.msra.mxu0 0.0
      %2175 = vmatprep.mubr.f32.mxu0 0.0
      %2176 = vmatmul.mubr.f32.gmra.mrb[0].mxu0 %v2022
      %v2177 = vpop.f32.mrb[0].mxu0
      %v2178 = vadd.f32 %v1873, %v2177
      %v2179 = vpop.f32.mrb[0].mxu0
      %2180 = vmatprep.mubr.f32.mxu0 0.0
      %2181 = vmatmul.mubr.f32.gmra.mrb[0].mxu0 %v2025
      %v2182 = vpop.f32.mrb[0].mxu0
      %v2183 = vadd.f32 %v1878, %v2182
      %v2184 = vpop.f32.mrb[0].mxu0
      %2185 = vmatprep.mubr.f32.mxu0 0.0
      %2186 = vmatmul.mubr.f32.gmra.mrb[0].mxu0 %v2028
      %v2187 = vpop.f32.mrb[0].mxu0
      %v2188 = vadd.f32 %v1883, %v2187
      %v2189 = vpop.f32.mrb[0].mxu0
      %2190 = vmatprep.mubr.f32.mxu0 0.0
      %2191 = vmatmul.mubr.f32.gmra.mrb[0].mxu0 %v2031
      %v2192 = vpop.f32.mrb[0].mxu0
      %v2193 = vadd.f32 %v1888, %v2192
      %v2194 = vpop.f32.mrb[0].mxu0
      %2195 = vmatprep.mubr.f32.mxu0 0.0
      %2196 = vmatmul.mubr.f32.gmra.mrb[0].mxu0 %v2034
      %v2197 = vpop.f32.mrb[0].mxu0
      %v2198 = vadd.f32 %v1893, %v2197
      %v2199 = vpop.f32.mrb[0].mxu0
      %2200 = vmatprep.mubr.f32.mxu0 0.0
      %2201 = vmatmul.mubr.f32.gmra.mrb[0].mxu0 %v2037
      %v2202 = vpop.f32.mrb[0].mxu0
      %v2203 = vadd.f32 %v1898, %v2202
      %v2204 = vpop.f32.mrb[0].mxu0
      %2205 = vmatprep.mubr.f32.mxu0 0.0
      %2206 = vmatmul.mubr.f32.gmra.mrb[0].mxu0 %v2040
      %v2207 = vpop.f32.mrb[0].mxu0
      %v2208 = vadd.f32 %v1903, %v2207
      %v2209 = vpop.f32.mrb[0].mxu0
      %2210 = vmatprep.mubr.f32.mxu0 0.0
      %2211 = vmatmul.mubr.f32.gmra.mrb[0].mxu0 %v2043
      %v2212 = vpop.f32.mrb[0].mxu0
      %v2213 = vadd.f32 %v1908, %v2212
      %v2214 = vpop.f32.mrb[0].mxu0
      %2215 = vmatprep.mubr.f32.mxu0 0.0
      %2216 = vmatmul.mubr.f32.gmra.mrb[0].mxu0 %v2046
      %v2217 = vpop.f32.mrb[0].mxu0
      %v2218 = vadd.f32 %v1913, %v2217
      %v2219 = vpop.f32.mrb[0].mxu0
      %2220 = vmatprep.mubr.f32.mxu0 0.0
      %2221 = vmatmul.mubr.f32.gmra.mrb[0].mxu0 %v2049
      %v2222 = vpop.f32.mrb[0].mxu0
      %v2223 = vadd.f32 %v1918, %v2222
      %v2224 = vpop.f32.mrb[0].mxu0
      %2225 = vmatprep.mubr.f32.mxu0 0.0
      %2226 = vmatmul.mubr.f32.gmra.mrb[0].mxu0 %v2052
      %v2227 = vpop.f32.mrb[0].mxu0
      %v2228 = vadd.f32 %v1923, %v2227
      %v2229 = vpop.f32.mrb[0].mxu0
      %2230 = vmatprep.mubr.f32.mxu0 0.0
      %2231 = vmatmul.mubr.f32.gmra.mrb[0].mxu0 %v2055
      %v2232 = vpop.f32.mrb[0].mxu0
      %v2233 = vadd.f32 %v1928, %v2232
      %v2234 = vpop.f32.mrb[0].mxu0
      %2235 = vmatprep.mubr.f32.mxu0 0.0
      %2236 = vmatmul.mubr.f32.gmra.mrb[0].mxu0 %v2058
      %v2237 = vpop.f32.mrb[0].mxu0
      %v2238 = vadd.f32 %v1933, %v2237
      %v2239 = vpop.f32.mrb[0].mxu0
      %2240 = vmatprep.mubr.f32.mxu0 0.0
      %2241 = vmatmul.mubr.f32.gmra.mrb[0].mxu0 %v2061
      %v2242 = vpop.f32.mrb[0].mxu0
      %v2243 = vadd.f32 %v1938, %v2242
      %v2244 = vpop.f32.mrb[0].mxu0
      %2245 = vmatprep.mubr.f32.mxu0 0.0
      %2246 = vmatmul.mubr.f32.gmra.mrb[0].mxu0 %v2064
      %v2247 = vpop.f32.mrb[0].mxu0
      %v2248 = vadd.f32 %v1943, %v2247
      %v2249 = vpop.f32.mrb[0].mxu0
      %2250 = vmatprep.mubr.f32.mxu0 0.0
      %2251 = vmatmul.mubr.f32.gmra.mrb[0].mxu0 %v2067
      %v2252 = vpop.f32.mrb[0].mxu0
      %v2253 = vadd.f32 %v1948, %v2252
      %v2254 = vpop.f32.mrb[0].mxu0
      %2255 = vmatprep.mubr.f32.mxu0 0.0
      %2256 = vmatmul.mubr.f32.gmra.mrb[0].mxu0 %v2070
      %v2257 = vpop.f32.mrb[0].mxu0
      %v2258 = vadd.f32 %v1953, %v2257
      %v2259 = vpop.f32.mrb[0].mxu0
      %2260 = vmatprep.mubr.f32.mxu0 0.0
      %2261 = vmatmul.mubr.f32.gmra.mrb[0].mxu0 %v2073
      %v2262 = vpop.f32.mrb[0].mxu0
      %v2263 = vadd.f32 %v1958, %v2262
      %v2264 = vpop.f32.mrb[0].mxu0
      %2265 = vmatprep.mubr.f32.mxu0 0.0
      %2266 = vmatmul.mubr.f32.gmra.mrb[0].mxu0 %v2076
      %v2267 = vpop.f32.mrb[0].mxu0
      %v2268 = vadd.f32 %v1963, %v2267
      %v2269 = vpop.f32.mrb[0].mxu0
      %2270 = vmatprep.mubr.f32.mxu0 0.0
      %2271 = vmatmul.mubr.f32.gmra.mrb[0].mxu0 %v2079
      %v2272 = vpop.f32.mrb[0].mxu0
      %v2273 = vadd.f32 %v1968, %v2272
      %v2274 = vpop.f32.mrb[0].mxu0
      %2275 = vmatprep.mubr.f32.mxu0 0.0
      %2276 = vmatmul.mubr.f32.gmra.mrb[0].mxu0 %v2082
      %v2277 = vpop.f32.mrb[0].mxu0
      %v2278 = vadd.f32 %v1973, %v2277
      %v2279 = vpop.f32.mrb[0].mxu0
      %2280 = vmatprep.mubr.f32.mxu0 0.0
      %2281 = vmatmul.mubr.f32.gmra.mrb[0].mxu0 %v2085
      %v2282 = vpop.f32.mrb[0].mxu0
      %v2283 = vadd.f32 %v1978, %v2282
      %v2284 = vpop.f32.mrb[0].mxu0
      %2285 = vmatprep.mubr.f32.mxu0 0.0
      %2286 = vmatmul.mubr.f32.gmra.mrb[0].mxu0 %v2088
      %v2287 = vpop.f32.mrb[0].mxu0
      %v2288 = vadd.f32 %v1983, %v2287
      %v2289 = vpop.f32.mrb[0].mxu0
      %2290 = vmatprep.mubr.f32.mxu0 0.0
      %2291 = vmatmul.mubr.f32.gmra.mrb[0].mxu0 %v2091
      %v2292 = vpop.f32.mrb[0].mxu0
      %v2293 = vadd.f32 %v1988, %v2292
      %v2294 = vpop.f32.mrb[0].mxu0
      %2295 = vmatprep.mubr.f32.mxu0 0.0
      %2296 = vmatmul.mubr.f32.gmra.mrb[0].mxu0 %v2094
      %v2297 = vpop.f32.mrb[0].mxu0
      %v2298 = vadd.f32 %v1993, %v2297
      %v2299 = vpop.f32.mrb[0].mxu0
      %2300 = vmatprep.mubr.f32.mxu0 0.0
      %2301 = vmatmul.mubr.f32.gmra.mrb[0].mxu0 %v2097
      %v2302 = vpop.f32.mrb[0].mxu0
      %v2303 = vadd.f32 %v1998, %v2302
      %v2304 = vpop.f32.mrb[0].mxu0
      %2305 = vmatprep.mubr.f32.mxu0 0.0
      %2306 = vmatmul.mubr.f32.gmra.mrb[0].mxu0 %v2100
      %v2307 = vpop.f32.mrb[0].mxu0
      %v2308 = vadd.f32 %v2003, %v2307
      %v2309 = vpop.f32.mrb[0].mxu0
      %2310 = vmatprep.mubr.f32.mxu0 0.0
      %2311 = vmatmul.mubr.f32.gmra.mrb[0].mxu0 %v2103
      %v2312 = vpop.f32.mrb[0].mxu0
      %v2313 = vadd.f32 %v2008, %v2312
      %v2314 = vpop.f32.mrb[0].mxu0
      %2315 = vmatprep.mubr.f32.mxu0 0.0
      %2316 = vmatmul.mubr.f32.gmra.mrb[0].mxu0 %v2106
      %v2317 = vpop.f32.mrb[0].mxu0
      %v2318 = vadd.f32 %v2013, %v2317
      %v2319 = vpop.f32.mrb[0].mxu0
      %2320 = vmatprep.mubr.f32.mxu0 0.0
      %2321 = vmatmul.mubr.f32.gmra.mrb[0].mxu0 %v2109
      %v2322 = vpop.f32.mrb[0].mxu0
      %v2323 = vadd.f32 %v2018, %v2322
      %v2324 = vpop.f32.mrb[0].mxu0
      %2325 = vdwg.mxu0
      %s2326 = scalar_lea.vmem %s1, 1920
      %v2327 = vld [vmem:[%s2326] sm:$0xff]
      %v2328 = vld [vmem:[%s2326 + $0x8] sm:$0xff]
      %v2329 = vld [vmem:[%s2326 + $0x10] sm:$0xff]
      %v2330 = vld [vmem:[%s2326 + $0x18] sm:$0xff]
      %v2331 = vld [vmem:[%s2326 + $0x20] sm:$0xff]
      %v2332 = vld [vmem:[%s2326 + $0x28] sm:$0xff]
      %v2333 = vld [vmem:[%s2326 + $0x30] sm:$0xff]
      %v2334 = vld [vmem:[%s2326 + $0x38] sm:$0xff]
      %v2335 = vld [vmem:[%s2326 + $0x40] sm:$0xff]
      %v2336 = vld [vmem:[%s2326 + $0x48] sm:$0xff]
      %v2337 = vld [vmem:[%s2326 + $0x50] sm:$0xff]
      %v2338 = vld [vmem:[%s2326 + $0x58] sm:$0xff]
      %v2339 = vld [vmem:[%s2326 + $0x60] sm:$0xff]
      %v2340 = vld [vmem:[%s2326 + $0x68] sm:$0xff]
      %v2341 = vld [vmem:[%s2326 + $0x70] sm:$0xff]
      %v2342 = vld [vmem:[%s2326 + $0x78] sm:$0xff]
      %v2343 = vld [vmem:[%s2326 + $0x80] sm:$0xff]
      %v2344 = vld [vmem:[%s2326 + $0x88] sm:$0xff]
      %v2345 = vld [vmem:[%s2326 + $0x90] sm:$0xff]
      %v2346 = vld [vmem:[%s2326 + $0x98] sm:$0xff]
      %v2347 = vld [vmem:[%s2326 + $0xa0] sm:$0xff]
      %v2348 = vld [vmem:[%s2326 + $0xa8] sm:$0xff]
      %v2349 = vld [vmem:[%s2326 + $0xb0] sm:$0xff]
      %v2350 = vld [vmem:[%s2326 + $0xb8] sm:$0xff]
      %v2351 = vld [vmem:[%s2326 + $0xc0] sm:$0xff]
      %v2352 = vld [vmem:[%s2326 + $0xc8] sm:$0xff]
      %v2353 = vld [vmem:[%s2326 + $0xd0] sm:$0xff]
      %v2354 = vld [vmem:[%s2326 + $0xd8] sm:$0xff]
      %v2355 = vld [vmem:[%s2326 + $0xe0] sm:$0xff]
      %v2356 = vld [vmem:[%s2326 + $0xe8] sm:$0xff]
      %v2357 = vld [vmem:[%s2326 + $0xf0] sm:$0xff]
      %v2358 = vld [vmem:[%s2326 + $0xf8] sm:$0xff]
      %v2359 = vld [vmem:[%s2326 + $0x100] sm:$0xff]
      %v2360 = vld [vmem:[%s2326 + $0x108] sm:$0xff]
      %v2361 = vld [vmem:[%s2326 + $0x110] sm:$0xff]
      %v2362 = vld [vmem:[%s2326 + $0x118] sm:$0xff]
      %v2363 = vld [vmem:[%s2326 + $0x120] sm:$0xff]
      %v2364 = vld [vmem:[%s2326 + $0x128] sm:$0xff]
      %v2365 = vld [vmem:[%s2326 + $0x130] sm:$0xff]
      %v2366 = vld [vmem:[%s2326 + $0x138] sm:$0xff]
      %v2367 = vld [vmem:[%s2326 + $0x140] sm:$0xff]
      %v2368 = vld [vmem:[%s2326 + $0x148] sm:$0xff]
      %v2369 = vld [vmem:[%s2326 + $0x150] sm:$0xff]
      %v2370 = vld [vmem:[%s2326 + $0x158] sm:$0xff]
      %v2371 = vld [vmem:[%s2326 + $0x160] sm:$0xff]
      %v2372 = vld [vmem:[%s2326 + $0x168] sm:$0xff]
      %v2373 = vld [vmem:[%s2326 + $0x170] sm:$0xff]
      %v2374 = vld [vmem:[%s2326 + $0x178] sm:$0xff]
      %v2375 = vld [vmem:[%s2326 + $0x180] sm:$0xff]
      %v2376 = vld [vmem:[%s2326 + $0x188] sm:$0xff]
      %v2377 = vld [vmem:[%s2326 + $0x190] sm:$0xff]
      %v2378 = vld [vmem:[%s2326 + $0x198] sm:$0xff]
      %v2379 = vld [vmem:[%s2326 + $0x1a0] sm:$0xff]
      %v2380 = vld [vmem:[%s2326 + $0x1a8] sm:$0xff]
      %v2381 = vld [vmem:[%s2326 + $0x1b0] sm:$0xff]
      %v2382 = vld [vmem:[%s2326 + $0x1b8] sm:$0xff]
      %v2383 = vld [vmem:[%s2326 + $0x1c0] sm:$0xff]
      %v2384 = vld [vmem:[%s2326 + $0x1c8] sm:$0xff]
      %v2385 = vld [vmem:[%s2326 + $0x1d0] sm:$0xff]
      %v2386 = vld [vmem:[%s2326 + $0x1d8] sm:$0xff]
      %v2387 = vld [vmem:[%s2326 + $0x1e0] sm:$0xff]
      %v2388 = vld [vmem:[%s2326 + $0x1e8] sm:$0xff]
      %v2389 = vld [vmem:[%s2326 + $0x1f0] sm:$0xff]
      %v2390 = vld [vmem:[%s2326 + $0x1f8] sm:$0xff]
      %v2391 = vld [vmem:[%s2326 + $0x200] sm:$0xff]
      %v2392 = vld [vmem:[%s2326 + $0x208] sm:$0xff]
      %v2393 = vld [vmem:[%s2326 + $0x210] sm:$0xff]
      %v2394 = vld [vmem:[%s2326 + $0x218] sm:$0xff]
      %v2395 = vld [vmem:[%s2326 + $0x220] sm:$0xff]
      %v2396 = vld [vmem:[%s2326 + $0x228] sm:$0xff]
      %v2397 = vld [vmem:[%s2326 + $0x230] sm:$0xff]
      %v2398 = vld [vmem:[%s2326 + $0x238] sm:$0xff]
      %v2399 = vld [vmem:[%s2326 + $0x240] sm:$0xff]
      %v2400 = vld [vmem:[%s2326 + $0x248] sm:$0xff]
      %v2401 = vld [vmem:[%s2326 + $0x250] sm:$0xff]
      %v2402 = vld [vmem:[%s2326 + $0x258] sm:$0xff]
      %v2403 = vld [vmem:[%s2326 + $0x260] sm:$0xff]
      %v2404 = vld [vmem:[%s2326 + $0x268] sm:$0xff]
      %v2405 = vld [vmem:[%s2326 + $0x270] sm:$0xff]
      %v2406 = vld [vmem:[%s2326 + $0x278] sm:$0xff]
      %v2407 = vld [vmem:[%s2326 + $0x280] sm:$0xff]
      %v2408 = vld [vmem:[%s2326 + $0x288] sm:$0xff]
      %v2409 = vld [vmem:[%s2326 + $0x290] sm:$0xff]
      %v2410 = vld [vmem:[%s2326 + $0x298] sm:$0xff]
      %v2411 = vld [vmem:[%s2326 + $0x2a0] sm:$0xff]
      %v2412 = vld [vmem:[%s2326 + $0x2a8] sm:$0xff]
      %v2413 = vld [vmem:[%s2326 + $0x2b0] sm:$0xff]
      %v2414 = vld [vmem:[%s2326 + $0x2b8] sm:$0xff]
      %v2415 = vld [vmem:[%s2326 + $0x2c0] sm:$0xff]
      %v2416 = vld [vmem:[%s2326 + $0x2c8] sm:$0xff]
      %v2417 = vld [vmem:[%s2326 + $0x2d0] sm:$0xff]
      %v2418 = vld [vmem:[%s2326 + $0x2d8] sm:$0xff]
      %v2419 = vld [vmem:[%s2326 + $0x2e0] sm:$0xff]
      %v2420 = vld [vmem:[%s2326 + $0x2e8] sm:$0xff]
      %v2421 = vld [vmem:[%s2326 + $0x2f0] sm:$0xff]
      %v2422 = vld [vmem:[%s2326 + $0x2f8] sm:$0xff]
      %v2423 = vld [vmem:[%s2326 + $0x300] sm:$0xff]
      %v2424 = vld [vmem:[%s2326 + $0x308] sm:$0xff]
      %v2425 = vld [vmem:[%s2326 + $0x310] sm:$0xff]
      %v2426 = vld [vmem:[%s2326 + $0x318] sm:$0xff]
      %v2427 = vld [vmem:[%s2326 + $0x320] sm:$0xff]
      %v2428 = vld [vmem:[%s2326 + $0x328] sm:$0xff]
      %v2429 = vld [vmem:[%s2326 + $0x330] sm:$0xff]
      %v2430 = vld [vmem:[%s2326 + $0x338] sm:$0xff]
      %v2431 = vld [vmem:[%s2326 + $0x340] sm:$0xff]
      %v2432 = vld [vmem:[%s2326 + $0x348] sm:$0xff]
      %v2433 = vld [vmem:[%s2326 + $0x350] sm:$0xff]
      %v2434 = vld [vmem:[%s2326 + $0x358] sm:$0xff]
      %v2435 = vld [vmem:[%s2326 + $0x360] sm:$0xff]
      %v2436 = vld [vmem:[%s2326 + $0x368] sm:$0xff]
      %v2437 = vld [vmem:[%s2326 + $0x370] sm:$0xff]
      %v2438 = vld [vmem:[%s2326 + $0x378] sm:$0xff]
      %v2439 = vld [vmem:[%s2326 + $0x380] sm:$0xff]
      %v2440 = vld [vmem:[%s2326 + $0x388] sm:$0xff]
      %v2441 = vld [vmem:[%s2326 + $0x390] sm:$0xff]
      %v2442 = vld [vmem:[%s2326 + $0x398] sm:$0xff]
      %v2443 = vld [vmem:[%s2326 + $0x3a0] sm:$0xff]
      %v2444 = vld [vmem:[%s2326 + $0x3a8] sm:$0xff]
      %v2445 = vld [vmem:[%s2326 + $0x3b0] sm:$0xff]
      %v2446 = vld [vmem:[%s2326 + $0x3b8] sm:$0xff]
      %2447 = vmatprep.subr.mxu0 0.0
      %2448 = vmatpush1.msra.mxu0 %v525
      %2449 = vmatprep.subr.mxu0 0.0
      %2450 = vmatpush1.msra.mxu0 %v526
      %2451 = vmatprep.subr.mxu0 0.0
      %2452 = vmatpush1.msra.mxu0 %v527
      %2453 = vmatprep.subr.mxu0 0.0
      %2454 = vmatpush1.msra.mxu0 %v528
      %2455 = vmatprep.subr.mxu0 0.0
      %2456 = vmatpush1.msra.mxu0 %v529
      %2457 = vmatprep.subr.mxu0 0.0
      %2458 = vmatpush1.msra.mxu0 %v530
      %2459 = vmatprep.subr.mxu0 0.0
      %2460 = vmatpush1.msra.mxu0 %v531
      %2461 = vmatprep.subr.mxu0 0.0
      %2462 = vmatpush1.msra.mxu0 %v532
      %2463 = vmatprep.subr.mxu0 0.0
      %2464 = vmatpush1.msra.mxu0 %v533
      %2465 = vmatprep.subr.mxu0 0.0
      %2466 = vmatpush1.msra.mxu0 %v534
      %2467 = vmatprep.subr.mxu0 0.0
      %2468 = vmatpush1.msra.mxu0 %v535
      %2469 = vmatprep.subr.mxu0 0.0
      %2470 = vmatpush1.msra.mxu0 %v536
      %2471 = vmatprep.subr.mxu0 0.0
      %2472 = vmatpush1.msra.mxu0 %v537
      %2473 = vmatprep.subr.mxu0 0.0
      %2474 = vmatpush1.msra.mxu0 %v538
      %2475 = vmatprep.subr.mxu0 0.0
      %2476 = vmatpush1.msra.mxu0 %v539
      %2477 = vmatprep.subr.mxu0 0.0
      %2478 = vmatpush1.msra.mxu0 %v540
      %2479 = vmatprep.subr.mxu0 0.0
      %2480 = vmatpush1.msra.mxu0 %v541
      %2481 = vmatprep.subr.mxu0 0.0
      %2482 = vmatpush1.msra.mxu0 %v542
      %2483 = vmatprep.subr.mxu0 0.0
      %2484 = vmatpush1.msra.mxu0 %v543
      %2485 = vmatprep.subr.mxu0 0.0
      %2486 = vmatpush1.msra.mxu0 %v544
      %2487 = vmatprep.subr.mxu0 0.0
      %2488 = vmatpush1.msra.mxu0 %v545
      %2489 = vmatprep.subr.mxu0 0.0
      %2490 = vmatpush1.msra.mxu0 %v546
      %2491 = vmatprep.subr.mxu0 0.0
      %2492 = vmatpush1.msra.mxu0 %v547
      %2493 = vmatprep.subr.mxu0 0.0
      %2494 = vmatpush1.msra.mxu0 %v548
      %2495 = vmatprep.subr.mxu0 0.0
      %2496 = vmatpush1.msra.mxu0 %v549
      %2497 = vmatprep.subr.mxu0 0.0
      %2498 = vmatpush1.msra.mxu0 %v550
      %2499 = vmatprep.subr.mxu0 0.0
      %2500 = vmatpush1.msra.mxu0 %v551
      %2501 = vmatprep.subr.mxu0 0.0
      %2502 = vmatpush1.msra.mxu0 %v552
      %2503 = vmatprep.subr.mxu0 0.0
      %2504 = vmatpush1.msra.mxu0 %v553
      %2505 = vmatprep.subr.mxu0 0.0
      %2506 = vmatpush1.msra.mxu0 %v554
      %2507 = vmatprep.subr.mxu0 0.0
      %2508 = vmatpush1.msra.mxu0 %v555
      %2509 = vmatprep.subr.mxu0 0.0
      %2510 = vmatpush1.msra.mxu0 %v556
      %2511 = vmatprep.mubr.f32.mxu0 %v2328
      %2512 = vmatmul.mubr.f32.gmra.mrb[0].mxu0 %v2327
      %v2513 = vpop.f32.mrb[0].mxu0
      %v2514 = vadd.f32 0.0, %v2513
      %v2515 = vpop.f32.mrb[0].mxu0
      %2516 = vmatprep.mubr.f32.mxu0 %v2332
      %2517 = vmatmul.mubr.f32.gmra.mrb[0].mxu0 %v2331
      %v2518 = vpop.f32.mrb[0].mxu0
      %v2519 = vadd.f32 0.0, %v2518
      %v2520 = vpop.f32.mrb[0].mxu0
      %2521 = vmatprep.mubr.f32.mxu0 %v2336
      %2522 = vmatmul.mubr.f32.gmra.mrb[0].mxu0 %v2335
      %v2523 = vpop.f32.mrb[0].mxu0
      %v2524 = vadd.f32 0.0, %v2523
      %v2525 = vpop.f32.mrb[0].mxu0
      %2526 = vmatprep.mubr.f32.mxu0 %v2340
      %2527 = vmatmul.mubr.f32.gmra.mrb[0].mxu0 %v2339
      %v2528 = vpop.f32.mrb[0].mxu0
      %v2529 = vadd.f32 0.0, %v2528
      %v2530 = vpop.f32.mrb[0].mxu0
      %2531 = vmatprep.mubr.f32.mxu0 %v2344
      %2532 = vmatmul.mubr.f32.gmra.mrb[0].mxu0 %v2343
      %v2533 = vpop.f32.mrb[0].mxu0
      %v2534 = vadd.f32 0.0, %v2533
      %v2535 = vpop.f32.mrb[0].mxu0
      %2536 = vmatprep.mubr.f32.mxu0 %v2348
      %2537 = vmatmul.mubr.f32.gmra.mrb[0].mxu0 %v2347
      %v2538 = vpop.f32.mrb[0].mxu0
      %v2539 = vadd.f32 0.0, %v2538
      %v2540 = vpop.f32.mrb[0].mxu0
      %2541 = vmatprep.mubr.f32.mxu0 %v2352
      %2542 = vmatmul.mubr.f32.gmra.mrb[0].mxu0 %v2351
      %v2543 = vpop.f32.mrb[0].mxu0
      %v2544 = vadd.f32 0.0, %v2543
      %v2545 = vpop.f32.mrb[0].mxu0
      %2546 = vmatprep.mubr.f32.mxu0 %v2356
      %2547 = vmatmul.mubr.f32.gmra.mrb[0].mxu0 %v2355
      %v2548 = vpop.f32.mrb[0].mxu0
      %v2549 = vadd.f32 0.0, %v2548
      %v2550 = vpop.f32.mrb[0].mxu0
      %2551 = vmatprep.mubr.f32.mxu0 %v2360
      %2552 = vmatmul.mubr.f32.gmra.mrb[0].mxu0 %v2359
      %v2553 = vpop.f32.mrb[0].mxu0
      %v2554 = vadd.f32 0.0, %v2553
      %v2555 = vpop.f32.mrb[0].mxu0
      %2556 = vmatprep.mubr.f32.mxu0 %v2364
      %2557 = vmatmul.mubr.f32.gmra.mrb[0].mxu0 %v2363
      %v2558 = vpop.f32.mrb[0].mxu0
      %v2559 = vadd.f32 0.0, %v2558
      %v2560 = vpop.f32.mrb[0].mxu0
      %2561 = vmatprep.mubr.f32.mxu0 %v2368
      %2562 = vmatmul.mubr.f32.gmra.mrb[0].mxu0 %v2367
      %v2563 = vpop.f32.mrb[0].mxu0
      %v2564 = vadd.f32 0.0, %v2563
      %v2565 = vpop.f32.mrb[0].mxu0
      %2566 = vmatprep.mubr.f32.mxu0 %v2372
      %2567 = vmatmul.mubr.f32.gmra.mrb[0].mxu0 %v2371
      %v2568 = vpop.f32.mrb[0].mxu0
      %v2569 = vadd.f32 0.0, %v2568
      %v2570 = vpop.f32.mrb[0].mxu0
      %2571 = vmatprep.mubr.f32.mxu0 %v2376
      %2572 = vmatmul.mubr.f32.gmra.mrb[0].mxu0 %v2375
      %v2573 = vpop.f32.mrb[0].mxu0
      %v2574 = vadd.f32 0.0, %v2573
      %v2575 = vpop.f32.mrb[0].mxu0
      %2576 = vmatprep.mubr.f32.mxu0 %v2380
      %2577 = vmatmul.mubr.f32.gmra.mrb[0].mxu0 %v2379
      %v2578 = vpop.f32.mrb[0].mxu0
      %v2579 = vadd.f32 0.0, %v2578
      %v2580 = vpop.f32.mrb[0].mxu0
      %2581 = vmatprep.mubr.f32.mxu0 %v2384
      %2582 = vmatmul.mubr.f32.gmra.mrb[0].mxu0 %v2383
      %v2583 = vpop.f32.mrb[0].mxu0
      %v2584 = vadd.f32 0.0, %v2583
      %v2585 = vpop.f32.mrb[0].mxu0
      %2586 = vmatprep.mubr.f32.mxu0 %v2388
      %2587 = vmatmul.mubr.f32.gmra.mrb[0].mxu0 %v2387
      %v2588 = vpop.f32.mrb[0].mxu0
      %v2589 = vadd.f32 0.0, %v2588
      %v2590 = vpop.f32.mrb[0].mxu0
      %2591 = vmatprep.mubr.f32.mxu0 %v2392
      %2592 = vmatmul.mubr.f32.gmra.mrb[0].mxu0 %v2391
      %v2593 = vpop.f32.mrb[0].mxu0
      %v2594 = vadd.f32 0.0, %v2593
      %v2595 = vpop.f32.mrb[0].mxu0
      %2596 = vmatprep.mubr.f32.mxu0 %v2396
      %2597 = vmatmul.mubr.f32.gmra.mrb[0].mxu0 %v2395
      %v2598 = vpop.f32.mrb[0].mxu0
      %v2599 = vadd.f32 0.0, %v2598
      %v2600 = vpop.f32.mrb[0].mxu0
      %2601 = vmatprep.mubr.f32.mxu0 %v2400
      %2602 = vmatmul.mubr.f32.gmra.mrb[0].mxu0 %v2399
      %v2603 = vpop.f32.mrb[0].mxu0
      %v2604 = vadd.f32 0.0, %v2603
      %v2605 = vpop.f32.mrb[0].mxu0
      %2606 = vmatprep.mubr.f32.mxu0 %v2404
      %2607 = vmatmul.mubr.f32.gmra.mrb[0].mxu0 %v2403
      %v2608 = vpop.f32.mrb[0].mxu0
      %v2609 = vadd.f32 0.0, %v2608
      %v2610 = vpop.f32.mrb[0].mxu0
      %2611 = vmatprep.mubr.f32.mxu0 %v2408
      %2612 = vmatmul.mubr.f32.gmra.mrb[0].mxu0 %v2407
      %v2613 = vpop.f32.mrb[0].mxu0
      %v2614 = vadd.f32 0.0, %v2613
      %v2615 = vpop.f32.mrb[0].mxu0
      %2616 = vmatprep.mubr.f32.mxu0 %v2412
      %2617 = vmatmul.mubr.f32.gmra.mrb[0].mxu0 %v2411
      %v2618 = vpop.f32.mrb[0].mxu0
      %v2619 = vadd.f32 0.0, %v2618
      %v2620 = vpop.f32.mrb[0].mxu0
      %2621 = vmatprep.mubr.f32.mxu0 %v2416
      %2622 = vmatmul.mubr.f32.gmra.mrb[0].mxu0 %v2415
      %v2623 = vpop.f32.mrb[0].mxu0
      %v2624 = vadd.f32 0.0, %v2623
      %v2625 = vpop.f32.mrb[0].mxu0
      %2626 = vmatprep.mubr.f32.mxu0 %v2420
      %2627 = vmatmul.mubr.f32.gmra.mrb[0].mxu0 %v2419
      %v2628 = vpop.f32.mrb[0].mxu0
      %v2629 = vadd.f32 0.0, %v2628
      %v2630 = vpop.f32.mrb[0].mxu0
      %2631 = vmatprep.mubr.f32.mxu0 %v2424
      %2632 = vmatmul.mubr.f32.gmra.mrb[0].mxu0 %v2423
      %v2633 = vpop.f32.mrb[0].mxu0
      %v2634 = vadd.f32 0.0, %v2633
      %v2635 = vpop.f32.mrb[0].mxu0
      %2636 = vmatprep.mubr.f32.mxu0 %v2428
      %2637 = vmatmul.mubr.f32.gmra.mrb[0].mxu0 %v2427
      %v2638 = vpop.f32.mrb[0].mxu0
      %v2639 = vadd.f32 0.0, %v2638
      %v2640 = vpop.f32.mrb[0].mxu0
      %2641 = vmatprep.mubr.f32.mxu0 %v2432
      %2642 = vmatmul.mubr.f32.gmra.mrb[0].mxu0 %v2431
      %v2643 = vpop.f32.mrb[0].mxu0
      %v2644 = vadd.f32 0.0, %v2643
      %v2645 = vpop.f32.mrb[0].mxu0
      %2646 = vmatprep.mubr.f32.mxu0 %v2436
      %2647 = vmatmul.mubr.f32.gmra.mrb[0].mxu0 %v2435
      %v2648 = vpop.f32.mrb[0].mxu0
      %v2649 = vadd.f32 0.0, %v2648
      %v2650 = vpop.f32.mrb[0].mxu0
      %2651 = vmatprep.mubr.f32.mxu0 %v2440
      %2652 = vmatmul.mubr.f32.gmra.mrb[0].mxu0 %v2439
      %v2653 = vpop.f32.mrb[0].mxu0
      %v2654 = vadd.f32 0.0, %v2653
      %v2655 = vpop.f32.mrb[0].mxu0
      %2656 = vmatprep.mubr.f32.mxu0 %v2444
      %2657 = vmatmul.mubr.f32.gmra.mrb[0].mxu0 %v2443
      %v2658 = vpop.f32.mrb[0].mxu0
      %v2659 = vadd.f32 0.0, %v2658
      %v2660 = vpop.f32.mrb[0].mxu0
      %2661 = vdwg.mxu0
      %2662 = vmatprep.subr.mxu0 0.0
      %2663 = vmatpush1.msra.mxu0 %v557
      %2664 = vmatprep.subr.mxu0 0.0
      %2665 = vmatpush1.msra.mxu0 %v558
      %2666 = vmatprep.subr.mxu0 0.0
      %2667 = vmatpush1.msra.mxu0 %v559
      %2668 = vmatprep.subr.mxu0 0.0
      %2669 = vmatpush1.msra.mxu0 %v560
      %2670 = vmatprep.subr.mxu0 0.0
      %2671 = vmatpush1.msra.mxu0 %v561
      %2672 = vmatprep.subr.mxu0 0.0
      %2673 = vmatpush1.msra.mxu0 %v562
      %2674 = vmatprep.subr.mxu0 0.0
      %2675 = vmatpush1.msra.mxu0 %v563
      %2676 = vmatprep.subr.mxu0 0.0
      %2677 = vmatpush1.msra.mxu0 %v564
      %2678 = vmatprep.subr.mxu0 0.0
      %2679 = vmatpush1.msra.mxu0 %v565
      %2680 = vmatprep.subr.mxu0 0.0
      %2681 = vmatpush1.msra.mxu0 %v566
      %2682 = vmatprep.subr.mxu0 0.0
      %2683 = vmatpush1.msra.mxu0 %v567
      %2684 = vmatprep.subr.mxu0 0.0
      %2685 = vmatpush1.msra.mxu0 %v568
      %2686 = vmatprep.subr.mxu0 0.0
      %2687 = vmatpush1.msra.mxu0 %v569
      %2688 = vmatprep.subr.mxu0 0.0
      %2689 = vmatpush1.msra.mxu0 %v570
      %2690 = vmatprep.subr.mxu0 0.0
      %2691 = vmatpush1.msra.mxu0 %v571
      %2692 = vmatprep.subr.mxu0 0.0
      %2693 = vmatpush1.msra.mxu0 %v572
      %2694 = vmatprep.subr.mxu0 0.0
      %2695 = vmatpush1.msra.mxu0 %v573
      %2696 = vmatprep.subr.mxu0 0.0
      %2697 = vmatpush1.msra.mxu0 %v574
      %2698 = vmatprep.subr.mxu0 0.0
      %2699 = vmatpush1.msra.mxu0 %v575
      %2700 = vmatprep.subr.mxu0 0.0
      %2701 = vmatpush1.msra.mxu0 %v576
      %2702 = vmatprep.subr.mxu0 0.0
      %2703 = vmatpush1.msra.mxu0 %v577
      %2704 = vmatprep.subr.mxu0 0.0
      %2705 = vmatpush1.msra.mxu0 %v578
      %2706 = vmatprep.subr.mxu0 0.0
      %2707 = vmatpush1.msra.mxu0 %v579
      %2708 = vmatprep.subr.mxu0 0.0
      %2709 = vmatpush1.msra.mxu0 %v580
      %2710 = vmatprep.subr.mxu0 0.0
      %2711 = vmatpush1.msra.mxu0 %v581
      %2712 = vmatprep.subr.mxu0 0.0
      %2713 = vmatpush1.msra.mxu0 %v582
      %2714 = vmatprep.subr.mxu0 0.0
      %2715 = vmatpush1.msra.mxu0 %v583
      %2716 = vmatprep.subr.mxu0 0.0
      %2717 = vmatpush1.msra.mxu0 %v584
      %2718 = vmatprep.subr.mxu0 0.0
      %2719 = vmatpush1.msra.mxu0 %v585
      %2720 = vmatprep.subr.mxu0 0.0
      %2721 = vmatpush1.msra.mxu0 %v586
      %2722 = vmatprep.subr.mxu0 0.0
      %2723 = vmatpush1.msra.mxu0 %v587
      %2724 = vmatprep.subr.mxu0 0.0
      %2725 = vmatpush1.msra.mxu0 %v588
      %2726 = vmatprep.mubr.f32.mxu0 %v2330
      %2727 = vmatmul.mubr.f32.gmra.mrb[0].mxu0 %v2329
      %v2728 = vpop.f32.mrb[0].mxu0
      %v2729 = vadd.f32 %v2514, %v2728
      %v2730 = vpop.f32.mrb[0].mxu0
      %2731 = vmatprep.mubr.f32.mxu0 %v2334
      %2732 = vmatmul.mubr.f32.gmra.mrb[0].mxu0 %v2333
      %v2733 = vpop.f32.mrb[0].mxu0
      %v2734 = vadd.f32 %v2519, %v2733
      %v2735 = vpop.f32.mrb[0].mxu0
      %2736 = vmatprep.mubr.f32.mxu0 %v2338
      %2737 = vmatmul.mubr.f32.gmra.mrb[0].mxu0 %v2337
      %v2738 = vpop.f32.mrb[0].mxu0
      %v2739 = vadd.f32 %v2524, %v2738
      %v2740 = vpop.f32.mrb[0].mxu0
      %2741 = vmatprep.mubr.f32.mxu0 %v2342
      %2742 = vmatmul.mubr.f32.gmra.mrb[0].mxu0 %v2341
      %v2743 = vpop.f32.mrb[0].mxu0
      %v2744 = vadd.f32 %v2529, %v2743
      %v2745 = vpop.f32.mrb[0].mxu0
      %2746 = vmatprep.mubr.f32.mxu0 %v2346
      %2747 = vmatmul.mubr.f32.gmra.mrb[0].mxu0 %v2345
      %v2748 = vpop.f32.mrb[0].mxu0
      %v2749 = vadd.f32 %v2534, %v2748
      %v2750 = vpop.f32.mrb[0].mxu0
      %2751 = vmatprep.mubr.f32.mxu0 %v2350
      %2752 = vmatmul.mubr.f32.gmra.mrb[0].mxu0 %v2349
      %v2753 = vpop.f32.mrb[0].mxu0
      %v2754 = vadd.f32 %v2539, %v2753
      %v2755 = vpop.f32.mrb[0].mxu0
      %2756 = vmatprep.mubr.f32.mxu0 %v2354
      %2757 = vmatmul.mubr.f32.gmra.mrb[0].mxu0 %v2353
      %v2758 = vpop.f32.mrb[0].mxu0
      %v2759 = vadd.f32 %v2544, %v2758
      %v2760 = vpop.f32.mrb[0].mxu0
      %2761 = vmatprep.mubr.f32.mxu0 %v2358
      %2762 = vmatmul.mubr.f32.gmra.mrb[0].mxu0 %v2357
      %v2763 = vpop.f32.mrb[0].mxu0
      %v2764 = vadd.f32 %v2549, %v2763
      %v2765 = vpop.f32.mrb[0].mxu0
      %2766 = vmatprep.mubr.f32.mxu0 %v2362
      %2767 = vmatmul.mubr.f32.gmra.mrb[0].mxu0 %v2361
      %v2768 = vpop.f32.mrb[0].mxu0
      %v2769 = vadd.f32 %v2554, %v2768
      %v2770 = vpop.f32.mrb[0].mxu0
      %2771 = vmatprep.mubr.f32.mxu0 %v2366
      %2772 = vmatmul.mubr.f32.gmra.mrb[0].mxu0 %v2365
      %v2773 = vpop.f32.mrb[0].mxu0
      %v2774 = vadd.f32 %v2559, %v2773
      %v2775 = vpop.f32.mrb[0].mxu0
      %2776 = vmatprep.mubr.f32.mxu0 %v2370
      %2777 = vmatmul.mubr.f32.gmra.mrb[0].mxu0 %v2369
      %v2778 = vpop.f32.mrb[0].mxu0
      %v2779 = vadd.f32 %v2564, %v2778
      %v2780 = vpop.f32.mrb[0].mxu0
      %2781 = vmatprep.mubr.f32.mxu0 %v2374
      %2782 = vmatmul.mubr.f32.gmra.mrb[0].mxu0 %v2373
      %v2783 = vpop.f32.mrb[0].mxu0
      %v2784 = vadd.f32 %v2569, %v2783
      %v2785 = vpop.f32.mrb[0].mxu0
      %2786 = vmatprep.mubr.f32.mxu0 %v2378
      %2787 = vmatmul.mubr.f32.gmra.mrb[0].mxu0 %v2377
      %v2788 = vpop.f32.mrb[0].mxu0
      %v2789 = vadd.f32 %v2574, %v2788
      %v2790 = vpop.f32.mrb[0].mxu0
      %2791 = vmatprep.mubr.f32.mxu0 %v2382
      %2792 = vmatmul.mubr.f32.gmra.mrb[0].mxu0 %v2381
      %v2793 = vpop.f32.mrb[0].mxu0
      %v2794 = vadd.f32 %v2579, %v2793
      %v2795 = vpop.f32.mrb[0].mxu0
      %2796 = vmatprep.mubr.f32.mxu0 %v2386
      %2797 = vmatmul.mubr.f32.gmra.mrb[0].mxu0 %v2385
      %v2798 = vpop.f32.mrb[0].mxu0
      %v2799 = vadd.f32 %v2584, %v2798
      %v2800 = vpop.f32.mrb[0].mxu0
      %2801 = vmatprep.mubr.f32.mxu0 %v2390
      %2802 = vmatmul.mubr.f32.gmra.mrb[0].mxu0 %v2389
      %v2803 = vpop.f32.mrb[0].mxu0
      %v2804 = vadd.f32 %v2589, %v2803
      %v2805 = vpop.f32.mrb[0].mxu0
      %2806 = vmatprep.mubr.f32.mxu0 %v2394
      %2807 = vmatmul.mubr.f32.gmra.mrb[0].mxu0 %v2393
      %v2808 = vpop.f32.mrb[0].mxu0
      %v2809 = vadd.f32 %v2594, %v2808
      %v2810 = vpop.f32.mrb[0].mxu0
      %2811 = vmatprep.mubr.f32.mxu0 %v2398
      %2812 = vmatmul.mubr.f32.gmra.mrb[0].mxu0 %v2397
      %v2813 = vpop.f32.mrb[0].mxu0
      %v2814 = vadd.f32 %v2599, %v2813
      %v2815 = vpop.f32.mrb[0].mxu0
      %2816 = vmatprep.mubr.f32.mxu0 %v2402
      %2817 = vmatmul.mubr.f32.gmra.mrb[0].mxu0 %v2401
      %v2818 = vpop.f32.mrb[0].mxu0
      %v2819 = vadd.f32 %v2604, %v2818
      %v2820 = vpop.f32.mrb[0].mxu0
      %2821 = vmatprep.mubr.f32.mxu0 %v2406
      %2822 = vmatmul.mubr.f32.gmra.mrb[0].mxu0 %v2405
      %v2823 = vpop.f32.mrb[0].mxu0
      %v2824 = vadd.f32 %v2609, %v2823
      %v2825 = vpop.f32.mrb[0].mxu0
      %2826 = vmatprep.mubr.f32.mxu0 %v2410
      %2827 = vmatmul.mubr.f32.gmra.mrb[0].mxu0 %v2409
      %v2828 = vpop.f32.mrb[0].mxu0
      %v2829 = vadd.f32 %v2614, %v2828
      %v2830 = vpop.f32.mrb[0].mxu0
      %2831 = vmatprep.mubr.f32.mxu0 %v2414
      %2832 = vmatmul.mubr.f32.gmra.mrb[0].mxu0 %v2413
      %v2833 = vpop.f32.mrb[0].mxu0
      %v2834 = vadd.f32 %v2619, %v2833
      %v2835 = vpop.f32.mrb[0].mxu0
      %2836 = vmatprep.mubr.f32.mxu0 %v2418
      %2837 = vmatmul.mubr.f32.gmra.mrb[0].mxu0 %v2417
      %v2838 = vpop.f32.mrb[0].mxu0
      %v2839 = vadd.f32 %v2624, %v2838
      %v2840 = vpop.f32.mrb[0].mxu0
      %2841 = vmatprep.mubr.f32.mxu0 %v2422
      %2842 = vmatmul.mubr.f32.gmra.mrb[0].mxu0 %v2421
      %v2843 = vpop.f32.mrb[0].mxu0
      %v2844 = vadd.f32 %v2629, %v2843
      %v2845 = vpop.f32.mrb[0].mxu0
      %2846 = vmatprep.mubr.f32.mxu0 %v2426
      %2847 = vmatmul.mubr.f32.gmra.mrb[0].mxu0 %v2425
      %v2848 = vpop.f32.mrb[0].mxu0
      %v2849 = vadd.f32 %v2634, %v2848
      %v2850 = vpop.f32.mrb[0].mxu0
      %2851 = vmatprep.mubr.f32.mxu0 %v2430
      %2852 = vmatmul.mubr.f32.gmra.mrb[0].mxu0 %v2429
      %v2853 = vpop.f32.mrb[0].mxu0
      %v2854 = vadd.f32 %v2639, %v2853
      %v2855 = vpop.f32.mrb[0].mxu0
      %2856 = vmatprep.mubr.f32.mxu0 %v2434
      %2857 = vmatmul.mubr.f32.gmra.mrb[0].mxu0 %v2433
      %v2858 = vpop.f32.mrb[0].mxu0
      %v2859 = vadd.f32 %v2644, %v2858
      %v2860 = vpop.f32.mrb[0].mxu0
      %2861 = vmatprep.mubr.f32.mxu0 %v2438
      %2862 = vmatmul.mubr.f32.gmra.mrb[0].mxu0 %v2437
      %v2863 = vpop.f32.mrb[0].mxu0
      %v2864 = vadd.f32 %v2649, %v2863
      %v2865 = vpop.f32.mrb[0].mxu0
      %2866 = vmatprep.mubr.f32.mxu0 %v2442
      %2867 = vmatmul.mubr.f32.gmra.mrb[0].mxu0 %v2441
      %v2868 = vpop.f32.mrb[0].mxu0
      %v2869 = vadd.f32 %v2654, %v2868
      %v2870 = vpop.f32.mrb[0].mxu0
      %2871 = vmatprep.mubr.f32.mxu0 %v2446
      %2872 = vmatmul.mubr.f32.gmra.mrb[0].mxu0 %v2445
      %v2873 = vpop.f32.mrb[0].mxu0
      %v2874 = vadd.f32 %v2659, %v2873
      %v2875 = vpop.f32.mrb[0].mxu0
      %2876 = vdwg.mxu0
      %s2877 = scalar_lea.vmem %s2, 192
      %v2878 = vld [vmem:[%s2877] sm:$0xff]
      %v2879 = vld [vmem:[%s2877 + $0x8] sm:$0xff]
      %v2880 = vld [vmem:[%s2877 + $0x10] sm:$0xff]
      %v2881 = vld [vmem:[%s2877 + $0x18] sm:$0xff]
      %v2882 = vld [vmem:[%s2877 + $0x20] sm:$0xff]
      %v2883 = vld [vmem:[%s2877 + $0x28] sm:$0xff]
      %v2884 = vld [vmem:[%s2877 + $0x30] sm:$0xff]
      %v2885 = vld [vmem:[%s2877 + $0x38] sm:$0xff]
      %v2886 = vld [vmem:[%s2877 + $0x40] sm:$0xff]
      %v2887 = vld [vmem:[%s2877 + $0x48] sm:$0xff]
      %v2888 = vld [vmem:[%s2877 + $0x50] sm:$0xff]
      %v2889 = vld [vmem:[%s2877 + $0x58] sm:$0xff]
      %v2891 = vsel %vm1715, %v2729, 0
      %v2894 = vsel %vm1715, %v2734, 0
      %v2897 = vsel %vm1715, %v2739, 0
      %v2900 = vsel %vm1715, %v2744, 0
      %v2903 = vsel %vm1715, %v2749, 0
      %v2906 = vsel %vm1715, %v2754, 0
      %v2909 = vsel %vm1715, %v2759, 0
      %v2912 = vsel %vm1715, %v2764, 0
      %v2915 = vsel %vm1715, %v2769, 0
      %v2918 = vsel %vm1715, %v2774, 0
      %v2921 = vsel %vm1715, %v2779, 0
      %v2924 = vsel %vm1715, %v2784, 0
      %v2927 = vsel %vm1715, %v2789, 0
      %v2930 = vsel %vm1715, %v2794, 0
      %v2933 = vsel %vm1715, %v2799, 0
      %v2936 = vsel %vm1715, %v2804, 0
      %v2939 = vsel %vm1715, %v2809, 0
      %v2942 = vsel %vm1715, %v2814, 0
      %v2945 = vsel %vm1715, %v2819, 0
      %v2948 = vsel %vm1715, %v2824, 0
      %v2951 = vsel %vm1715, %v2829, 0
      %v2954 = vsel %vm1715, %v2834, 0
      %v2957 = vsel %vm1715, %v2839, 0
      %v2960 = vsel %vm1715, %v2844, 0
      %v2963 = vsel %vm1715, %v2849, 0
      %v2966 = vsel %vm1715, %v2854, 0
      %v2969 = vsel %vm1715, %v2859, 0
      %v2972 = vsel %vm1715, %v2864, 0
      %v2975 = vsel %vm1715, %v2869, 0
      %v2978 = vsel %vm1715, %v2874, 0
      %2980 = vmatprep.subr.mxu0 0.0
      %2981 = vmatpush1.msra.mxu0 %v2878
      %2982 = vmatprep.subr.mxu0 0.0
      %2983 = vmatpush1.msra.mxu0 %v2879
      %2984 = vmatprep.subr.mxu0 0.0
      %2985 = vmatpush1.msra.mxu0 %v2880
      %2986 = vmatprep.subr.mxu0 0.0
      %2987 = vmatpush1.msra.mxu0 %v2881
      %2988 = vmatprep.subr.mxu0 0.0
      %2989 = vmatpush1.msra.mxu0 %v2882
      %2990 = vmatprep.subr.mxu0 0.0
      %2991 = vmatpush1.msra.mxu0 %v2883
      %2992 = vmatprep.subr.mxu0 0.0
      %2993 = vmatpush1.msra.mxu0 %v2884
      %2994 = vmatprep.subr.mxu0 0.0
      %2995 = vmatpush1.msra.mxu0 %v2885
      %2996 = vmatprep.subr.mxu0 0.0
      %2997 = vmatpush1.msra.mxu0 %v2886
      %2998 = vmatprep.subr.mxu0 0.0
      %2999 = vmatpush1.msra.mxu0 %v2887
      %3000 = vmatprep.subr.mxu0 0.0
      %3001 = vmatpush1.msra.mxu0 %v2888
      %3002 = vmatprep.subr.mxu0 0.0
      %3003 = vmatpush1.msra.mxu0 %v2889
      %3004 = vmatprep.subr.mxu0 0.0
      %3005 = vmatpush1.msra.mxu0 0.0
      %3006 = vmatprep.subr.mxu0 0.0
      %3007 = vmatpush1.msra.mxu0 0.0
      %3008 = vmatprep.subr.mxu0 0.0
      %3009 = vmatpush1.msra.mxu0 0.0
      %3010 = vmatprep.subr.mxu0 0.0
      %3011 = vmatpush1.msra.mxu0 0.0
      %3012 = vmatprep.subr.mxu0 0.0
      %3013 = vmatpush1.msra.mxu0 0.0
      %3014 = vmatprep.subr.mxu0 0.0
      %3015 = vmatpush1.msra.mxu0 0.0
      %3016 = vmatprep.subr.mxu0 0.0
      %3017 = vmatpush1.msra.mxu0 0.0
      %3018 = vmatprep.subr.mxu0 0.0
      %3019 = vmatpush1.msra.mxu0 0.0
      %3020 = vmatprep.subr.mxu0 0.0
      %3021 = vmatpush1.msra.mxu0 0.0
      %3022 = vmatprep.subr.mxu0 0.0
      %3023 = vmatpush1.msra.mxu0 0.0
      %3024 = vmatprep.subr.mxu0 0.0
      %3025 = vmatpush1.msra.mxu0 0.0
      %3026 = vmatprep.subr.mxu0 0.0
      %3027 = vmatpush1.msra.mxu0 0.0
      %3028 = vmatprep.subr.mxu0 0.0
      %3029 = vmatpush1.msra.mxu0 0.0
      %3030 = vmatprep.subr.mxu0 0.0
      %3031 = vmatpush1.msra.mxu0 0.0
      %3032 = vmatprep.subr.mxu0 0.0
      %3033 = vmatpush1.msra.mxu0 0.0
      %3034 = vmatprep.subr.mxu0 0.0
      %3035 = vmatpush1.msra.mxu0 0.0
      %3036 = vmatprep.subr.mxu0 0.0
      %3037 = vmatpush1.msra.mxu0 0.0
      %3038 = vmatprep.subr.mxu0 0.0
      %3039 = vmatpush1.msra.mxu0 0.0
      %3040 = vmatprep.subr.mxu0 0.0
      %3041 = vmatpush1.msra.mxu0 0.0
      %3042 = vmatprep.subr.mxu0 0.0
      %3043 = vmatpush1.msra.mxu0 0.0
      %3044 = vmatprep.mubr.f32.mxu0 0.0
      %3045 = vmatmul.mubr.f32.gmra.mrb[0].mxu0 %v2891
      %v3046 = vpop.f32.mrb[0].mxu0
      %v3047 = vadd.f32 0.0, %v3046
      %v3048 = vpop.f32.mrb[0].mxu0
      %3049 = vmatprep.mubr.f32.mxu0 0.0
      %3050 = vmatmul.mubr.f32.gmra.mrb[0].mxu0 %v2894
      %v3051 = vpop.f32.mrb[0].mxu0
      %v3052 = vadd.f32 0.0, %v3051
      %v3053 = vpop.f32.mrb[0].mxu0
      %3054 = vmatprep.mubr.f32.mxu0 0.0
      %3055 = vmatmul.mubr.f32.gmra.mrb[0].mxu0 %v2897
      %v3056 = vpop.f32.mrb[0].mxu0
      %v3057 = vadd.f32 0.0, %v3056
      %v3058 = vpop.f32.mrb[0].mxu0
      %3059 = vmatprep.mubr.f32.mxu0 0.0
      %3060 = vmatmul.mubr.f32.gmra.mrb[0].mxu0 %v2900
      %v3061 = vpop.f32.mrb[0].mxu0
      %v3062 = vadd.f32 0.0, %v3061
      %v3063 = vpop.f32.mrb[0].mxu0
      %3064 = vmatprep.mubr.f32.mxu0 0.0
      %3065 = vmatmul.mubr.f32.gmra.mrb[0].mxu0 %v2903
      %v3066 = vpop.f32.mrb[0].mxu0
      %v3067 = vadd.f32 0.0, %v3066
      %v3068 = vpop.f32.mrb[0].mxu0
      %3069 = vmatprep.mubr.f32.mxu0 0.0
      %3070 = vmatmul.mubr.f32.gmra.mrb[0].mxu0 %v2906
      %v3071 = vpop.f32.mrb[0].mxu0
      %v3072 = vadd.f32 0.0, %v3071
      %v3073 = vpop.f32.mrb[0].mxu0
      %3074 = vmatprep.mubr.f32.mxu0 0.0
      %3075 = vmatmul.mubr.f32.gmra.mrb[0].mxu0 %v2909
      %v3076 = vpop.f32.mrb[0].mxu0
      %v3077 = vadd.f32 0.0, %v3076
      %v3078 = vpop.f32.mrb[0].mxu0
      %3079 = vmatprep.mubr.f32.mxu0 0.0
      %3080 = vmatmul.mubr.f32.gmra.mrb[0].mxu0 %v2912
      %v3081 = vpop.f32.mrb[0].mxu0
      %v3082 = vadd.f32 0.0, %v3081
      %v3083 = vpop.f32.mrb[0].mxu0
      %3084 = vmatprep.mubr.f32.mxu0 0.0
      %3085 = vmatmul.mubr.f32.gmra.mrb[0].mxu0 %v2915
      %v3086 = vpop.f32.mrb[0].mxu0
      %v3087 = vadd.f32 0.0, %v3086
      %v3088 = vpop.f32.mrb[0].mxu0
      %3089 = vmatprep.mubr.f32.mxu0 0.0
      %3090 = vmatmul.mubr.f32.gmra.mrb[0].mxu0 %v2918
      %v3091 = vpop.f32.mrb[0].mxu0
      %v3092 = vadd.f32 0.0, %v3091
      %v3093 = vpop.f32.mrb[0].mxu0
      %3094 = vmatprep.mubr.f32.mxu0 0.0
      %3095 = vmatmul.mubr.f32.gmra.mrb[0].mxu0 %v2921
      %v3096 = vpop.f32.mrb[0].mxu0
      %v3097 = vadd.f32 0.0, %v3096
      %v3098 = vpop.f32.mrb[0].mxu0
      %3099 = vmatprep.mubr.f32.mxu0 0.0
      %3100 = vmatmul.mubr.f32.gmra.mrb[0].mxu0 %v2924
      %v3101 = vpop.f32.mrb[0].mxu0
      %v3102 = vadd.f32 0.0, %v3101
      %v3103 = vpop.f32.mrb[0].mxu0
      %3104 = vmatprep.mubr.f32.mxu0 0.0
      %3105 = vmatmul.mubr.f32.gmra.mrb[0].mxu0 %v2927
      %v3106 = vpop.f32.mrb[0].mxu0
      %v3107 = vadd.f32 0.0, %v3106
      %v3108 = vpop.f32.mrb[0].mxu0
      %3109 = vmatprep.mubr.f32.mxu0 0.0
      %3110 = vmatmul.mubr.f32.gmra.mrb[0].mxu0 %v2930
      %v3111 = vpop.f32.mrb[0].mxu0
      %v3112 = vadd.f32 0.0, %v3111
      %v3113 = vpop.f32.mrb[0].mxu0
      %3114 = vmatprep.mubr.f32.mxu0 0.0
      %3115 = vmatmul.mubr.f32.gmra.mrb[0].mxu0 %v2933
      %v3116 = vpop.f32.mrb[0].mxu0
      %v3117 = vadd.f32 0.0, %v3116
      %v3118 = vpop.f32.mrb[0].mxu0
      %3119 = vmatprep.mubr.f32.mxu0 0.0
      %3120 = vmatmul.mubr.f32.gmra.mrb[0].mxu0 %v2936
      %v3121 = vpop.f32.mrb[0].mxu0
      %v3122 = vadd.f32 0.0, %v3121
      %v3123 = vpop.f32.mrb[0].mxu0
      %3124 = vmatprep.mubr.f32.mxu0 0.0
      %3125 = vmatmul.mubr.f32.gmra.mrb[0].mxu0 %v2939
      %v3126 = vpop.f32.mrb[0].mxu0
      %v3127 = vadd.f32 0.0, %v3126
      %v3128 = vpop.f32.mrb[0].mxu0
      %3129 = vmatprep.mubr.f32.mxu0 0.0
      %3130 = vmatmul.mubr.f32.gmra.mrb[0].mxu0 %v2942
      %v3131 = vpop.f32.mrb[0].mxu0
      %v3132 = vadd.f32 0.0, %v3131
      %v3133 = vpop.f32.mrb[0].mxu0
      %3134 = vmatprep.mubr.f32.mxu0 0.0
      %3135 = vmatmul.mubr.f32.gmra.mrb[0].mxu0 %v2945
      %v3136 = vpop.f32.mrb[0].mxu0
      %v3137 = vadd.f32 0.0, %v3136
      %v3138 = vpop.f32.mrb[0].mxu0
      %3139 = vmatprep.mubr.f32.mxu0 0.0
      %3140 = vmatmul.mubr.f32.gmra.mrb[0].mxu0 %v2948
      %v3141 = vpop.f32.mrb[0].mxu0
      %v3142 = vadd.f32 0.0, %v3141
      %v3143 = vpop.f32.mrb[0].mxu0
      %3144 = vmatprep.mubr.f32.mxu0 0.0
      %3145 = vmatmul.mubr.f32.gmra.mrb[0].mxu0 %v2951
      %v3146 = vpop.f32.mrb[0].mxu0
      %v3147 = vadd.f32 0.0, %v3146
      %v3148 = vpop.f32.mrb[0].mxu0
      %3149 = vmatprep.mubr.f32.mxu0 0.0
      %3150 = vmatmul.mubr.f32.gmra.mrb[0].mxu0 %v2954
      %v3151 = vpop.f32.mrb[0].mxu0
      %v3152 = vadd.f32 0.0, %v3151
      %v3153 = vpop.f32.mrb[0].mxu0
      %3154 = vmatprep.mubr.f32.mxu0 0.0
      %3155 = vmatmul.mubr.f32.gmra.mrb[0].mxu0 %v2957
      %v3156 = vpop.f32.mrb[0].mxu0
      %v3157 = vadd.f32 0.0, %v3156
      %v3158 = vpop.f32.mrb[0].mxu0
      %3159 = vmatprep.mubr.f32.mxu0 0.0
      %3160 = vmatmul.mubr.f32.gmra.mrb[0].mxu0 %v2960
      %v3161 = vpop.f32.mrb[0].mxu0
      %v3162 = vadd.f32 0.0, %v3161
      %v3163 = vpop.f32.mrb[0].mxu0
      %3164 = vmatprep.mubr.f32.mxu0 0.0
      %3165 = vmatmul.mubr.f32.gmra.mrb[0].mxu0 %v2963
      %v3166 = vpop.f32.mrb[0].mxu0
      %v3167 = vadd.f32 0.0, %v3166
      %v3168 = vpop.f32.mrb[0].mxu0
      %3169 = vmatprep.mubr.f32.mxu0 0.0
      %3170 = vmatmul.mubr.f32.gmra.mrb[0].mxu0 %v2966
      %v3171 = vpop.f32.mrb[0].mxu0
      %v3172 = vadd.f32 0.0, %v3171
      %v3173 = vpop.f32.mrb[0].mxu0
      %3174 = vmatprep.mubr.f32.mxu0 0.0
      %3175 = vmatmul.mubr.f32.gmra.mrb[0].mxu0 %v2969
      %v3176 = vpop.f32.mrb[0].mxu0
      %v3177 = vadd.f32 0.0, %v3176
      %v3178 = vpop.f32.mrb[0].mxu0
      %3179 = vmatprep.mubr.f32.mxu0 0.0
      %3180 = vmatmul.mubr.f32.gmra.mrb[0].mxu0 %v2972
      %v3181 = vpop.f32.mrb[0].mxu0
      %v3182 = vadd.f32 0.0, %v3181
      %v3183 = vpop.f32.mrb[0].mxu0
      %3184 = vmatprep.mubr.f32.mxu0 0.0
      %3185 = vmatmul.mubr.f32.gmra.mrb[0].mxu0 %v2975
      %v3186 = vpop.f32.mrb[0].mxu0
      %v3187 = vadd.f32 0.0, %v3186
      %v3188 = vpop.f32.mrb[0].mxu0
      %3189 = vmatprep.mubr.f32.mxu0 0.0
      %3190 = vmatmul.mubr.f32.gmra.mrb[0].mxu0 %v2978
      %v3191 = vpop.f32.mrb[0].mxu0
      %v3192 = vadd.f32 0.0, %v3191
      %v3193 = vpop.f32.mrb[0].mxu0
      %3194 = vdwg.mxu0
      %v3195 = vadd.f32 %v2178, %v3047
      %v3196 = vadd.f32 %v2183, %v3052
      %v3197 = vadd.f32 %v2188, %v3057
      %v3198 = vadd.f32 %v2193, %v3062
      %v3199 = vadd.f32 %v2198, %v3067
      %v3200 = vadd.f32 %v2203, %v3072
      %v3201 = vadd.f32 %v2208, %v3077
      %v3202 = vadd.f32 %v2213, %v3082
      %v3203 = vadd.f32 %v2218, %v3087
      %v3204 = vadd.f32 %v2223, %v3092
      %v3205 = vadd.f32 %v2228, %v3097
      %v3206 = vadd.f32 %v2233, %v3102
      %v3207 = vadd.f32 %v2238, %v3107
      %v3208 = vadd.f32 %v2243, %v3112
      %v3209 = vadd.f32 %v2248, %v3117
      %v3210 = vadd.f32 %v2253, %v3122
      %v3211 = vadd.f32 %v2258, %v3127
      %v3212 = vadd.f32 %v2263, %v3132
      %v3213 = vadd.f32 %v2268, %v3137
      %v3214 = vadd.f32 %v2273, %v3142
      %v3215 = vadd.f32 %v2278, %v3147
      %v3216 = vadd.f32 %v2283, %v3152
      %v3217 = vadd.f32 %v2288, %v3157
      %v3218 = vadd.f32 %v2293, %v3162
      %v3219 = vadd.f32 %v2298, %v3167
      %v3220 = vadd.f32 %v2303, %v3172
      %v3221 = vadd.f32 %v2308, %v3177
      %v3222 = vadd.f32 %v2313, %v3182
      %v3223 = vadd.f32 %v2318, %v3187
      %v3224 = vadd.f32 %v2323, %v3192
      %v3225 = vld [vmem:[%s3] sm:$0x1]
      %v3227 = vlaneseq
      %v3228 = vshrl.u32 %v3227, 7
      %v3229 = vsub.s32 0, %v3228
      %v3230 = vrot.slane %v3225, %v3229
      %v3232 = vadd.f32 %v3195, %v3230
      %v3233 = vadd.f32 %v3196, %v3230
      %v3234 = vadd.f32 %v3197, %v3230
      %v3235 = vadd.f32 %v3198, %v3230
      %v3236 = vadd.f32 %v3199, %v3230
      %v3237 = vadd.f32 %v3200, %v3230
      %v3238 = vadd.f32 %v3201, %v3230
      %v3239 = vadd.f32 %v3202, %v3230
      %v3240 = vadd.f32 %v3203, %v3230
      %v3241 = vadd.f32 %v3204, %v3230
      %v3242 = vadd.f32 %v3205, %v3230
      %v3243 = vadd.f32 %v3206, %v3230
      %v3244 = vadd.f32 %v3207, %v3230
      %v3245 = vadd.f32 %v3208, %v3230
      %v3246 = vadd.f32 %v3209, %v3230
      %v3247 = vadd.f32 %v3210, %v3230
      %v3248 = vadd.f32 %v3211, %v3230
      %v3249 = vadd.f32 %v3212, %v3230
      %v3250 = vadd.f32 %v3213, %v3230
      %v3251 = vadd.f32 %v3214, %v3230
      %v3252 = vadd.f32 %v3215, %v3230
      %v3253 = vadd.f32 %v3216, %v3230
      %v3254 = vadd.f32 %v3217, %v3230
      %v3255 = vadd.f32 %v3218, %v3230
      %v3256 = vadd.f32 %v3219, %v3230
      %v3257 = vadd.f32 %v3220, %v3230
      %v3258 = vadd.f32 %v3221, %v3230
      %v3259 = vadd.f32 %v3222, %v3230
      %v3260 = vadd.f32 %v3223, %v3230
      %v3261 = vadd.f32 %v3224, %v3230
      %v3262 = vmax.f32 %v3232, 0.0
      %v3263 = vmax.f32 %v3233, 0.0
      %v3264 = vmax.f32 %v3234, 0.0
      %v3265 = vmax.f32 %v3235, 0.0
      %v3266 = vmax.f32 %v3236, 0.0
      %v3267 = vmax.f32 %v3237, 0.0
      %v3268 = vmax.f32 %v3238, 0.0
      %v3269 = vmax.f32 %v3239, 0.0
      %v3270 = vmax.f32 %v3240, 0.0
      %v3271 = vmax.f32 %v3241, 0.0
      %v3272 = vmax.f32 %v3242, 0.0
      %v3273 = vmax.f32 %v3243, 0.0
      %v3274 = vmax.f32 %v3244, 0.0
      %v3275 = vmax.f32 %v3245, 0.0
      %v3276 = vmax.f32 %v3246, 0.0
      %v3277 = vmax.f32 %v3247, 0.0
      %v3278 = vmax.f32 %v3248, 0.0
      %v3279 = vmax.f32 %v3249, 0.0
      %v3280 = vmax.f32 %v3250, 0.0
      %v3281 = vmax.f32 %v3251, 0.0
      %v3282 = vmax.f32 %v3252, 0.0
      %v3283 = vmax.f32 %v3253, 0.0
      %v3284 = vmax.f32 %v3254, 0.0
      %v3285 = vmax.f32 %v3255, 0.0
      %v3286 = vmax.f32 %v3256, 0.0
      %v3287 = vmax.f32 %v3257, 0.0
      %v3288 = vmax.f32 %v3258, 0.0
      %v3289 = vmax.f32 %v3259, 0.0
      %v3290 = vmax.f32 %v3260, 0.0
      %v3291 = vmax.f32 %v3261, 0.0
      %v3292 = vld [vmem:[%s4] sm:$0xff]
      %v3293 = vld [vmem:[%s4 + $0x8] sm:$0xff]
      %v3294 = vld [vmem:[%s4 + $0x10] sm:$0xff]
      %v3295 = vld [vmem:[%s4 + $0x18] sm:$0xff]
      %v3296 = vld [vmem:[%s4 + $0x20] sm:$0xff]
      %v3297 = vld [vmem:[%s4 + $0x28] sm:$0xff]
      %v3298 = vld [vmem:[%s4 + $0x30] sm:$0xff]
      %v3299 = vld [vmem:[%s4 + $0x38] sm:$0xff]
      %v3300 = vld [vmem:[%s4 + $0x40] sm:$0xff]
      %v3301 = vld [vmem:[%s4 + $0x48] sm:$0xff]
      %v3302 = vld [vmem:[%s4 + $0x50] sm:$0xff]
      %v3303 = vld [vmem:[%s4 + $0x58] sm:$0xff]
      %v3304 = vld [vmem:[%s4 + $0x60] sm:$0xff]
      %v3305 = vld [vmem:[%s4 + $0x68] sm:$0xff]
      %v3306 = vld [vmem:[%s4 + $0x70] sm:$0xff]
      %v3307 = vld [vmem:[%s4 + $0x78] sm:$0xff]
      %v3308 = vld [vmem:[%s4 + $0x80] sm:$0xff]
      %v3309 = vld [vmem:[%s4 + $0x88] sm:$0xff]
      %v3310 = vld [vmem:[%s4 + $0x90] sm:$0xff]
      %v3311 = vld [vmem:[%s4 + $0x98] sm:$0xff]
      %v3312 = vld [vmem:[%s4 + $0xa0] sm:$0xff]
      %v3313 = vld [vmem:[%s4 + $0xa8] sm:$0xff]
      %v3314 = vld [vmem:[%s4 + $0xb0] sm:$0xff]
      %v3315 = vld [vmem:[%s4 + $0xb8] sm:$0xff]
      %v3316 = vld [vmem:[%s4 + $0xc0] sm:$0xff]
      %v3317 = vld [vmem:[%s4 + $0xc8] sm:$0xff]
      %v3318 = vld [vmem:[%s4 + $0xd0] sm:$0xff]
      %v3319 = vld [vmem:[%s4 + $0xd8] sm:$0xff]
      %v3320 = vld [vmem:[%s4 + $0xe0] sm:$0xff]
      %v3321 = vld [vmem:[%s4 + $0xe8] sm:$0xff]
      %v3322 = vld [vmem:[%s4 + $0xf0] sm:$0xff]
      %v3323 = vld [vmem:[%s4 + $0xf8] sm:$0xff]
      %v3324 = vld [vmem:[%s4 + $0x100] sm:$0xff]
      %v3325 = vld [vmem:[%s4 + $0x108] sm:$0xff]
      %v3326 = vld [vmem:[%s4 + $0x110] sm:$0xff]
      %v3327 = vld [vmem:[%s4 + $0x118] sm:$0xff]
      %v3328 = vld [vmem:[%s4 + $0x120] sm:$0xff]
      %v3329 = vld [vmem:[%s4 + $0x128] sm:$0xff]
      %v3330 = vld [vmem:[%s4 + $0x130] sm:$0xff]
      %v3331 = vld [vmem:[%s4 + $0x138] sm:$0xff]
      %v3332 = vld [vmem:[%s4 + $0x140] sm:$0xff]
      %v3333 = vld [vmem:[%s4 + $0x148] sm:$0xff]
      %v3334 = vld [vmem:[%s4 + $0x150] sm:$0xff]
      %v3335 = vld [vmem:[%s4 + $0x158] sm:$0xff]
      %v3336 = vld [vmem:[%s4 + $0x160] sm:$0xff]
      %v3337 = vld [vmem:[%s4 + $0x168] sm:$0xff]
      %v3338 = vld [vmem:[%s4 + $0x170] sm:$0xff]
      %v3339 = vld [vmem:[%s4 + $0x178] sm:$0xff]
      %v3340 = vld [vmem:[%s4 + $0x180] sm:$0xff]
      %v3341 = vld [vmem:[%s4 + $0x188] sm:$0xff]
      %v3342 = vld [vmem:[%s4 + $0x190] sm:$0xff]
      %v3343 = vld [vmem:[%s4 + $0x198] sm:$0xff]
      %vm3344 = vcmask 916480
      %v3346 = vsel %vm3344, %v3293, 0
      %v3349 = vsel %vm3344, %v3295, 0
      %v3352 = vsel %vm3344, %v3297, 0
      %v3355 = vsel %vm3344, %v3299, 0
      %v3358 = vsel %vm3344, %v3301, 0
      %v3361 = vsel %vm3344, %v3303, 0
      %v3364 = vsel %vm3344, %v3305, 0
      %v3367 = vsel %vm3344, %v3307, 0
      %v3370 = vsel %vm3344, %v3309, 0
      %v3373 = vsel %vm3344, %v3311, 0
      %v3376 = vsel %vm3344, %v3313, 0
      %v3379 = vsel %vm3344, %v3315, 0
      %v3382 = vsel %vm3344, %v3317, 0
      %v3385 = vsel %vm3344, %v3319, 0
      %v3388 = vsel %vm3344, %v3321, 0
      %v3391 = vsel %vm3344, %v3323, 0
      %v3394 = vsel %vm3344, %v3325, 0
      %v3397 = vsel %vm3344, %v3327, 0
      %v3400 = vsel %vm3344, %v3329, 0
      %v3403 = vsel %vm3344, %v3331, 0
      %v3406 = vsel %vm3344, %v3333, 0
      %v3409 = vsel %vm3344, %v3335, 0
      %v3412 = vsel %vm3344, %v3337, 0
      %v3415 = vsel %vm3344, %v3339, 0
      %v3418 = vsel %vm3344, %v3341, 0
      %v3421 = vsel %vm3344, %v3343, 0
      %3423 = vmatprep.subr.mxu0 0.0
      %3424 = vmatpush1.msra.mxu0 %v3262
      %3425 = vmatprep.subr.mxu0 0.0
      %3426 = vmatpush1.msra.mxu0 %v3263
      %3427 = vmatprep.subr.mxu0 0.0
      %3428 = vmatpush1.msra.mxu0 %v3264
      %3429 = vmatprep.subr.mxu0 0.0
      %3430 = vmatpush1.msra.mxu0 %v3265
      %3431 = vmatprep.subr.mxu0 0.0
      %3432 = vmatpush1.msra.mxu0 %v3266
      %3433 = vmatprep.subr.mxu0 0.0
      %3434 = vmatpush1.msra.mxu0 %v3267
      %3435 = vmatprep.subr.mxu0 0.0
      %3436 = vmatpush1.msra.mxu0 %v3268
      %3437 = vmatprep.subr.mxu0 0.0
      %3438 = vmatpush1.msra.mxu0 %v3269
      %3439 = vmatprep.subr.mxu0 0.0
      %3440 = vmatpush1.msra.mxu0 %v3270
      %3441 = vmatprep.subr.mxu0 0.0
      %3442 = vmatpush1.msra.mxu0 %v3271
      %3443 = vmatprep.subr.mxu0 0.0
      %3444 = vmatpush1.msra.mxu0 %v3272
      %3445 = vmatprep.subr.mxu0 0.0
      %3446 = vmatpush1.msra.mxu0 %v3273
      %3447 = vmatprep.subr.mxu0 0.0
      %3448 = vmatpush1.msra.mxu0 %v3274
      %3449 = vmatprep.subr.mxu0 0.0
      %3450 = vmatpush1.msra.mxu0 %v3275
      %3451 = vmatprep.subr.mxu0 0.0
      %3452 = vmatpush1.msra.mxu0 %v3276
      %3453 = vmatprep.subr.mxu0 0.0
      %3454 = vmatpush1.msra.mxu0 %v3277
      %3455 = vmatprep.subr.mxu0 0.0
      %3456 = vmatpush1.msra.mxu0 %v3278
      %3457 = vmatprep.subr.mxu0 0.0
      %3458 = vmatpush1.msra.mxu0 %v3279
      %3459 = vmatprep.subr.mxu0 0.0
      %3460 = vmatpush1.msra.mxu0 %v3280
      %3461 = vmatprep.subr.mxu0 0.0
      %3462 = vmatpush1.msra.mxu0 %v3281
      %3463 = vmatprep.subr.mxu0 0.0
      %3464 = vmatpush1.msra.mxu0 %v3282
      %3465 = vmatprep.subr.mxu0 0.0
      %3466 = vmatpush1.msra.mxu0 %v3283
      %3467 = vmatprep.subr.mxu0 0.0
      %3468 = vmatpush1.msra.mxu0 %v3284
      %3469 = vmatprep.subr.mxu0 0.0
      %3470 = vmatpush1.msra.mxu0 %v3285
      %3471 = vmatprep.subr.mxu0 0.0
      %3472 = vmatpush1.msra.mxu0 %v3286
      %3473 = vmatprep.subr.mxu0 0.0
      %3474 = vmatpush1.msra.mxu0 %v3287
      %3475 = vmatprep.subr.mxu0 0.0
      %3476 = vmatpush1.msra.mxu0 %v3288
      %3477 = vmatprep.subr.mxu0 0.0
      %3478 = vmatpush1.msra.mxu0 %v3289
      %3479 = vmatprep.subr.mxu0 0.0
      %3480 = vmatpush1.msra.mxu0 %v3290
      %3481 = vmatprep.subr.mxu0 0.0
      %3482 = vmatpush1.msra.mxu0 %v3291
      %3483 = vmatprep.subr.mxu0 0.0
      %3484 = vmatpush1.msra.mxu0 0.0
      %3485 = vmatprep.subr.mxu0 0.0
      %3486 = vmatpush1.msra.mxu0 0.0
      %3487 = vmatprep.mubr.f32.mxu0 %v3346
      %3488 = vmatmul.mubr.f32.gmra.mrb[0].mxu0 %v3292
      %v3489 = vpop.f32.mrb[0].mxu0
      %v3490 = vadd.f32 0.0, %v3489
      %v3491 = vpop.f32.mrb[0].mxu0
      %3492 = vmatprep.mubr.f32.mxu0 %v3349
      %3493 = vmatmul.mubr.f32.gmra.mrb[0].mxu0 %v3294
      %v3494 = vpop.f32.mrb[0].mxu0
      %v3495 = vadd.f32 0.0, %v3494
      %v3496 = vpop.f32.mrb[0].mxu0
      %3497 = vmatprep.mubr.f32.mxu0 %v3352
      %3498 = vmatmul.mubr.f32.gmra.mrb[0].mxu0 %v3296
      %v3499 = vpop.f32.mrb[0].mxu0
      %v3500 = vadd.f32 0.0, %v3499
      %v3501 = vpop.f32.mrb[0].mxu0
      %3502 = vmatprep.mubr.f32.mxu0 %v3355
      %3503 = vmatmul.mubr.f32.gmra.mrb[0].mxu0 %v3298
      %v3504 = vpop.f32.mrb[0].mxu0
      %v3505 = vadd.f32 0.0, %v3504
      %v3506 = vpop.f32.mrb[0].mxu0
      %3507 = vmatprep.mubr.f32.mxu0 %v3358
      %3508 = vmatmul.mubr.f32.gmra.mrb[0].mxu0 %v3300
      %v3509 = vpop.f32.mrb[0].mxu0
      %v3510 = vadd.f32 0.0, %v3509
      %v3511 = vpop.f32.mrb[0].mxu0
      %3512 = vmatprep.mubr.f32.mxu0 %v3361
      %3513 = vmatmul.mubr.f32.gmra.mrb[0].mxu0 %v3302
      %v3514 = vpop.f32.mrb[0].mxu0
      %v3515 = vadd.f32 0.0, %v3514
      %v3516 = vpop.f32.mrb[0].mxu0
      %3517 = vmatprep.mubr.f32.mxu0 %v3364
      %3518 = vmatmul.mubr.f32.gmra.mrb[0].mxu0 %v3304
      %v3519 = vpop.f32.mrb[0].mxu0
      %v3520 = vadd.f32 0.0, %v3519
      %v3521 = vpop.f32.mrb[0].mxu0
      %3522 = vmatprep.mubr.f32.mxu0 %v3367
      %3523 = vmatmul.mubr.f32.gmra.mrb[0].mxu0 %v3306
      %v3524 = vpop.f32.mrb[0].mxu0
      %v3525 = vadd.f32 0.0, %v3524
      %v3526 = vpop.f32.mrb[0].mxu0
      %3527 = vmatprep.mubr.f32.mxu0 %v3370
      %3528 = vmatmul.mubr.f32.gmra.mrb[0].mxu0 %v3308
      %v3529 = vpop.f32.mrb[0].mxu0
      %v3530 = vadd.f32 0.0, %v3529
      %v3531 = vpop.f32.mrb[0].mxu0
      %3532 = vmatprep.mubr.f32.mxu0 %v3373
      %3533 = vmatmul.mubr.f32.gmra.mrb[0].mxu0 %v3310
      %v3534 = vpop.f32.mrb[0].mxu0
      %v3535 = vadd.f32 0.0, %v3534
      %v3536 = vpop.f32.mrb[0].mxu0
      %3537 = vmatprep.mubr.f32.mxu0 %v3376
      %3538 = vmatmul.mubr.f32.gmra.mrb[0].mxu0 %v3312
      %v3539 = vpop.f32.mrb[0].mxu0
      %v3540 = vadd.f32 0.0, %v3539
      %v3541 = vpop.f32.mrb[0].mxu0
      %3542 = vmatprep.mubr.f32.mxu0 %v3379
      %3543 = vmatmul.mubr.f32.gmra.mrb[0].mxu0 %v3314
      %v3544 = vpop.f32.mrb[0].mxu0
      %v3545 = vadd.f32 0.0, %v3544
      %v3546 = vpop.f32.mrb[0].mxu0
      %3547 = vmatprep.mubr.f32.mxu0 %v3382
      %3548 = vmatmul.mubr.f32.gmra.mrb[0].mxu0 %v3316
      %v3549 = vpop.f32.mrb[0].mxu0
      %v3550 = vadd.f32 0.0, %v3549
      %v3551 = vpop.f32.mrb[0].mxu0
      %3552 = vmatprep.mubr.f32.mxu0 %v3385
      %3553 = vmatmul.mubr.f32.gmra.mrb[0].mxu0 %v3318
      %v3554 = vpop.f32.mrb[0].mxu0
      %v3555 = vadd.f32 0.0, %v3554
      %v3556 = vpop.f32.mrb[0].mxu0
      %3557 = vmatprep.mubr.f32.mxu0 %v3388
      %3558 = vmatmul.mubr.f32.gmra.mrb[0].mxu0 %v3320
      %v3559 = vpop.f32.mrb[0].mxu0
      %v3560 = vadd.f32 0.0, %v3559
      %v3561 = vpop.f32.mrb[0].mxu0
      %3562 = vmatprep.mubr.f32.mxu0 %v3391
      %3563 = vmatmul.mubr.f32.gmra.mrb[0].mxu0 %v3322
      %v3564 = vpop.f32.mrb[0].mxu0
      %v3565 = vadd.f32 0.0, %v3564
      %v3566 = vpop.f32.mrb[0].mxu0
      %3567 = vmatprep.mubr.f32.mxu0 %v3394
      %3568 = vmatmul.mubr.f32.gmra.mrb[0].mxu0 %v3324
      %v3569 = vpop.f32.mrb[0].mxu0
      %v3570 = vadd.f32 0.0, %v3569
      %v3571 = vpop.f32.mrb[0].mxu0
      %3572 = vmatprep.mubr.f32.mxu0 %v3397
      %3573 = vmatmul.mubr.f32.gmra.mrb[0].mxu0 %v3326
      %v3574 = vpop.f32.mrb[0].mxu0
      %v3575 = vadd.f32 0.0, %v3574
      %v3576 = vpop.f32.mrb[0].mxu0
      %3577 = vmatprep.mubr.f32.mxu0 %v3400
      %3578 = vmatmul.mubr.f32.gmra.mrb[0].mxu0 %v3328
      %v3579 = vpop.f32.mrb[0].mxu0
      %v3580 = vadd.f32 0.0, %v3579
      %v3581 = vpop.f32.mrb[0].mxu0
      %3582 = vmatprep.mubr.f32.mxu0 %v3403
      %3583 = vmatmul.mubr.f32.gmra.mrb[0].mxu0 %v3330
      %v3584 = vpop.f32.mrb[0].mxu0
      %v3585 = vadd.f32 0.0, %v3584
      %v3586 = vpop.f32.mrb[0].mxu0
      %3587 = vmatprep.mubr.f32.mxu0 %v3406
      %3588 = vmatmul.mubr.f32.gmra.mrb[0].mxu0 %v3332
      %v3589 = vpop.f32.mrb[0].mxu0
      %v3590 = vadd.f32 0.0, %v3589
      %v3591 = vpop.f32.mrb[0].mxu0
      %3592 = vmatprep.mubr.f32.mxu0 %v3409
      %3593 = vmatmul.mubr.f32.gmra.mrb[0].mxu0 %v3334
      %v3594 = vpop.f32.mrb[0].mxu0
      %v3595 = vadd.f32 0.0, %v3594
      %v3596 = vpop.f32.mrb[0].mxu0
      %3597 = vmatprep.mubr.f32.mxu0 %v3412
      %3598 = vmatmul.mubr.f32.gmra.mrb[0].mxu0 %v3336
      %v3599 = vpop.f32.mrb[0].mxu0
      %v3600 = vadd.f32 0.0, %v3599
      %v3601 = vpop.f32.mrb[0].mxu0
      %3602 = vmatprep.mubr.f32.mxu0 %v3415
      %3603 = vmatmul.mubr.f32.gmra.mrb[0].mxu0 %v3338
      %v3604 = vpop.f32.mrb[0].mxu0
      %v3605 = vadd.f32 0.0, %v3604
      %v3606 = vpop.f32.mrb[0].mxu0
      %3607 = vmatprep.mubr.f32.mxu0 %v3418
      %3608 = vmatmul.mubr.f32.gmra.mrb[0].mxu0 %v3340
      %v3609 = vpop.f32.mrb[0].mxu0
      %v3610 = vadd.f32 0.0, %v3609
      %v3611 = vpop.f32.mrb[0].mxu0
      %3612 = vmatprep.mubr.f32.mxu0 %v3421
      %3613 = vmatmul.mubr.f32.gmra.mrb[0].mxu0 %v3342
      %v3614 = vpop.f32.mrb[0].mxu0
      %v3615 = vadd.f32 0.0, %v3614
      %v3616 = vpop.f32.mrb[0].mxu0
      %3617 = vdwg.mxu0
      %v3618 = vld [vmem:[%s5] sm:$0xff]
      %v3619 = vld [vmem:[%s5 + $0x8] sm:$0xff]
      %v3620 = vld [vmem:[%s5 + $0x10] sm:$0xff]
      %v3621 = vld [vmem:[%s5 + $0x18] sm:$0xff]
      %v3622 = vld [vmem:[%s5 + $0x20] sm:$0xff]
      %v3623 = vld [vmem:[%s5 + $0x28] sm:$0xff]
      %v3624 = vld [vmem:[%s5 + $0x30] sm:$0xff]
      %v3625 = vld [vmem:[%s5 + $0x38] sm:$0xff]
      %v3626 = vld [vmem:[%s5 + $0x40] sm:$0xff]
      %v3627 = vld [vmem:[%s5 + $0x48] sm:$0xff]
      %v3628 = vld [vmem:[%s5 + $0x50] sm:$0xff]
      %v3629 = vld [vmem:[%s5 + $0x58] sm:$0xff]
      %v3630 = vld [vmem:[%s5 + $0x60] sm:$0xff]
      %v3631 = vld [vmem:[%s5 + $0x68] sm:$0xff]
      %v3632 = vld [vmem:[%s5 + $0x70] sm:$0xff]
      %s3633 = scalar_lea.vmem %s4, 416
      %v3634 = vld [vmem:[%s3633] sm:$0xff]
      %v3635 = vld [vmem:[%s3633 + $0x8] sm:$0xff]
      %v3636 = vld [vmem:[%s3633 + $0x10] sm:$0xff]
      %v3637 = vld [vmem:[%s3633 + $0x18] sm:$0xff]
      %v3638 = vld [vmem:[%s3633 + $0x20] sm:$0xff]
      %v3639 = vld [vmem:[%s3633 + $0x28] sm:$0xff]
      %v3640 = vld [vmem:[%s3633 + $0x30] sm:$0xff]
      %v3641 = vld [vmem:[%s3633 + $0x38] sm:$0xff]
      %v3642 = vld [vmem:[%s3633 + $0x40] sm:$0xff]
      %v3643 = vld [vmem:[%s3633 + $0x48] sm:$0xff]
      %v3644 = vld [vmem:[%s3633 + $0x50] sm:$0xff]
      %v3645 = vld [vmem:[%s3633 + $0x58] sm:$0xff]
      %v3646 = vld [vmem:[%s3633 + $0x60] sm:$0xff]
      %v3647 = vld [vmem:[%s3633 + $0x68] sm:$0xff]
      %v3648 = vld [vmem:[%s3633 + $0x70] sm:$0xff]
      %v3649 = vld [vmem:[%s3633 + $0x78] sm:$0xff]
      %v3650 = vld [vmem:[%s3633 + $0x80] sm:$0xff]
      %v3651 = vld [vmem:[%s3633 + $0x88] sm:$0xff]
      %v3652 = vld [vmem:[%s3633 + $0x90] sm:$0xff]
      %v3653 = vld [vmem:[%s3633 + $0x98] sm:$0xff]
      %v3654 = vld [vmem:[%s3633 + $0xa0] sm:$0xff]
      %v3655 = vld [vmem:[%s3633 + $0xa8] sm:$0xff]
      %v3656 = vld [vmem:[%s3633 + $0xb0] sm:$0xff]
      %v3657 = vld [vmem:[%s3633 + $0xb8] sm:$0xff]
      %v3658 = vld [vmem:[%s3633 + $0xc0] sm:$0xff]
      %v3659 = vld [vmem:[%s3633 + $0xc8] sm:$0xff]
      %v3660 = vld [vmem:[%s3633 + $0xd0] sm:$0xff]
      %v3661 = vld [vmem:[%s3633 + $0xd8] sm:$0xff]
      %v3662 = vld [vmem:[%s3633 + $0xe0] sm:$0xff]
      %v3663 = vld [vmem:[%s3633 + $0xe8] sm:$0xff]
      %v3664 = vld [vmem:[%s3633 + $0xf0] sm:$0xff]
      %v3665 = vld [vmem:[%s3633 + $0xf8] sm:$0xff]
      %v3666 = vld [vmem:[%s3633 + $0x100] sm:$0xff]
      %v3667 = vld [vmem:[%s3633 + $0x108] sm:$0xff]
      %v3668 = vld [vmem:[%s3633 + $0x110] sm:$0xff]
      %v3669 = vld [vmem:[%s3633 + $0x118] sm:$0xff]
      %v3670 = vld [vmem:[%s3633 + $0x120] sm:$0xff]
      %v3671 = vld [vmem:[%s3633 + $0x128] sm:$0xff]
      %v3672 = vld [vmem:[%s3633 + $0x130] sm:$0xff]
      %v3673 = vld [vmem:[%s3633 + $0x138] sm:$0xff]
      %v3674 = vld [vmem:[%s3633 + $0x140] sm:$0xff]
      %v3675 = vld [vmem:[%s3633 + $0x148] sm:$0xff]
      %v3676 = vld [vmem:[%s3633 + $0x150] sm:$0xff]
      %v3677 = vld [vmem:[%s3633 + $0x158] sm:$0xff]
      %v3678 = vld [vmem:[%s3633 + $0x160] sm:$0xff]
      %v3679 = vld [vmem:[%s3633 + $0x168] sm:$0xff]
      %v3680 = vld [vmem:[%s3633 + $0x170] sm:$0xff]
      %v3681 = vld [vmem:[%s3633 + $0x178] sm:$0xff]
      %v3682 = vld [vmem:[%s3633 + $0x180] sm:$0xff]
      %v3683 = vld [vmem:[%s3633 + $0x188] sm:$0xff]
      %v3684 = vld [vmem:[%s3633 + $0x190] sm:$0xff]
      %v3685 = vld [vmem:[%s3633 + $0x198] sm:$0xff]
      %v3687 = vsel %vm3344, %v3635, 0
      %v3690 = vsel %vm3344, %v3637, 0
      %v3693 = vsel %vm3344, %v3639, 0
      %v3696 = vsel %vm3344, %v3641, 0
      %v3699 = vsel %vm3344, %v3643, 0
      %v3702 = vsel %vm3344, %v3645, 0
      %v3705 = vsel %vm3344, %v3647, 0
      %v3708 = vsel %vm3344, %v3649, 0
      %v3711 = vsel %vm3344, %v3651, 0
      %v3714 = vsel %vm3344, %v3653, 0
      %v3717 = vsel %vm3344, %v3655, 0
      %v3720 = vsel %vm3344, %v3657, 0
      %v3723 = vsel %vm3344, %v3659, 0
      %v3726 = vsel %vm3344, %v3661, 0
      %v3729 = vsel %vm3344, %v3663, 0
      %v3732 = vsel %vm3344, %v3665, 0
      %v3735 = vsel %vm3344, %v3667, 0
      %v3738 = vsel %vm3344, %v3669, 0
      %v3741 = vsel %vm3344, %v3671, 0
      %v3744 = vsel %vm3344, %v3673, 0
      %v3747 = vsel %vm3344, %v3675, 0
      %v3750 = vsel %vm3344, %v3677, 0
      %v3753 = vsel %vm3344, %v3679, 0
      %v3756 = vsel %vm3344, %v3681, 0
      %v3759 = vsel %vm3344, %v3683, 0
      %v3762 = vsel %vm3344, %v3685, 0
      %3764 = vmatprep.subr.mxu0 0.0
      %3765 = vmatpush1.msra.mxu0 %v3262
      %3766 = vmatprep.subr.mxu0 0.0
      %3767 = vmatpush1.msra.mxu0 %v3263
      %3768 = vmatprep.subr.mxu0 0.0
      %3769 = vmatpush1.msra.mxu0 %v3264
      %3770 = vmatprep.subr.mxu0 0.0
      %3771 = vmatpush1.msra.mxu0 %v3265
      %3772 = vmatprep.subr.mxu0 0.0
      %3773 = vmatpush1.msra.mxu0 %v3266
      %3774 = vmatprep.subr.mxu0 0.0
      %3775 = vmatpush1.msra.mxu0 %v3267
      %3776 = vmatprep.subr.mxu0 0.0
      %3777 = vmatpush1.msra.mxu0 %v3268
      %3778 = vmatprep.subr.mxu0 0.0
      %3779 = vmatpush1.msra.mxu0 %v3269
      %3780 = vmatprep.subr.mxu0 0.0
      %3781 = vmatpush1.msra.mxu0 %v3270
      %3782 = vmatprep.subr.mxu0 0.0
      %3783 = vmatpush1.msra.mxu0 %v3271
      %3784 = vmatprep.subr.mxu0 0.0
      %3785 = vmatpush1.msra.mxu0 %v3272
      %3786 = vmatprep.subr.mxu0 0.0
      %3787 = vmatpush1.msra.mxu0 %v3273
      %3788 = vmatprep.subr.mxu0 0.0
      %3789 = vmatpush1.msra.mxu0 %v3274
      %3790 = vmatprep.subr.mxu0 0.0
      %3791 = vmatpush1.msra.mxu0 %v3275
      %3792 = vmatprep.subr.mxu0 0.0
      %3793 = vmatpush1.msra.mxu0 %v3276
      %3794 = vmatprep.subr.mxu0 0.0
      %3795 = vmatpush1.msra.mxu0 %v3277
      %3796 = vmatprep.subr.mxu0 0.0
      %3797 = vmatpush1.msra.mxu0 %v3278
      %3798 = vmatprep.subr.mxu0 0.0
      %3799 = vmatpush1.msra.mxu0 %v3279
      %3800 = vmatprep.subr.mxu0 0.0
      %3801 = vmatpush1.msra.mxu0 %v3280
      %3802 = vmatprep.subr.mxu0 0.0
      %3803 = vmatpush1.msra.mxu0 %v3281
      %3804 = vmatprep.subr.mxu0 0.0
      %3805 = vmatpush1.msra.mxu0 %v3282
      %3806 = vmatprep.subr.mxu0 0.0
      %3807 = vmatpush1.msra.mxu0 %v3283
      %3808 = vmatprep.subr.mxu0 0.0
      %3809 = vmatpush1.msra.mxu0 %v3284
      %3810 = vmatprep.subr.mxu0 0.0
      %3811 = vmatpush1.msra.mxu0 %v3285
      %3812 = vmatprep.subr.mxu0 0.0
      %3813 = vmatpush1.msra.mxu0 %v3286
      %3814 = vmatprep.subr.mxu0 0.0
      %3815 = vmatpush1.msra.mxu0 %v3287
      %3816 = vmatprep.subr.mxu0 0.0
      %3817 = vmatpush1.msra.mxu0 %v3288
      %3818 = vmatprep.subr.mxu0 0.0
      %3819 = vmatpush1.msra.mxu0 %v3289
      %3820 = vmatprep.subr.mxu0 0.0
      %3821 = vmatpush1.msra.mxu0 %v3290
      %3822 = vmatprep.subr.mxu0 0.0
      %3823 = vmatpush1.msra.mxu0 %v3291
      %3824 = vmatprep.subr.mxu0 0.0
      %3825 = vmatpush1.msra.mxu0 0.0
      %3826 = vmatprep.subr.mxu0 0.0
      %3827 = vmatpush1.msra.mxu0 0.0
      %3828 = vmatprep.mubr.f32.mxu0 %v3687
      %3829 = vmatmul.mubr.f32.gmra.mrb[0].mxu0 %v3634
      %v3830 = vpop.f32.mrb[0].mxu0
      %v3831 = vadd.f32 0.0, %v3830
      %v3832 = vpop.f32.mrb[0].mxu0
      %3833 = vmatprep.mubr.f32.mxu0 %v3690
      %3834 = vmatmul.mubr.f32.gmra.mrb[0].mxu0 %v3636
      %v3835 = vpop.f32.mrb[0].mxu0
      %v3836 = vadd.f32 0.0, %v3835
      %v3837 = vpop.f32.mrb[0].mxu0
      %3838 = vmatprep.mubr.f32.mxu0 %v3693
      %3839 = vmatmul.mubr.f32.gmra.mrb[0].mxu0 %v3638
      %v3840 = vpop.f32.mrb[0].mxu0
      %v3841 = vadd.f32 0.0, %v3840
      %v3842 = vpop.f32.mrb[0].mxu0
      %3843 = vmatprep.mubr.f32.mxu0 %v3696
      %3844 = vmatmul.mubr.f32.gmra.mrb[0].mxu0 %v3640
      %v3845 = vpop.f32.mrb[0].mxu0
      %v3846 = vadd.f32 0.0, %v3845
      %v3847 = vpop.f32.mrb[0].mxu0
      %3848 = vmatprep.mubr.f32.mxu0 %v3699
      %3849 = vmatmul.mubr.f32.gmra.mrb[0].mxu0 %v3642
      %v3850 = vpop.f32.mrb[0].mxu0
      %v3851 = vadd.f32 0.0, %v3850
      %v3852 = vpop.f32.mrb[0].mxu0
      %3853 = vmatprep.mubr.f32.mxu0 %v3702
      %3854 = vmatmul.mubr.f32.gmra.mrb[0].mxu0 %v3644
      %v3855 = vpop.f32.mrb[0].mxu0
      %v3856 = vadd.f32 0.0, %v3855
      %v3857 = vpop.f32.mrb[0].mxu0
      %3858 = vmatprep.mubr.f32.mxu0 %v3705
      %3859 = vmatmul.mubr.f32.gmra.mrb[0].mxu0 %v3646
      %v3860 = vpop.f32.mrb[0].mxu0
      %v3861 = vadd.f32 0.0, %v3860
      %v3862 = vpop.f32.mrb[0].mxu0
      %3863 = vmatprep.mubr.f32.mxu0 %v3708
      %3864 = vmatmul.mubr.f32.gmra.mrb[0].mxu0 %v3648
      %v3865 = vpop.f32.mrb[0].mxu0
      %v3866 = vadd.f32 0.0, %v3865
      %v3867 = vpop.f32.mrb[0].mxu0
      %3868 = vmatprep.mubr.f32.mxu0 %v3711
      %3869 = vmatmul.mubr.f32.gmra.mrb[0].mxu0 %v3650
      %v3870 = vpop.f32.mrb[0].mxu0
      %v3871 = vadd.f32 0.0, %v3870
      %v3872 = vpop.f32.mrb[0].mxu0
      %3873 = vmatprep.mubr.f32.mxu0 %v3714
      %3874 = vmatmul.mubr.f32.gmra.mrb[0].mxu0 %v3652
      %v3875 = vpop.f32.mrb[0].mxu0
      %v3876 = vadd.f32 0.0, %v3875
      %v3877 = vpop.f32.mrb[0].mxu0
      %3878 = vmatprep.mubr.f32.mxu0 %v3717
      %3879 = vmatmul.mubr.f32.gmra.mrb[0].mxu0 %v3654
      %v3880 = vpop.f32.mrb[0].mxu0
      %v3881 = vadd.f32 0.0, %v3880
      %v3882 = vpop.f32.mrb[0].mxu0
      %3883 = vmatprep.mubr.f32.mxu0 %v3720
      %3884 = vmatmul.mubr.f32.gmra.mrb[0].mxu0 %v3656
      %v3885 = vpop.f32.mrb[0].mxu0
      %v3886 = vadd.f32 0.0, %v3885
      %v3887 = vpop.f32.mrb[0].mxu0
      %3888 = vmatprep.mubr.f32.mxu0 %v3723
      %3889 = vmatmul.mubr.f32.gmra.mrb[0].mxu0 %v3658
      %v3890 = vpop.f32.mrb[0].mxu0
      %v3891 = vadd.f32 0.0, %v3890
      %v3892 = vpop.f32.mrb[0].mxu0
      %3893 = vmatprep.mubr.f32.mxu0 %v3726
      %3894 = vmatmul.mubr.f32.gmra.mrb[0].mxu0 %v3660
      %v3895 = vpop.f32.mrb[0].mxu0
      %v3896 = vadd.f32 0.0, %v3895
      %v3897 = vpop.f32.mrb[0].mxu0
      %3898 = vmatprep.mubr.f32.mxu0 %v3729
      %3899 = vmatmul.mubr.f32.gmra.mrb[0].mxu0 %v3662
      %v3900 = vpop.f32.mrb[0].mxu0
      %v3901 = vadd.f32 0.0, %v3900
      %v3902 = vpop.f32.mrb[0].mxu0
      %3903 = vmatprep.mubr.f32.mxu0 %v3732
      %3904 = vmatmul.mubr.f32.gmra.mrb[0].mxu0 %v3664
      %v3905 = vpop.f32.mrb[0].mxu0
      %v3906 = vadd.f32 0.0, %v3905
      %v3907 = vpop.f32.mrb[0].mxu0
      %3908 = vmatprep.mubr.f32.mxu0 %v3735
      %3909 = vmatmul.mubr.f32.gmra.mrb[0].mxu0 %v3666
      %v3910 = vpop.f32.mrb[0].mxu0
      %v3911 = vadd.f32 0.0, %v3910
      %v3912 = vpop.f32.mrb[0].mxu0
      %3913 = vmatprep.mubr.f32.mxu0 %v3738
      %3914 = vmatmul.mubr.f32.gmra.mrb[0].mxu0 %v3668
      %v3915 = vpop.f32.mrb[0].mxu0
      %v3916 = vadd.f32 0.0, %v3915
      %v3917 = vpop.f32.mrb[0].mxu0
      %3918 = vmatprep.mubr.f32.mxu0 %v3741
      %3919 = vmatmul.mubr.f32.gmra.mrb[0].mxu0 %v3670
      %v3920 = vpop.f32.mrb[0].mxu0
      %v3921 = vadd.f32 0.0, %v3920
      %v3922 = vpop.f32.mrb[0].mxu0
      %3923 = vmatprep.mubr.f32.mxu0 %v3744
      %3924 = vmatmul.mubr.f32.gmra.mrb[0].mxu0 %v3672
      %v3925 = vpop.f32.mrb[0].mxu0
      %v3926 = vadd.f32 0.0, %v3925
      %v3927 = vpop.f32.mrb[0].mxu0
      %3928 = vmatprep.mubr.f32.mxu0 %v3747
      %3929 = vmatmul.mubr.f32.gmra.mrb[0].mxu0 %v3674
      %v3930 = vpop.f32.mrb[0].mxu0
      %v3931 = vadd.f32 0.0, %v3930
      %v3932 = vpop.f32.mrb[0].mxu0
      %3933 = vmatprep.mubr.f32.mxu0 %v3750
      %3934 = vmatmul.mubr.f32.gmra.mrb[0].mxu0 %v3676
      %v3935 = vpop.f32.mrb[0].mxu0
      %v3936 = vadd.f32 0.0, %v3935
      %v3937 = vpop.f32.mrb[0].mxu0
      %3938 = vmatprep.mubr.f32.mxu0 %v3753
      %3939 = vmatmul.mubr.f32.gmra.mrb[0].mxu0 %v3678
      %v3940 = vpop.f32.mrb[0].mxu0
      %v3941 = vadd.f32 0.0, %v3940
      %v3942 = vpop.f32.mrb[0].mxu0
      %3943 = vmatprep.mubr.f32.mxu0 %v3756
      %3944 = vmatmul.mubr.f32.gmra.mrb[0].mxu0 %v3680
      %v3945 = vpop.f32.mrb[0].mxu0
      %v3946 = vadd.f32 0.0, %v3945
      %v3947 = vpop.f32.mrb[0].mxu0
      %3948 = vmatprep.mubr.f32.mxu0 %v3759
      %3949 = vmatmul.mubr.f32.gmra.mrb[0].mxu0 %v3682
      %v3950 = vpop.f32.mrb[0].mxu0
      %v3951 = vadd.f32 0.0, %v3950
      %v3952 = vpop.f32.mrb[0].mxu0
      %3953 = vmatprep.mubr.f32.mxu0 %v3762
      %3954 = vmatmul.mubr.f32.gmra.mrb[0].mxu0 %v3684
      %v3955 = vpop.f32.mrb[0].mxu0
      %v3956 = vadd.f32 0.0, %v3955
      %v3957 = vpop.f32.mrb[0].mxu0
      %3958 = vdwg.mxu0
      %s3959 = scalar_lea.vmem %s5, 120
      %v3960 = vld [vmem:[%s3959] sm:$0xff]
      %v3961 = vld [vmem:[%s3959 + $0x8] sm:$0xff]
      %v3962 = vld [vmem:[%s3959 + $0x10] sm:$0xff]
      %v3963 = vld [vmem:[%s3959 + $0x18] sm:$0xff]
      %v3964 = vld [vmem:[%s3959 + $0x20] sm:$0xff]
      %v3965 = vld [vmem:[%s3959 + $0x28] sm:$0xff]
      %v3966 = vld [vmem:[%s3959 + $0x30] sm:$0xff]
      %v3967 = vld [vmem:[%s3959 + $0x38] sm:$0xff]
      %v3968 = vld [vmem:[%s3959 + $0x40] sm:$0xff]
      %v3969 = vld [vmem:[%s3959 + $0x48] sm:$0xff]
      %v3970 = vld [vmem:[%s3959 + $0x50] sm:$0xff]
      %v3971 = vld [vmem:[%s3959 + $0x58] sm:$0xff]
      %v3972 = vld [vmem:[%s3959 + $0x60] sm:$0xff]
      %v3973 = vld [vmem:[%s3959 + $0x68] sm:$0xff]
      %v3974 = vld [vmem:[%s3959 + $0x70] sm:$0xff]
      %vm3975 = vcmask 982016
      %v3977 = vsel %vm3975, %v3831, 0
      %v3980 = vsel %vm3975, %v3836, 0
      %v3983 = vsel %vm3975, %v3841, 0
      %v3986 = vsel %vm3975, %v3846, 0
      %v3989 = vsel %vm3975, %v3851, 0
      %v3992 = vsel %vm3975, %v3856, 0
      %v3995 = vsel %vm3975, %v3861, 0
      %v3998 = vsel %vm3975, %v3866, 0
      %v4001 = vsel %vm3975, %v3871, 0
      %v4004 = vsel %vm3975, %v3876, 0
      %v4007 = vsel %vm3975, %v3881, 0
      %v4010 = vsel %vm3975, %v3886, 0
      %v4013 = vsel %vm3975, %v3891, 0
      %v4016 = vsel %vm3975, %v3896, 0
      %v4019 = vsel %vm3975, %v3901, 0
      %v4022 = vsel %vm3975, %v3906, 0
      %v4025 = vsel %vm3975, %v3911, 0
      %v4028 = vsel %vm3975, %v3916, 0
      %v4031 = vsel %vm3975, %v3921, 0
      %v4034 = vsel %vm3975, %v3926, 0
      %v4037 = vsel %vm3975, %v3931, 0
      %v4040 = vsel %vm3975, %v3936, 0
      %v4043 = vsel %vm3975, %v3941, 0
      %v4046 = vsel %vm3975, %v3946, 0
      %v4049 = vsel %vm3975, %v3951, 0
      %v4052 = vsel %vm3975, %v3956, 0
      %4054 = vmatprep.subr.mxu0 0.0
      %4055 = vmatpush1.msra.mxu0 %v3960
      %4056 = vmatprep.subr.mxu0 0.0
      %4057 = vmatpush1.msra.mxu0 %v3961
      %4058 = vmatprep.subr.mxu0 0.0
      %4059 = vmatpush1.msra.mxu0 %v3962
      %4060 = vmatprep.subr.mxu0 0.0
      %4061 = vmatpush1.msra.mxu0 %v3963
      %4062 = vmatprep.subr.mxu0 0.0
      %4063 = vmatpush1.msra.mxu0 %v3964
      %4064 = vmatprep.subr.mxu0 0.0
      %4065 = vmatpush1.msra.mxu0 %v3965
      %4066 = vmatprep.subr.mxu0 0.0
      %4067 = vmatpush1.msra.mxu0 %v3966
      %4068 = vmatprep.subr.mxu0 0.0
      %4069 = vmatpush1.msra.mxu0 %v3967
      %4070 = vmatprep.subr.mxu0 0.0
      %4071 = vmatpush1.msra.mxu0 %v3968
      %4072 = vmatprep.subr.mxu0 0.0
      %4073 = vmatpush1.msra.mxu0 %v3969
      %4074 = vmatprep.subr.mxu0 0.0
      %4075 = vmatpush1.msra.mxu0 %v3970
      %4076 = vmatprep.subr.mxu0 0.0
      %4077 = vmatpush1.msra.mxu0 %v3971
      %4078 = vmatprep.subr.mxu0 0.0
      %4079 = vmatpush1.msra.mxu0 %v3972
      %4080 = vmatprep.subr.mxu0 0.0
      %4081 = vmatpush1.msra.mxu0 %v3973
      %4082 = vmatprep.subr.mxu0 0.0
      %4083 = vmatpush1.msra.mxu0 %v3974
      %4084 = vmatprep.subr.mxu0 0.0
      %4085 = vmatpush1.msra.mxu0 0.0
      %4086 = vmatprep.subr.mxu0 0.0
      %4087 = vmatpush1.msra.mxu0 0.0
      %4088 = vmatprep.subr.mxu0 0.0
      %4089 = vmatpush1.msra.mxu0 0.0
      %4090 = vmatprep.subr.mxu0 0.0
      %4091 = vmatpush1.msra.mxu0 0.0
      %4092 = vmatprep.subr.mxu0 0.0
      %4093 = vmatpush1.msra.mxu0 0.0
      %4094 = vmatprep.subr.mxu0 0.0
      %4095 = vmatpush1.msra.mxu0 0.0
      %4096 = vmatprep.subr.mxu0 0.0
      %4097 = vmatpush1.msra.mxu0 0.0
      %4098 = vmatprep.subr.mxu0 0.0
      %4099 = vmatpush1.msra.mxu0 0.0
      %4100 = vmatprep.subr.mxu0 0.0
      %4101 = vmatpush1.msra.mxu0 0.0
      %4102 = vmatprep.subr.mxu0 0.0
      %4103 = vmatpush1.msra.mxu0 0.0
      %4104 = vmatprep.subr.mxu0 0.0
      %4105 = vmatpush1.msra.mxu0 0.0
      %4106 = vmatprep.subr.mxu0 0.0
      %4107 = vmatpush1.msra.mxu0 0.0
      %4108 = vmatprep.subr.mxu0 0.0
      %4109 = vmatpush1.msra.mxu0 0.0
      %4110 = vmatprep.subr.mxu0 0.0
      %4111 = vmatpush1.msra.mxu0 0.0
      %4112 = vmatprep.subr.mxu0 0.0
      %4113 = vmatpush1.msra.mxu0 0.0
      %4114 = vmatprep.subr.mxu0 0.0
      %4115 = vmatpush1.msra.mxu0 0.0
      %4116 = vmatprep.subr.mxu0 0.0
      %4117 = vmatpush1.msra.mxu0 0.0
      %4118 = vmatprep.mubr.f32.mxu0 0.0
      %4119 = vmatmul.mubr.f32.gmra.mrb[0].mxu0 %v3977
      %v4120 = vpop.f32.mrb[0].mxu0
      %v4121 = vadd.f32 0.0, %v4120
      %v4122 = vpop.f32.mrb[0].mxu0
      %4123 = vmatprep.mubr.f32.mxu0 0.0
      %4124 = vmatmul.mubr.f32.gmra.mrb[0].mxu0 %v3980
      %v4125 = vpop.f32.mrb[0].mxu0
      %v4126 = vadd.f32 0.0, %v4125
      %v4127 = vpop.f32.mrb[0].mxu0
      %4128 = vmatprep.mubr.f32.mxu0 0.0
      %4129 = vmatmul.mubr.f32.gmra.mrb[0].mxu0 %v3983
      %v4130 = vpop.f32.mrb[0].mxu0
      %v4131 = vadd.f32 0.0, %v4130
      %v4132 = vpop.f32.mrb[0].mxu0
      %4133 = vmatprep.mubr.f32.mxu0 0.0
      %4134 = vmatmul.mubr.f32.gmra.mrb[0].mxu0 %v3986
      %v4135 = vpop.f32.mrb[0].mxu0
      %v4136 = vadd.f32 0.0, %v4135
      %v4137 = vpop.f32.mrb[0].mxu0
      %4138 = vmatprep.mubr.f32.mxu0 0.0
      %4139 = vmatmul.mubr.f32.gmra.mrb[0].mxu0 %v3989
      %v4140 = vpop.f32.mrb[0].mxu0
      %v4141 = vadd.f32 0.0, %v4140
      %v4142 = vpop.f32.mrb[0].mxu0
      %4143 = vmatprep.mubr.f32.mxu0 0.0
      %4144 = vmatmul.mubr.f32.gmra.mrb[0].mxu0 %v3992
      %v4145 = vpop.f32.mrb[0].mxu0
      %v4146 = vadd.f32 0.0, %v4145
      %v4147 = vpop.f32.mrb[0].mxu0
      %4148 = vmatprep.mubr.f32.mxu0 0.0
      %4149 = vmatmul.mubr.f32.gmra.mrb[0].mxu0 %v3995
      %v4150 = vpop.f32.mrb[0].mxu0
      %v4151 = vadd.f32 0.0, %v4150
      %v4152 = vpop.f32.mrb[0].mxu0
      %4153 = vmatprep.mubr.f32.mxu0 0.0
      %4154 = vmatmul.mubr.f32.gmra.mrb[0].mxu0 %v3998
      %v4155 = vpop.f32.mrb[0].mxu0
      %v4156 = vadd.f32 0.0, %v4155
      %v4157 = vpop.f32.mrb[0].mxu0
      %4158 = vmatprep.mubr.f32.mxu0 0.0
      %4159 = vmatmul.mubr.f32.gmra.mrb[0].mxu0 %v4001
      %v4160 = vpop.f32.mrb[0].mxu0
      %v4161 = vadd.f32 0.0, %v4160
      %v4162 = vpop.f32.mrb[0].mxu0
      %4163 = vmatprep.mubr.f32.mxu0 0.0
      %4164 = vmatmul.mubr.f32.gmra.mrb[0].mxu0 %v4004
      %v4165 = vpop.f32.mrb[0].mxu0
      %v4166 = vadd.f32 0.0, %v4165
      %v4167 = vpop.f32.mrb[0].mxu0
      %4168 = vmatprep.mubr.f32.mxu0 0.0
      %4169 = vmatmul.mubr.f32.gmra.mrb[0].mxu0 %v4007
      %v4170 = vpop.f32.mrb[0].mxu0
      %v4171 = vadd.f32 0.0, %v4170
      %v4172 = vpop.f32.mrb[0].mxu0
      %4173 = vmatprep.mubr.f32.mxu0 0.0
      %4174 = vmatmul.mubr.f32.gmra.mrb[0].mxu0 %v4010
      %v4175 = vpop.f32.mrb[0].mxu0
      %v4176 = vadd.f32 0.0, %v4175
      %v4177 = vpop.f32.mrb[0].mxu0
      %4178 = vmatprep.mubr.f32.mxu0 0.0
      %4179 = vmatmul.mubr.f32.gmra.mrb[0].mxu0 %v4013
      %v4180 = vpop.f32.mrb[0].mxu0
      %v4181 = vadd.f32 0.0, %v4180
      %v4182 = vpop.f32.mrb[0].mxu0
      %4183 = vmatprep.mubr.f32.mxu0 0.0
      %4184 = vmatmul.mubr.f32.gmra.mrb[0].mxu0 %v4016
      %v4185 = vpop.f32.mrb[0].mxu0
      %v4186 = vadd.f32 0.0, %v4185
      %v4187 = vpop.f32.mrb[0].mxu0
      %4188 = vmatprep.mubr.f32.mxu0 0.0
      %4189 = vmatmul.mubr.f32.gmra.mrb[0].mxu0 %v4019
      %v4190 = vpop.f32.mrb[0].mxu0
      %v4191 = vadd.f32 0.0, %v4190
      %v4192 = vpop.f32.mrb[0].mxu0
      %4193 = vmatprep.mubr.f32.mxu0 0.0
      %4194 = vmatmul.mubr.f32.gmra.mrb[0].mxu0 %v4022
      %v4195 = vpop.f32.mrb[0].mxu0
      %v4196 = vadd.f32 0.0, %v4195
      %v4197 = vpop.f32.mrb[0].mxu0
      %4198 = vmatprep.mubr.f32.mxu0 0.0
      %4199 = vmatmul.mubr.f32.gmra.mrb[0].mxu0 %v4025
      %v4200 = vpop.f32.mrb[0].mxu0
      %v4201 = vadd.f32 0.0, %v4200
      %v4202 = vpop.f32.mrb[0].mxu0
      %4203 = vmatprep.mubr.f32.mxu0 0.0
      %4204 = vmatmul.mubr.f32.gmra.mrb[0].mxu0 %v4028
      %v4205 = vpop.f32.mrb[0].mxu0
      %v4206 = vadd.f32 0.0, %v4205
      %v4207 = vpop.f32.mrb[0].mxu0
      %4208 = vmatprep.mubr.f32.mxu0 0.0
      %4209 = vmatmul.mubr.f32.gmra.mrb[0].mxu0 %v4031
      %v4210 = vpop.f32.mrb[0].mxu0
      %v4211 = vadd.f32 0.0, %v4210
      %v4212 = vpop.f32.mrb[0].mxu0
      %4213 = vmatprep.mubr.f32.mxu0 0.0
      %4214 = vmatmul.mubr.f32.gmra.mrb[0].mxu0 %v4034
      %v4215 = vpop.f32.mrb[0].mxu0
      %v4216 = vadd.f32 0.0, %v4215
      %v4217 = vpop.f32.mrb[0].mxu0
      %4218 = vmatprep.mubr.f32.mxu0 0.0
      %4219 = vmatmul.mubr.f32.gmra.mrb[0].mxu0 %v4037
      %v4220 = vpop.f32.mrb[0].mxu0
      %v4221 = vadd.f32 0.0, %v4220
      %v4222 = vpop.f32.mrb[0].mxu0
      %4223 = vmatprep.mubr.f32.mxu0 0.0
      %4224 = vmatmul.mubr.f32.gmra.mrb[0].mxu0 %v4040
      %v4225 = vpop.f32.mrb[0].mxu0
      %v4226 = vadd.f32 0.0, %v4225
      %v4227 = vpop.f32.mrb[0].mxu0
      %4228 = vmatprep.mubr.f32.mxu0 0.0
      %4229 = vmatmul.mubr.f32.gmra.mrb[0].mxu0 %v4043
      %v4230 = vpop.f32.mrb[0].mxu0
      %v4231 = vadd.f32 0.0, %v4230
      %v4232 = vpop.f32.mrb[0].mxu0
      %4233 = vmatprep.mubr.f32.mxu0 0.0
      %4234 = vmatmul.mubr.f32.gmra.mrb[0].mxu0 %v4046
      %v4235 = vpop.f32.mrb[0].mxu0
      %v4236 = vadd.f32 0.0, %v4235
      %v4237 = vpop.f32.mrb[0].mxu0
      %4238 = vmatprep.mubr.f32.mxu0 0.0
      %4239 = vmatmul.mubr.f32.gmra.mrb[0].mxu0 %v4049
      %v4240 = vpop.f32.mrb[0].mxu0
      %v4241 = vadd.f32 0.0, %v4240
      %v4242 = vpop.f32.mrb[0].mxu0
      %4243 = vmatprep.mubr.f32.mxu0 0.0
      %4244 = vmatmul.mubr.f32.gmra.mrb[0].mxu0 %v4052
      %v4245 = vpop.f32.mrb[0].mxu0
      %v4246 = vadd.f32 0.0, %v4245
      %v4247 = vpop.f32.mrb[0].mxu0
      %4248 = vdwg.mxu0
      %v4250 = vsel %vm3975, %v3490, 0
      %v4253 = vsel %vm3975, %v3495, 0
      %v4256 = vsel %vm3975, %v3500, 0
      %v4259 = vsel %vm3975, %v3505, 0
      %v4262 = vsel %vm3975, %v3510, 0
      %v4265 = vsel %vm3975, %v3515, 0
      %v4268 = vsel %vm3975, %v3520, 0
      %v4271 = vsel %vm3975, %v3525, 0
      %v4274 = vsel %vm3975, %v3530, 0
      %v4277 = vsel %vm3975, %v3535, 0
      %v4280 = vsel %vm3975, %v3540, 0
      %v4283 = vsel %vm3975, %v3545, 0
      %v4286 = vsel %vm3975, %v3550, 0
      %v4289 = vsel %vm3975, %v3555, 0
      %v4292 = vsel %vm3975, %v3560, 0
      %v4295 = vsel %vm3975, %v3565, 0
      %v4298 = vsel %vm3975, %v3570, 0
      %v4301 = vsel %vm3975, %v3575, 0
      %v4304 = vsel %vm3975, %v3580, 0
      %v4307 = vsel %vm3975, %v3585, 0
      %v4310 = vsel %vm3975, %v3590, 0
      %v4313 = vsel %vm3975, %v3595, 0
      %v4316 = vsel %vm3975, %v3600, 0
      %v4319 = vsel %vm3975, %v3605, 0
      %v4322 = vsel %vm3975, %v3610, 0
      %v4325 = vsel %vm3975, %v3615, 0
      %4327 = vmatprep.subr.mxu0 0.0
      %4328 = vmatpush1.msra.mxu0 %v3618
      %4329 = vmatprep.subr.mxu0 0.0
      %4330 = vmatpush1.msra.mxu0 %v3619
      %4331 = vmatprep.subr.mxu0 0.0
      %4332 = vmatpush1.msra.mxu0 %v3620
      %4333 = vmatprep.subr.mxu0 0.0
      %4334 = vmatpush1.msra.mxu0 %v3621
      %4335 = vmatprep.subr.mxu0 0.0
      %4336 = vmatpush1.msra.mxu0 %v3622
      %4337 = vmatprep.subr.mxu0 0.0
      %4338 = vmatpush1.msra.mxu0 %v3623
      %4339 = vmatprep.subr.mxu0 0.0
      %4340 = vmatpush1.msra.mxu0 %v3624
      %4341 = vmatprep.subr.mxu0 0.0
      %4342 = vmatpush1.msra.mxu0 %v3625
      %4343 = vmatprep.subr.mxu0 0.0
      %4344 = vmatpush1.msra.mxu0 %v3626
      %4345 = vmatprep.subr.mxu0 0.0
      %4346 = vmatpush1.msra.mxu0 %v3627
      %4347 = vmatprep.subr.mxu0 0.0
      %4348 = vmatpush1.msra.mxu0 %v3628
      %4349 = vmatprep.subr.mxu0 0.0
      %4350 = vmatpush1.msra.mxu0 %v3629
      %4351 = vmatprep.subr.mxu0 0.0
      %4352 = vmatpush1.msra.mxu0 %v3630
      %4353 = vmatprep.subr.mxu0 0.0
      %4354 = vmatpush1.msra.mxu0 %v3631
      %4355 = vmatprep.subr.mxu0 0.0
      %4356 = vmatpush1.msra.mxu0 %v3632
      %4357 = vmatprep.subr.mxu0 0.0
      %4358 = vmatpush1.msra.mxu0 0.0
      %4359 = vmatprep.subr.mxu0 0.0
      %4360 = vmatpush1.msra.mxu0 0.0
      %4361 = vmatprep.subr.mxu0 0.0
      %4362 = vmatpush1.msra.mxu0 0.0
      %4363 = vmatprep.subr.mxu0 0.0
      %4364 = vmatpush1.msra.mxu0 0.0
      %4365 = vmatprep.subr.mxu0 0.0
      %4366 = vmatpush1.msra.mxu0 0.0
      %4367 = vmatprep.subr.mxu0 0.0
      %4368 = vmatpush1.msra.mxu0 0.0
      %4369 = vmatprep.subr.mxu0 0.0
      %4370 = vmatpush1.msra.mxu0 0.0
      %4371 = vmatprep.subr.mxu0 0.0
      %4372 = vmatpush1.msra.mxu0 0.0
      %4373 = vmatprep.subr.mxu0 0.0
      %4374 = vmatpush1.msra.mxu0 0.0
      %4375 = vmatprep.subr.mxu0 0.0
      %4376 = vmatpush1.msra.mxu0 0.0
      %4377 = vmatprep.subr.mxu0 0.0
      %4378 = vmatpush1.msra.mxu0 0.0
      %4379 = vmatprep.subr.mxu0 0.0
      %4380 = vmatpush1.msra.mxu0 0.0
      %4381 = vmatprep.subr.mxu0 0.0
      %4382 = vmatpush1.msra.mxu0 0.0
      %4383 = vmatprep.subr.mxu0 0.0
      %4384 = vmatpush1.msra.mxu0 0.0
      %4385 = vmatprep.subr.mxu0 0.0
      %4386 = vmatpush1.msra.mxu0 0.0
      %4387 = vmatprep.subr.mxu0 0.0
      %4388 = vmatpush1.msra.mxu0 0.0
      %4389 = vmatprep.subr.mxu0 0.0
      %4390 = vmatpush1.msra.mxu0 0.0
      %4391 = vmatprep.mubr.f32.mxu0 0.0
      %4392 = vmatmul.mubr.f32.gmra.mrb[0].mxu0 %v4250
      %v4393 = vpop.f32.mrb[0].mxu0
      %v4394 = vadd.f32 %v4121, %v4393
      %v4395 = vpop.f32.mrb[0].mxu0
      %4396 = vmatprep.mubr.f32.mxu0 0.0
      %4397 = vmatmul.mubr.f32.gmra.mrb[0].mxu0 %v4253
      %v4398 = vpop.f32.mrb[0].mxu0
      %v4399 = vadd.f32 %v4126, %v4398
      %v4400 = vpop.f32.mrb[0].mxu0
      %4401 = vmatprep.mubr.f32.mxu0 0.0
      %4402 = vmatmul.mubr.f32.gmra.mrb[0].mxu0 %v4256
      %v4403 = vpop.f32.mrb[0].mxu0
      %v4404 = vadd.f32 %v4131, %v4403
      %v4405 = vpop.f32.mrb[0].mxu0
      %4406 = vmatprep.mubr.f32.mxu0 0.0
      %4407 = vmatmul.mubr.f32.gmra.mrb[0].mxu0 %v4259
      %v4408 = vpop.f32.mrb[0].mxu0
      %v4409 = vadd.f32 %v4136, %v4408
      %v4410 = vpop.f32.mrb[0].mxu0
      %4411 = vmatprep.mubr.f32.mxu0 0.0
      %4412 = vmatmul.mubr.f32.gmra.mrb[0].mxu0 %v4262
      %v4413 = vpop.f32.mrb[0].mxu0
      %v4414 = vadd.f32 %v4141, %v4413
      %v4415 = vpop.f32.mrb[0].mxu0
      %4416 = vmatprep.mubr.f32.mxu0 0.0
      %4417 = vmatmul.mubr.f32.gmra.mrb[0].mxu0 %v4265
      %v4418 = vpop.f32.mrb[0].mxu0
      %v4419 = vadd.f32 %v4146, %v4418
      %v4420 = vpop.f32.mrb[0].mxu0
      %4421 = vmatprep.mubr.f32.mxu0 0.0
      %4422 = vmatmul.mubr.f32.gmra.mrb[0].mxu0 %v4268
      %v4423 = vpop.f32.mrb[0].mxu0
      %v4424 = vadd.f32 %v4151, %v4423
      %v4425 = vpop.f32.mrb[0].mxu0
      %4426 = vmatprep.mubr.f32.mxu0 0.0
      %4427 = vmatmul.mubr.f32.gmra.mrb[0].mxu0 %v4271
      %v4428 = vpop.f32.mrb[0].mxu0
      %v4429 = vadd.f32 %v4156, %v4428
      %v4430 = vpop.f32.mrb[0].mxu0
      %4431 = vmatprep.mubr.f32.mxu0 0.0
      %4432 = vmatmul.mubr.f32.gmra.mrb[0].mxu0 %v4274
      %v4433 = vpop.f32.mrb[0].mxu0
      %v4434 = vadd.f32 %v4161, %v4433
      %v4435 = vpop.f32.mrb[0].mxu0
      %4436 = vmatprep.mubr.f32.mxu0 0.0
      %4437 = vmatmul.mubr.f32.gmra.mrb[0].mxu0 %v4277
      %v4438 = vpop.f32.mrb[0].mxu0
      %v4439 = vadd.f32 %v4166, %v4438
      %v4440 = vpop.f32.mrb[0].mxu0
      %4441 = vmatprep.mubr.f32.mxu0 0.0
      %4442 = vmatmul.mubr.f32.gmra.mrb[0].mxu0 %v4280
      %v4443 = vpop.f32.mrb[0].mxu0
      %v4444 = vadd.f32 %v4171, %v4443
      %v4445 = vpop.f32.mrb[0].mxu0
      %4446 = vmatprep.mubr.f32.mxu0 0.0
      %4447 = vmatmul.mubr.f32.gmra.mrb[0].mxu0 %v4283
      %v4448 = vpop.f32.mrb[0].mxu0
      %v4449 = vadd.f32 %v4176, %v4448
      %v4450 = vpop.f32.mrb[0].mxu0
      %4451 = vmatprep.mubr.f32.mxu0 0.0
      %4452 = vmatmul.mubr.f32.gmra.mrb[0].mxu0 %v4286
      %v4453 = vpop.f32.mrb[0].mxu0
      %v4454 = vadd.f32 %v4181, %v4453
      %v4455 = vpop.f32.mrb[0].mxu0
      %4456 = vmatprep.mubr.f32.mxu0 0.0
      %4457 = vmatmul.mubr.f32.gmra.mrb[0].mxu0 %v4289
      %v4458 = vpop.f32.mrb[0].mxu0
      %v4459 = vadd.f32 %v4186, %v4458
      %v4460 = vpop.f32.mrb[0].mxu0
      %4461 = vmatprep.mubr.f32.mxu0 0.0
      %4462 = vmatmul.mubr.f32.gmra.mrb[0].mxu0 %v4292
      %v4463 = vpop.f32.mrb[0].mxu0
      %v4464 = vadd.f32 %v4191, %v4463
      %v4465 = vpop.f32.mrb[0].mxu0
      %4466 = vmatprep.mubr.f32.mxu0 0.0
      %4467 = vmatmul.mubr.f32.gmra.mrb[0].mxu0 %v4295
      %v4468 = vpop.f32.mrb[0].mxu0
      %v4469 = vadd.f32 %v4196, %v4468
      %v4470 = vpop.f32.mrb[0].mxu0
      %4471 = vmatprep.mubr.f32.mxu0 0.0
      %4472 = vmatmul.mubr.f32.gmra.mrb[0].mxu0 %v4298
      %v4473 = vpop.f32.mrb[0].mxu0
      %v4474 = vadd.f32 %v4201, %v4473
      %v4475 = vpop.f32.mrb[0].mxu0
      %4476 = vmatprep.mubr.f32.mxu0 0.0
      %4477 = vmatmul.mubr.f32.gmra.mrb[0].mxu0 %v4301
      %v4478 = vpop.f32.mrb[0].mxu0
      %v4479 = vadd.f32 %v4206, %v4478
      %v4480 = vpop.f32.mrb[0].mxu0
      %4481 = vmatprep.mubr.f32.mxu0 0.0
      %4482 = vmatmul.mubr.f32.gmra.mrb[0].mxu0 %v4304
      %v4483 = vpop.f32.mrb[0].mxu0
      %v4484 = vadd.f32 %v4211, %v4483
      %v4485 = vpop.f32.mrb[0].mxu0
      %4486 = vmatprep.mubr.f32.mxu0 0.0
      %4487 = vmatmul.mubr.f32.gmra.mrb[0].mxu0 %v4307
      %v4488 = vpop.f32.mrb[0].mxu0
      %v4489 = vadd.f32 %v4216, %v4488
      %v4490 = vpop.f32.mrb[0].mxu0
      %4491 = vmatprep.mubr.f32.mxu0 0.0
      %4492 = vmatmul.mubr.f32.gmra.mrb[0].mxu0 %v4310
      %v4493 = vpop.f32.mrb[0].mxu0
      %v4494 = vadd.f32 %v4221, %v4493
      %v4495 = vpop.f32.mrb[0].mxu0
      %4496 = vmatprep.mubr.f32.mxu0 0.0
      %4497 = vmatmul.mubr.f32.gmra.mrb[0].mxu0 %v4313
      %v4498 = vpop.f32.mrb[0].mxu0
      %v4499 = vadd.f32 %v4226, %v4498
      %v4500 = vpop.f32.mrb[0].mxu0
      %4501 = vmatprep.mubr.f32.mxu0 0.0
      %4502 = vmatmul.mubr.f32.gmra.mrb[0].mxu0 %v4316
      %v4503 = vpop.f32.mrb[0].mxu0
      %v4504 = vadd.f32 %v4231, %v4503
      %v4505 = vpop.f32.mrb[0].mxu0
      %4506 = vmatprep.mubr.f32.mxu0 0.0
      %4507 = vmatmul.mubr.f32.gmra.mrb[0].mxu0 %v4319
      %v4508 = vpop.f32.mrb[0].mxu0
      %v4509 = vadd.f32 %v4236, %v4508
      %v4510 = vpop.f32.mrb[0].mxu0
      %4511 = vmatprep.mubr.f32.mxu0 0.0
      %4512 = vmatmul.mubr.f32.gmra.mrb[0].mxu0 %v4322
      %v4513 = vpop.f32.mrb[0].mxu0
      %v4514 = vadd.f32 %v4241, %v4513
      %v4515 = vpop.f32.mrb[0].mxu0
      %4516 = vmatprep.mubr.f32.mxu0 0.0
      %4517 = vmatmul.mubr.f32.gmra.mrb[0].mxu0 %v4325
      %v4518 = vpop.f32.mrb[0].mxu0
      %v4519 = vadd.f32 %v4246, %v4518
      %v4520 = vpop.f32.mrb[0].mxu0
      %4521 = vdwg.mxu0
      %s4522 = scalar_lea.vmem %s4, 832
      %v4523 = vld [vmem:[%s4522] sm:$0xff]
      %v4524 = vld [vmem:[%s4522 + $0x8] sm:$0xff]
      %v4525 = vld [vmem:[%s4522 + $0x10] sm:$0xff]
      %v4526 = vld [vmem:[%s4522 + $0x18] sm:$0xff]
      %v4527 = vld [vmem:[%s4522 + $0x20] sm:$0xff]
      %v4528 = vld [vmem:[%s4522 + $0x28] sm:$0xff]
      %v4529 = vld [vmem:[%s4522 + $0x30] sm:$0xff]
      %v4530 = vld [vmem:[%s4522 + $0x38] sm:$0xff]
      %v4531 = vld [vmem:[%s4522 + $0x40] sm:$0xff]
      %v4532 = vld [vmem:[%s4522 + $0x48] sm:$0xff]
      %v4533 = vld [vmem:[%s4522 + $0x50] sm:$0xff]
      %v4534 = vld [vmem:[%s4522 + $0x58] sm:$0xff]
      %v4535 = vld [vmem:[%s4522 + $0x60] sm:$0xff]
      %v4536 = vld [vmem:[%s4522 + $0x68] sm:$0xff]
      %v4537 = vld [vmem:[%s4522 + $0x70] sm:$0xff]
      %v4538 = vld [vmem:[%s4522 + $0x78] sm:$0xff]
      %v4539 = vld [vmem:[%s4522 + $0x80] sm:$0xff]
      %v4540 = vld [vmem:[%s4522 + $0x88] sm:$0xff]
      %v4541 = vld [vmem:[%s4522 + $0x90] sm:$0xff]
      %v4542 = vld [vmem:[%s4522 + $0x98] sm:$0xff]
      %v4543 = vld [vmem:[%s4522 + $0xa0] sm:$0xff]
      %v4544 = vld [vmem:[%s4522 + $0xa8] sm:$0xff]
      %v4545 = vld [vmem:[%s4522 + $0xb0] sm:$0xff]
      %v4546 = vld [vmem:[%s4522 + $0xb8] sm:$0xff]
      %v4547 = vld [vmem:[%s4522 + $0xc0] sm:$0xff]
      %v4548 = vld [vmem:[%s4522 + $0xc8] sm:$0xff]
      %v4549 = vld [vmem:[%s4522 + $0xd0] sm:$0xff]
      %v4550 = vld [vmem:[%s4522 + $0xd8] sm:$0xff]
      %v4551 = vld [vmem:[%s4522 + $0xe0] sm:$0xff]
      %v4552 = vld [vmem:[%s4522 + $0xe8] sm:$0xff]
      %v4553 = vld [vmem:[%s4522 + $0xf0] sm:$0xff]
      %v4554 = vld [vmem:[%s4522 + $0xf8] sm:$0xff]
      %v4555 = vld [vmem:[%s4522 + $0x100] sm:$0xff]
      %v4556 = vld [vmem:[%s4522 + $0x108] sm:$0xff]
      %v4557 = vld [vmem:[%s4522 + $0x110] sm:$0xff]
      %v4558 = vld [vmem:[%s4522 + $0x118] sm:$0xff]
      %v4559 = vld [vmem:[%s4522 + $0x120] sm:$0xff]
      %v4560 = vld [vmem:[%s4522 + $0x128] sm:$0xff]
      %v4561 = vld [vmem:[%s4522 + $0x130] sm:$0xff]
      %v4562 = vld [vmem:[%s4522 + $0x138] sm:$0xff]
      %v4563 = vld [vmem:[%s4522 + $0x140] sm:$0xff]
      %v4564 = vld [vmem:[%s4522 + $0x148] sm:$0xff]
      %v4565 = vld [vmem:[%s4522 + $0x150] sm:$0xff]
      %v4566 = vld [vmem:[%s4522 + $0x158] sm:$0xff]
      %v4567 = vld [vmem:[%s4522 + $0x160] sm:$0xff]
      %v4568 = vld [vmem:[%s4522 + $0x168] sm:$0xff]
      %v4569 = vld [vmem:[%s4522 + $0x170] sm:$0xff]
      %v4570 = vld [vmem:[%s4522 + $0x178] sm:$0xff]
      %v4571 = vld [vmem:[%s4522 + $0x180] sm:$0xff]
      %v4572 = vld [vmem:[%s4522 + $0x188] sm:$0xff]
      %v4573 = vld [vmem:[%s4522 + $0x190] sm:$0xff]
      %v4574 = vld [vmem:[%s4522 + $0x198] sm:$0xff]
      %v4576 = vsel %vm3344, %v4524, 0
      %v4579 = vsel %vm3344, %v4526, 0
      %v4582 = vsel %vm3344, %v4528, 0
      %v4585 = vsel %vm3344, %v4530, 0
      %v4588 = vsel %vm3344, %v4532, 0
      %v4591 = vsel %vm3344, %v4534, 0
      %v4594 = vsel %vm3344, %v4536, 0
      %v4597 = vsel %vm3344, %v4538, 0
      %v4600 = vsel %vm3344, %v4540, 0
      %v4603 = vsel %vm3344, %v4542, 0
      %v4606 = vsel %vm3344, %v4544, 0
      %v4609 = vsel %vm3344, %v4546, 0
      %v4612 = vsel %vm3344, %v4548, 0
      %v4615 = vsel %vm3344, %v4550, 0
      %v4618 = vsel %vm3344, %v4552, 0
      %v4621 = vsel %vm3344, %v4554, 0
      %v4624 = vsel %vm3344, %v4556, 0
      %v4627 = vsel %vm3344, %v4558, 0
      %v4630 = vsel %vm3344, %v4560, 0
      %v4633 = vsel %vm3344, %v4562, 0
      %v4636 = vsel %vm3344, %v4564, 0
      %v4639 = vsel %vm3344, %v4566, 0
      %v4642 = vsel %vm3344, %v4568, 0
      %v4645 = vsel %vm3344, %v4570, 0
      %v4648 = vsel %vm3344, %v4572, 0
      %v4651 = vsel %vm3344, %v4574, 0
      %4653 = vmatprep.subr.mxu0 0.0
      %4654 = vmatpush1.msra.mxu0 %v3262
      %4655 = vmatprep.subr.mxu0 0.0
      %4656 = vmatpush1.msra.mxu0 %v3263
      %4657 = vmatprep.subr.mxu0 0.0
      %4658 = vmatpush1.msra.mxu0 %v3264
      %4659 = vmatprep.subr.mxu0 0.0
      %4660 = vmatpush1.msra.mxu0 %v3265
      %4661 = vmatprep.subr.mxu0 0.0
      %4662 = vmatpush1.msra.mxu0 %v3266
      %4663 = vmatprep.subr.mxu0 0.0
      %4664 = vmatpush1.msra.mxu0 %v3267
      %4665 = vmatprep.subr.mxu0 0.0
      %4666 = vmatpush1.msra.mxu0 %v3268
      %4667 = vmatprep.subr.mxu0 0.0
      %4668 = vmatpush1.msra.mxu0 %v3269
      %4669 = vmatprep.subr.mxu0 0.0
      %4670 = vmatpush1.msra.mxu0 %v3270
      %4671 = vmatprep.subr.mxu0 0.0
      %4672 = vmatpush1.msra.mxu0 %v3271
      %4673 = vmatprep.subr.mxu0 0.0
      %4674 = vmatpush1.msra.mxu0 %v3272
      %4675 = vmatprep.subr.mxu0 0.0
      %4676 = vmatpush1.msra.mxu0 %v3273
      %4677 = vmatprep.subr.mxu0 0.0
      %4678 = vmatpush1.msra.mxu0 %v3274
      %4679 = vmatprep.subr.mxu0 0.0
      %4680 = vmatpush1.msra.mxu0 %v3275
      %4681 = vmatprep.subr.mxu0 0.0
      %4682 = vmatpush1.msra.mxu0 %v3276
      %4683 = vmatprep.subr.mxu0 0.0
      %4684 = vmatpush1.msra.mxu0 %v3277
      %4685 = vmatprep.subr.mxu0 0.0
      %4686 = vmatpush1.msra.mxu0 %v3278
      %4687 = vmatprep.subr.mxu0 0.0
      %4688 = vmatpush1.msra.mxu0 %v3279
      %4689 = vmatprep.subr.mxu0 0.0
      %4690 = vmatpush1.msra.mxu0 %v3280
      %4691 = vmatprep.subr.mxu0 0.0
      %4692 = vmatpush1.msra.mxu0 %v3281
      %4693 = vmatprep.subr.mxu0 0.0
      %4694 = vmatpush1.msra.mxu0 %v3282
      %4695 = vmatprep.subr.mxu0 0.0
      %4696 = vmatpush1.msra.mxu0 %v3283
      %4697 = vmatprep.subr.mxu0 0.0
      %4698 = vmatpush1.msra.mxu0 %v3284
      %4699 = vmatprep.subr.mxu0 0.0
      %4700 = vmatpush1.msra.mxu0 %v3285
      %4701 = vmatprep.subr.mxu0 0.0
      %4702 = vmatpush1.msra.mxu0 %v3286
      %4703 = vmatprep.subr.mxu0 0.0
      %4704 = vmatpush1.msra.mxu0 %v3287
      %4705 = vmatprep.subr.mxu0 0.0
      %4706 = vmatpush1.msra.mxu0 %v3288
      %4707 = vmatprep.subr.mxu0 0.0
      %4708 = vmatpush1.msra.mxu0 %v3289
      %4709 = vmatprep.subr.mxu0 0.0
      %4710 = vmatpush1.msra.mxu0 %v3290
      %4711 = vmatprep.subr.mxu0 0.0
      %4712 = vmatpush1.msra.mxu0 %v3291
      %4713 = vmatprep.subr.mxu0 0.0
      %4714 = vmatpush1.msra.mxu0 0.0
      %4715 = vmatprep.subr.mxu0 0.0
      %4716 = vmatpush1.msra.mxu0 0.0
      %4717 = vmatprep.mubr.f32.mxu0 %v4576
      %4718 = vmatmul.mubr.f32.gmra.mrb[0].mxu0 %v4523
      %v4719 = vpop.f32.mrb[0].mxu0
      %v4720 = vadd.f32 0.0, %v4719
      %v4721 = vpop.f32.mrb[0].mxu0
      %4722 = vmatprep.mubr.f32.mxu0 %v4579
      %4723 = vmatmul.mubr.f32.gmra.mrb[0].mxu0 %v4525
      %v4724 = vpop.f32.mrb[0].mxu0
      %v4725 = vadd.f32 0.0, %v4724
      %v4726 = vpop.f32.mrb[0].mxu0
      %4727 = vmatprep.mubr.f32.mxu0 %v4582
      %4728 = vmatmul.mubr.f32.gmra.mrb[0].mxu0 %v4527
      %v4729 = vpop.f32.mrb[0].mxu0
      %v4730 = vadd.f32 0.0, %v4729
      %v4731 = vpop.f32.mrb[0].mxu0
      %4732 = vmatprep.mubr.f32.mxu0 %v4585
      %4733 = vmatmul.mubr.f32.gmra.mrb[0].mxu0 %v4529
      %v4734 = vpop.f32.mrb[0].mxu0
      %v4735 = vadd.f32 0.0, %v4734
      %v4736 = vpop.f32.mrb[0].mxu0
      %4737 = vmatprep.mubr.f32.mxu0 %v4588
      %4738 = vmatmul.mubr.f32.gmra.mrb[0].mxu0 %v4531
      %v4739 = vpop.f32.mrb[0].mxu0
      %v4740 = vadd.f32 0.0, %v4739
      %v4741 = vpop.f32.mrb[0].mxu0
      %4742 = vmatprep.mubr.f32.mxu0 %v4591
      %4743 = vmatmul.mubr.f32.gmra.mrb[0].mxu0 %v4533
      %v4744 = vpop.f32.mrb[0].mxu0
      %v4745 = vadd.f32 0.0, %v4744
      %v4746 = vpop.f32.mrb[0].mxu0
      %4747 = vmatprep.mubr.f32.mxu0 %v4594
      %4748 = vmatmul.mubr.f32.gmra.mrb[0].mxu0 %v4535
      %v4749 = vpop.f32.mrb[0].mxu0
      %v4750 = vadd.f32 0.0, %v4749
      %v4751 = vpop.f32.mrb[0].mxu0
      %4752 = vmatprep.mubr.f32.mxu0 %v4597
      %4753 = vmatmul.mubr.f32.gmra.mrb[0].mxu0 %v4537
      %v4754 = vpop.f32.mrb[0].mxu0
      %v4755 = vadd.f32 0.0, %v4754
      %v4756 = vpop.f32.mrb[0].mxu0
      %4757 = vmatprep.mubr.f32.mxu0 %v4600
      %4758 = vmatmul.mubr.f32.gmra.mrb[0].mxu0 %v4539
      %v4759 = vpop.f32.mrb[0].mxu0
      %v4760 = vadd.f32 0.0, %v4759
      %v4761 = vpop.f32.mrb[0].mxu0
      %4762 = vmatprep.mubr.f32.mxu0 %v4603
      %4763 = vmatmul.mubr.f32.gmra.mrb[0].mxu0 %v4541
      %v4764 = vpop.f32.mrb[0].mxu0
      %v4765 = vadd.f32 0.0, %v4764
      %v4766 = vpop.f32.mrb[0].mxu0
      %4767 = vmatprep.mubr.f32.mxu0 %v4606
      %4768 = vmatmul.mubr.f32.gmra.mrb[0].mxu0 %v4543
      %v4769 = vpop.f32.mrb[0].mxu0
      %v4770 = vadd.f32 0.0, %v4769
      %v4771 = vpop.f32.mrb[0].mxu0
      %4772 = vmatprep.mubr.f32.mxu0 %v4609
      %4773 = vmatmul.mubr.f32.gmra.mrb[0].mxu0 %v4545
      %v4774 = vpop.f32.mrb[0].mxu0
      %v4775 = vadd.f32 0.0, %v4774
      %v4776 = vpop.f32.mrb[0].mxu0
      %4777 = vmatprep.mubr.f32.mxu0 %v4612
      %4778 = vmatmul.mubr.f32.gmra.mrb[0].mxu0 %v4547
      %v4779 = vpop.f32.mrb[0].mxu0
      %v4780 = vadd.f32 0.0, %v4779
      %v4781 = vpop.f32.mrb[0].mxu0
      %4782 = vmatprep.mubr.f32.mxu0 %v4615
      %4783 = vmatmul.mubr.f32.gmra.mrb[0].mxu0 %v4549
      %v4784 = vpop.f32.mrb[0].mxu0
      %v4785 = vadd.f32 0.0, %v4784
      %v4786 = vpop.f32.mrb[0].mxu0
      %4787 = vmatprep.mubr.f32.mxu0 %v4618
      %4788 = vmatmul.mubr.f32.gmra.mrb[0].mxu0 %v4551
      %v4789 = vpop.f32.mrb[0].mxu0
      %v4790 = vadd.f32 0.0, %v4789
      %v4791 = vpop.f32.mrb[0].mxu0
      %4792 = vmatprep.mubr.f32.mxu0 %v4621
      %4793 = vmatmul.mubr.f32.gmra.mrb[0].mxu0 %v4553
      %v4794 = vpop.f32.mrb[0].mxu0
      %v4795 = vadd.f32 0.0, %v4794
      %v4796 = vpop.f32.mrb[0].mxu0
      %4797 = vmatprep.mubr.f32.mxu0 %v4624
      %4798 = vmatmul.mubr.f32.gmra.mrb[0].mxu0 %v4555
      %v4799 = vpop.f32.mrb[0].mxu0
      %v4800 = vadd.f32 0.0, %v4799
      %v4801 = vpop.f32.mrb[0].mxu0
      %4802 = vmatprep.mubr.f32.mxu0 %v4627
      %4803 = vmatmul.mubr.f32.gmra.mrb[0].mxu0 %v4557
      %v4804 = vpop.f32.mrb[0].mxu0
      %v4805 = vadd.f32 0.0, %v4804
      %v4806 = vpop.f32.mrb[0].mxu0
      %4807 = vmatprep.mubr.f32.mxu0 %v4630
      %4808 = vmatmul.mubr.f32.gmra.mrb[0].mxu0 %v4559
      %v4809 = vpop.f32.mrb[0].mxu0
      %v4810 = vadd.f32 0.0, %v4809
      %v4811 = vpop.f32.mrb[0].mxu0
      %4812 = vmatprep.mubr.f32.mxu0 %v4633
      %4813 = vmatmul.mubr.f32.gmra.mrb[0].mxu0 %v4561
      %v4814 = vpop.f32.mrb[0].mxu0
      %v4815 = vadd.f32 0.0, %v4814
      %v4816 = vpop.f32.mrb[0].mxu0
      %4817 = vmatprep.mubr.f32.mxu0 %v4636
      %4818 = vmatmul.mubr.f32.gmra.mrb[0].mxu0 %v4563
      %v4819 = vpop.f32.mrb[0].mxu0
      %v4820 = vadd.f32 0.0, %v4819
      %v4821 = vpop.f32.mrb[0].mxu0
      %4822 = vmatprep.mubr.f32.mxu0 %v4639
      %4823 = vmatmul.mubr.f32.gmra.mrb[0].mxu0 %v4565
      %v4824 = vpop.f32.mrb[0].mxu0
      %v4825 = vadd.f32 0.0, %v4824
      %v4826 = vpop.f32.mrb[0].mxu0
      %4827 = vmatprep.mubr.f32.mxu0 %v4642
      %4828 = vmatmul.mubr.f32.gmra.mrb[0].mxu0 %v4567
      %v4829 = vpop.f32.mrb[0].mxu0
      %v4830 = vadd.f32 0.0, %v4829
      %v4831 = vpop.f32.mrb[0].mxu0
      %4832 = vmatprep.mubr.f32.mxu0 %v4645
      %4833 = vmatmul.mubr.f32.gmra.mrb[0].mxu0 %v4569
      %v4834 = vpop.f32.mrb[0].mxu0
      %v4835 = vadd.f32 0.0, %v4834
      %v4836 = vpop.f32.mrb[0].mxu0
      %4837 = vmatprep.mubr.f32.mxu0 %v4648
      %4838 = vmatmul.mubr.f32.gmra.mrb[0].mxu0 %v4571
      %v4839 = vpop.f32.mrb[0].mxu0
      %v4840 = vadd.f32 0.0, %v4839
      %v4841 = vpop.f32.mrb[0].mxu0
      %4842 = vmatprep.mubr.f32.mxu0 %v4651
      %4843 = vmatmul.mubr.f32.gmra.mrb[0].mxu0 %v4573
      %v4844 = vpop.f32.mrb[0].mxu0
      %v4845 = vadd.f32 0.0, %v4844
      %v4846 = vpop.f32.mrb[0].mxu0
      %4847 = vdwg.mxu0
      %s4848 = scalar_lea.vmem %s5, 240
      %v4849 = vld [vmem:[%s4848] sm:$0xff]
      %v4850 = vld [vmem:[%s4848 + $0x8] sm:$0xff]
      %v4851 = vld [vmem:[%s4848 + $0x10] sm:$0xff]
      %v4852 = vld [vmem:[%s4848 + $0x18] sm:$0xff]
      %v4853 = vld [vmem:[%s4848 + $0x20] sm:$0xff]
      %v4854 = vld [vmem:[%s4848 + $0x28] sm:$0xff]
      %v4855 = vld [vmem:[%s4848 + $0x30] sm:$0xff]
      %v4856 = vld [vmem:[%s4848 + $0x38] sm:$0xff]
      %v4857 = vld [vmem:[%s4848 + $0x40] sm:$0xff]
      %v4858 = vld [vmem:[%s4848 + $0x48] sm:$0xff]
      %v4859 = vld [vmem:[%s4848 + $0x50] sm:$0xff]
      %v4860 = vld [vmem:[%s4848 + $0x58] sm:$0xff]
      %v4861 = vld [vmem:[%s4848 + $0x60] sm:$0xff]
      %v4862 = vld [vmem:[%s4848 + $0x68] sm:$0xff]
      %v4863 = vld [vmem:[%s4848 + $0x70] sm:$0xff]
      %v4865 = vsel %vm3975, %v4720, 0
      %v4868 = vsel %vm3975, %v4725, 0
      %v4871 = vsel %vm3975, %v4730, 0
      %v4874 = vsel %vm3975, %v4735, 0
      %v4877 = vsel %vm3975, %v4740, 0
      %v4880 = vsel %vm3975, %v4745, 0
      %v4883 = vsel %vm3975, %v4750, 0
      %v4886 = vsel %vm3975, %v4755, 0
      %v4889 = vsel %vm3975, %v4760, 0
      %v4892 = vsel %vm3975, %v4765, 0
      %v4895 = vsel %vm3975, %v4770, 0
      %v4898 = vsel %vm3975, %v4775, 0
      %v4901 = vsel %vm3975, %v4780, 0
      %v4904 = vsel %vm3975, %v4785, 0
      %v4907 = vsel %vm3975, %v4790, 0
      %v4910 = vsel %vm3975, %v4795, 0
      %v4913 = vsel %vm3975, %v4800, 0
      %v4916 = vsel %vm3975, %v4805, 0
      %v4919 = vsel %vm3975, %v4810, 0
      %v4922 = vsel %vm3975, %v4815, 0
      %v4925 = vsel %vm3975, %v4820, 0
      %v4928 = vsel %vm3975, %v4825, 0
      %v4931 = vsel %vm3975, %v4830, 0
      %v4934 = vsel %vm3975, %v4835, 0
      %v4937 = vsel %vm3975, %v4840, 0
      %v4940 = vsel %vm3975, %v4845, 0
      %4942 = vmatprep.subr.mxu0 0.0
      %4943 = vmatpush1.msra.mxu0 %v4849
      %4944 = vmatprep.subr.mxu0 0.0
      %4945 = vmatpush1.msra.mxu0 %v4850
      %4946 = vmatprep.subr.mxu0 0.0
      %4947 = vmatpush1.msra.mxu0 %v4851
      %4948 = vmatprep.subr.mxu0 0.0
      %4949 = vmatpush1.msra.mxu0 %v4852
      %4950 = vmatprep.subr.mxu0 0.0
      %4951 = vmatpush1.msra.mxu0 %v4853
      %4952 = vmatprep.subr.mxu0 0.0
      %4953 = vmatpush1.msra.mxu0 %v4854
      %4954 = vmatprep.subr.mxu0 0.0
      %4955 = vmatpush1.msra.mxu0 %v4855
      %4956 = vmatprep.subr.mxu0 0.0
      %4957 = vmatpush1.msra.mxu0 %v4856
      %4958 = vmatprep.subr.mxu0 0.0
      %4959 = vmatpush1.msra.mxu0 %v4857
      %4960 = vmatprep.subr.mxu0 0.0
      %4961 = vmatpush1.msra.mxu0 %v4858
      %4962 = vmatprep.subr.mxu0 0.0
      %4963 = vmatpush1.msra.mxu0 %v4859
      %4964 = vmatprep.subr.mxu0 0.0
      %4965 = vmatpush1.msra.mxu0 %v4860
      %4966 = vmatprep.subr.mxu0 0.0
      %4967 = vmatpush1.msra.mxu0 %v4861
      %4968 = vmatprep.subr.mxu0 0.0
      %4969 = vmatpush1.msra.mxu0 %v4862
      %4970 = vmatprep.subr.mxu0 0.0
      %4971 = vmatpush1.msra.mxu0 %v4863
      %4972 = vmatprep.subr.mxu0 0.0
      %4973 = vmatpush1.msra.mxu0 0.0
      %4974 = vmatprep.subr.mxu0 0.0
      %4975 = vmatpush1.msra.mxu0 0.0
      %4976 = vmatprep.subr.mxu0 0.0
      %4977 = vmatpush1.msra.mxu0 0.0
      %4978 = vmatprep.subr.mxu0 0.0
      %4979 = vmatpush1.msra.mxu0 0.0
      %4980 = vmatprep.subr.mxu0 0.0
      %4981 = vmatpush1.msra.mxu0 0.0
      %4982 = vmatprep.subr.mxu0 0.0
      %4983 = vmatpush1.msra.mxu0 0.0
      %4984 = vmatprep.subr.mxu0 0.0
      %4985 = vmatpush1.msra.mxu0 0.0
      %4986 = vmatprep.subr.mxu0 0.0
      %4987 = vmatpush1.msra.mxu0 0.0
      %4988 = vmatprep.subr.mxu0 0.0
      %4989 = vmatpush1.msra.mxu0 0.0
      %4990 = vmatprep.subr.mxu0 0.0
      %4991 = vmatpush1.msra.mxu0 0.0
      %4992 = vmatprep.subr.mxu0 0.0
      %4993 = vmatpush1.msra.mxu0 0.0
      %4994 = vmatprep.subr.mxu0 0.0
      %4995 = vmatpush1.msra.mxu0 0.0
      %4996 = vmatprep.subr.mxu0 0.0
      %4997 = vmatpush1.msra.mxu0 0.0
      %4998 = vmatprep.subr.mxu0 0.0
      %4999 = vmatpush1.msra.mxu0 0.0
      %5000 = vmatprep.subr.mxu0 0.0
      %5001 = vmatpush1.msra.mxu0 0.0
      %5002 = vmatprep.subr.mxu0 0.0
      %5003 = vmatpush1.msra.mxu0 0.0
      %5004 = vmatprep.subr.mxu0 0.0
      %5005 = vmatpush1.msra.mxu0 0.0
      %5006 = vmatprep.mubr.f32.mxu0 0.0
      %5007 = vmatmul.mubr.f32.gmra.mrb[0].mxu0 %v4865
      %v5008 = vpop.f32.mrb[0].mxu0
      %v5009 = vadd.f32 0.0, %v5008
      %v5010 = vpop.f32.mrb[0].mxu0
      %5011 = vmatprep.mubr.f32.mxu0 0.0
      %5012 = vmatmul.mubr.f32.gmra.mrb[0].mxu0 %v4868
      %v5013 = vpop.f32.mrb[0].mxu0
      %v5014 = vadd.f32 0.0, %v5013
      %v5015 = vpop.f32.mrb[0].mxu0
      %5016 = vmatprep.mubr.f32.mxu0 0.0
      %5017 = vmatmul.mubr.f32.gmra.mrb[0].mxu0 %v4871
      %v5018 = vpop.f32.mrb[0].mxu0
      %v5019 = vadd.f32 0.0, %v5018
      %v5020 = vpop.f32.mrb[0].mxu0
      %5021 = vmatprep.mubr.f32.mxu0 0.0
      %5022 = vmatmul.mubr.f32.gmra.mrb[0].mxu0 %v4874
      %v5023 = vpop.f32.mrb[0].mxu0
      %v5024 = vadd.f32 0.0, %v5023
      %v5025 = vpop.f32.mrb[0].mxu0
      %5026 = vmatprep.mubr.f32.mxu0 0.0
      %5027 = vmatmul.mubr.f32.gmra.mrb[0].mxu0 %v4877
      %v5028 = vpop.f32.mrb[0].mxu0
      %v5029 = vadd.f32 0.0, %v5028
      %v5030 = vpop.f32.mrb[0].mxu0
      %5031 = vmatprep.mubr.f32.mxu0 0.0
      %5032 = vmatmul.mubr.f32.gmra.mrb[0].mxu0 %v4880
      %v5033 = vpop.f32.mrb[0].mxu0
      %v5034 = vadd.f32 0.0, %v5033
      %v5035 = vpop.f32.mrb[0].mxu0
      %5036 = vmatprep.mubr.f32.mxu0 0.0
      %5037 = vmatmul.mubr.f32.gmra.mrb[0].mxu0 %v4883
      %v5038 = vpop.f32.mrb[0].mxu0
      %v5039 = vadd.f32 0.0, %v5038
      %v5040 = vpop.f32.mrb[0].mxu0
      %5041 = vmatprep.mubr.f32.mxu0 0.0
      %5042 = vmatmul.mubr.f32.gmra.mrb[0].mxu0 %v4886
      %v5043 = vpop.f32.mrb[0].mxu0
      %v5044 = vadd.f32 0.0, %v5043
      %v5045 = vpop.f32.mrb[0].mxu0
      %5046 = vmatprep.mubr.f32.mxu0 0.0
      %5047 = vmatmul.mubr.f32.gmra.mrb[0].mxu0 %v4889
      %v5048 = vpop.f32.mrb[0].mxu0
      %v5049 = vadd.f32 0.0, %v5048
      %v5050 = vpop.f32.mrb[0].mxu0
      %5051 = vmatprep.mubr.f32.mxu0 0.0
      %5052 = vmatmul.mubr.f32.gmra.mrb[0].mxu0 %v4892
      %v5053 = vpop.f32.mrb[0].mxu0
      %v5054 = vadd.f32 0.0, %v5053
      %v5055 = vpop.f32.mrb[0].mxu0
      %5056 = vmatprep.mubr.f32.mxu0 0.0
      %5057 = vmatmul.mubr.f32.gmra.mrb[0].mxu0 %v4895
      %v5058 = vpop.f32.mrb[0].mxu0
      %v5059 = vadd.f32 0.0, %v5058
      %v5060 = vpop.f32.mrb[0].mxu0
      %5061 = vmatprep.mubr.f32.mxu0 0.0
      %5062 = vmatmul.mubr.f32.gmra.mrb[0].mxu0 %v4898
      %v5063 = vpop.f32.mrb[0].mxu0
      %v5064 = vadd.f32 0.0, %v5063
      %v5065 = vpop.f32.mrb[0].mxu0
      %5066 = vmatprep.mubr.f32.mxu0 0.0
      %5067 = vmatmul.mubr.f32.gmra.mrb[0].mxu0 %v4901
      %v5068 = vpop.f32.mrb[0].mxu0
      %v5069 = vadd.f32 0.0, %v5068
      %v5070 = vpop.f32.mrb[0].mxu0
      %5071 = vmatprep.mubr.f32.mxu0 0.0
      %5072 = vmatmul.mubr.f32.gmra.mrb[0].mxu0 %v4904
      %v5073 = vpop.f32.mrb[0].mxu0
      %v5074 = vadd.f32 0.0, %v5073
      %v5075 = vpop.f32.mrb[0].mxu0
      %5076 = vmatprep.mubr.f32.mxu0 0.0
      %5077 = vmatmul.mubr.f32.gmra.mrb[0].mxu0 %v4907
      %v5078 = vpop.f32.mrb[0].mxu0
      %v5079 = vadd.f32 0.0, %v5078
      %v5080 = vpop.f32.mrb[0].mxu0
      %5081 = vmatprep.mubr.f32.mxu0 0.0
      %5082 = vmatmul.mubr.f32.gmra.mrb[0].mxu0 %v4910
      %v5083 = vpop.f32.mrb[0].mxu0
      %v5084 = vadd.f32 0.0, %v5083
      %v5085 = vpop.f32.mrb[0].mxu0
      %5086 = vmatprep.mubr.f32.mxu0 0.0
      %5087 = vmatmul.mubr.f32.gmra.mrb[0].mxu0 %v4913
      %v5088 = vpop.f32.mrb[0].mxu0
      %v5089 = vadd.f32 0.0, %v5088
      %v5090 = vpop.f32.mrb[0].mxu0
      %5091 = vmatprep.mubr.f32.mxu0 0.0
      %5092 = vmatmul.mubr.f32.gmra.mrb[0].mxu0 %v4916
      %v5093 = vpop.f32.mrb[0].mxu0
      %v5094 = vadd.f32 0.0, %v5093
      %v5095 = vpop.f32.mrb[0].mxu0
      %5096 = vmatprep.mubr.f32.mxu0 0.0
      %5097 = vmatmul.mubr.f32.gmra.mrb[0].mxu0 %v4919
      %v5098 = vpop.f32.mrb[0].mxu0
      %v5099 = vadd.f32 0.0, %v5098
      %v5100 = vpop.f32.mrb[0].mxu0
      %5101 = vmatprep.mubr.f32.mxu0 0.0
      %5102 = vmatmul.mubr.f32.gmra.mrb[0].mxu0 %v4922
      %v5103 = vpop.f32.mrb[0].mxu0
      %v5104 = vadd.f32 0.0, %v5103
      %v5105 = vpop.f32.mrb[0].mxu0
      %5106 = vmatprep.mubr.f32.mxu0 0.0
      %5107 = vmatmul.mubr.f32.gmra.mrb[0].mxu0 %v4925
      %v5108 = vpop.f32.mrb[0].mxu0
      %v5109 = vadd.f32 0.0, %v5108
      %v5110 = vpop.f32.mrb[0].mxu0
      %5111 = vmatprep.mubr.f32.mxu0 0.0
      %5112 = vmatmul.mubr.f32.gmra.mrb[0].mxu0 %v4928
      %v5113 = vpop.f32.mrb[0].mxu0
      %v5114 = vadd.f32 0.0, %v5113
      %v5115 = vpop.f32.mrb[0].mxu0
      %5116 = vmatprep.mubr.f32.mxu0 0.0
      %5117 = vmatmul.mubr.f32.gmra.mrb[0].mxu0 %v4931
      %v5118 = vpop.f32.mrb[0].mxu0
      %v5119 = vadd.f32 0.0, %v5118
      %v5120 = vpop.f32.mrb[0].mxu0
      %5121 = vmatprep.mubr.f32.mxu0 0.0
      %5122 = vmatmul.mubr.f32.gmra.mrb[0].mxu0 %v4934
      %v5123 = vpop.f32.mrb[0].mxu0
      %v5124 = vadd.f32 0.0, %v5123
      %v5125 = vpop.f32.mrb[0].mxu0
      %5126 = vmatprep.mubr.f32.mxu0 0.0
      %5127 = vmatmul.mubr.f32.gmra.mrb[0].mxu0 %v4937
      %v5128 = vpop.f32.mrb[0].mxu0
      %v5129 = vadd.f32 0.0, %v5128
      %v5130 = vpop.f32.mrb[0].mxu0
      %5131 = vmatprep.mubr.f32.mxu0 0.0
      %5132 = vmatmul.mubr.f32.gmra.mrb[0].mxu0 %v4940
      %v5133 = vpop.f32.mrb[0].mxu0
      %v5134 = vadd.f32 0.0, %v5133
      %v5135 = vpop.f32.mrb[0].mxu0
      %5136 = vdwg.mxu0
      %v5137 = vadd.f32 %v4394, %v5009
      %v5138 = vadd.f32 %v4399, %v5014
      %v5139 = vadd.f32 %v4404, %v5019
      %v5140 = vadd.f32 %v4409, %v5024
      %v5141 = vadd.f32 %v4414, %v5029
      %v5142 = vadd.f32 %v4419, %v5034
      %v5143 = vadd.f32 %v4424, %v5039
      %v5144 = vadd.f32 %v4429, %v5044
      %v5145 = vadd.f32 %v4434, %v5049
      %v5146 = vadd.f32 %v4439, %v5054
      %v5147 = vadd.f32 %v4444, %v5059
      %v5148 = vadd.f32 %v4449, %v5064
      %v5149 = vadd.f32 %v4454, %v5069
      %v5150 = vadd.f32 %v4459, %v5074
      %v5151 = vadd.f32 %v4464, %v5079
      %v5152 = vadd.f32 %v4469, %v5084
      %v5153 = vadd.f32 %v4474, %v5089
      %v5154 = vadd.f32 %v4479, %v5094
      %v5155 = vadd.f32 %v4484, %v5099
      %v5156 = vadd.f32 %v4489, %v5104
      %v5157 = vadd.f32 %v4494, %v5109
      %v5158 = vadd.f32 %v4499, %v5114
      %v5159 = vadd.f32 %v4504, %v5119
      %v5160 = vadd.f32 %v4509, %v5124
      %v5161 = vadd.f32 %v4514, %v5129
      %v5162 = vadd.f32 %v4519, %v5134
      %v5163 = vld [vmem:[%s6] sm:$0x1]
      %v5165 = vlaneseq
      %v5166 = vshrl.u32 %v5165, 7
      %v5167 = vsub.s32 0, %v5166
      %v5168 = vrot.slane %v5163, %v5167
      %v5170 = vadd.f32 %v5137, %v5168
      %v5171 = vadd.f32 %v5138, %v5168
      %v5172 = vadd.f32 %v5139, %v5168
      %v5173 = vadd.f32 %v5140, %v5168
      %v5174 = vadd.f32 %v5141, %v5168
      %v5175 = vadd.f32 %v5142, %v5168
      %v5176 = vadd.f32 %v5143, %v5168
      %v5177 = vadd.f32 %v5144, %v5168
      %v5178 = vadd.f32 %v5145, %v5168
      %v5179 = vadd.f32 %v5146, %v5168
      %v5180 = vadd.f32 %v5147, %v5168
      %v5181 = vadd.f32 %v5148, %v5168
      %v5182 = vadd.f32 %v5149, %v5168
      %v5183 = vadd.f32 %v5150, %v5168
      %v5184 = vadd.f32 %v5151, %v5168
      %v5185 = vadd.f32 %v5152, %v5168
      %v5186 = vadd.f32 %v5153, %v5168
      %v5187 = vadd.f32 %v5154, %v5168
      %v5188 = vadd.f32 %v5155, %v5168
      %v5189 = vadd.f32 %v5156, %v5168
      %v5190 = vadd.f32 %v5157, %v5168
      %v5191 = vadd.f32 %v5158, %v5168
      %v5192 = vadd.f32 %v5159, %v5168
      %v5193 = vadd.f32 %v5160, %v5168
      %v5194 = vadd.f32 %v5161, %v5168
      %v5195 = vadd.f32 %v5162, %v5168
      %v5196 = vmax.f32 %v5170, 0.0
      %v5197 = vmax.f32 %v5171, 0.0
      %v5198 = vmax.f32 %v5172, 0.0
      %v5199 = vmax.f32 %v5173, 0.0
      %v5200 = vmax.f32 %v5174, 0.0
      %v5201 = vmax.f32 %v5175, 0.0
      %v5202 = vmax.f32 %v5176, 0.0
      %v5203 = vmax.f32 %v5177, 0.0
      %v5204 = vmax.f32 %v5178, 0.0
      %v5205 = vmax.f32 %v5179, 0.0
      %v5206 = vmax.f32 %v5180, 0.0
      %v5207 = vmax.f32 %v5181, 0.0
      %v5208 = vmax.f32 %v5182, 0.0
      %v5209 = vmax.f32 %v5183, 0.0
      %v5210 = vmax.f32 %v5184, 0.0
      %v5211 = vmax.f32 %v5185, 0.0
      %v5212 = vmax.f32 %v5186, 0.0
      %v5213 = vmax.f32 %v5187, 0.0
      %v5214 = vmax.f32 %v5188, 0.0
      %v5215 = vmax.f32 %v5189, 0.0
      %v5216 = vmax.f32 %v5190, 0.0
      %v5217 = vmax.f32 %v5191, 0.0
      %v5218 = vmax.f32 %v5192, 0.0
      %v5219 = vmax.f32 %v5193, 0.0
      %v5220 = vmax.f32 %v5194, 0.0
      %v5221 = vmax.f32 %v5195, 0.0
      %v5222 = vld [vmem:[%s7] sm:$0xff]
      %v5223 = vld [vmem:[%s7 + $0x8] sm:$0xff]
      %v5224 = vld [vmem:[%s7 + $0x10] sm:$0xff]
      %v5225 = vld [vmem:[%s7 + $0x18] sm:$0xff]
      %v5226 = vld [vmem:[%s7 + $0x20] sm:$0xff]
      %v5227 = vld [vmem:[%s7 + $0x28] sm:$0xff]
      %v5228 = vld [vmem:[%s7 + $0x30] sm:$0xff]
      %v5229 = vld [vmem:[%s7 + $0x38] sm:$0xff]
      %v5230 = vld [vmem:[%s7 + $0x40] sm:$0xff]
      %v5231 = vld [vmem:[%s7 + $0x48] sm:$0xff]
      %v5232 = vld [vmem:[%s7 + $0x50] sm:$0xff]
      %v5233 = vld [vmem:[%s7 + $0x58] sm:$0xff]
      %v5234 = vld [vmem:[%s7 + $0x60] sm:$0xff]
      %v5235 = vld [vmem:[%s7 + $0x68] sm:$0xff]
      %v5236 = vld [vmem:[%s7 + $0x70] sm:$0xff]
      %v5237 = vld [vmem:[%s7 + $0x78] sm:$0xff]
      %v5238 = vld [vmem:[%s7 + $0x80] sm:$0xff]
      %v5239 = vld [vmem:[%s7 + $0x88] sm:$0xff]
      %v5240 = vld [vmem:[%s7 + $0x90] sm:$0xff]
      %v5241 = vld [vmem:[%s7 + $0x98] sm:$0xff]
      %v5242 = vld [vmem:[%s7 + $0xa0] sm:$0xff]
      %v5243 = vld [vmem:[%s7 + $0xa8] sm:$0xff]
      %v5244 = vld [vmem:[%s7 + $0xb0] sm:$0xff]
      %v5245 = vld [vmem:[%s7 + $0xb8] sm:$0xff]
      %vm5246 = vcmask 654336
      %v5248 = vsel %vm5246, %v5223, 0
      %v5251 = vsel %vm5246, %v5225, 0
      %v5254 = vsel %vm5246, %v5227, 0
      %v5257 = vsel %vm5246, %v5229, 0
      %v5260 = vsel %vm5246, %v5231, 0
      %v5263 = vsel %vm5246, %v5233, 0
      %v5266 = vsel %vm5246, %v5235, 0
      %v5269 = vsel %vm5246, %v5237, 0
      %v5272 = vsel %vm5246, %v5239, 0
      %v5275 = vsel %vm5246, %v5241, 0
      %v5278 = vsel %vm5246, %v5243, 0
      %v5281 = vsel %vm5246, %v5245, 0
      %5283 = vmatprep.subr.mxu0 0.0
      %5284 = vmatpush1.msra.mxu0 %v5196
      %5285 = vmatprep.subr.mxu0 0.0
      %5286 = vmatpush1.msra.mxu0 %v5197
      %5287 = vmatprep.subr.mxu0 0.0
      %5288 = vmatpush1.msra.mxu0 %v5198
      %5289 = vmatprep.subr.mxu0 0.0
      %5290 = vmatpush1.msra.mxu0 %v5199
      %5291 = vmatprep.subr.mxu0 0.0
      %5292 = vmatpush1.msra.mxu0 %v5200
      %5293 = vmatprep.subr.mxu0 0.0
      %5294 = vmatpush1.msra.mxu0 %v5201
      %5295 = vmatprep.subr.mxu0 0.0
      %5296 = vmatpush1.msra.mxu0 %v5202
      %5297 = vmatprep.subr.mxu0 0.0
      %5298 = vmatpush1.msra.mxu0 %v5203
      %5299 = vmatprep.subr.mxu0 0.0
      %5300 = vmatpush1.msra.mxu0 %v5204
      %5301 = vmatprep.subr.mxu0 0.0
      %5302 = vmatpush1.msra.mxu0 %v5205
      %5303 = vmatprep.subr.mxu0 0.0
      %5304 = vmatpush1.msra.mxu0 %v5206
      %5305 = vmatprep.subr.mxu0 0.0
      %5306 = vmatpush1.msra.mxu0 %v5207
      %5307 = vmatprep.subr.mxu0 0.0
      %5308 = vmatpush1.msra.mxu0 %v5208
      %5309 = vmatprep.subr.mxu0 0.0
      %5310 = vmatpush1.msra.mxu0 %v5209
      %5311 = vmatprep.subr.mxu0 0.0
      %5312 = vmatpush1.msra.mxu0 %v5210
      %5313 = vmatprep.subr.mxu0 0.0
      %5314 = vmatpush1.msra.mxu0 %v5211
      %5315 = vmatprep.subr.mxu0 0.0
      %5316 = vmatpush1.msra.mxu0 %v5212
      %5317 = vmatprep.subr.mxu0 0.0
      %5318 = vmatpush1.msra.mxu0 %v5213
      %5319 = vmatprep.subr.mxu0 0.0
      %5320 = vmatpush1.msra.mxu0 %v5214
      %5321 = vmatprep.subr.mxu0 0.0
      %5322 = vmatpush1.msra.mxu0 %v5215
      %5323 = vmatprep.subr.mxu0 0.0
      %5324 = vmatpush1.msra.mxu0 %v5216
      %5325 = vmatprep.subr.mxu0 0.0
      %5326 = vmatpush1.msra.mxu0 %v5217
      %5327 = vmatprep.subr.mxu0 0.0
      %5328 = vmatpush1.msra.mxu0 %v5218
      %5329 = vmatprep.subr.mxu0 0.0
      %5330 = vmatpush1.msra.mxu0 %v5219
      %5331 = vmatprep.subr.mxu0 0.0
      %5332 = vmatpush1.msra.mxu0 %v5220
      %5333 = vmatprep.subr.mxu0 0.0
      %5334 = vmatpush1.msra.mxu0 %v5221
      %5335 = vmatprep.subr.mxu0 0.0
      %5336 = vmatpush1.msra.mxu0 0.0
      %5337 = vmatprep.subr.mxu0 0.0
      %5338 = vmatpush1.msra.mxu0 0.0
      %5339 = vmatprep.subr.mxu0 0.0
      %5340 = vmatpush1.msra.mxu0 0.0
      %5341 = vmatprep.subr.mxu0 0.0
      %5342 = vmatpush1.msra.mxu0 0.0
      %5343 = vmatprep.subr.mxu0 0.0
      %5344 = vmatpush1.msra.mxu0 0.0
      %5345 = vmatprep.subr.mxu0 0.0
      %5346 = vmatpush1.msra.mxu0 0.0
      %5347 = vmatprep.mubr.f32.mxu0 %v5248
      %5348 = vmatmul.mubr.f32.gmra.mrb[0].mxu0 %v5222
      %v5349 = vpop.f32.mrb[0].mxu0
      %v5350 = vadd.f32 0.0, %v5349
      %v5351 = vpop.f32.mrb[0].mxu0
      %5352 = vmatprep.mubr.f32.mxu0 %v5251
      %5353 = vmatmul.mubr.f32.gmra.mrb[0].mxu0 %v5224
      %v5354 = vpop.f32.mrb[0].mxu0
      %v5355 = vadd.f32 0.0, %v5354
      %v5356 = vpop.f32.mrb[0].mxu0
      %5357 = vmatprep.mubr.f32.mxu0 %v5254
      %5358 = vmatmul.mubr.f32.gmra.mrb[0].mxu0 %v5226
      %v5359 = vpop.f32.mrb[0].mxu0
      %v5360 = vadd.f32 0.0, %v5359
      %v5361 = vpop.f32.mrb[0].mxu0
      %5362 = vmatprep.mubr.f32.mxu0 %v5257
      %5363 = vmatmul.mubr.f32.gmra.mrb[0].mxu0 %v5228
      %v5364 = vpop.f32.mrb[0].mxu0
      %v5365 = vadd.f32 0.0, %v5364
      %v5366 = vpop.f32.mrb[0].mxu0
      %5367 = vmatprep.mubr.f32.mxu0 %v5260
      %5368 = vmatmul.mubr.f32.gmra.mrb[0].mxu0 %v5230
      %v5369 = vpop.f32.mrb[0].mxu0
      %v5370 = vadd.f32 0.0, %v5369
      %v5371 = vpop.f32.mrb[0].mxu0
      %5372 = vmatprep.mubr.f32.mxu0 %v5263
      %5373 = vmatmul.mubr.f32.gmra.mrb[0].mxu0 %v5232
      %v5374 = vpop.f32.mrb[0].mxu0
      %v5375 = vadd.f32 0.0, %v5374
      %v5376 = vpop.f32.mrb[0].mxu0
      %5377 = vmatprep.mubr.f32.mxu0 %v5266
      %5378 = vmatmul.mubr.f32.gmra.mrb[0].mxu0 %v5234
      %v5379 = vpop.f32.mrb[0].mxu0
      %v5380 = vadd.f32 0.0, %v5379
      %v5381 = vpop.f32.mrb[0].mxu0
      %5382 = vmatprep.mubr.f32.mxu0 %v5269
      %5383 = vmatmul.mubr.f32.gmra.mrb[0].mxu0 %v5236
      %v5384 = vpop.f32.mrb[0].mxu0
      %v5385 = vadd.f32 0.0, %v5384
      %v5386 = vpop.f32.mrb[0].mxu0
      %5387 = vmatprep.mubr.f32.mxu0 %v5272
      %5388 = vmatmul.mubr.f32.gmra.mrb[0].mxu0 %v5238
      %v5389 = vpop.f32.mrb[0].mxu0
      %v5390 = vadd.f32 0.0, %v5389
      %v5391 = vpop.f32.mrb[0].mxu0
      %5392 = vmatprep.mubr.f32.mxu0 %v5275
      %5393 = vmatmul.mubr.f32.gmra.mrb[0].mxu0 %v5240
      %v5394 = vpop.f32.mrb[0].mxu0
      %v5395 = vadd.f32 0.0, %v5394
      %v5396 = vpop.f32.mrb[0].mxu0
      %5397 = vmatprep.mubr.f32.mxu0 %v5278
      %5398 = vmatmul.mubr.f32.gmra.mrb[0].mxu0 %v5242
      %v5399 = vpop.f32.mrb[0].mxu0
      %v5400 = vadd.f32 0.0, %v5399
      %v5401 = vpop.f32.mrb[0].mxu0
      %5402 = vmatprep.mubr.f32.mxu0 %v5281
      %5403 = vmatmul.mubr.f32.gmra.mrb[0].mxu0 %v5244
      %v5404 = vpop.f32.mrb[0].mxu0
      %v5405 = vadd.f32 0.0, %v5404
      %v5406 = vpop.f32.mrb[0].mxu0
      %5407 = vdwg.mxu0
      %v5408 = vld [vmem:[%s8] sm:$0xff]
      %v5409 = vld [vmem:[%s8 + $0x8] sm:$0xff]
      %v5410 = vld [vmem:[%s8 + $0x10] sm:$0xff]
      %v5411 = vld [vmem:[%s8 + $0x18] sm:$0xff]
      %v5412 = vld [vmem:[%s8 + $0x20] sm:$0xff]
      %v5413 = vld [vmem:[%s8 + $0x28] sm:$0xff]
      %v5414 = vld [vmem:[%s8 + $0x30] sm:$0xff]
      %v5415 = vld [vmem:[%s8 + $0x38] sm:$0xff]
      %v5416 = vld [vmem:[%s8 + $0x40] sm:$0xff]
      %v5417 = vld [vmem:[%s8 + $0x48] sm:$0xff]
      %v5418 = vld [vmem:[%s8 + $0x50] sm:$0xff]
      %v5419 = vld [vmem:[%s8 + $0x58] sm:$0xff]
      %v5420 = vld [vmem:[%s8 + $0x60] sm:$0xff]
      %s5421 = scalar_lea.vmem %s7, 192
      %v5422 = vld [vmem:[%s5421] sm:$0xff]
      %v5423 = vld [vmem:[%s5421 + $0x8] sm:$0xff]
      %v5424 = vld [vmem:[%s5421 + $0x10] sm:$0xff]
      %v5425 = vld [vmem:[%s5421 + $0x18] sm:$0xff]
      %v5426 = vld [vmem:[%s5421 + $0x20] sm:$0xff]
      %v5427 = vld [vmem:[%s5421 + $0x28] sm:$0xff]
      %v5428 = vld [vmem:[%s5421 + $0x30] sm:$0xff]
      %v5429 = vld [vmem:[%s5421 + $0x38] sm:$0xff]
      %v5430 = vld [vmem:[%s5421 + $0x40] sm:$0xff]
      %v5431 = vld [vmem:[%s5421 + $0x48] sm:$0xff]
      %v5432 = vld [vmem:[%s5421 + $0x50] sm:$0xff]
      %v5433 = vld [vmem:[%s5421 + $0x58] sm:$0xff]
      %v5434 = vld [vmem:[%s5421 + $0x60] sm:$0xff]
      %v5435 = vld [vmem:[%s5421 + $0x68] sm:$0xff]
      %v5436 = vld [vmem:[%s5421 + $0x70] sm:$0xff]
      %v5437 = vld [vmem:[%s5421 + $0x78] sm:$0xff]
      %v5438 = vld [vmem:[%s5421 + $0x80] sm:$0xff]
      %v5439 = vld [vmem:[%s5421 + $0x88] sm:$0xff]
      %v5440 = vld [vmem:[%s5421 + $0x90] sm:$0xff]
      %v5441 = vld [vmem:[%s5421 + $0x98] sm:$0xff]
      %v5442 = vld [vmem:[%s5421 + $0xa0] sm:$0xff]
      %v5443 = vld [vmem:[%s5421 + $0xa8] sm:$0xff]
      %v5444 = vld [vmem:[%s5421 + $0xb0] sm:$0xff]
      %v5445 = vld [vmem:[%s5421 + $0xb8] sm:$0xff]
      %v5447 = vsel %vm5246, %v5423, 0
      %v5450 = vsel %vm5246, %v5425, 0
      %v5453 = vsel %vm5246, %v5427, 0
      %v5456 = vsel %vm5246, %v5429, 0
      %v5459 = vsel %vm5246, %v5431, 0
      %v5462 = vsel %vm5246, %v5433, 0
      %v5465 = vsel %vm5246, %v5435, 0
      %v5468 = vsel %vm5246, %v5437, 0
      %v5471 = vsel %vm5246, %v5439, 0
      %v5474 = vsel %vm5246, %v5441, 0
      %v5477 = vsel %vm5246, %v5443, 0
      %v5480 = vsel %vm5246, %v5445, 0
      %5482 = vmatprep.subr.mxu0 0.0
      %5483 = vmatpush1.msra.mxu0 %v5196
      %5484 = vmatprep.subr.mxu0 0.0
      %5485 = vmatpush1.msra.mxu0 %v5197
      %5486 = vmatprep.subr.mxu0 0.0
      %5487 = vmatpush1.msra.mxu0 %v5198
      %5488 = vmatprep.subr.mxu0 0.0
      %5489 = vmatpush1.msra.mxu0 %v5199
      %5490 = vmatprep.subr.mxu0 0.0
      %5491 = vmatpush1.msra.mxu0 %v5200
      %5492 = vmatprep.subr.mxu0 0.0
      %5493 = vmatpush1.msra.mxu0 %v5201
      %5494 = vmatprep.subr.mxu0 0.0
      %5495 = vmatpush1.msra.mxu0 %v5202
      %5496 = vmatprep.subr.mxu0 0.0
      %5497 = vmatpush1.msra.mxu0 %v5203
      %5498 = vmatprep.subr.mxu0 0.0
      %5499 = vmatpush1.msra.mxu0 %v5204
      %5500 = vmatprep.subr.mxu0 0.0
      %5501 = vmatpush1.msra.mxu0 %v5205
      %5502 = vmatprep.subr.mxu0 0.0
      %5503 = vmatpush1.msra.mxu0 %v5206
      %5504 = vmatprep.subr.mxu0 0.0
      %5505 = vmatpush1.msra.mxu0 %v5207
      %5506 = vmatprep.subr.mxu0 0.0
      %5507 = vmatpush1.msra.mxu0 %v5208
      %5508 = vmatprep.subr.mxu0 0.0
      %5509 = vmatpush1.msra.mxu0 %v5209
      %5510 = vmatprep.subr.mxu0 0.0
      %5511 = vmatpush1.msra.mxu0 %v5210
      %5512 = vmatprep.subr.mxu0 0.0
      %5513 = vmatpush1.msra.mxu0 %v5211
      %5514 = vmatprep.subr.mxu0 0.0
      %5515 = vmatpush1.msra.mxu0 %v5212
      %5516 = vmatprep.subr.mxu0 0.0
      %5517 = vmatpush1.msra.mxu0 %v5213
      %5518 = vmatprep.subr.mxu0 0.0
      %5519 = vmatpush1.msra.mxu0 %v5214
      %5520 = vmatprep.subr.mxu0 0.0
      %5521 = vmatpush1.msra.mxu0 %v5215
      %5522 = vmatprep.subr.mxu0 0.0
      %5523 = vmatpush1.msra.mxu0 %v5216
      %5524 = vmatprep.subr.mxu0 0.0
      %5525 = vmatpush1.msra.mxu0 %v5217
      %5526 = vmatprep.subr.mxu0 0.0
      %5527 = vmatpush1.msra.mxu0 %v5218
      %5528 = vmatprep.subr.mxu0 0.0
      %5529 = vmatpush1.msra.mxu0 %v5219
      %5530 = vmatprep.subr.mxu0 0.0
      %5531 = vmatpush1.msra.mxu0 %v5220
      %5532 = vmatprep.subr.mxu0 0.0
      %5533 = vmatpush1.msra.mxu0 %v5221
      %5534 = vmatprep.subr.mxu0 0.0
      %5535 = vmatpush1.msra.mxu0 0.0
      %5536 = vmatprep.subr.mxu0 0.0
      %5537 = vmatpush1.msra.mxu0 0.0
      %5538 = vmatprep.subr.mxu0 0.0
      %5539 = vmatpush1.msra.mxu0 0.0
      %5540 = vmatprep.subr.mxu0 0.0
      %5541 = vmatpush1.msra.mxu0 0.0
      %5542 = vmatprep.subr.mxu0 0.0
      %5543 = vmatpush1.msra.mxu0 0.0
      %5544 = vmatprep.subr.mxu0 0.0
      %5545 = vmatpush1.msra.mxu0 0.0
      %5546 = vmatprep.mubr.f32.mxu0 %v5447
      %5547 = vmatmul.mubr.f32.gmra.mrb[0].mxu0 %v5422
      %v5548 = vpop.f32.mrb[0].mxu0
      %v5549 = vadd.f32 0.0, %v5548
      %v5550 = vpop.f32.mrb[0].mxu0
      %5551 = vmatprep.mubr.f32.mxu0 %v5450
      %5552 = vmatmul.mubr.f32.gmra.mrb[0].mxu0 %v5424
      %v5553 = vpop.f32.mrb[0].mxu0
      %v5554 = vadd.f32 0.0, %v5553
      %v5555 = vpop.f32.mrb[0].mxu0
      %5556 = vmatprep.mubr.f32.mxu0 %v5453
      %5557 = vmatmul.mubr.f32.gmra.mrb[0].mxu0 %v5426
      %v5558 = vpop.f32.mrb[0].mxu0
      %v5559 = vadd.f32 0.0, %v5558
      %v5560 = vpop.f32.mrb[0].mxu0
      %5561 = vmatprep.mubr.f32.mxu0 %v5456
      %5562 = vmatmul.mubr.f32.gmra.mrb[0].mxu0 %v5428
      %v5563 = vpop.f32.mrb[0].mxu0
      %v5564 = vadd.f32 0.0, %v5563
      %v5565 = vpop.f32.mrb[0].mxu0
      %5566 = vmatprep.mubr.f32.mxu0 %v5459
      %5567 = vmatmul.mubr.f32.gmra.mrb[0].mxu0 %v5430
      %v5568 = vpop.f32.mrb[0].mxu0
      %v5569 = vadd.f32 0.0, %v5568
      %v5570 = vpop.f32.mrb[0].mxu0
      %5571 = vmatprep.mubr.f32.mxu0 %v5462
      %5572 = vmatmul.mubr.f32.gmra.mrb[0].mxu0 %v5432
      %v5573 = vpop.f32.mrb[0].mxu0
      %v5574 = vadd.f32 0.0, %v5573
      %v5575 = vpop.f32.mrb[0].mxu0
      %5576 = vmatprep.mubr.f32.mxu0 %v5465
      %5577 = vmatmul.mubr.f32.gmra.mrb[0].mxu0 %v5434
      %v5578 = vpop.f32.mrb[0].mxu0
      %v5579 = vadd.f32 0.0, %v5578
      %v5580 = vpop.f32.mrb[0].mxu0
      %5581 = vmatprep.mubr.f32.mxu0 %v5468
      %5582 = vmatmul.mubr.f32.gmra.mrb[0].mxu0 %v5436
      %v5583 = vpop.f32.mrb[0].mxu0
      %v5584 = vadd.f32 0.0, %v5583
      %v5585 = vpop.f32.mrb[0].mxu0
      %5586 = vmatprep.mubr.f32.mxu0 %v5471
      %5587 = vmatmul.mubr.f32.gmra.mrb[0].mxu0 %v5438
      %v5588 = vpop.f32.mrb[0].mxu0
      %v5589 = vadd.f32 0.0, %v5588
      %v5590 = vpop.f32.mrb[0].mxu0
      %5591 = vmatprep.mubr.f32.mxu0 %v5474
      %5592 = vmatmul.mubr.f32.gmra.mrb[0].mxu0 %v5440
      %v5593 = vpop.f32.mrb[0].mxu0
      %v5594 = vadd.f32 0.0, %v5593
      %v5595 = vpop.f32.mrb[0].mxu0
      %5596 = vmatprep.mubr.f32.mxu0 %v5477
      %5597 = vmatmul.mubr.f32.gmra.mrb[0].mxu0 %v5442
      %v5598 = vpop.f32.mrb[0].mxu0
      %v5599 = vadd.f32 0.0, %v5598
      %v5600 = vpop.f32.mrb[0].mxu0
      %5601 = vmatprep.mubr.f32.mxu0 %v5480
      %5602 = vmatmul.mubr.f32.gmra.mrb[0].mxu0 %v5444
      %v5603 = vpop.f32.mrb[0].mxu0
      %v5604 = vadd.f32 0.0, %v5603
      %v5605 = vpop.f32.mrb[0].mxu0
      %5606 = vdwg.mxu0
      %s5607 = scalar_lea.vmem %s8, 104
      %v5608 = vld [vmem:[%s5607] sm:$0xff]
      %v5609 = vld [vmem:[%s5607 + $0x8] sm:$0xff]
      %v5610 = vld [vmem:[%s5607 + $0x10] sm:$0xff]
      %v5611 = vld [vmem:[%s5607 + $0x18] sm:$0xff]
      %v5612 = vld [vmem:[%s5607 + $0x20] sm:$0xff]
      %v5613 = vld [vmem:[%s5607 + $0x28] sm:$0xff]
      %v5614 = vld [vmem:[%s5607 + $0x30] sm:$0xff]
      %v5615 = vld [vmem:[%s5607 + $0x38] sm:$0xff]
      %v5616 = vld [vmem:[%s5607 + $0x40] sm:$0xff]
      %v5617 = vld [vmem:[%s5607 + $0x48] sm:$0xff]
      %v5618 = vld [vmem:[%s5607 + $0x50] sm:$0xff]
      %v5619 = vld [vmem:[%s5607 + $0x58] sm:$0xff]
      %v5620 = vld [vmem:[%s5607 + $0x60] sm:$0xff]
      %vm5621 = vcmask 850944
      %v5623 = vsel %vm5621, %v5549, 0
      %v5626 = vsel %vm5621, %v5554, 0
      %v5629 = vsel %vm5621, %v5559, 0
      %v5632 = vsel %vm5621, %v5564, 0
      %v5635 = vsel %vm5621, %v5569, 0
      %v5638 = vsel %vm5621, %v5574, 0
      %v5641 = vsel %vm5621, %v5579, 0
      %v5644 = vsel %vm5621, %v5584, 0
      %v5647 = vsel %vm5621, %v5589, 0
      %v5650 = vsel %vm5621, %v5594, 0
      %v5653 = vsel %vm5621, %v5599, 0
      %v5656 = vsel %vm5621, %v5604, 0
      %5658 = vmatprep.subr.mxu0 0.0
      %5659 = vmatpush1.msra.mxu0 %v5608
      %5660 = vmatprep.subr.mxu0 0.0
      %5661 = vmatpush1.msra.mxu0 %v5609
      %5662 = vmatprep.subr.mxu0 0.0
      %5663 = vmatpush1.msra.mxu0 %v5610
      %5664 = vmatprep.subr.mxu0 0.0
      %5665 = vmatpush1.msra.mxu0 %v5611
      %5666 = vmatprep.subr.mxu0 0.0
      %5667 = vmatpush1.msra.mxu0 %v5612
      %5668 = vmatprep.subr.mxu0 0.0
      %5669 = vmatpush1.msra.mxu0 %v5613
      %5670 = vmatprep.subr.mxu0 0.0
      %5671 = vmatpush1.msra.mxu0 %v5614
      %5672 = vmatprep.subr.mxu0 0.0
      %5673 = vmatpush1.msra.mxu0 %v5615
      %5674 = vmatprep.subr.mxu0 0.0
      %5675 = vmatpush1.msra.mxu0 %v5616
      %5676 = vmatprep.subr.mxu0 0.0
      %5677 = vmatpush1.msra.mxu0 %v5617
      %5678 = vmatprep.subr.mxu0 0.0
      %5679 = vmatpush1.msra.mxu0 %v5618
      %5680 = vmatprep.subr.mxu0 0.0
      %5681 = vmatpush1.msra.mxu0 %v5619
      %5682 = vmatprep.subr.mxu0 0.0
      %5683 = vmatpush1.msra.mxu0 %v5620
      %5684 = vmatprep.subr.mxu0 0.0
      %5685 = vmatpush1.msra.mxu0 0.0
      %5686 = vmatprep.subr.mxu0 0.0
      %5687 = vmatpush1.msra.mxu0 0.0
      %5688 = vmatprep.subr.mxu0 0.0
      %5689 = vmatpush1.msra.mxu0 0.0
      %5690 = vmatprep.subr.mxu0 0.0
      %5691 = vmatpush1.msra.mxu0 0.0
      %5692 = vmatprep.subr.mxu0 0.0
      %5693 = vmatpush1.msra.mxu0 0.0
      %5694 = vmatprep.subr.mxu0 0.0
      %5695 = vmatpush1.msra.mxu0 0.0
      %5696 = vmatprep.subr.mxu0 0.0
      %5697 = vmatpush1.msra.mxu0 0.0
      %5698 = vmatprep.subr.mxu0 0.0
      %5699 = vmatpush1.msra.mxu0 0.0
      %5700 = vmatprep.subr.mxu0 0.0
      %5701 = vmatpush1.msra.mxu0 0.0
      %5702 = vmatprep.subr.mxu0 0.0
      %5703 = vmatpush1.msra.mxu0 0.0
      %5704 = vmatprep.subr.mxu0 0.0
      %5705 = vmatpush1.msra.mxu0 0.0
      %5706 = vmatprep.subr.mxu0 0.0
      %5707 = vmatpush1.msra.mxu0 0.0
      %5708 = vmatprep.subr.mxu0 0.0
      %5709 = vmatpush1.msra.mxu0 0.0
      %5710 = vmatprep.subr.mxu0 0.0
      %5711 = vmatpush1.msra.mxu0 0.0
      %5712 = vmatprep.subr.mxu0 0.0
      %5713 = vmatpush1.msra.mxu0 0.0
      %5714 = vmatprep.subr.mxu0 0.0
      %5715 = vmatpush1.msra.mxu0 0.0
      %5716 = vmatprep.subr.mxu0 0.0
      %5717 = vmatpush1.msra.mxu0 0.0
      %5718 = vmatprep.subr.mxu0 0.0
      %5719 = vmatpush1.msra.mxu0 0.0
      %5720 = vmatprep.subr.mxu0 0.0
      %5721 = vmatpush1.msra.mxu0 0.0
      %5722 = vmatprep.mubr.f32.mxu0 0.0
      %5723 = vmatmul.mubr.f32.gmra.mrb[0].mxu0 %v5623
      %v5724 = vpop.f32.mrb[0].mxu0
      %v5725 = vadd.f32 0.0, %v5724
      %v5726 = vpop.f32.mrb[0].mxu0
      %5727 = vmatprep.mubr.f32.mxu0 0.0
      %5728 = vmatmul.mubr.f32.gmra.mrb[0].mxu0 %v5626
      %v5729 = vpop.f32.mrb[0].mxu0
      %v5730 = vadd.f32 0.0, %v5729
      %v5731 = vpop.f32.mrb[0].mxu0
      %5732 = vmatprep.mubr.f32.mxu0 0.0
      %5733 = vmatmul.mubr.f32.gmra.mrb[0].mxu0 %v5629
      %v5734 = vpop.f32.mrb[0].mxu0
      %v5735 = vadd.f32 0.0, %v5734
      %v5736 = vpop.f32.mrb[0].mxu0
      %5737 = vmatprep.mubr.f32.mxu0 0.0
      %5738 = vmatmul.mubr.f32.gmra.mrb[0].mxu0 %v5632
      %v5739 = vpop.f32.mrb[0].mxu0
      %v5740 = vadd.f32 0.0, %v5739
      %v5741 = vpop.f32.mrb[0].mxu0
      %5742 = vmatprep.mubr.f32.mxu0 0.0
      %5743 = vmatmul.mubr.f32.gmra.mrb[0].mxu0 %v5635
      %v5744 = vpop.f32.mrb[0].mxu0
      %v5745 = vadd.f32 0.0, %v5744
      %v5746 = vpop.f32.mrb[0].mxu0
      %5747 = vmatprep.mubr.f32.mxu0 0.0
      %5748 = vmatmul.mubr.f32.gmra.mrb[0].mxu0 %v5638
      %v5749 = vpop.f32.mrb[0].mxu0
      %v5750 = vadd.f32 0.0, %v5749
      %v5751 = vpop.f32.mrb[0].mxu0
      %5752 = vmatprep.mubr.f32.mxu0 0.0
      %5753 = vmatmul.mubr.f32.gmra.mrb[0].mxu0 %v5641
      %v5754 = vpop.f32.mrb[0].mxu0
      %v5755 = vadd.f32 0.0, %v5754
      %v5756 = vpop.f32.mrb[0].mxu0
      %5757 = vmatprep.mubr.f32.mxu0 0.0
      %5758 = vmatmul.mubr.f32.gmra.mrb[0].mxu0 %v5644
      %v5759 = vpop.f32.mrb[0].mxu0
      %v5760 = vadd.f32 0.0, %v5759
      %v5761 = vpop.f32.mrb[0].mxu0
      %5762 = vmatprep.mubr.f32.mxu0 0.0
      %5763 = vmatmul.mubr.f32.gmra.mrb[0].mxu0 %v5647
      %v5764 = vpop.f32.mrb[0].mxu0
      %v5765 = vadd.f32 0.0, %v5764
      %v5766 = vpop.f32.mrb[0].mxu0
      %5767 = vmatprep.mubr.f32.mxu0 0.0
      %5768 = vmatmul.mubr.f32.gmra.mrb[0].mxu0 %v5650
      %v5769 = vpop.f32.mrb[0].mxu0
      %v5770 = vadd.f32 0.0, %v5769
      %v5771 = vpop.f32.mrb[0].mxu0
      %5772 = vmatprep.mubr.f32.mxu0 0.0
      %5773 = vmatmul.mubr.f32.gmra.mrb[0].mxu0 %v5653
      %v5774 = vpop.f32.mrb[0].mxu0
      %v5775 = vadd.f32 0.0, %v5774
      %v5776 = vpop.f32.mrb[0].mxu0
      %5777 = vmatprep.mubr.f32.mxu0 0.0
      %5778 = vmatmul.mubr.f32.gmra.mrb[0].mxu0 %v5656
      %v5779 = vpop.f32.mrb[0].mxu0
      %v5780 = vadd.f32 0.0, %v5779
      %v5781 = vpop.f32.mrb[0].mxu0
      %5782 = vdwg.mxu0
      %v5784 = vsel %vm5621, %v5350, 0
      %v5787 = vsel %vm5621, %v5355, 0
      %v5790 = vsel %vm5621, %v5360, 0
      %v5793 = vsel %vm5621, %v5365, 0
      %v5796 = vsel %vm5621, %v5370, 0
      %v5799 = vsel %vm5621, %v5375, 0
      %v5802 = vsel %vm5621, %v5380, 0
      %v5805 = vsel %vm5621, %v5385, 0
      %v5808 = vsel %vm5621, %v5390, 0
      %v5811 = vsel %vm5621, %v5395, 0
      %v5814 = vsel %vm5621, %v5400, 0
      %v5817 = vsel %vm5621, %v5405, 0
      %5819 = vmatprep.subr.mxu0 0.0
      %5820 = vmatpush1.msra.mxu0 %v5408
      %5821 = vmatprep.subr.mxu0 0.0
      %5822 = vmatpush1.msra.mxu0 %v5409
      %5823 = vmatprep.subr.mxu0 0.0
      %5824 = vmatpush1.msra.mxu0 %v5410
      %5825 = vmatprep.subr.mxu0 0.0
      %5826 = vmatpush1.msra.mxu0 %v5411
      %5827 = vmatprep.subr.mxu0 0.0
      %5828 = vmatpush1.msra.mxu0 %v5412
      %5829 = vmatprep.subr.mxu0 0.0
      %5830 = vmatpush1.msra.mxu0 %v5413
      %5831 = vmatprep.subr.mxu0 0.0
      %5832 = vmatpush1.msra.mxu0 %v5414
      %5833 = vmatprep.subr.mxu0 0.0
      %5834 = vmatpush1.msra.mxu0 %v5415
      %5835 = vmatprep.subr.mxu0 0.0
      %5836 = vmatpush1.msra.mxu0 %v5416
      %5837 = vmatprep.subr.mxu0 0.0
      %5838 = vmatpush1.msra.mxu0 %v5417
      %5839 = vmatprep.subr.mxu0 0.0
      %5840 = vmatpush1.msra.mxu0 %v5418
      %5841 = vmatprep.subr.mxu0 0.0
      %5842 = vmatpush1.msra.mxu0 %v5419
      %5843 = vmatprep.subr.mxu0 0.0
      %5844 = vmatpush1.msra.mxu0 %v5420
      %5845 = vmatprep.subr.mxu0 0.0
      %5846 = vmatpush1.msra.mxu0 0.0
      %5847 = vmatprep.subr.mxu0 0.0
      %5848 = vmatpush1.msra.mxu0 0.0
      %5849 = vmatprep.subr.mxu0 0.0
      %5850 = vmatpush1.msra.mxu0 0.0
      %5851 = vmatprep.subr.mxu0 0.0
      %5852 = vmatpush1.msra.mxu0 0.0
      %5853 = vmatprep.subr.mxu0 0.0
      %5854 = vmatpush1.msra.mxu0 0.0
      %5855 = vmatprep.subr.mxu0 0.0
      %5856 = vmatpush1.msra.mxu0 0.0
      %5857 = vmatprep.subr.mxu0 0.0
      %5858 = vmatpush1.msra.mxu0 0.0
      %5859 = vmatprep.subr.mxu0 0.0
      %5860 = vmatpush1.msra.mxu0 0.0
      %5861 = vmatprep.subr.mxu0 0.0
      %5862 = vmatpush1.msra.mxu0 0.0
      %5863 = vmatprep.subr.mxu0 0.0
      %5864 = vmatpush1.msra.mxu0 0.0
      %5865 = vmatprep.subr.mxu0 0.0
      %5866 = vmatpush1.msra.mxu0 0.0
      %5867 = vmatprep.subr.mxu0 0.0
      %5868 = vmatpush1.msra.mxu0 0.0
      %5869 = vmatprep.subr.mxu0 0.0
      %5870 = vmatpush1.msra.mxu0 0.0
      %5871 = vmatprep.subr.mxu0 0.0
      %5872 = vmatpush1.msra.mxu0 0.0
      %5873 = vmatprep.subr.mxu0 0.0
      %5874 = vmatpush1.msra.mxu0 0.0
      %5875 = vmatprep.subr.mxu0 0.0
      %5876 = vmatpush1.msra.mxu0 0.0
      %5877 = vmatprep.subr.mxu0 0.0
      %5878 = vmatpush1.msra.mxu0 0.0
      %5879 = vmatprep.subr.mxu0 0.0
      %5880 = vmatpush1.msra.mxu0 0.0
      %5881 = vmatprep.subr.mxu0 0.0
      %5882 = vmatpush1.msra.mxu0 0.0
      %5883 = vmatprep.mubr.f32.mxu0 0.0
      %5884 = vmatmul.mubr.f32.gmra.mrb[0].mxu0 %v5784
      %v5885 = vpop.f32.mrb[0].mxu0
      %v5886 = vadd.f32 %v5725, %v5885
      %v5887 = vpop.f32.mrb[0].mxu0
      %5888 = vmatprep.mubr.f32.mxu0 0.0
      %5889 = vmatmul.mubr.f32.gmra.mrb[0].mxu0 %v5787
      %v5890 = vpop.f32.mrb[0].mxu0
      %v5891 = vadd.f32 %v5730, %v5890
      %v5892 = vpop.f32.mrb[0].mxu0
      %5893 = vmatprep.mubr.f32.mxu0 0.0
      %5894 = vmatmul.mubr.f32.gmra.mrb[0].mxu0 %v5790
      %v5895 = vpop.f32.mrb[0].mxu0
      %v5896 = vadd.f32 %v5735, %v5895
      %v5897 = vpop.f32.mrb[0].mxu0
      %5898 = vmatprep.mubr.f32.mxu0 0.0
      %5899 = vmatmul.mubr.f32.gmra.mrb[0].mxu0 %v5793
      %v5900 = vpop.f32.mrb[0].mxu0
      %v5901 = vadd.f32 %v5740, %v5900
      %v5902 = vpop.f32.mrb[0].mxu0
      %5903 = vmatprep.mubr.f32.mxu0 0.0
      %5904 = vmatmul.mubr.f32.gmra.mrb[0].mxu0 %v5796
      %v5905 = vpop.f32.mrb[0].mxu0
      %v5906 = vadd.f32 %v5745, %v5905
      %v5907 = vpop.f32.mrb[0].mxu0
      %5908 = vmatprep.mubr.f32.mxu0 0.0
      %5909 = vmatmul.mubr.f32.gmra.mrb[0].mxu0 %v5799
      %v5910 = vpop.f32.mrb[0].mxu0
      %v5911 = vadd.f32 %v5750, %v5910
      %v5912 = vpop.f32.mrb[0].mxu0
      %5913 = vmatprep.mubr.f32.mxu0 0.0
      %5914 = vmatmul.mubr.f32.gmra.mrb[0].mxu0 %v5802
      %v5915 = vpop.f32.mrb[0].mxu0
      %v5916 = vadd.f32 %v5755, %v5915
      %v5917 = vpop.f32.mrb[0].mxu0
      %5918 = vmatprep.mubr.f32.mxu0 0.0
      %5919 = vmatmul.mubr.f32.gmra.mrb[0].mxu0 %v5805
      %v5920 = vpop.f32.mrb[0].mxu0
      %v5921 = vadd.f32 %v5760, %v5920
      %v5922 = vpop.f32.mrb[0].mxu0
      %5923 = vmatprep.mubr.f32.mxu0 0.0
      %5924 = vmatmul.mubr.f32.gmra.mrb[0].mxu0 %v5808
      %v5925 = vpop.f32.mrb[0].mxu0
      %v5926 = vadd.f32 %v5765, %v5925
      %v5927 = vpop.f32.mrb[0].mxu0
      %5928 = vmatprep.mubr.f32.mxu0 0.0
      %5929 = vmatmul.mubr.f32.gmra.mrb[0].mxu0 %v5811
      %v5930 = vpop.f32.mrb[0].mxu0
      %v5931 = vadd.f32 %v5770, %v5930
      %v5932 = vpop.f32.mrb[0].mxu0
      %5933 = vmatprep.mubr.f32.mxu0 0.0
      %5934 = vmatmul.mubr.f32.gmra.mrb[0].mxu0 %v5814
      %v5935 = vpop.f32.mrb[0].mxu0
      %v5936 = vadd.f32 %v5775, %v5935
      %v5937 = vpop.f32.mrb[0].mxu0
      %5938 = vmatprep.mubr.f32.mxu0 0.0
      %5939 = vmatmul.mubr.f32.gmra.mrb[0].mxu0 %v5817
      %v5940 = vpop.f32.mrb[0].mxu0
      %v5941 = vadd.f32 %v5780, %v5940
      %v5942 = vpop.f32.mrb[0].mxu0
      %5943 = vdwg.mxu0
      %s5944 = scalar_lea.vmem %s7, 384
      %v5945 = vld [vmem:[%s5944] sm:$0xff]
      %v5946 = vld [vmem:[%s5944 + $0x8] sm:$0xff]
      %v5947 = vld [vmem:[%s5944 + $0x10] sm:$0xff]
      %v5948 = vld [vmem:[%s5944 + $0x18] sm:$0xff]
      %v5949 = vld [vmem:[%s5944 + $0x20] sm:$0xff]
      %v5950 = vld [vmem:[%s5944 + $0x28] sm:$0xff]
      %v5951 = vld [vmem:[%s5944 + $0x30] sm:$0xff]
      %v5952 = vld [vmem:[%s5944 + $0x38] sm:$0xff]
      %v5953 = vld [vmem:[%s5944 + $0x40] sm:$0xff]
      %v5954 = vld [vmem:[%s5944 + $0x48] sm:$0xff]
      %v5955 = vld [vmem:[%s5944 + $0x50] sm:$0xff]
      %v5956 = vld [vmem:[%s5944 + $0x58] sm:$0xff]
      %v5957 = vld [vmem:[%s5944 + $0x60] sm:$0xff]
      %v5958 = vld [vmem:[%s5944 + $0x68] sm:$0xff]
      %v5959 = vld [vmem:[%s5944 + $0x70] sm:$0xff]
      %v5960 = vld [vmem:[%s5944 + $0x78] sm:$0xff]
      %v5961 = vld [vmem:[%s5944 + $0x80] sm:$0xff]
      %v5962 = vld [vmem:[%s5944 + $0x88] sm:$0xff]
      %v5963 = vld [vmem:[%s5944 + $0x90] sm:$0xff]
      %v5964 = vld [vmem:[%s5944 + $0x98] sm:$0xff]
      %v5965 = vld [vmem:[%s5944 + $0xa0] sm:$0xff]
      %v5966 = vld [vmem:[%s5944 + $0xa8] sm:$0xff]
      %v5967 = vld [vmem:[%s5944 + $0xb0] sm:$0xff]
      %v5968 = vld [vmem:[%s5944 + $0xb8] sm:$0xff]
      %v5970 = vsel %vm5246, %v5946, 0
      %v5973 = vsel %vm5246, %v5948, 0
      %v5976 = vsel %vm5246, %v5950, 0
      %v5979 = vsel %vm5246, %v5952, 0
      %v5982 = vsel %vm5246, %v5954, 0
      %v5985 = vsel %vm5246, %v5956, 0
      %v5988 = vsel %vm5246, %v5958, 0
      %v5991 = vsel %vm5246, %v5960, 0
      %v5994 = vsel %vm5246, %v5962, 0
      %v5997 = vsel %vm5246, %v5964, 0
      %v6000 = vsel %vm5246, %v5966, 0
      %v6003 = vsel %vm5246, %v5968, 0
      %6005 = vmatprep.subr.mxu0 0.0
      %6006 = vmatpush1.msra.mxu0 %v5196
      %6007 = vmatprep.subr.mxu0 0.0
      %6008 = vmatpush1.msra.mxu0 %v5197
      %6009 = vmatprep.subr.mxu0 0.0
      %6010 = vmatpush1.msra.mxu0 %v5198
      %6011 = vmatprep.subr.mxu0 0.0
      %6012 = vmatpush1.msra.mxu0 %v5199
      %6013 = vmatprep.subr.mxu0 0.0
      %6014 = vmatpush1.msra.mxu0 %v5200
      %6015 = vmatprep.subr.mxu0 0.0
      %6016 = vmatpush1.msra.mxu0 %v5201
      %6017 = vmatprep.subr.mxu0 0.0
      %6018 = vmatpush1.msra.mxu0 %v5202
      %6019 = vmatprep.subr.mxu0 0.0
      %6020 = vmatpush1.msra.mxu0 %v5203
      %6021 = vmatprep.subr.mxu0 0.0
      %6022 = vmatpush1.msra.mxu0 %v5204
      %6023 = vmatprep.subr.mxu0 0.0
      %6024 = vmatpush1.msra.mxu0 %v5205
      %6025 = vmatprep.subr.mxu0 0.0
      %6026 = vmatpush1.msra.mxu0 %v5206
      %6027 = vmatprep.subr.mxu0 0.0
      %6028 = vmatpush1.msra.mxu0 %v5207
      %6029 = vmatprep.subr.mxu0 0.0
      %6030 = vmatpush1.msra.mxu0 %v5208
      %6031 = vmatprep.subr.mxu0 0.0
      %6032 = vmatpush1.msra.mxu0 %v5209
      %6033 = vmatprep.subr.mxu0 0.0
      %6034 = vmatpush1.msra.mxu0 %v5210
      %6035 = vmatprep.subr.mxu0 0.0
      %6036 = vmatpush1.msra.mxu0 %v5211
      %6037 = vmatprep.subr.mxu0 0.0
      %6038 = vmatpush1.msra.mxu0 %v5212
      %6039 = vmatprep.subr.mxu0 0.0
      %6040 = vmatpush1.msra.mxu0 %v5213
      %6041 = vmatprep.subr.mxu0 0.0
      %6042 = vmatpush1.msra.mxu0 %v5214
      %6043 = vmatprep.subr.mxu0 0.0
      %6044 = vmatpush1.msra.mxu0 %v5215
      %6045 = vmatprep.subr.mxu0 0.0
      %6046 = vmatpush1.msra.mxu0 %v5216
      %6047 = vmatprep.subr.mxu0 0.0
      %6048 = vmatpush1.msra.mxu0 %v5217
      %6049 = vmatprep.subr.mxu0 0.0
      %6050 = vmatpush1.msra.mxu0 %v5218
      %6051 = vmatprep.subr.mxu0 0.0
      %6052 = vmatpush1.msra.mxu0 %v5219
      %6053 = vmatprep.subr.mxu0 0.0
      %6054 = vmatpush1.msra.mxu0 %v5220
      %6055 = vmatprep.subr.mxu0 0.0
      %6056 = vmatpush1.msra.mxu0 %v5221
      %6057 = vmatprep.subr.mxu0 0.0
      %6058 = vmatpush1.msra.mxu0 0.0
      %6059 = vmatprep.subr.mxu0 0.0
      %6060 = vmatpush1.msra.mxu0 0.0
      %6061 = vmatprep.subr.mxu0 0.0
      %6062 = vmatpush1.msra.mxu0 0.0
      %6063 = vmatprep.subr.mxu0 0.0
      %6064 = vmatpush1.msra.mxu0 0.0
      %6065 = vmatprep.subr.mxu0 0.0
      %6066 = vmatpush1.msra.mxu0 0.0
      %6067 = vmatprep.subr.mxu0 0.0
      %6068 = vmatpush1.msra.mxu0 0.0
      %6069 = vmatprep.mubr.f32.mxu0 %v5970
      %6070 = vmatmul.mubr.f32.gmra.mrb[0].mxu0 %v5945
      %v6071 = vpop.f32.mrb[0].mxu0
      %v6072 = vadd.f32 0.0, %v6071
      %v6073 = vpop.f32.mrb[0].mxu0
      %6074 = vmatprep.mubr.f32.mxu0 %v5973
      %6075 = vmatmul.mubr.f32.gmra.mrb[0].mxu0 %v5947
      %v6076 = vpop.f32.mrb[0].mxu0
      %v6077 = vadd.f32 0.0, %v6076
      %v6078 = vpop.f32.mrb[0].mxu0
      %6079 = vmatprep.mubr.f32.mxu0 %v5976
      %6080 = vmatmul.mubr.f32.gmra.mrb[0].mxu0 %v5949
      %v6081 = vpop.f32.mrb[0].mxu0
      %v6082 = vadd.f32 0.0, %v6081
      %v6083 = vpop.f32.mrb[0].mxu0
      %6084 = vmatprep.mubr.f32.mxu0 %v5979
      %6085 = vmatmul.mubr.f32.gmra.mrb[0].mxu0 %v5951
      %v6086 = vpop.f32.mrb[0].mxu0
      %v6087 = vadd.f32 0.0, %v6086
      %v6088 = vpop.f32.mrb[0].mxu0
      %6089 = vmatprep.mubr.f32.mxu0 %v5982
      %6090 = vmatmul.mubr.f32.gmra.mrb[0].mxu0 %v5953
      %v6091 = vpop.f32.mrb[0].mxu0
      %v6092 = vadd.f32 0.0, %v6091
      %v6093 = vpop.f32.mrb[0].mxu0
      %6094 = vmatprep.mubr.f32.mxu0 %v5985
      %6095 = vmatmul.mubr.f32.gmra.mrb[0].mxu0 %v5955
      %v6096 = vpop.f32.mrb[0].mxu0
      %v6097 = vadd.f32 0.0, %v6096
      %v6098 = vpop.f32.mrb[0].mxu0
      %6099 = vmatprep.mubr.f32.mxu0 %v5988
      %6100 = vmatmul.mubr.f32.gmra.mrb[0].mxu0 %v5957
      %v6101 = vpop.f32.mrb[0].mxu0
      %v6102 = vadd.f32 0.0, %v6101
      %v6103 = vpop.f32.mrb[0].mxu0
      %6104 = vmatprep.mubr.f32.mxu0 %v5991
      %6105 = vmatmul.mubr.f32.gmra.mrb[0].mxu0 %v5959
      %v6106 = vpop.f32.mrb[0].mxu0
      %v6107 = vadd.f32 0.0, %v6106
      %v6108 = vpop.f32.mrb[0].mxu0
      %6109 = vmatprep.mubr.f32.mxu0 %v5994
      %6110 = vmatmul.mubr.f32.gmra.mrb[0].mxu0 %v5961
      %v6111 = vpop.f32.mrb[0].mxu0
      %v6112 = vadd.f32 0.0, %v6111
      %v6113 = vpop.f32.mrb[0].mxu0
      %6114 = vmatprep.mubr.f32.mxu0 %v5997
      %6115 = vmatmul.mubr.f32.gmra.mrb[0].mxu0 %v5963
      %v6116 = vpop.f32.mrb[0].mxu0
      %v6117 = vadd.f32 0.0, %v6116
      %v6118 = vpop.f32.mrb[0].mxu0
      %6119 = vmatprep.mubr.f32.mxu0 %v6000
      %6120 = vmatmul.mubr.f32.gmra.mrb[0].mxu0 %v5965
      %v6121 = vpop.f32.mrb[0].mxu0
      %v6122 = vadd.f32 0.0, %v6121
      %v6123 = vpop.f32.mrb[0].mxu0
      %6124 = vmatprep.mubr.f32.mxu0 %v6003
      %6125 = vmatmul.mubr.f32.gmra.mrb[0].mxu0 %v5967
      %v6126 = vpop.f32.mrb[0].mxu0
      %v6127 = vadd.f32 0.0, %v6126
      %v6128 = vpop.f32.mrb[0].mxu0
      %6129 = vdwg.mxu0
      %s6130 = scalar_lea.vmem %s8, 208
      %v6131 = vld [vmem:[%s6130] sm:$0xff]
      %v6132 = vld [vmem:[%s6130 + $0x8] sm:$0xff]
      %v6133 = vld [vmem:[%s6130 + $0x10] sm:$0xff]
      %v6134 = vld [vmem:[%s6130 + $0x18] sm:$0xff]
      %v6135 = vld [vmem:[%s6130 + $0x20] sm:$0xff]
      %v6136 = vld [vmem:[%s6130 + $0x28] sm:$0xff]
      %v6137 = vld [vmem:[%s6130 + $0x30] sm:$0xff]
      %v6138 = vld [vmem:[%s6130 + $0x38] sm:$0xff]
      %v6139 = vld [vmem:[%s6130 + $0x40] sm:$0xff]
      %v6140 = vld [vmem:[%s6130 + $0x48] sm:$0xff]
      %v6141 = vld [vmem:[%s6130 + $0x50] sm:$0xff]
      %v6142 = vld [vmem:[%s6130 + $0x58] sm:$0xff]
      %v6143 = vld [vmem:[%s6130 + $0x60] sm:$0xff]
      %v6145 = vsel %vm5621, %v6072, 0
      %v6148 = vsel %vm5621, %v6077, 0
      %v6151 = vsel %vm5621, %v6082, 0
      %v6154 = vsel %vm5621, %v6087, 0
      %v6157 = vsel %vm5621, %v6092, 0
      %v6160 = vsel %vm5621, %v6097, 0
      %v6163 = vsel %vm5621, %v6102, 0
      %v6166 = vsel %vm5621, %v6107, 0
      %v6169 = vsel %vm5621, %v6112, 0
      %v6172 = vsel %vm5621, %v6117, 0
      %v6175 = vsel %vm5621, %v6122, 0
      %v6178 = vsel %vm5621, %v6127, 0
      %6180 = vmatprep.subr.mxu0 0.0
      %6181 = vmatpush1.msra.mxu0 %v6131
      %6182 = vmatprep.subr.mxu0 0.0
      %6183 = vmatpush1.msra.mxu0 %v6132
      %6184 = vmatprep.subr.mxu0 0.0
      %6185 = vmatpush1.msra.mxu0 %v6133
      %6186 = vmatprep.subr.mxu0 0.0
      %6187 = vmatpush1.msra.mxu0 %v6134
      %6188 = vmatprep.subr.mxu0 0.0
      %6189 = vmatpush1.msra.mxu0 %v6135
      %6190 = vmatprep.subr.mxu0 0.0
      %6191 = vmatpush1.msra.mxu0 %v6136
      %6192 = vmatprep.subr.mxu0 0.0
      %6193 = vmatpush1.msra.mxu0 %v6137
      %6194 = vmatprep.subr.mxu0 0.0
      %6195 = vmatpush1.msra.mxu0 %v6138
      %6196 = vmatprep.subr.mxu0 0.0
      %6197 = vmatpush1.msra.mxu0 %v6139
      %6198 = vmatprep.subr.mxu0 0.0
      %6199 = vmatpush1.msra.mxu0 %v6140
      %6200 = vmatprep.subr.mxu0 0.0
      %6201 = vmatpush1.msra.mxu0 %v6141
      %6202 = vmatprep.subr.mxu0 0.0
      %6203 = vmatpush1.msra.mxu0 %v6142
      %6204 = vmatprep.subr.mxu0 0.0
      %6205 = vmatpush1.msra.mxu0 %v6143
      %6206 = vmatprep.subr.mxu0 0.0
      %6207 = vmatpush1.msra.mxu0 0.0
      %6208 = vmatprep.subr.mxu0 0.0
      %6209 = vmatpush1.msra.mxu0 0.0
      %6210 = vmatprep.subr.mxu0 0.0
      %6211 = vmatpush1.msra.mxu0 0.0
      %6212 = vmatprep.subr.mxu0 0.0
      %6213 = vmatpush1.msra.mxu0 0.0
      %6214 = vmatprep.subr.mxu0 0.0
      %6215 = vmatpush1.msra.mxu0 0.0
      %6216 = vmatprep.subr.mxu0 0.0
      %6217 = vmatpush1.msra.mxu0 0.0
      %6218 = vmatprep.subr.mxu0 0.0
      %6219 = vmatpush1.msra.mxu0 0.0
      %6220 = vmatprep.subr.mxu0 0.0
      %6221 = vmatpush1.msra.mxu0 0.0
      %6222 = vmatprep.subr.mxu0 0.0
      %6223 = vmatpush1.msra.mxu0 0.0
      %6224 = vmatprep.subr.mxu0 0.0
      %6225 = vmatpush1.msra.mxu0 0.0
      %6226 = vmatprep.subr.mxu0 0.0
      %6227 = vmatpush1.msra.mxu0 0.0
      %6228 = vmatprep.subr.mxu0 0.0
      %6229 = vmatpush1.msra.mxu0 0.0
      %6230 = vmatprep.subr.mxu0 0.0
      %6231 = vmatpush1.msra.mxu0 0.0
      %6232 = vmatprep.subr.mxu0 0.0
      %6233 = vmatpush1.msra.mxu0 0.0
      %6234 = vmatprep.subr.mxu0 0.0
      %6235 = vmatpush1.msra.mxu0 0.0
      %6236 = vmatprep.subr.mxu0 0.0
      %6237 = vmatpush1.msra.mxu0 0.0
      %6238 = vmatprep.subr.mxu0 0.0
      %6239 = vmatpush1.msra.mxu0 0.0
      %6240 = vmatprep.subr.mxu0 0.0
      %6241 = vmatpush1.msra.mxu0 0.0
      %6242 = vmatprep.subr.mxu0 0.0
      %6243 = vmatpush1.msra.mxu0 0.0
      %6244 = vmatprep.mubr.f32.mxu0 0.0
      %6245 = vmatmul.mubr.f32.gmra.mrb[0].mxu0 %v6145
      %v6246 = vpop.f32.mrb[0].mxu0
      %v6247 = vadd.f32 0.0, %v6246
      %v6248 = vpop.f32.mrb[0].mxu0
      %6249 = vmatprep.mubr.f32.mxu0 0.0
      %6250 = vmatmul.mubr.f32.gmra.mrb[0].mxu0 %v6148
      %v6251 = vpop.f32.mrb[0].mxu0
      %v6252 = vadd.f32 0.0, %v6251
      %v6253 = vpop.f32.mrb[0].mxu0
      %6254 = vmatprep.mubr.f32.mxu0 0.0
      %6255 = vmatmul.mubr.f32.gmra.mrb[0].mxu0 %v6151
      %v6256 = vpop.f32.mrb[0].mxu0
      %v6257 = vadd.f32 0.0, %v6256
      %v6258 = vpop.f32.mrb[0].mxu0
      %6259 = vmatprep.mubr.f32.mxu0 0.0
      %6260 = vmatmul.mubr.f32.gmra.mrb[0].mxu0 %v6154
      %v6261 = vpop.f32.mrb[0].mxu0
      %v6262 = vadd.f32 0.0, %v6261
      %v6263 = vpop.f32.mrb[0].mxu0
      %6264 = vmatprep.mubr.f32.mxu0 0.0
      %6265 = vmatmul.mubr.f32.gmra.mrb[0].mxu0 %v6157
      %v6266 = vpop.f32.mrb[0].mxu0
      %v6267 = vadd.f32 0.0, %v6266
      %v6268 = vpop.f32.mrb[0].mxu0
      %6269 = vmatprep.mubr.f32.mxu0 0.0
      %6270 = vmatmul.mubr.f32.gmra.mrb[0].mxu0 %v6160
      %v6271 = vpop.f32.mrb[0].mxu0
      %v6272 = vadd.f32 0.0, %v6271
      %v6273 = vpop.f32.mrb[0].mxu0
      %6274 = vmatprep.mubr.f32.mxu0 0.0
      %6275 = vmatmul.mubr.f32.gmra.mrb[0].mxu0 %v6163
      %v6276 = vpop.f32.mrb[0].mxu0
      %v6277 = vadd.f32 0.0, %v6276
      %v6278 = vpop.f32.mrb[0].mxu0
      %6279 = vmatprep.mubr.f32.mxu0 0.0
      %6280 = vmatmul.mubr.f32.gmra.mrb[0].mxu0 %v6166
      %v6281 = vpop.f32.mrb[0].mxu0
      %v6282 = vadd.f32 0.0, %v6281
      %v6283 = vpop.f32.mrb[0].mxu0
      %6284 = vmatprep.mubr.f32.mxu0 0.0
      %6285 = vmatmul.mubr.f32.gmra.mrb[0].mxu0 %v6169
      %v6286 = vpop.f32.mrb[0].mxu0
      %v6287 = vadd.f32 0.0, %v6286
      %v6288 = vpop.f32.mrb[0].mxu0
      %6289 = vmatprep.mubr.f32.mxu0 0.0
      %6290 = vmatmul.mubr.f32.gmra.mrb[0].mxu0 %v6172
      %v6291 = vpop.f32.mrb[0].mxu0
      %v6292 = vadd.f32 0.0, %v6291
      %v6293 = vpop.f32.mrb[0].mxu0
      %6294 = vmatprep.mubr.f32.mxu0 0.0
      %6295 = vmatmul.mubr.f32.gmra.mrb[0].mxu0 %v6175
      %v6296 = vpop.f32.mrb[0].mxu0
      %v6297 = vadd.f32 0.0, %v6296
      %v6298 = vpop.f32.mrb[0].mxu0
      %6299 = vmatprep.mubr.f32.mxu0 0.0
      %6300 = vmatmul.mubr.f32.gmra.mrb[0].mxu0 %v6178
      %v6301 = vpop.f32.mrb[0].mxu0
      %v6302 = vadd.f32 0.0, %v6301
      %v6303 = vpop.f32.mrb[0].mxu0
      %6304 = vdwg.mxu0
      %v6305 = vadd.f32 %v5886, %v6247
      %v6306 = vadd.f32 %v5891, %v6252
      %v6307 = vadd.f32 %v5896, %v6257
      %v6308 = vadd.f32 %v5901, %v6262
      %v6309 = vadd.f32 %v5906, %v6267
      %v6310 = vadd.f32 %v5911, %v6272
      %v6311 = vadd.f32 %v5916, %v6277
      %v6312 = vadd.f32 %v5921, %v6282
      %v6313 = vadd.f32 %v5926, %v6287
      %v6314 = vadd.f32 %v5931, %v6292
      %v6315 = vadd.f32 %v5936, %v6297
      %v6316 = vadd.f32 %v5941, %v6302
      %v6317 = vld [vmem:[%s9] sm:$0x1]
      %v6319 = vlaneseq
      %v6320 = vshrl.u32 %v6319, 7
      %v6321 = vsub.s32 0, %v6320
      %v6322 = vrot.slane %v6317, %v6321
      %v6324 = vadd.f32 %v6305, %v6322
      %v6325 = vadd.f32 %v6306, %v6322
      %v6326 = vadd.f32 %v6307, %v6322
      %v6327 = vadd.f32 %v6308, %v6322
      %v6328 = vadd.f32 %v6309, %v6322
      %v6329 = vadd.f32 %v6310, %v6322
      %v6330 = vadd.f32 %v6311, %v6322
      %v6331 = vadd.f32 %v6312, %v6322
      %v6332 = vadd.f32 %v6313, %v6322
      %v6333 = vadd.f32 %v6314, %v6322
      %v6334 = vadd.f32 %v6315, %v6322
      %v6335 = vadd.f32 %v6316, %v6322
      %v6336 = vmax.f32 %v6324, 0.0
      %v6337 = vmax.f32 %v6325, 0.0
      %v6338 = vmax.f32 %v6326, 0.0
      %v6339 = vmax.f32 %v6327, 0.0
      %v6340 = vmax.f32 %v6328, 0.0
      %v6341 = vmax.f32 %v6329, 0.0
      %v6342 = vmax.f32 %v6330, 0.0
      %v6343 = vmax.f32 %v6331, 0.0
      %v6344 = vmax.f32 %v6332, 0.0
      %v6345 = vmax.f32 %v6333, 0.0
      %v6346 = vmax.f32 %v6334, 0.0
      %v6347 = vmax.f32 %v6335, 0.0
      %v6348 = vld [vmem:[%s10] sm:$0xff]
      %v6349 = vld [vmem:[%s10 + $0x8] sm:$0xff]
      %v6350 = vld [vmem:[%s10 + $0x10] sm:$0xff]
      %v6351 = vld [vmem:[%s10 + $0x18] sm:$0xff]
      %v6352 = vld [vmem:[%s10 + $0x20] sm:$0xff]
      %v6353 = vld [vmem:[%s10 + $0x28] sm:$0xff]
      %v6354 = vld [vmem:[%s10 + $0x30] sm:$0xff]
      %v6355 = vld [vmem:[%s10 + $0x38] sm:$0xff]
      %v6357 = vsel %vm1715, %v6348, 0
      %v6360 = vsel %vm1715, %v6349, 0
      %v6363 = vsel %vm1715, %v6350, 0
      %v6366 = vsel %vm1715, %v6351, 0
      %v6369 = vsel %vm1715, %v6352, 0
      %v6372 = vsel %vm1715, %v6353, 0
      %v6375 = vsel %vm1715, %v6354, 0
      %v6378 = vsel %vm1715, %v6355, 0
      %6380 = vmatprep.subr.mxu0 0.0
      %6381 = vmatpush1.msra.mxu0 %v6336
      %6382 = vmatprep.subr.mxu0 0.0
      %6383 = vmatpush1.msra.mxu0 %v6337
      %6384 = vmatprep.subr.mxu0 0.0
      %6385 = vmatpush1.msra.mxu0 %v6338
      %6386 = vmatprep.subr.mxu0 0.0
      %6387 = vmatpush1.msra.mxu0 %v6339
      %6388 = vmatprep.subr.mxu0 0.0
      %6389 = vmatpush1.msra.mxu0 %v6340
      %6390 = vmatprep.subr.mxu0 0.0
      %6391 = vmatpush1.msra.mxu0 %v6341
      %6392 = vmatprep.subr.mxu0 0.0
      %6393 = vmatpush1.msra.mxu0 %v6342
      %6394 = vmatprep.subr.mxu0 0.0
      %6395 = vmatpush1.msra.mxu0 %v6343
      %6396 = vmatprep.subr.mxu0 0.0
      %6397 = vmatpush1.msra.mxu0 %v6344
      %6398 = vmatprep.subr.mxu0 0.0
      %6399 = vmatpush1.msra.mxu0 %v6345
      %6400 = vmatprep.subr.mxu0 0.0
      %6401 = vmatpush1.msra.mxu0 %v6346
      %6402 = vmatprep.subr.mxu0 0.0
      %6403 = vmatpush1.msra.mxu0 %v6347
      %6404 = vmatprep.subr.mxu0 0.0
      %6405 = vmatpush1.msra.mxu0 0.0
      %6406 = vmatprep.subr.mxu0 0.0
      %6407 = vmatpush1.msra.mxu0 0.0
      %6408 = vmatprep.subr.mxu0 0.0
      %6409 = vmatpush1.msra.mxu0 0.0
      %6410 = vmatprep.subr.mxu0 0.0
      %6411 = vmatpush1.msra.mxu0 0.0
      %6412 = vmatprep.subr.mxu0 0.0
      %6413 = vmatpush1.msra.mxu0 0.0
      %6414 = vmatprep.subr.mxu0 0.0
      %6415 = vmatpush1.msra.mxu0 0.0
      %6416 = vmatprep.subr.mxu0 0.0
      %6417 = vmatpush1.msra.mxu0 0.0
      %6418 = vmatprep.subr.mxu0 0.0
      %6419 = vmatpush1.msra.mxu0 0.0
      %6420 = vmatprep.subr.mxu0 0.0
      %6421 = vmatpush1.msra.mxu0 0.0
      %6422 = vmatprep.subr.mxu0 0.0
      %6423 = vmatpush1.msra.mxu0 0.0
      %6424 = vmatprep.subr.mxu0 0.0
      %6425 = vmatpush1.msra.mxu0 0.0
      %6426 = vmatprep.subr.mxu0 0.0
      %6427 = vmatpush1.msra.mxu0 0.0
      %6428 = vmatprep.subr.mxu0 0.0
      %6429 = vmatpush1.msra.mxu0 0.0
      %6430 = vmatprep.subr.mxu0 0.0
      %6431 = vmatpush1.msra.mxu0 0.0
      %6432 = vmatprep.subr.mxu0 0.0
      %6433 = vmatpush1.msra.mxu0 0.0
      %6434 = vmatprep.subr.mxu0 0.0
      %6435 = vmatpush1.msra.mxu0 0.0
      %6436 = vmatprep.subr.mxu0 0.0
      %6437 = vmatpush1.msra.mxu0 0.0
      %6438 = vmatprep.subr.mxu0 0.0
      %6439 = vmatpush1.msra.mxu0 0.0
      %6440 = vmatprep.subr.mxu0 0.0
      %6441 = vmatpush1.msra.mxu0 0.0
      %6442 = vmatprep.subr.mxu0 0.0
      %6443 = vmatpush1.msra.mxu0 0.0
      %6444 = vmatprep.mubr.f32.mxu0 0.0
      %6445 = vmatmul.mubr.f32.gmra.mrb[0].mxu0 %v6357
      %v6446 = vpop.f32.mrb[0].mxu0
      %v6447 = vadd.f32 0.0, %v6446
      %v6448 = vpop.f32.mrb[0].mxu0
      %6449 = vmatprep.mubr.f32.mxu0 0.0
      %6450 = vmatmul.mubr.f32.gmra.mrb[0].mxu0 %v6360
      %v6451 = vpop.f32.mrb[0].mxu0
      %v6452 = vadd.f32 0.0, %v6451
      %v6453 = vpop.f32.mrb[0].mxu0
      %6454 = vmatprep.mubr.f32.mxu0 0.0
      %6455 = vmatmul.mubr.f32.gmra.mrb[0].mxu0 %v6363
      %v6456 = vpop.f32.mrb[0].mxu0
      %v6457 = vadd.f32 0.0, %v6456
      %v6458 = vpop.f32.mrb[0].mxu0
      %6459 = vmatprep.mubr.f32.mxu0 0.0
      %6460 = vmatmul.mubr.f32.gmra.mrb[0].mxu0 %v6366
      %v6461 = vpop.f32.mrb[0].mxu0
      %v6462 = vadd.f32 0.0, %v6461
      %v6463 = vpop.f32.mrb[0].mxu0
      %6464 = vmatprep.mubr.f32.mxu0 0.0
      %6465 = vmatmul.mubr.f32.gmra.mrb[0].mxu0 %v6369
      %v6466 = vpop.f32.mrb[0].mxu0
      %v6467 = vadd.f32 0.0, %v6466
      %v6468 = vpop.f32.mrb[0].mxu0
      %6469 = vmatprep.mubr.f32.mxu0 0.0
      %6470 = vmatmul.mubr.f32.gmra.mrb[0].mxu0 %v6372
      %v6471 = vpop.f32.mrb[0].mxu0
      %v6472 = vadd.f32 0.0, %v6471
      %v6473 = vpop.f32.mrb[0].mxu0
      %6474 = vmatprep.mubr.f32.mxu0 0.0
      %6475 = vmatmul.mubr.f32.gmra.mrb[0].mxu0 %v6375
      %v6476 = vpop.f32.mrb[0].mxu0
      %v6477 = vadd.f32 0.0, %v6476
      %v6478 = vpop.f32.mrb[0].mxu0
      %6479 = vmatprep.mubr.f32.mxu0 0.0
      %6480 = vmatmul.mubr.f32.gmra.mrb[0].mxu0 %v6378
      %v6481 = vpop.f32.mrb[0].mxu0
      %v6482 = vadd.f32 0.0, %v6481
      %v6483 = vpop.f32.mrb[0].mxu0
      %6484 = vdwg.mxu0
      %v6485 = vld [vmem:[%s11] sm:$0xff]
      %v6486 = vld [vmem:[%s11 + $0x8] sm:$0xff]
      %v6487 = vld [vmem:[%s11 + $0x10] sm:$0xff]
      %v6488 = vld [vmem:[%s11 + $0x18] sm:$0xff]
      %v6489 = vld [vmem:[%s11 + $0x20] sm:$0xff]
      %v6490 = vld [vmem:[%s11 + $0x28] sm:$0xff]
      %v6491 = vld [vmem:[%s11 + $0x30] sm:$0xff]
      %v6492 = vld [vmem:[%s11 + $0x38] sm:$0xff]
      %v6493 = vld [vmem:[%s11 + $0x40] sm:$0xff]
      %v6494 = vld [vmem:[%s11 + $0x48] sm:$0xff]
      %v6495 = vld [vmem:[%s11 + $0x50] sm:$0xff]
      %v6496 = vld [vmem:[%s11 + $0x58] sm:$0xff]
      %s6497 = scalar_lea.vmem %s10, 64
      %v6498 = vld [vmem:[%s6497] sm:$0xff]
      %v6499 = vld [vmem:[%s6497 + $0x8] sm:$0xff]
      %v6500 = vld [vmem:[%s6497 + $0x10] sm:$0xff]
      %v6501 = vld [vmem:[%s6497 + $0x18] sm:$0xff]
      %v6502 = vld [vmem:[%s6497 + $0x20] sm:$0xff]
      %v6503 = vld [vmem:[%s6497 + $0x28] sm:$0xff]
      %v6504 = vld [vmem:[%s6497 + $0x30] sm:$0xff]
      %v6505 = vld [vmem:[%s6497 + $0x38] sm:$0xff]
      %v6507 = vsel %vm1715, %v6498, 0
      %v6510 = vsel %vm1715, %v6499, 0
      %v6513 = vsel %vm1715, %v6500, 0
      %v6516 = vsel %vm1715, %v6501, 0
      %v6519 = vsel %vm1715, %v6502, 0
      %v6522 = vsel %vm1715, %v6503, 0
      %v6525 = vsel %vm1715, %v6504, 0
      %v6528 = vsel %vm1715, %v6505, 0
      %6530 = vmatprep.subr.mxu0 0.0
      %6531 = vmatpush1.msra.mxu0 %v6336
      %6532 = vmatprep.subr.mxu0 0.0
      %6533 = vmatpush1.msra.mxu0 %v6337
      %6534 = vmatprep.subr.mxu0 0.0
      %6535 = vmatpush1.msra.mxu0 %v6338
      %6536 = vmatprep.subr.mxu0 0.0
      %6537 = vmatpush1.msra.mxu0 %v6339
      %6538 = vmatprep.subr.mxu0 0.0
      %6539 = vmatpush1.msra.mxu0 %v6340
      %6540 = vmatprep.subr.mxu0 0.0
      %6541 = vmatpush1.msra.mxu0 %v6341
      %6542 = vmatprep.subr.mxu0 0.0
      %6543 = vmatpush1.msra.mxu0 %v6342
      %6544 = vmatprep.subr.mxu0 0.0
      %6545 = vmatpush1.msra.mxu0 %v6343
      %6546 = vmatprep.subr.mxu0 0.0
      %6547 = vmatpush1.msra.mxu0 %v6344
      %6548 = vmatprep.subr.mxu0 0.0
      %6549 = vmatpush1.msra.mxu0 %v6345
      %6550 = vmatprep.subr.mxu0 0.0
      %6551 = vmatpush1.msra.mxu0 %v6346
      %6552 = vmatprep.subr.mxu0 0.0
      %6553 = vmatpush1.msra.mxu0 %v6347
      %6554 = vmatprep.subr.mxu0 0.0
      %6555 = vmatpush1.msra.mxu0 0.0
      %6556 = vmatprep.subr.mxu0 0.0
      %6557 = vmatpush1.msra.mxu0 0.0
      %6558 = vmatprep.subr.mxu0 0.0
      %6559 = vmatpush1.msra.mxu0 0.0
      %6560 = vmatprep.subr.mxu0 0.0
      %6561 = vmatpush1.msra.mxu0 0.0
      %6562 = vmatprep.subr.mxu0 0.0
      %6563 = vmatpush1.msra.mxu0 0.0
      %6564 = vmatprep.subr.mxu0 0.0
      %6565 = vmatpush1.msra.mxu0 0.0
      %6566 = vmatprep.subr.mxu0 0.0
      %6567 = vmatpush1.msra.mxu0 0.0
      %6568 = vmatprep.subr.mxu0 0.0
      %6569 = vmatpush1.msra.mxu0 0.0
      %6570 = vmatprep.subr.mxu0 0.0
      %6571 = vmatpush1.msra.mxu0 0.0
      %6572 = vmatprep.subr.mxu0 0.0
      %6573 = vmatpush1.msra.mxu0 0.0
      %6574 = vmatprep.subr.mxu0 0.0
      %6575 = vmatpush1.msra.mxu0 0.0
      %6576 = vmatprep.subr.mxu0 0.0
      %6577 = vmatpush1.msra.mxu0 0.0
      %6578 = vmatprep.subr.mxu0 0.0
      %6579 = vmatpush1.msra.mxu0 0.0
      %6580 = vmatprep.subr.mxu0 0.0
      %6581 = vmatpush1.msra.mxu0 0.0
      %6582 = vmatprep.subr.mxu0 0.0
      %6583 = vmatpush1.msra.mxu0 0.0
      %6584 = vmatprep.subr.mxu0 0.0
      %6585 = vmatpush1.msra.mxu0 0.0
      %6586 = vmatprep.subr.mxu0 0.0
      %6587 = vmatpush1.msra.mxu0 0.0
      %6588 = vmatprep.subr.mxu0 0.0
      %6589 = vmatpush1.msra.mxu0 0.0
      %6590 = vmatprep.subr.mxu0 0.0
      %6591 = vmatpush1.msra.mxu0 0.0
      %6592 = vmatprep.subr.mxu0 0.0
      %6593 = vmatpush1.msra.mxu0 0.0
      %6594 = vmatprep.mubr.f32.mxu0 0.0
      %6595 = vmatmul.mubr.f32.gmra.mrb[0].mxu0 %v6507
      %v6596 = vpop.f32.mrb[0].mxu0
      %v6597 = vadd.f32 0.0, %v6596
      %v6598 = vpop.f32.mrb[0].mxu0
      %6599 = vmatprep.mubr.f32.mxu0 0.0
      %6600 = vmatmul.mubr.f32.gmra.mrb[0].mxu0 %v6510
      %v6601 = vpop.f32.mrb[0].mxu0
      %v6602 = vadd.f32 0.0, %v6601
      %v6603 = vpop.f32.mrb[0].mxu0
      %6604 = vmatprep.mubr.f32.mxu0 0.0
      %6605 = vmatmul.mubr.f32.gmra.mrb[0].mxu0 %v6513
      %v6606 = vpop.f32.mrb[0].mxu0
      %v6607 = vadd.f32 0.0, %v6606
      %v6608 = vpop.f32.mrb[0].mxu0
      %6609 = vmatprep.mubr.f32.mxu0 0.0
      %6610 = vmatmul.mubr.f32.gmra.mrb[0].mxu0 %v6516
      %v6611 = vpop.f32.mrb[0].mxu0
      %v6612 = vadd.f32 0.0, %v6611
      %v6613 = vpop.f32.mrb[0].mxu0
      %6614 = vmatprep.mubr.f32.mxu0 0.0
      %6615 = vmatmul.mubr.f32.gmra.mrb[0].mxu0 %v6519
      %v6616 = vpop.f32.mrb[0].mxu0
      %v6617 = vadd.f32 0.0, %v6616
      %v6618 = vpop.f32.mrb[0].mxu0
      %6619 = vmatprep.mubr.f32.mxu0 0.0
      %6620 = vmatmul.mubr.f32.gmra.mrb[0].mxu0 %v6522
      %v6621 = vpop.f32.mrb[0].mxu0
      %v6622 = vadd.f32 0.0, %v6621
      %v6623 = vpop.f32.mrb[0].mxu0
      %6624 = vmatprep.mubr.f32.mxu0 0.0
      %6625 = vmatmul.mubr.f32.gmra.mrb[0].mxu0 %v6525
      %v6626 = vpop.f32.mrb[0].mxu0
      %v6627 = vadd.f32 0.0, %v6626
      %v6628 = vpop.f32.mrb[0].mxu0
      %6629 = vmatprep.mubr.f32.mxu0 0.0
      %6630 = vmatmul.mubr.f32.gmra.mrb[0].mxu0 %v6528
      %v6631 = vpop.f32.mrb[0].mxu0
      %v6632 = vadd.f32 0.0, %v6631
      %v6633 = vpop.f32.mrb[0].mxu0
      %6634 = vdwg.mxu0
      %s6635 = scalar_lea.vmem %s11, 96
      %v6636 = vld [vmem:[%s6635] sm:$0xff]
      %v6637 = vld [vmem:[%s6635 + $0x8] sm:$0xff]
      %v6638 = vld [vmem:[%s6635 + $0x10] sm:$0xff]
      %v6639 = vld [vmem:[%s6635 + $0x18] sm:$0xff]
      %v6640 = vld [vmem:[%s6635 + $0x20] sm:$0xff]
      %v6641 = vld [vmem:[%s6635 + $0x28] sm:$0xff]
      %v6642 = vld [vmem:[%s6635 + $0x30] sm:$0xff]
      %v6643 = vld [vmem:[%s6635 + $0x38] sm:$0xff]
      %v6644 = vld [vmem:[%s6635 + $0x40] sm:$0xff]
      %v6645 = vld [vmem:[%s6635 + $0x48] sm:$0xff]
      %v6646 = vld [vmem:[%s6635 + $0x50] sm:$0xff]
      %v6647 = vld [vmem:[%s6635 + $0x58] sm:$0xff]
      %v6649 = vsel %vm1715, %v6597, 0
      %v6652 = vsel %vm1715, %v6602, 0
      %v6655 = vsel %vm1715, %v6607, 0
      %v6658 = vsel %vm1715, %v6612, 0
      %v6661 = vsel %vm1715, %v6617, 0
      %v6664 = vsel %vm1715, %v6622, 0
      %v6667 = vsel %vm1715, %v6627, 0
      %v6670 = vsel %vm1715, %v6632, 0
      %6672 = vmatprep.subr.mxu0 0.0
      %6673 = vmatpush1.msra.mxu0 %v6636
      %6674 = vmatprep.subr.mxu0 0.0
      %6675 = vmatpush1.msra.mxu0 %v6637
      %6676 = vmatprep.subr.mxu0 0.0
      %6677 = vmatpush1.msra.mxu0 %v6638
      %6678 = vmatprep.subr.mxu0 0.0
      %6679 = vmatpush1.msra.mxu0 %v6639
      %6680 = vmatprep.subr.mxu0 0.0
      %6681 = vmatpush1.msra.mxu0 %v6640
      %6682 = vmatprep.subr.mxu0 0.0
      %6683 = vmatpush1.msra.mxu0 %v6641
      %6684 = vmatprep.subr.mxu0 0.0
      %6685 = vmatpush1.msra.mxu0 %v6642
      %6686 = vmatprep.subr.mxu0 0.0
      %6687 = vmatpush1.msra.mxu0 %v6643
      %6688 = vmatprep.subr.mxu0 0.0
      %6689 = vmatpush1.msra.mxu0 %v6644
      %6690 = vmatprep.subr.mxu0 0.0
      %6691 = vmatpush1.msra.mxu0 %v6645
      %6692 = vmatprep.subr.mxu0 0.0
      %6693 = vmatpush1.msra.mxu0 %v6646
      %6694 = vmatprep.subr.mxu0 0.0
      %6695 = vmatpush1.msra.mxu0 %v6647
      %6696 = vmatprep.subr.mxu0 0.0
      %6697 = vmatpush1.msra.mxu0 0.0
      %6698 = vmatprep.subr.mxu0 0.0
      %6699 = vmatpush1.msra.mxu0 0.0
      %6700 = vmatprep.subr.mxu0 0.0
      %6701 = vmatpush1.msra.mxu0 0.0
      %6702 = vmatprep.subr.mxu0 0.0
      %6703 = vmatpush1.msra.mxu0 0.0
      %6704 = vmatprep.subr.mxu0 0.0
      %6705 = vmatpush1.msra.mxu0 0.0
      %6706 = vmatprep.subr.mxu0 0.0
      %6707 = vmatpush1.msra.mxu0 0.0
      %6708 = vmatprep.subr.mxu0 0.0
      %6709 = vmatpush1.msra.mxu0 0.0
      %6710 = vmatprep.subr.mxu0 0.0
      %6711 = vmatpush1.msra.mxu0 0.0
      %6712 = vmatprep.subr.mxu0 0.0
      %6713 = vmatpush1.msra.mxu0 0.0
      %6714 = vmatprep.subr.mxu0 0.0
      %6715 = vmatpush1.msra.mxu0 0.0
      %6716 = vmatprep.subr.mxu0 0.0
      %6717 = vmatpush1.msra.mxu0 0.0
      %6718 = vmatprep.subr.mxu0 0.0
      %6719 = vmatpush1.msra.mxu0 0.0
      %6720 = vmatprep.subr.mxu0 0.0
      %6721 = vmatpush1.msra.mxu0 0.0
      %6722 = vmatprep.subr.mxu0 0.0
      %6723 = vmatpush1.msra.mxu0 0.0
      %6724 = vmatprep.subr.mxu0 0.0
      %6725 = vmatpush1.msra.mxu0 0.0
      %6726 = vmatprep.subr.mxu0 0.0
      %6727 = vmatpush1.msra.mxu0 0.0
      %6728 = vmatprep.subr.mxu0 0.0
      %6729 = vmatpush1.msra.mxu0 0.0
      %6730 = vmatprep.subr.mxu0 0.0
      %6731 = vmatpush1.msra.mxu0 0.0
      %6732 = vmatprep.subr.mxu0 0.0
      %6733 = vmatpush1.msra.mxu0 0.0
      %6734 = vmatprep.subr.mxu0 0.0
      %6735 = vmatpush1.msra.mxu0 0.0
      %6736 = vmatprep.mubr.f32.mxu0 0.0
      %6737 = vmatmul.mubr.f32.gmra.mrb[0].mxu0 %v6649
      %v6738 = vpop.f32.mrb[0].mxu0
      %v6739 = vadd.f32 0.0, %v6738
      %v6740 = vpop.f32.mrb[0].mxu0
      %6741 = vmatprep.mubr.f32.mxu0 0.0
      %6742 = vmatmul.mubr.f32.gmra.mrb[0].mxu0 %v6652
      %v6743 = vpop.f32.mrb[0].mxu0
      %v6744 = vadd.f32 0.0, %v6743
      %v6745 = vpop.f32.mrb[0].mxu0
      %6746 = vmatprep.mubr.f32.mxu0 0.0
      %6747 = vmatmul.mubr.f32.gmra.mrb[0].mxu0 %v6655
      %v6748 = vpop.f32.mrb[0].mxu0
      %v6749 = vadd.f32 0.0, %v6748
      %v6750 = vpop.f32.mrb[0].mxu0
      %6751 = vmatprep.mubr.f32.mxu0 0.0
      %6752 = vmatmul.mubr.f32.gmra.mrb[0].mxu0 %v6658
      %v6753 = vpop.f32.mrb[0].mxu0
      %v6754 = vadd.f32 0.0, %v6753
      %v6755 = vpop.f32.mrb[0].mxu0
      %6756 = vmatprep.mubr.f32.mxu0 0.0
      %6757 = vmatmul.mubr.f32.gmra.mrb[0].mxu0 %v6661
      %v6758 = vpop.f32.mrb[0].mxu0
      %v6759 = vadd.f32 0.0, %v6758
      %v6760 = vpop.f32.mrb[0].mxu0
      %6761 = vmatprep.mubr.f32.mxu0 0.0
      %6762 = vmatmul.mubr.f32.gmra.mrb[0].mxu0 %v6664
      %v6763 = vpop.f32.mrb[0].mxu0
      %v6764 = vadd.f32 0.0, %v6763
      %v6765 = vpop.f32.mrb[0].mxu0
      %6766 = vmatprep.mubr.f32.mxu0 0.0
      %6767 = vmatmul.mubr.f32.gmra.mrb[0].mxu0 %v6667
      %v6768 = vpop.f32.mrb[0].mxu0
      %v6769 = vadd.f32 0.0, %v6768
      %v6770 = vpop.f32.mrb[0].mxu0
      %6771 = vmatprep.mubr.f32.mxu0 0.0
      %6772 = vmatmul.mubr.f32.gmra.mrb[0].mxu0 %v6670
      %v6773 = vpop.f32.mrb[0].mxu0
      %v6774 = vadd.f32 0.0, %v6773
      %v6775 = vpop.f32.mrb[0].mxu0
      %6776 = vdwg.mxu0
      %v6778 = vsel %vm1715, %v6447, 0
      %v6781 = vsel %vm1715, %v6452, 0
      %v6784 = vsel %vm1715, %v6457, 0
      %v6787 = vsel %vm1715, %v6462, 0
      %v6790 = vsel %vm1715, %v6467, 0
      %v6793 = vsel %vm1715, %v6472, 0
      %v6796 = vsel %vm1715, %v6477, 0
      %v6799 = vsel %vm1715, %v6482, 0
      %6801 = vmatprep.subr.mxu0 0.0
      %6802 = vmatpush1.msra.mxu0 %v6485
      %6803 = vmatprep.subr.mxu0 0.0
      %6804 = vmatpush1.msra.mxu0 %v6486
      %6805 = vmatprep.subr.mxu0 0.0
      %6806 = vmatpush1.msra.mxu0 %v6487
      %6807 = vmatprep.subr.mxu0 0.0
      %6808 = vmatpush1.msra.mxu0 %v6488
      %6809 = vmatprep.subr.mxu0 0.0
      %6810 = vmatpush1.msra.mxu0 %v6489
      %6811 = vmatprep.subr.mxu0 0.0
      %6812 = vmatpush1.msra.mxu0 %v6490
      %6813 = vmatprep.subr.mxu0 0.0
      %6814 = vmatpush1.msra.mxu0 %v6491
      %6815 = vmatprep.subr.mxu0 0.0
      %6816 = vmatpush1.msra.mxu0 %v6492
      %6817 = vmatprep.subr.mxu0 0.0
      %6818 = vmatpush1.msra.mxu0 %v6493
      %6819 = vmatprep.subr.mxu0 0.0
      %6820 = vmatpush1.msra.mxu0 %v6494
      %6821 = vmatprep.subr.mxu0 0.0
      %6822 = vmatpush1.msra.mxu0 %v6495
      %6823 = vmatprep.subr.mxu0 0.0
      %6824 = vmatpush1.msra.mxu0 %v6496
      %6825 = vmatprep.subr.mxu0 0.0
      %6826 = vmatpush1.msra.mxu0 0.0
      %6827 = vmatprep.subr.mxu0 0.0
      %6828 = vmatpush1.msra.mxu0 0.0
      %6829 = vmatprep.subr.mxu0 0.0
      %6830 = vmatpush1.msra.mxu0 0.0
      %6831 = vmatprep.subr.mxu0 0.0
      %6832 = vmatpush1.msra.mxu0 0.0
      %6833 = vmatprep.subr.mxu0 0.0
      %6834 = vmatpush1.msra.mxu0 0.0
      %6835 = vmatprep.subr.mxu0 0.0
      %6836 = vmatpush1.msra.mxu0 0.0
      %6837 = vmatprep.subr.mxu0 0.0
      %6838 = vmatpush1.msra.mxu0 0.0
      %6839 = vmatprep.subr.mxu0 0.0
      %6840 = vmatpush1.msra.mxu0 0.0
      %6841 = vmatprep.subr.mxu0 0.0
      %6842 = vmatpush1.msra.mxu0 0.0
      %6843 = vmatprep.subr.mxu0 0.0
      %6844 = vmatpush1.msra.mxu0 0.0
      %6845 = vmatprep.subr.mxu0 0.0
      %6846 = vmatpush1.msra.mxu0 0.0
      %6847 = vmatprep.subr.mxu0 0.0
      %6848 = vmatpush1.msra.mxu0 0.0
      %6849 = vmatprep.subr.mxu0 0.0
      %6850 = vmatpush1.msra.mxu0 0.0
      %6851 = vmatprep.subr.mxu0 0.0
      %6852 = vmatpush1.msra.mxu0 0.0
      %6853 = vmatprep.subr.mxu0 0.0
      %6854 = vmatpush1.msra.mxu0 0.0
      %6855 = vmatprep.subr.mxu0 0.0
      %6856 = vmatpush1.msra.mxu0 0.0
      %6857 = vmatprep.subr.mxu0 0.0
      %6858 = vmatpush1.msra.mxu0 0.0
      %6859 = vmatprep.subr.mxu0 0.0
      %6860 = vmatpush1.msra.mxu0 0.0
      %6861 = vmatprep.subr.mxu0 0.0
      %6862 = vmatpush1.msra.mxu0 0.0
      %6863 = vmatprep.subr.mxu0 0.0
      %6864 = vmatpush1.msra.mxu0 0.0
      %6865 = vmatprep.mubr.f32.mxu0 0.0
      %6866 = vmatmul.mubr.f32.gmra.mrb[0].mxu0 %v6778
      %v6867 = vpop.f32.mrb[0].mxu0
      %v6868 = vadd.f32 %v6739, %v6867
      %v6869 = vpop.f32.mrb[0].mxu0
      %6870 = vmatprep.mubr.f32.mxu0 0.0
      %6871 = vmatmul.mubr.f32.gmra.mrb[0].mxu0 %v6781
      %v6872 = vpop.f32.mrb[0].mxu0
      %v6873 = vadd.f32 %v6744, %v6872
      %v6874 = vpop.f32.mrb[0].mxu0
      %6875 = vmatprep.mubr.f32.mxu0 0.0
      %6876 = vmatmul.mubr.f32.gmra.mrb[0].mxu0 %v6784
      %v6877 = vpop.f32.mrb[0].mxu0
      %v6878 = vadd.f32 %v6749, %v6877
      %v6879 = vpop.f32.mrb[0].mxu0
      %6880 = vmatprep.mubr.f32.mxu0 0.0
      %6881 = vmatmul.mubr.f32.gmra.mrb[0].mxu0 %v6787
      %v6882 = vpop.f32.mrb[0].mxu0
      %v6883 = vadd.f32 %v6754, %v6882
      %v6884 = vpop.f32.mrb[0].mxu0
      %6885 = vmatprep.mubr.f32.mxu0 0.0
      %6886 = vmatmul.mubr.f32.gmra.mrb[0].mxu0 %v6790
      %v6887 = vpop.f32.mrb[0].mxu0
      %v6888 = vadd.f32 %v6759, %v6887
      %v6889 = vpop.f32.mrb[0].mxu0
      %6890 = vmatprep.mubr.f32.mxu0 0.0
      %6891 = vmatmul.mubr.f32.gmra.mrb[0].mxu0 %v6793
      %v6892 = vpop.f32.mrb[0].mxu0
      %v6893 = vadd.f32 %v6764, %v6892
      %v6894 = vpop.f32.mrb[0].mxu0
      %6895 = vmatprep.mubr.f32.mxu0 0.0
      %6896 = vmatmul.mubr.f32.gmra.mrb[0].mxu0 %v6796
      %v6897 = vpop.f32.mrb[0].mxu0
      %v6898 = vadd.f32 %v6769, %v6897
      %v6899 = vpop.f32.mrb[0].mxu0
      %6900 = vmatprep.mubr.f32.mxu0 0.0
      %6901 = vmatmul.mubr.f32.gmra.mrb[0].mxu0 %v6799
      %v6902 = vpop.f32.mrb[0].mxu0
      %v6903 = vadd.f32 %v6774, %v6902
      %v6904 = vpop.f32.mrb[0].mxu0
      %6905 = vdwg.mxu0
      %s6906 = scalar_lea.vmem %s10, 128
      %v6907 = vld [vmem:[%s6906] sm:$0xff]
      %v6908 = vld [vmem:[%s6906 + $0x8] sm:$0xff]
      %v6909 = vld [vmem:[%s6906 + $0x10] sm:$0xff]
      %v6910 = vld [vmem:[%s6906 + $0x18] sm:$0xff]
      %v6911 = vld [vmem:[%s6906 + $0x20] sm:$0xff]
      %v6912 = vld [vmem:[%s6906 + $0x28] sm:$0xff]
      %v6913 = vld [vmem:[%s6906 + $0x30] sm:$0xff]
      %v6914 = vld [vmem:[%s6906 + $0x38] sm:$0xff]
      %v6916 = vsel %vm1715, %v6907, 0
      %v6919 = vsel %vm1715, %v6908, 0
      %v6922 = vsel %vm1715, %v6909, 0
      %v6925 = vsel %vm1715, %v6910, 0
      %v6928 = vsel %vm1715, %v6911, 0
      %v6931 = vsel %vm1715, %v6912, 0
      %v6934 = vsel %vm1715, %v6913, 0
      %v6937 = vsel %vm1715, %v6914, 0
      %6939 = vmatprep.subr.mxu0 0.0
      %6940 = vmatpush1.msra.mxu0 %v6336
      %6941 = vmatprep.subr.mxu0 0.0
      %6942 = vmatpush1.msra.mxu0 %v6337
      %6943 = vmatprep.subr.mxu0 0.0
      %6944 = vmatpush1.msra.mxu0 %v6338
      %6945 = vmatprep.subr.mxu0 0.0
      %6946 = vmatpush1.msra.mxu0 %v6339
      %6947 = vmatprep.subr.mxu0 0.0
      %6948 = vmatpush1.msra.mxu0 %v6340
      %6949 = vmatprep.subr.mxu0 0.0
      %6950 = vmatpush1.msra.mxu0 %v6341
      %6951 = vmatprep.subr.mxu0 0.0
      %6952 = vmatpush1.msra.mxu0 %v6342
      %6953 = vmatprep.subr.mxu0 0.0
      %6954 = vmatpush1.msra.mxu0 %v6343
      %6955 = vmatprep.subr.mxu0 0.0
      %6956 = vmatpush1.msra.mxu0 %v6344
      %6957 = vmatprep.subr.mxu0 0.0
      %6958 = vmatpush1.msra.mxu0 %v6345
      %6959 = vmatprep.subr.mxu0 0.0
      %6960 = vmatpush1.msra.mxu0 %v6346
      %6961 = vmatprep.subr.mxu0 0.0
      %6962 = vmatpush1.msra.mxu0 %v6347
      %6963 = vmatprep.subr.mxu0 0.0
      %6964 = vmatpush1.msra.mxu0 0.0
      %6965 = vmatprep.subr.mxu0 0.0
      %6966 = vmatpush1.msra.mxu0 0.0
      %6967 = vmatprep.subr.mxu0 0.0
      %6968 = vmatpush1.msra.mxu0 0.0
      %6969 = vmatprep.subr.mxu0 0.0
      %6970 = vmatpush1.msra.mxu0 0.0
      %6971 = vmatprep.subr.mxu0 0.0
      %6972 = vmatpush1.msra.mxu0 0.0
      %6973 = vmatprep.subr.mxu0 0.0
      %6974 = vmatpush1.msra.mxu0 0.0
      %6975 = vmatprep.subr.mxu0 0.0
      %6976 = vmatpush1.msra.mxu0 0.0
      %6977 = vmatprep.subr.mxu0 0.0
      %6978 = vmatpush1.msra.mxu0 0.0
      %6979 = vmatprep.subr.mxu0 0.0
      %6980 = vmatpush1.msra.mxu0 0.0
      %6981 = vmatprep.subr.mxu0 0.0
      %6982 = vmatpush1.msra.mxu0 0.0
      %6983 = vmatprep.subr.mxu0 0.0
      %6984 = vmatpush1.msra.mxu0 0.0
      %6985 = vmatprep.subr.mxu0 0.0
      %6986 = vmatpush1.msra.mxu0 0.0
      %6987 = vmatprep.subr.mxu0 0.0
      %6988 = vmatpush1.msra.mxu0 0.0
      %6989 = vmatprep.subr.mxu0 0.0
      %6990 = vmatpush1.msra.mxu0 0.0
      %6991 = vmatprep.subr.mxu0 0.0
      %6992 = vmatpush1.msra.mxu0 0.0
      %6993 = vmatprep.subr.mxu0 0.0
      %6994 = vmatpush1.msra.mxu0 0.0
      %6995 = vmatprep.subr.mxu0 0.0
      %6996 = vmatpush1.msra.mxu0 0.0
      %6997 = vmatprep.subr.mxu0 0.0
      %6998 = vmatpush1.msra.mxu0 0.0
      %6999 = vmatprep.subr.mxu0 0.0
      %7000 = vmatpush1.msra.mxu0 0.0
      %7001 = vmatprep.subr.mxu0 0.0
      %7002 = vmatpush1.msra.mxu0 0.0
      %7003 = vmatprep.mubr.f32.mxu0 0.0
      %7004 = vmatmul.mubr.f32.gmra.mrb[0].mxu0 %v6916
      %v7005 = vpop.f32.mrb[0].mxu0
      %v7006 = vadd.f32 0.0, %v7005
      %v7007 = vpop.f32.mrb[0].mxu0
      %7008 = vmatprep.mubr.f32.mxu0 0.0
      %7009 = vmatmul.mubr.f32.gmra.mrb[0].mxu0 %v6919
      %v7010 = vpop.f32.mrb[0].mxu0
      %v7011 = vadd.f32 0.0, %v7010
      %v7012 = vpop.f32.mrb[0].mxu0
      %7013 = vmatprep.mubr.f32.mxu0 0.0
      %7014 = vmatmul.mubr.f32.gmra.mrb[0].mxu0 %v6922
      %v7015 = vpop.f32.mrb[0].mxu0
      %v7016 = vadd.f32 0.0, %v7015
      %v7017 = vpop.f32.mrb[0].mxu0
      %7018 = vmatprep.mubr.f32.mxu0 0.0
      %7019 = vmatmul.mubr.f32.gmra.mrb[0].mxu0 %v6925
      %v7020 = vpop.f32.mrb[0].mxu0
      %v7021 = vadd.f32 0.0, %v7020
      %v7022 = vpop.f32.mrb[0].mxu0
      %7023 = vmatprep.mubr.f32.mxu0 0.0
      %7024 = vmatmul.mubr.f32.gmra.mrb[0].mxu0 %v6928
      %v7025 = vpop.f32.mrb[0].mxu0
      %v7026 = vadd.f32 0.0, %v7025
      %v7027 = vpop.f32.mrb[0].mxu0
      %7028 = vmatprep.mubr.f32.mxu0 0.0
      %7029 = vmatmul.mubr.f32.gmra.mrb[0].mxu0 %v6931
      %v7030 = vpop.f32.mrb[0].mxu0
      %v7031 = vadd.f32 0.0, %v7030
      %v7032 = vpop.f32.mrb[0].mxu0
      %7033 = vmatprep.mubr.f32.mxu0 0.0
      %7034 = vmatmul.mubr.f32.gmra.mrb[0].mxu0 %v6934
      %v7035 = vpop.f32.mrb[0].mxu0
      %v7036 = vadd.f32 0.0, %v7035
      %v7037 = vpop.f32.mrb[0].mxu0
      %7038 = vmatprep.mubr.f32.mxu0 0.0
      %7039 = vmatmul.mubr.f32.gmra.mrb[0].mxu0 %v6937
      %v7040 = vpop.f32.mrb[0].mxu0
      %v7041 = vadd.f32 0.0, %v7040
      %v7042 = vpop.f32.mrb[0].mxu0
      %7043 = vdwg.mxu0
      %s7044 = scalar_lea.vmem %s11, 192
      %v7045 = vld [vmem:[%s7044] sm:$0xff]
      %v7046 = vld [vmem:[%s7044 + $0x8] sm:$0xff]
      %v7047 = vld [vmem:[%s7044 + $0x10] sm:$0xff]
      %v7048 = vld [vmem:[%s7044 + $0x18] sm:$0xff]
      %v7049 = vld [vmem:[%s7044 + $0x20] sm:$0xff]
      %v7050 = vld [vmem:[%s7044 + $0x28] sm:$0xff]
      %v7051 = vld [vmem:[%s7044 + $0x30] sm:$0xff]
      %v7052 = vld [vmem:[%s7044 + $0x38] sm:$0xff]
      %v7053 = vld [vmem:[%s7044 + $0x40] sm:$0xff]
      %v7054 = vld [vmem:[%s7044 + $0x48] sm:$0xff]
      %v7055 = vld [vmem:[%s7044 + $0x50] sm:$0xff]
      %v7056 = vld [vmem:[%s7044 + $0x58] sm:$0xff]
      %v7058 = vsel %vm1715, %v7006, 0
      %v7061 = vsel %vm1715, %v7011, 0
      %v7064 = vsel %vm1715, %v7016, 0
      %v7067 = vsel %vm1715, %v7021, 0
      %v7070 = vsel %vm1715, %v7026, 0
      %v7073 = vsel %vm1715, %v7031, 0
      %v7076 = vsel %vm1715, %v7036, 0
      %v7079 = vsel %vm1715, %v7041, 0
      %7081 = vmatprep.subr.mxu0 0.0
      %7082 = vmatpush1.msra.mxu0 %v7045
      %7083 = vmatprep.subr.mxu0 0.0
      %7084 = vmatpush1.msra.mxu0 %v7046
      %7085 = vmatprep.subr.mxu0 0.0
      %7086 = vmatpush1.msra.mxu0 %v7047
      %7087 = vmatprep.subr.mxu0 0.0
      %7088 = vmatpush1.msra.mxu0 %v7048
      %7089 = vmatprep.subr.mxu0 0.0
      %7090 = vmatpush1.msra.mxu0 %v7049
      %7091 = vmatprep.subr.mxu0 0.0
      %7092 = vmatpush1.msra.mxu0 %v7050
      %7093 = vmatprep.subr.mxu0 0.0
      %7094 = vmatpush1.msra.mxu0 %v7051
      %7095 = vmatprep.subr.mxu0 0.0
      %7096 = vmatpush1.msra.mxu0 %v7052
      %7097 = vmatprep.subr.mxu0 0.0
      %7098 = vmatpush1.msra.mxu0 %v7053
      %7099 = vmatprep.subr.mxu0 0.0
      %7100 = vmatpush1.msra.mxu0 %v7054
      %7101 = vmatprep.subr.mxu0 0.0
      %7102 = vmatpush1.msra.mxu0 %v7055
      %7103 = vmatprep.subr.mxu0 0.0
      %7104 = vmatpush1.msra.mxu0 %v7056
      %7105 = vmatprep.subr.mxu0 0.0
      %7106 = vmatpush1.msra.mxu0 0.0
      %7107 = vmatprep.subr.mxu0 0.0
      %7108 = vmatpush1.msra.mxu0 0.0
      %7109 = vmatprep.subr.mxu0 0.0
      %7110 = vmatpush1.msra.mxu0 0.0
      %7111 = vmatprep.subr.mxu0 0.0
      %7112 = vmatpush1.msra.mxu0 0.0
      %7113 = vmatprep.subr.mxu0 0.0
      %7114 = vmatpush1.msra.mxu0 0.0
      %7115 = vmatprep.subr.mxu0 0.0
      %7116 = vmatpush1.msra.mxu0 0.0
      %7117 = vmatprep.subr.mxu0 0.0
      %7118 = vmatpush1.msra.mxu0 0.0
      %7119 = vmatprep.subr.mxu0 0.0
      %7120 = vmatpush1.msra.mxu0 0.0
      %7121 = vmatprep.subr.mxu0 0.0
      %7122 = vmatpush1.msra.mxu0 0.0
      %7123 = vmatprep.subr.mxu0 0.0
      %7124 = vmatpush1.msra.mxu0 0.0
      %7125 = vmatprep.subr.mxu0 0.0
      %7126 = vmatpush1.msra.mxu0 0.0
      %7127 = vmatprep.subr.mxu0 0.0
      %7128 = vmatpush1.msra.mxu0 0.0
      %7129 = vmatprep.subr.mxu0 0.0
      %7130 = vmatpush1.msra.mxu0 0.0
      %7131 = vmatprep.subr.mxu0 0.0
      %7132 = vmatpush1.msra.mxu0 0.0
      %7133 = vmatprep.subr.mxu0 0.0
      %7134 = vmatpush1.msra.mxu0 0.0
      %7135 = vmatprep.subr.mxu0 0.0
      %7136 = vmatpush1.msra.mxu0 0.0
      %7137 = vmatprep.subr.mxu0 0.0
      %7138 = vmatpush1.msra.mxu0 0.0
      %7139 = vmatprep.subr.mxu0 0.0
      %7140 = vmatpush1.msra.mxu0 0.0
      %7141 = vmatprep.subr.mxu0 0.0
      %7142 = vmatpush1.msra.mxu0 0.0
      %7143 = vmatprep.subr.mxu0 0.0
      %7144 = vmatpush1.msra.mxu0 0.0
      %7145 = vmatprep.mubr.f32.mxu0 0.0
      %7146 = vmatmul.mubr.f32.gmra.mrb[0].mxu0 %v7058
      %v7147 = vpop.f32.mrb[0].mxu0
      %v7148 = vadd.f32 0.0, %v7147
      %v7149 = vpop.f32.mrb[0].mxu0
      %7150 = vmatprep.mubr.f32.mxu0 0.0
      %7151 = vmatmul.mubr.f32.gmra.mrb[0].mxu0 %v7061
      %v7152 = vpop.f32.mrb[0].mxu0
      %v7153 = vadd.f32 0.0, %v7152
      %v7154 = vpop.f32.mrb[0].mxu0
      %7155 = vmatprep.mubr.f32.mxu0 0.0
      %7156 = vmatmul.mubr.f32.gmra.mrb[0].mxu0 %v7064
      %v7157 = vpop.f32.mrb[0].mxu0
      %v7158 = vadd.f32 0.0, %v7157
      %v7159 = vpop.f32.mrb[0].mxu0
      %7160 = vmatprep.mubr.f32.mxu0 0.0
      %7161 = vmatmul.mubr.f32.gmra.mrb[0].mxu0 %v7067
      %v7162 = vpop.f32.mrb[0].mxu0
      %v7163 = vadd.f32 0.0, %v7162
      %v7164 = vpop.f32.mrb[0].mxu0
      %7165 = vmatprep.mubr.f32.mxu0 0.0
      %7166 = vmatmul.mubr.f32.gmra.mrb[0].mxu0 %v7070
      %v7167 = vpop.f32.mrb[0].mxu0
      %v7168 = vadd.f32 0.0, %v7167
      %v7169 = vpop.f32.mrb[0].mxu0
      %7170 = vmatprep.mubr.f32.mxu0 0.0
      %7171 = vmatmul.mubr.f32.gmra.mrb[0].mxu0 %v7073
      %v7172 = vpop.f32.mrb[0].mxu0
      %v7173 = vadd.f32 0.0, %v7172
      %v7174 = vpop.f32.mrb[0].mxu0
      %7175 = vmatprep.mubr.f32.mxu0 0.0
      %7176 = vmatmul.mubr.f32.gmra.mrb[0].mxu0 %v7076
      %v7177 = vpop.f32.mrb[0].mxu0
      %v7178 = vadd.f32 0.0, %v7177
      %v7179 = vpop.f32.mrb[0].mxu0
      %7180 = vmatprep.mubr.f32.mxu0 0.0
      %7181 = vmatmul.mubr.f32.gmra.mrb[0].mxu0 %v7079
      %v7182 = vpop.f32.mrb[0].mxu0
      %v7183 = vadd.f32 0.0, %v7182
      %v7184 = vpop.f32.mrb[0].mxu0
      %7185 = vdwg.mxu0
      %v7186 = vadd.f32 %v6868, %v7148
      %v7187 = vadd.f32 %v6873, %v7153
      %v7188 = vadd.f32 %v6878, %v7158
      %v7189 = vadd.f32 %v6883, %v7163
      %v7190 = vadd.f32 %v6888, %v7168
      %v7191 = vadd.f32 %v6893, %v7173
      %v7192 = vadd.f32 %v6898, %v7178
      %v7193 = vadd.f32 %v6903, %v7183
      %v7194 = vld [vmem:[%s12] sm:$0x1]
      %v7196 = vlaneseq
      %v7197 = vshrl.u32 %v7196, 7
      %v7198 = vsub.s32 0, %v7197
      %v7199 = vrot.slane %v7194, %v7198
      %v7201 = vadd.f32 %v7186, %v7199
      %v7202 = vadd.f32 %v7187, %v7199
      %v7203 = vadd.f32 %v7188, %v7199
      %v7204 = vadd.f32 %v7189, %v7199
      %v7205 = vadd.f32 %v7190, %v7199
      %v7206 = vadd.f32 %v7191, %v7199
      %v7207 = vadd.f32 %v7192, %v7199
      %v7208 = vadd.f32 %v7193, %v7199
      %v7209 = vmax.f32 %v7201, 0.0
      %v7210 = vmax.f32 %v7202, 0.0
      %v7211 = vmax.f32 %v7203, 0.0
      %v7212 = vmax.f32 %v7204, 0.0
      %v7213 = vmax.f32 %v7205, 0.0
      %v7214 = vmax.f32 %v7206, 0.0
      %v7215 = vmax.f32 %v7207, 0.0
      %v7216 = vmax.f32 %v7208, 0.0
      %v7217 = vld [vmem:[%s13] sm:$0xff]
      %v7218 = vld [vmem:[%s13 + $0x8] sm:$0xff]
      %vm7219 = vcmask 523264
      %v7221 = vsel %vm7219, %v7217, 0
      %v7224 = vsel %vm7219, %v7218, 0
      %7226 = vmatprep.subr.mxu0 0.0
      %7227 = vmatpush1.msra.mxu0 %v7209
      %7228 = vmatprep.subr.mxu0 0.0
      %7229 = vmatpush1.msra.mxu0 %v7210
      %7230 = vmatprep.subr.mxu0 0.0
      %7231 = vmatpush1.msra.mxu0 %v7211
      %7232 = vmatprep.subr.mxu0 0.0
      %7233 = vmatpush1.msra.mxu0 %v7212
      %7234 = vmatprep.subr.mxu0 0.0
      %7235 = vmatpush1.msra.mxu0 %v7213
      %7236 = vmatprep.subr.mxu0 0.0
      %7237 = vmatpush1.msra.mxu0 %v7214
      %7238 = vmatprep.subr.mxu0 0.0
      %7239 = vmatpush1.msra.mxu0 %v7215
      %7240 = vmatprep.subr.mxu0 0.0
      %7241 = vmatpush1.msra.mxu0 %v7216
      %7242 = vmatprep.subr.mxu0 0.0
      %7243 = vmatpush1.msra.mxu0 0.0
      %7244 = vmatprep.subr.mxu0 0.0
      %7245 = vmatpush1.msra.mxu0 0.0
      %7246 = vmatprep.subr.mxu0 0.0
      %7247 = vmatpush1.msra.mxu0 0.0
      %7248 = vmatprep.subr.mxu0 0.0
      %7249 = vmatpush1.msra.mxu0 0.0
      %7250 = vmatprep.subr.mxu0 0.0
      %7251 = vmatpush1.msra.mxu0 0.0
      %7252 = vmatprep.subr.mxu0 0.0
      %7253 = vmatpush1.msra.mxu0 0.0
      %7254 = vmatprep.subr.mxu0 0.0
      %7255 = vmatpush1.msra.mxu0 0.0
      %7256 = vmatprep.subr.mxu0 0.0
      %7257 = vmatpush1.msra.mxu0 0.0
      %7258 = vmatprep.subr.mxu0 0.0
      %7259 = vmatpush1.msra.mxu0 0.0
      %7260 = vmatprep.subr.mxu0 0.0
      %7261 = vmatpush1.msra.mxu0 0.0
      %7262 = vmatprep.subr.mxu0 0.0
      %7263 = vmatpush1.msra.mxu0 0.0
      %7264 = vmatprep.subr.mxu0 0.0
      %7265 = vmatpush1.msra.mxu0 0.0
      %7266 = vmatprep.subr.mxu0 0.0
      %7267 = vmatpush1.msra.mxu0 0.0
      %7268 = vmatprep.subr.mxu0 0.0
      %7269 = vmatpush1.msra.mxu0 0.0
      %7270 = vmatprep.subr.mxu0 0.0
      %7271 = vmatpush1.msra.mxu0 0.0
      %7272 = vmatprep.subr.mxu0 0.0
      %7273 = vmatpush1.msra.mxu0 0.0
      %7274 = vmatprep.subr.mxu0 0.0
      %7275 = vmatpush1.msra.mxu0 0.0
      %7276 = vmatprep.subr.mxu0 0.0
      %7277 = vmatpush1.msra.mxu0 0.0
      %7278 = vmatprep.subr.mxu0 0.0
      %7279 = vmatpush1.msra.mxu0 0.0
      %7280 = vmatprep.subr.mxu0 0.0
      %7281 = vmatpush1.msra.mxu0 0.0
      %7282 = vmatprep.subr.mxu0 0.0
      %7283 = vmatpush1.msra.mxu0 0.0
      %7284 = vmatprep.subr.mxu0 0.0
      %7285 = vmatpush1.msra.mxu0 0.0
      %7286 = vmatprep.subr.mxu0 0.0
      %7287 = vmatpush1.msra.mxu0 0.0
      %7288 = vmatprep.subr.mxu0 0.0
      %7289 = vmatpush1.msra.mxu0 0.0
      %7290 = vmatprep.mubr.f32.mxu0 0.0
      %7291 = vmatmul.mubr.f32.gmra.mrb[0].mxu0 %v7221
      %v7292 = vpop.f32.mrb[0].mxu0
      %v7293 = vadd.f32 0.0, %v7292
      %v7294 = vpop.f32.mrb[0].mxu0
      %7295 = vmatprep.mubr.f32.mxu0 0.0
      %7296 = vmatmul.mubr.f32.gmra.mrb[0].mxu0 %v7224
      %v7297 = vpop.f32.mrb[0].mxu0
      %v7298 = vadd.f32 0.0, %v7297
      %v7299 = vpop.f32.mrb[0].mxu0
      %7300 = vdwg.mxu0
      %v7301 = vld [vmem:[%s14] sm:$0xff]
      %v7302 = vld [vmem:[%s14 + $0x8] sm:$0xff]
      %v7303 = vld [vmem:[%s14 + $0x10] sm:$0xff]
      %v7304 = vld [vmem:[%s14 + $0x18] sm:$0xff]
      %v7305 = vld [vmem:[%s14 + $0x20] sm:$0xff]
      %v7306 = vld [vmem:[%s14 + $0x28] sm:$0xff]
      %v7307 = vld [vmem:[%s14 + $0x30] sm:$0xff]
      %v7308 = vld [vmem:[%s14 + $0x38] sm:$0xff]
      %v7309 = vld [vmem:[%s15] sm:$0x1]
      %v7311 = vlaneseq
      %v7312 = vshrl.u32 %v7311, 7
      %v7313 = vsub.s32 0, %v7312
      %v7314 = vrot.slane %v7309, %v7313
      %v7317 = vsel %vm7219, %v7293, 0
      %v7320 = vsel %vm7219, %v7298, 0
      %7322 = vmatprep.subr.mxu0 0.0
      %7323 = vmatpush1.msra.mxu0 %v7301
      %7324 = vmatprep.subr.mxu0 0.0
      %7325 = vmatpush1.msra.mxu0 %v7302
      %7326 = vmatprep.subr.mxu0 0.0
      %7327 = vmatpush1.msra.mxu0 %v7303
      %7328 = vmatprep.subr.mxu0 0.0
      %7329 = vmatpush1.msra.mxu0 %v7304
      %7330 = vmatprep.subr.mxu0 0.0
      %7331 = vmatpush1.msra.mxu0 %v7305
      %7332 = vmatprep.subr.mxu0 0.0
      %7333 = vmatpush1.msra.mxu0 %v7306
      %7334 = vmatprep.subr.mxu0 0.0
      %7335 = vmatpush1.msra.mxu0 %v7307
      %7336 = vmatprep.subr.mxu0 0.0
      %7337 = vmatpush1.msra.mxu0 %v7308
      %7338 = vmatprep.subr.mxu0 0.0
      %7339 = vmatpush1.msra.mxu0 0.0
      %7340 = vmatprep.subr.mxu0 0.0
      %7341 = vmatpush1.msra.mxu0 0.0
      %7342 = vmatprep.subr.mxu0 0.0
      %7343 = vmatpush1.msra.mxu0 0.0
      %7344 = vmatprep.subr.mxu0 0.0
      %7345 = vmatpush1.msra.mxu0 0.0
      %7346 = vmatprep.subr.mxu0 0.0
      %7347 = vmatpush1.msra.mxu0 0.0
      %7348 = vmatprep.subr.mxu0 0.0
      %7349 = vmatpush1.msra.mxu0 0.0
      %7350 = vmatprep.subr.mxu0 0.0
      %7351 = vmatpush1.msra.mxu0 0.0
      %7352 = vmatprep.subr.mxu0 0.0
      %7353 = vmatpush1.msra.mxu0 0.0
      %7354 = vmatprep.subr.mxu0 0.0
      %7355 = vmatpush1.msra.mxu0 0.0
      %7356 = vmatprep.subr.mxu0 0.0
      %7357 = vmatpush1.msra.mxu0 0.0
      %7358 = vmatprep.subr.mxu0 0.0
      %7359 = vmatpush1.msra.mxu0 0.0
      %7360 = vmatprep.subr.mxu0 0.0
      %7361 = vmatpush1.msra.mxu0 0.0
      %7362 = vmatprep.subr.mxu0 0.0
      %7363 = vmatpush1.msra.mxu0 0.0
      %7364 = vmatprep.subr.mxu0 0.0
      %7365 = vmatpush1.msra.mxu0 0.0
      %7366 = vmatprep.subr.mxu0 0.0
      %7367 = vmatpush1.msra.mxu0 0.0
      %7368 = vmatprep.subr.mxu0 0.0
      %7369 = vmatpush1.msra.mxu0 0.0
      %7370 = vmatprep.subr.mxu0 0.0
      %7371 = vmatpush1.msra.mxu0 0.0
      %7372 = vmatprep.subr.mxu0 0.0
      %7373 = vmatpush1.msra.mxu0 0.0
      %7374 = vmatprep.subr.mxu0 0.0
      %7375 = vmatpush1.msra.mxu0 0.0
      %7376 = vmatprep.subr.mxu0 0.0
      %7377 = vmatpush1.msra.mxu0 0.0
      %7378 = vmatprep.subr.mxu0 0.0
      %7379 = vmatpush1.msra.mxu0 0.0
      %7380 = vmatprep.subr.mxu0 0.0
      %7381 = vmatpush1.msra.mxu0 0.0
      %7382 = vmatprep.subr.mxu0 0.0
      %7383 = vmatpush1.msra.mxu0 0.0
      %7384 = vmatprep.subr.mxu0 0.0
      %7385 = vmatpush1.msra.mxu0 0.0
      %7386 = vmatprep.mubr.f32.mxu0 0.0
      %7387 = vmatmul.mubr.f32.gmra.mrb[0].mxu0 %v7317
      %v7388 = vpop.f32.mrb[0].mxu0
      %v7389 = vadd.f32 %v7314, %v7388
      %v7390 = vpop.f32.mrb[0].mxu0
      %7391 = vmatprep.mubr.f32.mxu0 0.0
      %7392 = vmatmul.mubr.f32.gmra.mrb[0].mxu0 %v7320
      %v7393 = vpop.f32.mrb[0].mxu0
      %v7394 = vadd.f32 %v7314, %v7393
      %v7395 = vpop.f32.mrb[0].mxu0
      %7396 = vdwg.mxu0
      %vm7397 = vcmask 80896
      %7398 = vst.msk [vmem:[%s523] sm:$0xff] %vm7397, %v7389
      %7399 = vst.msk [vmem:[%s523 + $0x8] sm:$0xff] %vm7397, %v7394
      %s7400 = smul.u32 2, %s27
      %p7401 = scmp.lt.s32.totalorder %s7400, 3
      %s7402 = scalar_select %p7401, %s7400, 3
      %s7403 = smul.addr %s7402, 8
      %s7404 = scalar_lea.vmem %s16, %s7403
      // Predicated region
      $region85: #{model_forward.1} parent=83 // pred_check
        %p7405 = pneg %p386
      $region86: #{model_forward.1} parent=83 // pred_check_branch
        %7407 = sbr.rel (%p7405) target = $region88
      $region87: #{model_forward.1} parent=83 // pred_region
        %s7408 = smul.u32 2, %s27
      $region88: #{model_forward.1} parent=83 // pred_fallthru
        _
    $region84: #{model_forward.1} parent=5 // pred_fallthru
      _
    %p7409 = scmp.le.s32.totalorder 2, %s22
    // Predicated region
    $region89: #{model_forward.1} parent=5 // pred_check
      %p7410 = pneg %p7409
    $region90: #{model_forward.1} parent=5 // pred_check_branch
      %7412 = sbr.rel (%p7410) target = $region92
    $region91: #{model_forward.1} parent=5 // pred_region
      %s7413 = ssub.s32 %s22, 2
      // Predicated region
      $region93: #{model_forward.1} parent=91 // pred_check
        %p7414 = pneg %p392
      $region94: #{model_forward.1} parent=91 // pred_check_branch
        %7416 = sbr.rel (%p7414) target = $region96
      $region95: #{model_forward.1} parent=91 // pred_region
        %s7417 = smul.u32 2, %s28
        %p7418 = scmp.lt.s32.totalorder %s7417, 3
        %s7419 = scalar_select %p7418, %s7417, 3
        %s7420 = smul.addr %s7419, 8
        %s7421 = scalar_lea.vmem %s16, %s7420
      $region96: #{model_forward.1} parent=91 // pred_fallthru
        _
    $region92: #{model_forward.1} parent=5 // pred_fallthru
      _
  $region6: #{model_forward.1} parent=0 // loop_footer
    %s26 = sadd.s32 1, %s22
  $region7: #{model_forward.1} parent=0 // loop_footer_branch
    %21 = sbr.rel target = $region3
  $region8: #{model_forward.1} parent=0 // loop_exit
    _

</llo_original>
